<compile_context>
chip_gen: v5e
topology: v5e:2x2
jax: 0.10.0
libtpu: 0.0.40
codegen_flags: <defaults>
</compile_context>

<pallas_src>
import functools
import numpy as np
import jax
import jax.numpy as jnp
from jax.experimental import pallas as pl
from jax.experimental.pallas import tpu as pltpu

KH = KW = 5                                   # all convs are 5x5, VALID (nn.Conv2d default)
CONV_CHANNELS = [(1, 8), (8, 16), (16, 32), (32, 64)]
VMEM_LIMIT = 32 * 1024 * 1024                 # ~7 MiB actually used; headroom on v7x's 64 MiB


def _ceil2(v):
    return (v + 1) // 2


def _round8(v):
    return ((v + 7) // 8) * 8


# ---------------- static geometry plan (Python ints only) ----------------

def make_plan(H, W):
    """Geometry chain.  Layer 1 writes the layer-2 slab directly; stages describe layers 2..4."""
    P, Q = (H - 4) // 2, (W - 4) // 2           # valid pooled map after layer 1
    HS, WS = _ceil2(P), _ceil2(Q)               # super-pixel grid of the layer-2 slab
    plan = {"HS2": HS, "WS2": WS}
    stages = []
    for li in range(1, 4):                      # conv layers 2, 3, 4
        cin, cout = CONV_CHANNELS[li]
        Pn, Qn = (P - 4) // 2, (Q - 4) // 2     # this layer's valid pooled output
        if li < 3:
            HSn, WSn = _ceil2(Pn), _ceil2(Qn)   # grid of the NEXT layer's slab
            # MF must cover all valid outputs AND every row the re-tile step reads.
            MF = _round8(max(Pn * WS, (2 * HSn - 1) * WS + 2 * WSn))
        else:
            HSn = WSn = 0
            MF = Pn * WS
        Ls = _round8(max(HS * WS, MF + 2 * WS + 2))   # slab rows incl. tap-read overrun
        stages.append(dict(cin=cin, cout=cout, WS=WS, Ls=Ls, MF=MF,
                           P=Pn, Q=Qn, HS_next=HSn, WS_next=WSn))
        P, Q, HS, WS = Pn, Qn, HSn, WSn
    plan["stages"] = stages
    plan["final_P"], plan["final_Q"] = stages[-1]["P"], stages[-1]["Q"]
    return plan


# ---------------- host-side input prep (one small XLA gather, once per call) ----------------

def build_l1_patch(img, HS2, WS2):
    """img (N, H, W) -> (N, HS2*WS2, 64): row hp*WS2 + wp holds the 8x8 pixel block at (4hp, 4wp),
    flattened in (e, f) order.  Feeds layer 1's single GEMM."""
    N, H, W = img.shape
    Hn, Wn = 4 * (HS2 - 1) + 8, 4 * (WS2 - 1) + 8
    if Hn > H or Wn > W:
        img = jnp.pad(img, ((0, 0), (0, max(0, Hn - H)), (0, max(0, Wn - W))))
    parts = []
    for e in range(8):
        for f in range(8):
            sl = img[:, e:e + 4 * (HS2 - 1) + 1:4, f:f + 4 * (WS2 - 1) + 1:4]   # (N, HS2, WS2)
            parts.append(sl.reshape(N, HS2 * WS2, 1))
    return jnp.concatenate(parts, axis=-1)                                       # (N, HS2*WS2, 64)


# ---------------- weight packing (host-side, once) ----------------

def pack_conv_first(w, b):
    """(5,5,1,8) HWIO -> (64, 128).  Rows = 8x8 block pixel (e,f); cols = pool member (r,dw) x
    slab position (dr,dc) x 8 channels.  bias+ReLU+member-max of the GEMM output IS the layer-2
    super-pixel slab content."""
    w = np.asarray(w, np.float32)
    b = np.asarray(b, np.float32).reshape(-1)
    cout = w.shape[3]
    Wp = np.zeros((64, 128), np.float32)
    Bp = np.zeros((1, 128), np.float32)
    for r in range(2):
        for dw in range(2):
            for dr in range(2):
                for dc in range(2):
                    col0 = (r * 2 + dw) * 4 * cout + (dr * 2 + dc) * cout
                    Bp[0, col0:col0 + cout] = b
                    for e in range(8):
                        for f in range(8):
                            ki = e - 2 * dr - r
                            kj = f - 2 * dc - dw
                            if 0 <= ki < KH and 0 <= kj < KW:
                                Wp[e * 8 + f, col0:col0 + cout] = w[ki, kj, 0]
    return jnp.asarray(Wp), jnp.asarray(Bp)


def pack_conv_std(w, b):
    """(5,5,cin,cout) HWIO -> (36*cin, max(128, 4*cout)).  Rows = 3x3 super-pixel tap (a,bb) x
    (dr,dc) x cin; cols = 4 pool members (r,dw) x cout (zero-padded to >=128 lanes)."""
    w = np.asarray(w, np.float32)
    b = np.asarray(b, np.float32).reshape(-1)
    kh, kw, cin, cout = w.shape
    npack = max(128, 4 * cout)
    Wp = np.zeros((9 * 4 * cin, npack), np.float32)
    Bp = np.zeros((1, npack), np.float32)
    for r in range(2):
        for dw in range(2):
            col0 = (r * 2 + dw) * cout
            Bp[0, col0:col0 + cout] = b
            for a in range(3):
                for bb in range(3):
                    for dr in range(2):
                        for dc in range(2):
                            ki = 2 * a + dr - r
                            kj = 2 * bb + dc - dw
                            if 0 <= ki < kh and 0 <= kj < kw:
                                row0 = (a * 3 + bb) * 4 * cin + (dr * 2 + dc) * cin
                                Wp[row0:row0 + cin, col0:col0 + cout] = w[ki, kj]
    return jnp.asarray(Wp), jnp.asarray(Bp)


def pack_params(params, n_classes):
    assert n_classes <= 128
    packed = {"w1": pack_conv_first(*params["conv"][0]),
              "conv": [pack_conv_std(w, b) for (w, b) in params["conv"][1:]]}
    (wl1, bl1), (wl2, bl2), (wl3, bl3) = params["l1"], params["l2"], params["l3"]
    w3p = np.zeros((np.asarray(wl3).shape[0], 128), np.float32)
    w3p[:, :n_classes] = np.asarray(wl3, np.float32)
    b3p = np.zeros((1, 128), np.float32)
    b3p[0, :n_classes] = np.asarray(bl3, np.float32).reshape(-1)
    packed["mlp"] = (jnp.asarray(wl1, jnp.float32), jnp.asarray(bl1, jnp.float32).reshape(1, -1),
                     jnp.asarray(wl2, jnp.float32), jnp.asarray(bl2, jnp.float32).reshape(1, -1),
                     jnp.asarray(w3p), jnp.asarray(b3p))
    return packed


# ---------------- in-kernel building blocks ----------------

def _conv_pool_taps(slab_ref, w_ref, b_ref, *, WS, MF, cin, cout):
    """9 shifted-tap matmuls accumulated on the MXU (no im2col scratch, no masked patch stores),
    then bias + ReLU + 4-way pool-member max.  Returns (MF, cout)."""
    c4 = 4 * cin
    z = None
    for a in range(3):
        for bb in range(3):
            k = a * 3 + bb
            tap = slab_ref[pl.ds(a * WS + bb, MF), :]                       # (MF, 4*cin)
            part = jnp.dot(tap, w_ref[pl.ds(k * c4, c4), :],
                           preferred_element_type=jnp.float32)
            z = part if z is None else z + part
    z = jnp.maximum(z + b_ref[...], 0.0)
    return jnp.maximum(jnp.maximum(z[:, 0:cout], z[:, cout:2 * cout]),
                       jnp.maximum(z[:, 2 * cout:3 * cout], z[:, 3 * cout:4 * cout]))


def _retile(pooled_ref, slab_ref, *, WS_in, WS_out, HS_out, cout):
    """Pooled map (row-major over the previous super-pixel grid) -> next layer's 2x2 super-pixel
    slab.  A few tiny stride-2 reads per output super-pixel row; everything stays in VMEM."""
    for hp in range(HS_out):
        for dr in range(2):
            for dc in range(2):
                start = (2 * hp + dr) * WS_in + dc
                col0 = (dr * 2 + dc) * cout
                slab_ref[pl.ds(hp * WS_out, WS_out), col0:col0 + cout] = \
                    pooled_ref[pl.ds(start, WS_out, stride=2), :]


# ---------------- fused forward pass ----------------

def depth_maps_classifier_forward(x_nchw, packed, n_classes):
    N, _, H, W = x_nchw.shape
    plan = make_plan(H, W)
    if plan["final_P"] != 1 or plan["final_Q"] != 1:
        # TODO(synk): general NCHW flatten for final maps larger than 1x1 (not needed for 84x84).
        raise NotImplementedError("fused kernel assumes the final conv feature map is 1x1")
    st2, st3, st4 = plan["stages"]
    s2_rows = plan["HS2"] * plan["WS2"]
    g1 = 4 * CONV_CHANNELS[0][1]                                   # layer-1 member-group width

    patch1 = build_l1_patch(x_nchw[:, 0], plan["HS2"], plan["WS2"])
    w1p, b1p = packed["w1"]
    (w2p, b2p), (w3p, b3p), (w4p, b4p) = packed["conv"]
    wl1, bl1, wl2, bl2, wl3, bl3 = packed["mlp"]

    def kernel(p1_ref, w1_ref, b1_ref, w2_ref, b2_ref, w3_ref, b3_ref, w4_ref, b4_ref,
               wl1_ref, bl1_ref, wl2_ref, bl2_ref, wl3_ref, bl3_ref, out_ref,
               slab2, pooled2, slab3, pooled3, slab4):
        # Defensive: rows that only garbage outputs read must still be finite.
        slab2[...] = jnp.zeros_like(slab2)
        slab3[...] = jnp.zeros_like(slab3)
        slab4[...] = jnp.zeros_like(slab4)

        # ---- layer 1: one GEMM; member-max of its output IS the layer-2 slab content ----
        z = jnp.dot(p1_ref[0], w1_ref[...], preferred_element_type=jnp.float32) + b1_ref[...]
        z = jnp.maximum(z, 0.0)
        slab2[pl.ds(0, s2_rows), :] = jnp.maximum(
            jnp.maximum(z[:, 0:g1], z[:, g1:2 * g1]),
            jnp.maximum(z[:, 2 * g1:3 * g1], z[:, 3 * g1:4 * g1]))

        # ---- layer 2 ----
        pooled2[...] = _conv_pool_taps(slab2, w2_ref, b2_ref, WS=st2["WS"], MF=st2["MF"],
                                       cin=st2["cin"], cout=st2["cout"])
        _retile(pooled2, slab3, WS_in=st2["WS"], WS_out=st2["WS_next"],
                HS_out=st2["HS_next"], cout=st2["cout"])

        # ---- layer 3 ----
        pooled3[...] = _conv_pool_taps(slab3, w3_ref, b3_ref, WS=st3["WS"], MF=st3["MF"],
                                       cin=st3["cin"], cout=st3["cout"])
        _retile(pooled3, slab4, WS_in=st3["WS"], WS_out=st3["WS_next"],
                HS_out=st3["HS_next"], cout=st3["cout"])

        # ---- layer 4 (final 1x1 map) + fused 3-layer MLP ----
        p4 = _conv_pool_taps(slab4, w4_ref, b4_ref, WS=st4["WS"], MF=st4["MF"],
                             cin=st4["cin"], cout=st4["cout"])
        feat = p4[0:1, :]                                          # the single valid pixel -> (1, 64)
        h = jnp.dot(feat, wl1_ref[...], preferred_element_type=jnp.float32) + bl1_ref[...]
        h = jnp.dot(jnp.maximum(h, 0.0), wl2_ref[...],
                    preferred_element_type=jnp.float32) + bl2_ref[...]
        h = jnp.dot(jnp.maximum(h, 0.0), wl3_ref[...],
                    preferred_element_type=jnp.float32) + bl3_ref[...]
        out_ref[0] = h

    def _const_spec(arr):
        idx = (0,) * arr.ndim
        return pl.BlockSpec(arr.shape, lambda n, _i=idx: _i)       # weights stay resident in VMEM

    out = pl.pallas_call(
        kernel,
        out_shape=jax.ShapeDtypeStruct((N, 1, 128), jnp.float32),
        grid=(N,),
        in_specs=[pl.BlockSpec((1,) + patch1.shape[1:], lambda n: (n, 0, 0))]
                 + [_const_spec(a) for a in (w1p, b1p, w2p, b2p, w3p, b3p, w4p, b4p,
                                             wl1, bl1, wl2, bl2, wl3, bl3)],
        out_specs=pl.BlockSpec((1, 1, 128), lambda n: (n, 0, 0)),
        scratch_shapes=[
            pltpu.VMEM((st2["Ls"], 4 * st2["cin"]), jnp.float32),   # slab feeding layer 2
            pltpu.VMEM((st2["MF"], st2["cout"]), jnp.float32),      # pooled output of layer 2
            pltpu.VMEM((st3["Ls"], 4 * st3["cin"]), jnp.float32),   # slab feeding layer 3
            pltpu.VMEM((st3["MF"], st3["cout"]), jnp.float32),      # pooled output of layer 3
            pltpu.VMEM((st4["Ls"], 4 * st4["cin"]), jnp.float32),   # slab feeding layer 4
        ],
        compiler_params=pltpu.CompilerParams(dimension_semantics=("parallel",),
                                             vmem_limit_bytes=VMEM_LIMIT),
    )(patch1, w1p, b1p, w2p, b2p, w3p, b3p, w4p, b4p, wl1, bl1, wl2, bl2, wl3, bl3)
    return out[:, 0, :n_classes]


# ---------------- deterministic parameter init ----------------

def init_params(key, n_classes, depth_dims):
    params = {"conv": []}
    for cin, cout in CONV_CHANNELS:
        key, k1, k2 = jax.random.split(key, 3)
        w = jax.random.normal(k1, (KH, KW, cin, cout), jnp.float32) / np.sqrt(KH * KW * cin)
        b = 0.1 * jax.random.normal(k2, (1, cout), jnp.float32)
        params["conv"].append((w, b))
    h, w_ = depth_dims
    for _ in range(4):                       # 4 x (5x5 valid conv + 2x2 pool)
        h, w_ = (h - 4) // 2, (w_ - 4) // 2
    feat = 64 * h * w_
    dims = [(feat, 256), (256, 256), (256, n_classes)]
    for name, (din, dout) in zip(("l1", "l2", "l3"), dims):
        key, k1, k2 = jax.random.split(key, 3)
        wl = jax.random.normal(k1, (din, dout), jnp.float32) / np.sqrt(din)
        bl = 0.1 * jax.random.normal(k2, (1, dout), jnp.float32)
        params[name] = (wl, bl)
    return params


# ---------------- pure-JAX reference for validation ----------------

def reference_forward(x_nchw, params):
    y = jnp.transpose(x_nchw, (0, 2, 3, 1))
    for w, b in params["conv"]:
        y = jax.lax.conv_general_dilated(
            y, w, window_strides=(1, 1), padding="VALID",
            dimension_numbers=("NHWC", "HWIO", "NHWC"))
        y = jnp.maximum(y + b.reshape(1, 1, 1, -1), 0.0)
        y = jax.lax.reduce_window(y, -jnp.inf, jax.lax.max,
                                  (1, 2, 2, 1), (1, 2, 2, 1), "VALID")
    f = jnp.transpose(y, (0, 3, 1, 2)).reshape(y.shape[0], -1)      # PyTorch NCHW flatten order
    (w1, b1), (w2, b2), (w3, b3) = params["l1"], params["l2"], params["l3"]
    z1 = f @ w1 + b1
    z2 = jnp.maximum(z1, 0.0) @ w2 + b2
    return jnp.maximum(z2, 0.0) @ w3 + b3


if __name__ == "__main__":
    n_classes = 10
    depth_dims = (84, 84)   # smallest convenient size surviving 4 x (conv5 + pool2) -> 1x1
    batch = 2

    key = jax.random.PRNGKey(0)
    key, kx = jax.random.split(key)
    x = jax.random.uniform(kx, (batch, 1, depth_dims[0], depth_dims[1]), jnp.float32)
    params = init_params(key, n_classes, depth_dims)
    packed = pack_params(params, n_classes)

    fwd = jax.jit(functools.partial(depth_maps_classifier_forward, n_classes=n_classes))
    out = jax.block_until_ready(fwd(x, packed))

    ref = jax.block_until_ready(reference_forward(x, params))
    np.testing.assert_allclose(np.asarray(out), np.asarray(ref), rtol=2e-3, atol=2e-3)
    assert out.shape == (batch, n_classes)
    print("KERNEL_OK")
</pallas_src>

<mosaic_0001>
module attributes {stable_mosaic.version = 11 : i64} {
  func.func @kernel(%arg0: i32, %arg1: memref<1x400x64xf32, #tpu.memory_space<vmem>>, %arg2: memref<64x128xf32, #tpu.memory_space<vmem>>, %arg3: memref<1x128xf32, #tpu.memory_space<vmem>>, %arg4: memref<288x128xf32, #tpu.memory_space<vmem>>, %arg5: memref<1x128xf32, #tpu.memory_space<vmem>>, %arg6: memref<576x128xf32, #tpu.memory_space<vmem>>, %arg7: memref<1x128xf32, #tpu.memory_space<vmem>>, %arg8: memref<1152x256xf32, #tpu.memory_space<vmem>>, %arg9: memref<1x256xf32, #tpu.memory_space<vmem>>, %arg10: memref<64x256xf32, #tpu.memory_space<vmem>>, %arg11: memref<1x256xf32, #tpu.memory_space<vmem>>, %arg12: memref<256x256xf32, #tpu.memory_space<vmem>>, %arg13: memref<1x256xf32, #tpu.memory_space<vmem>>, %arg14: memref<256x128xf32, #tpu.memory_space<vmem>>, %arg15: memref<1x128xf32, #tpu.memory_space<vmem>>, %arg16: memref<1x1x128xf32, #tpu.memory_space<vmem>>, %arg17: memref<408x32xf32, #tpu.memory_space<vmem>>, %arg18: memref<360x16xf32, #tpu.memory_space<vmem>>, %arg19: memref<96x64xf32, #tpu.memory_space<vmem>>, %arg20: memref<72x32xf32, #tpu.memory_space<vmem>>, %arg21: memref<16x128xf32, #tpu.memory_space<vmem>>) attributes {dimension_semantics = [#tpu.dimension_semantics<parallel>], iteration_bounds = array<i64: 2>, scalar_prefetch = 0 : i64, scratch_operands = 5 : i64, tpu.core_type = #tpu.core_type<tc>, window_params = [{transform_indices = @transform_0, window_bounds = array<i64: 1, 400, 64>}, {pipeline_mode = #tpu.pipeline_mode<synchronous>, transform_indices = @transform_1, window_bounds = array<i64: 64, 128>}, {pipeline_mode = #tpu.pipeline_mode<synchronous>, transform_indices = @transform_2, window_bounds = array<i64: 1, 128>}, {pipeline_mode = #tpu.pipeline_mode<synchronous>, transform_indices = @transform_3, window_bounds = array<i64: 288, 128>}, {pipeline_mode = #tpu.pipeline_mode<synchronous>, transform_indices = @transform_4, window_bounds = array<i64: 1, 128>}, {pipeline_mode = #tpu.pipeline_mode<synchronous>, transform_indices = @transform_5, window_bounds = array<i64: 576, 128>}, {pipeline_mode = #tpu.pipeline_mode<synchronous>, transform_indices = @transform_6, window_bounds = array<i64: 1, 128>}, {pipeline_mode = #tpu.pipeline_mode<synchronous>, transform_indices = @transform_7, window_bounds = array<i64: 1152, 256>}, {pipeline_mode = #tpu.pipeline_mode<synchronous>, transform_indices = @transform_8, window_bounds = array<i64: 1, 256>}, {pipeline_mode = #tpu.pipeline_mode<synchronous>, transform_indices = @transform_9, window_bounds = array<i64: 64, 256>}, {pipeline_mode = #tpu.pipeline_mode<synchronous>, transform_indices = @transform_10, window_bounds = array<i64: 1, 256>}, {pipeline_mode = #tpu.pipeline_mode<synchronous>, transform_indices = @transform_11, window_bounds = array<i64: 256, 256>}, {pipeline_mode = #tpu.pipeline_mode<synchronous>, transform_indices = @transform_12, window_bounds = array<i64: 1, 256>}, {pipeline_mode = #tpu.pipeline_mode<synchronous>, transform_indices = @transform_13, window_bounds = array<i64: 256, 128>}, {pipeline_mode = #tpu.pipeline_mode<synchronous>, transform_indices = @transform_14, window_bounds = array<i64: 1, 128>}, {transform_indices = @transform_15, window_bounds = array<i64: 1, 1, 128>}]} {
    %cst = arith.constant 0.000000e+00 : f32
    %0 = vector.broadcast %cst : f32 to vector<408x32xf32>
    %c0 = arith.constant 0 : index
    %c0_0 = arith.constant 0 : index
    %1 = vector.load %arg17[%c0, %c0_0] : memref<408x32xf32, #tpu.memory_space<vmem>>, vector<408x32xf32>
    tpu.vector_store %arg17[%c0, %c0_0], %0 {strides = array<i32>} : memref<408x32xf32, #tpu.memory_space<vmem>>, vector<408x32xf32>,
    %cst_1 = arith.constant 0.000000e+00 : f32
    %2 = vector.broadcast %cst_1 : f32 to vector<96x64xf32>
    %c0_2 = arith.constant 0 : index
    %c0_3 = arith.constant 0 : index
    %3 = vector.load %arg19[%c0_2, %c0_3] : memref<96x64xf32, #tpu.memory_space<vmem>>, vector<96x64xf32>
    tpu.vector_store %arg19[%c0_2, %c0_3], %2 {strides = array<i32>} : memref<96x64xf32, #tpu.memory_space<vmem>>, vector<96x64xf32>,
    %cst_4 = arith.constant 0.000000e+00 : f32
    %4 = vector.broadcast %cst_4 : f32 to vector<16x128xf32>
    %c0_5 = arith.constant 0 : index
    %c0_6 = arith.constant 0 : index
    %5 = vector.load %arg21[%c0_5, %c0_6] : memref<16x128xf32, #tpu.memory_space<vmem>>, vector<16x128xf32>
    tpu.vector_store %arg21[%c0_5, %c0_6], %4 {strides = array<i32>} : memref<16x128xf32, #tpu.memory_space<vmem>>, vector<16x128xf32>,
    %c0_7 = arith.constant 0 : index
    %c0_8 = arith.constant 0 : index
    %c0_9 = arith.constant 0 : index
    %6 = vector.load %arg1[%c0_7, %c0_8, %c0_9] : memref<1x400x64xf32, #tpu.memory_space<vmem>>, vector<1x400x64xf32>
    %7 = vector.shape_cast %6 : vector<1x400x64xf32> to vector<400x64xf32>
    %c0_10 = arith.constant 0 : index
    %c0_11 = arith.constant 0 : index
    %8 = vector.load %arg2[%c0_10, %c0_11] : memref<64x128xf32, #tpu.memory_space<vmem>>, vector<64x128xf32>
    %cst_12 = arith.constant dense<0.000000e+00> : vector<400x128xf32>
    %9 = tpu.matmul %7, %8, %cst_12 {dimension_numbers = #tpu.dot_dimension_numbers<[1], [0], [0], [1], [0, 0, 1, 1], [], []>} : vector<400x64xf32>, vector<64x128xf32>, vector<400x128xf32> -> vector<400x128xf32>
    %c0_13 = arith.constant 0 : index
    %c0_14 = arith.constant 0 : index
    %10 = vector.load %arg3[%c0_13, %c0_14] : memref<1x128xf32, #tpu.memory_space<vmem>>, vector<1x128xf32>
    %11 = vector.broadcast %10 : vector<1x128xf32> to vector<400x128xf32>
    %12 = arith.addf %9, %11 : vector<400x128xf32>
    %cst_15 = arith.constant 0.000000e+00 : f32
    %13 = vector.broadcast %cst_15 : f32 to vector<400x128xf32>
    %14 = arith.maximumf %12, %13 : vector<400x128xf32>
    %15 = vector.extract_strided_slice %14 {offsets = [0, 0], sizes = [400, 32], strides = [1, 1]} : vector<400x128xf32> to vector<400x32xf32>
    %16 = vector.extract_strided_slice %14 {offsets = [0, 32], sizes = [400, 32], strides = [1, 1]} : vector<400x128xf32> to vector<400x32xf32>
    %17 = arith.maximumf %15, %16 : vector<400x32xf32>
    %18 = vector.extract_strided_slice %14 {offsets = [0, 64], sizes = [400, 32], strides = [1, 1]} : vector<400x128xf32> to vector<400x32xf32>
    %19 = vector.extract_strided_slice %14 {offsets = [0, 96], sizes = [400, 32], strides = [1, 1]} : vector<400x128xf32> to vector<400x32xf32>
    %20 = arith.maximumf %18, %19 : vector<400x32xf32>
    %21 = arith.maximumf %17, %20 : vector<400x32xf32>
    %c0_16 = arith.constant 0 : index
    %c0_17 = arith.constant 0 : index
    %22 = vector.load %arg17[%c0_16, %c0_17] : memref<408x32xf32, #tpu.memory_space<vmem>>, vector<400x32xf32>
    tpu.vector_store %arg17[%c0_16, %c0_17], %21 {strides = array<i32>} : memref<408x32xf32, #tpu.memory_space<vmem>>, vector<400x32xf32>,
    %c0_18 = arith.constant 0 : index
    %c0_19 = arith.constant 0 : index
    %23 = vector.load %arg17[%c0_18, %c0_19] : memref<408x32xf32, #tpu.memory_space<vmem>>, vector<360x32xf32>
    %c0_20 = arith.constant 0 : index
    %c0_21 = arith.constant 0 : index
    %24 = vector.load %arg4[%c0_20, %c0_21] : memref<288x128xf32, #tpu.memory_space<vmem>>, vector<32x128xf32>
    %cst_22 = arith.constant dense<0.000000e+00> : vector<360x128xf32>
    %25 = tpu.matmul %23, %24, %cst_22 {dimension_numbers = #tpu.dot_dimension_numbers<[1], [0], [0], [1], [0, 0, 1, 1], [], []>} : vector<360x32xf32>, vector<32x128xf32>, vector<360x128xf32> -> vector<360x128xf32>
    %c1 = arith.constant 1 : index
    %c0_23 = arith.constant 0 : index
    %26 = vector.load %arg17[%c1, %c0_23] : memref<408x32xf32, #tpu.memory_space<vmem>>, vector<360x32xf32>
    %c32 = arith.constant 32 : index
    %c0_24 = arith.constant 0 : index
    %27 = vector.load %arg4[%c32, %c0_24] : memref<288x128xf32, #tpu.memory_space<vmem>>, vector<32x128xf32>
    %cst_25 = arith.constant dense<0.000000e+00> : vector<360x128xf32>
    %28 = tpu.matmul %26, %27, %cst_25 {dimension_numbers = #tpu.dot_dimension_numbers<[1], [0], [0], [1], [0, 0, 1, 1], [], []>} : vector<360x32xf32>, vector<32x128xf32>, vector<360x128xf32> -> vector<360x128xf32>
    %29 = arith.addf %25, %28 : vector<360x128xf32>
    %c2 = arith.constant 2 : index
    %c0_26 = arith.constant 0 : index
    %30 = vector.load %arg17[%c2, %c0_26] : memref<408x32xf32, #tpu.memory_space<vmem>>, vector<360x32xf32>
    %c64 = arith.constant 64 : index
    %c0_27 = arith.constant 0 : index
    %31 = vector.load %arg4[%c64, %c0_27] : memref<288x128xf32, #tpu.memory_space<vmem>>, vector<32x128xf32>
    %cst_28 = arith.constant dense<0.000000e+00> : vector<360x128xf32>
    %32 = tpu.matmul %30, %31, %cst_28 {dimension_numbers = #tpu.dot_dimension_numbers<[1], [0], [0], [1], [0, 0, 1, 1], [], []>} : vector<360x32xf32>, vector<32x128xf32>, vector<360x128xf32> -> vector<360x128xf32>
    %33 = arith.addf %29, %32 : vector<360x128xf32>
    %c20 = arith.constant 20 : index
    %c0_29 = arith.constant 0 : index
    %34 = vector.load %arg17[%c20, %c0_29] : memref<408x32xf32, #tpu.memory_space<vmem>>, vector<360x32xf32>
    %c96 = arith.constant 96 : index
    %c0_30 = arith.constant 0 : index
    %35 = vector.load %arg4[%c96, %c0_30] : memref<288x128xf32, #tpu.memory_space<vmem>>, vector<32x128xf32>
    %cst_31 = arith.constant dense<0.000000e+00> : vector<360x128xf32>
    %36 = tpu.matmul %34, %35, %cst_31 {dimension_numbers = #tpu.dot_dimension_numbers<[1], [0], [0], [1], [0, 0, 1, 1], [], []>} : vector<360x32xf32>, vector<32x128xf32>, vector<360x128xf32> -> vector<360x128xf32>
    %37 = arith.addf %33, %36 : vector<360x128xf32>
    %c21 = arith.constant 21 : index
    %c0_32 = arith.constant 0 : index
    %38 = vector.load %arg17[%c21, %c0_32] : memref<408x32xf32, #tpu.memory_space<vmem>>, vector<360x32xf32>
    %c128 = arith.constant 128 : index
    %c0_33 = arith.constant 0 : index
    %39 = vector.load %arg4[%c128, %c0_33] : memref<288x128xf32, #tpu.memory_space<vmem>>, vector<32x128xf32>
    %cst_34 = arith.constant dense<0.000000e+00> : vector<360x128xf32>
    %40 = tpu.matmul %38, %39, %cst_34 {dimension_numbers = #tpu.dot_dimension_numbers<[1], [0], [0], [1], [0, 0, 1, 1], [], []>} : vector<360x32xf32>, vector<32x128xf32>, vector<360x128xf32> -> vector<360x128xf32>
    %41 = arith.addf %37, %40 : vector<360x128xf32>
    %c22 = arith.constant 22 : index
    %c0_35 = arith.constant 0 : index
    %42 = vector.load %arg17[%c22, %c0_35] : memref<408x32xf32, #tpu.memory_space<vmem>>, vector<360x32xf32>
    %c160 = arith.constant 160 : index
    %c0_36 = arith.constant 0 : index
    %43 = vector.load %arg4[%c160, %c0_36] : memref<288x128xf32, #tpu.memory_space<vmem>>, vector<32x128xf32>
    %cst_37 = arith.constant dense<0.000000e+00> : vector<360x128xf32>
    %44 = tpu.matmul %42, %43, %cst_37 {dimension_numbers = #tpu.dot_dimension_numbers<[1], [0], [0], [1], [0, 0, 1, 1], [], []>} : vector<360x32xf32>, vector<32x128xf32>, vector<360x128xf32> -> vector<360x128xf32>
    %45 = arith.addf %41, %44 : vector<360x128xf32>
    %c40 = arith.constant 40 : index
    %c0_38 = arith.constant 0 : index
    %46 = vector.load %arg17[%c40, %c0_38] : memref<408x32xf32, #tpu.memory_space<vmem>>, vector<360x32xf32>
    %c192 = arith.constant 192 : index
    %c0_39 = arith.constant 0 : index
    %47 = vector.load %arg4[%c192, %c0_39] : memref<288x128xf32, #tpu.memory_space<vmem>>, vector<32x128xf32>
    %cst_40 = arith.constant dense<0.000000e+00> : vector<360x128xf32>
    %48 = tpu.matmul %46, %47, %cst_40 {dimension_numbers = #tpu.dot_dimension_numbers<[1], [0], [0], [1], [0, 0, 1, 1], [], []>} : vector<360x32xf32>, vector<32x128xf32>, vector<360x128xf32> -> vector<360x128xf32>
    %49 = arith.addf %45, %48 : vector<360x128xf32>
    %c41 = arith.constant 41 : index
    %c0_41 = arith.constant 0 : index
    %50 = vector.load %arg17[%c41, %c0_41] : memref<408x32xf32, #tpu.memory_space<vmem>>, vector<360x32xf32>
    %c224 = arith.constant 224 : index
    %c0_42 = arith.constant 0 : index
    %51 = vector.load %arg4[%c224, %c0_42] : memref<288x128xf32, #tpu.memory_space<vmem>>, vector<32x128xf32>
    %cst_43 = arith.constant dense<0.000000e+00> : vector<360x128xf32>
    %52 = tpu.matmul %50, %51, %cst_43 {dimension_numbers = #tpu.dot_dimension_numbers<[1], [0], [0], [1], [0, 0, 1, 1], [], []>} : vector<360x32xf32>, vector<32x128xf32>, vector<360x128xf32> -> vector<360x128xf32>
    %53 = arith.addf %49, %52 : vector<360x128xf32>
    %c42 = arith.constant 42 : index
    %c0_44 = arith.constant 0 : index
    %54 = vector.load %arg17[%c42, %c0_44] : memref<408x32xf32, #tpu.memory_space<vmem>>, vector<360x32xf32>
    %c256 = arith.constant 256 : index
    %c0_45 = arith.constant 0 : index
    %55 = vector.load %arg4[%c256, %c0_45] : memref<288x128xf32, #tpu.memory_space<vmem>>, vector<32x128xf32>
    %cst_46 = arith.constant dense<0.000000e+00> : vector<360x128xf32>
    %56 = tpu.matmul %54, %55, %cst_46 {dimension_numbers = #tpu.dot_dimension_numbers<[1], [0], [0], [1], [0, 0, 1, 1], [], []>} : vector<360x32xf32>, vector<32x128xf32>, vector<360x128xf32> -> vector<360x128xf32>
    %57 = arith.addf %53, %56 : vector<360x128xf32>
    %c0_47 = arith.constant 0 : index
    %c0_48 = arith.constant 0 : index
    %58 = vector.load %arg5[%c0_47, %c0_48] : memref<1x128xf32, #tpu.memory_space<vmem>>, vector<1x128xf32>
    %59 = vector.broadcast %58 : vector<1x128xf32> to vector<360x128xf32>
    %60 = arith.addf %57, %59 : vector<360x128xf32>
    %cst_49 = arith.constant 0.000000e+00 : f32
    %61 = vector.broadcast %cst_49 : f32 to vector<360x128xf32>
    %62 = arith.maximumf %60, %61 : vector<360x128xf32>
    %63 = vector.extract_strided_slice %62 {offsets = [0, 0], sizes = [360, 16], strides = [1, 1]} : vector<360x128xf32> to vector<360x16xf32>
    %64 = vector.extract_strided_slice %62 {offsets = [0, 16], sizes = [360, 16], strides = [1, 1]} : vector<360x128xf32> to vector<360x16xf32>
    %65 = arith.maximumf %63, %64 : vector<360x16xf32>
    %66 = vector.extract_strided_slice %62 {offsets = [0, 32], sizes = [360, 16], strides = [1, 1]} : vector<360x128xf32> to vector<360x16xf32>
    %67 = vector.extract_strided_slice %62 {offsets = [0, 48], sizes = [360, 16], strides = [1, 1]} : vector<360x128xf32> to vector<360x16xf32>
    %68 = arith.maximumf %66, %67 : vector<360x16xf32>
    %69 = arith.maximumf %65, %68 : vector<360x16xf32>
    %c0_50 = arith.constant 0 : index
    %c0_51 = arith.constant 0 : index
    %70 = vector.load %arg18[%c0_50, %c0_51] : memref<360x16xf32, #tpu.memory_space<vmem>>, vector<360x16xf32>
    tpu.vector_store %arg18[%c0_50, %c0_51], %69 {strides = array<i32>} : memref<360x16xf32, #tpu.memory_space<vmem>>, vector<360x16xf32>,
    %c0_52 = arith.constant 0 : index
    %c0_53 = arith.constant 0 : index
    %71 = tpu.strided_load %arg18[%c0_52, %c0_53] {strides = array<i32: 2, 1>} : memref<360x16xf32, #tpu.memory_space<vmem>>, vector<9x16xf32>
    %c0_54 = arith.constant 0 : index
    %c0_55 = arith.constant 0 : index
    %72 = vector.load %arg19[%c0_54, %c0_55] : memref<96x64xf32, #tpu.memory_space<vmem>>, vector<9x16xf32>
    tpu.vector_store %arg19[%c0_54, %c0_55], %71 {strides = array<i32>} : memref<96x64xf32, #tpu.memory_space<vmem>>, vector<9x16xf32>,
    %c1_56 = arith.constant 1 : index
    %c0_57 = arith.constant 0 : index
    %73 = tpu.strided_load %arg18[%c1_56, %c0_57] {strides = array<i32: 2, 1>} : memref<360x16xf32, #tpu.memory_space<vmem>>, vector<9x16xf32>
    %c0_58 = arith.constant 0 : index
    %c16 = arith.constant 16 : index
    %74 = vector.load %arg19[%c0_58, %c16] : memref<96x64xf32, #tpu.memory_space<vmem>>, vector<9x16xf32>
    tpu.vector_store %arg19[%c0_58, %c16], %73 {strides = array<i32>} : memref<96x64xf32, #tpu.memory_space<vmem>>, vector<9x16xf32>,
    %c20_59 = arith.constant 20 : index
    %c0_60 = arith.constant 0 : index
    %75 = tpu.strided_load %arg18[%c20_59, %c0_60] {strides = array<i32: 2, 1>} : memref<360x16xf32, #tpu.memory_space<vmem>>, vector<9x16xf32>
    %c0_61 = arith.constant 0 : index
    %c32_62 = arith.constant 32 : index
    %76 = vector.load %arg19[%c0_61, %c32_62] : memref<96x64xf32, #tpu.memory_space<vmem>>, vector<9x16xf32>
    tpu.vector_store %arg19[%c0_61, %c32_62], %75 {strides = array<i32>} : memref<96x64xf32, #tpu.memory_space<vmem>>, vector<9x16xf32>,
    %c21_63 = arith.constant 21 : index
    %c0_64 = arith.constant 0 : index
    %77 = tpu.strided_load %arg18[%c21_63, %c0_64] {strides = array<i32: 2, 1>} : memref<360x16xf32, #tpu.memory_space<vmem>>, vector<9x16xf32>
    %c0_65 = arith.constant 0 : index
    %c48 = arith.constant 48 : index
    %78 = vector.load %arg19[%c0_65, %c48] : memref<96x64xf32, #tpu.memory_space<vmem>>, vector<9x16xf32>
    tpu.vector_store %arg19[%c0_65, %c48], %77 {strides = array<i32>} : memref<96x64xf32, #tpu.memory_space<vmem>>, vector<9x16xf32>,
    %c40_66 = arith.constant 40 : index
    %c0_67 = arith.constant 0 : index
    %79 = tpu.strided_load %arg18[%c40_66, %c0_67] {strides = array<i32: 2, 1>} : memref<360x16xf32, #tpu.memory_space<vmem>>, vector<9x16xf32>
    %c9 = arith.constant 9 : index
    %c0_68 = arith.constant 0 : index
    %80 = vector.load %arg19[%c9, %c0_68] : memref<96x64xf32, #tpu.memory_space<vmem>>, vector<9x16xf32>
    tpu.vector_store %arg19[%c9, %c0_68], %79 {strides = array<i32>} : memref<96x64xf32, #tpu.memory_space<vmem>>, vector<9x16xf32>,
    %c41_69 = arith.constant 41 : index
    %c0_70 = arith.constant 0 : index
    %81 = tpu.strided_load %arg18[%c41_69, %c0_70] {strides = array<i32: 2, 1>} : memref<360x16xf32, #tpu.memory_space<vmem>>, vector<9x16xf32>
    %c9_71 = arith.constant 9 : index
    %c16_72 = arith.constant 16 : index
    %82 = vector.load %arg19[%c9_71, %c16_72] : memref<96x64xf32, #tpu.memory_space<vmem>>, vector<9x16xf32>
    tpu.vector_store %arg19[%c9_71, %c16_72], %81 {strides = array<i32>} : memref<96x64xf32, #tpu.memory_space<vmem>>, vector<9x16xf32>,
    %c60 = arith.constant 60 : index
    %c0_73 = arith.constant 0 : index
    %83 = tpu.strided_load %arg18[%c60, %c0_73] {strides = array<i32: 2, 1>} : memref<360x16xf32, #tpu.memory_space<vmem>>, vector<9x16xf32>
    %c9_74 = arith.constant 9 : index
    %c32_75 = arith.constant 32 : index
    %84 = vector.load %arg19[%c9_74, %c32_75] : memref<96x64xf32, #tpu.memory_space<vmem>>, vector<9x16xf32>
    tpu.vector_store %arg19[%c9_74, %c32_75], %83 {strides = array<i32>} : memref<96x64xf32, #tpu.memory_space<vmem>>, vector<9x16xf32>,
    %c61 = arith.constant 61 : index
    %c0_76 = arith.constant 0 : index
    %85 = tpu.strided_load %arg18[%c61, %c0_76] {strides = array<i32: 2, 1>} : memref<360x16xf32, #tpu.memory_space<vmem>>, vector<9x16xf32>
    %c9_77 = arith.constant 9 : index
    %c48_78 = arith.constant 48 : index
    %86 = vector.load %arg19[%c9_77, %c48_78] : memref<96x64xf32, #tpu.memory_space<vmem>>, vector<9x16xf32>
    tpu.vector_store %arg19[%c9_77, %c48_78], %85 {strides = array<i32>} : memref<96x64xf32, #tpu.memory_space<vmem>>, vector<9x16xf32>,
    %c80 = arith.constant 80 : index
    %c0_79 = arith.constant 0 : index
    %87 = tpu.strided_load %arg18[%c80, %c0_79] {strides = array<i32: 2, 1>} : memref<360x16xf32, #tpu.memory_space<vmem>>, vector<9x16xf32>
    %c18 = arith.constant 18 : index
    %c0_80 = arith.constant 0 : index
    %88 = vector.load %arg19[%c18, %c0_80] : memref<96x64xf32, #tpu.memory_space<vmem>>, vector<9x16xf32>
    tpu.vector_store %arg19[%c18, %c0_80], %87 {strides = array<i32>} : memref<96x64xf32, #tpu.memory_space<vmem>>, vector<9x16xf32>,
    %c81 = arith.constant 81 : index
    %c0_81 = arith.constant 0 : index
    %89 = tpu.strided_load %arg18[%c81, %c0_81] {strides = array<i32: 2, 1>} : memref<360x16xf32, #tpu.memory_space<vmem>>, vector<9x16xf32>
    %c18_82 = arith.constant 18 : index
    %c16_83 = arith.constant 16 : index
    %90 = vector.load %arg19[%c18_82, %c16_83] : memref<96x64xf32, #tpu.memory_space<vmem>>, vector<9x16xf32>
    tpu.vector_store %arg19[%c18_82, %c16_83], %89 {strides = array<i32>} : memref<96x64xf32, #tpu.memory_space<vmem>>, vector<9x16xf32>,
    %c100 = arith.constant 100 : index
    %c0_84 = arith.constant 0 : index
    %91 = tpu.strided_load %arg18[%c100, %c0_84] {strides = array<i32: 2, 1>} : memref<360x16xf32, #tpu.memory_space<vmem>>, vector<9x16xf32>
    %c18_85 = arith.constant 18 : index
    %c32_86 = arith.constant 32 : index
    %92 = vector.load %arg19[%c18_85, %c32_86] : memref<96x64xf32, #tpu.memory_space<vmem>>, vector<9x16xf32>
    tpu.vector_store %arg19[%c18_85, %c32_86], %91 {strides = array<i32>} : memref<96x64xf32, #tpu.memory_space<vmem>>, vector<9x16xf32>,
    %c101 = arith.constant 101 : index
    %c0_87 = arith.constant 0 : index
    %93 = tpu.strided_load %arg18[%c101, %c0_87] {strides = array<i32: 2, 1>} : memref<360x16xf32, #tpu.memory_space<vmem>>, vector<9x16xf32>
    %c18_88 = arith.constant 18 : index
    %c48_89 = arith.constant 48 : index
    %94 = vector.load %arg19[%c18_88, %c48_89] : memref<96x64xf32, #tpu.memory_space<vmem>>, vector<9x16xf32>
    tpu.vector_store %arg19[%c18_88, %c48_89], %93 {strides = array<i32>} : memref<96x64xf32, #tpu.memory_space<vmem>>, vector<9x16xf32>,
    %c120 = arith.constant 120 : index
    %c0_90 = arith.constant 0 : index
    %95 = tpu.strided_load %arg18[%c120, %c0_90] {strides = array<i32: 2, 1>} : memref<360x16xf32, #tpu.memory_space<vmem>>, vector<9x16xf32>
    %c27 = arith.constant 27 : index
    %c0_91 = arith.constant 0 : index
    %96 = vector.load %arg19[%c27, %c0_91] : memref<96x64xf32, #tpu.memory_space<vmem>>, vector<9x16xf32>
    tpu.vector_store %arg19[%c27, %c0_91], %95 {strides = array<i32>} : memref<96x64xf32, #tpu.memory_space<vmem>>, vector<9x16xf32>,
    %c121 = arith.constant 121 : index
    %c0_92 = arith.constant 0 : index
    %97 = tpu.strided_load %arg18[%c121, %c0_92] {strides = array<i32: 2, 1>} : memref<360x16xf32, #tpu.memory_space<vmem>>, vector<9x16xf32>
    %c27_93 = arith.constant 27 : index
    %c16_94 = arith.constant 16 : index
    %98 = vector.load %arg19[%c27_93, %c16_94] : memref<96x64xf32, #tpu.memory_space<vmem>>, vector<9x16xf32>
    tpu.vector_store %arg19[%c27_93, %c16_94], %97 {strides = array<i32>} : memref<96x64xf32, #tpu.memory_space<vmem>>, vector<9x16xf32>,
    %c140 = arith.constant 140 : index
    %c0_95 = arith.constant 0 : index
    %99 = tpu.strided_load %arg18[%c140, %c0_95] {strides = array<i32: 2, 1>} : memref<360x16xf32, #tpu.memory_space<vmem>>, vector<9x16xf32>
    %c27_96 = arith.constant 27 : index
    %c32_97 = arith.constant 32 : index
    %100 = vector.load %arg19[%c27_96, %c32_97] : memref<96x64xf32, #tpu.memory_space<vmem>>, vector<9x16xf32>
    tpu.vector_store %arg19[%c27_96, %c32_97], %99 {strides = array<i32>} : memref<96x64xf32, #tpu.memory_space<vmem>>, vector<9x16xf32>,
    %c141 = arith.constant 141 : index
    %c0_98 = arith.constant 0 : index
    %101 = tpu.strided_load %arg18[%c141, %c0_98] {strides = array<i32: 2, 1>} : memref<360x16xf32, #tpu.memory_space<vmem>>, vector<9x16xf32>
    %c27_99 = arith.constant 27 : index
    %c48_100 = arith.constant 48 : index
    %102 = vector.load %arg19[%c27_99, %c48_100] : memref<96x64xf32, #tpu.memory_space<vmem>>, vector<9x16xf32>
    tpu.vector_store %arg19[%c27_99, %c48_100], %101 {strides = array<i32>} : memref<96x64xf32, #tpu.memory_space<vmem>>, vector<9x16xf32>,
    %c160_101 = arith.constant 160 : index
    %c0_102 = arith.constant 0 : index
    %103 = tpu.strided_load %arg18[%c160_101, %c0_102] {strides = array<i32: 2, 1>} : memref<360x16xf32, #tpu.memory_space<vmem>>, vector<9x16xf32>
    %c36 = arith.constant 36 : index
    %c0_103 = arith.constant 0 : index
    %104 = vector.load %arg19[%c36, %c0_103] : memref<96x64xf32, #tpu.memory_space<vmem>>, vector<9x16xf32>
    tpu.vector_store %arg19[%c36, %c0_103], %103 {strides = array<i32>} : memref<96x64xf32, #tpu.memory_space<vmem>>, vector<9x16xf32>,
    %c161 = arith.constant 161 : index
    %c0_104 = arith.constant 0 : index
    %105 = tpu.strided_load %arg18[%c161, %c0_104] {strides = array<i32: 2, 1>} : memref<360x16xf32, #tpu.memory_space<vmem>>, vector<9x16xf32>
    %c36_105 = arith.constant 36 : index
    %c16_106 = arith.constant 16 : index
    %106 = vector.load %arg19[%c36_105, %c16_106] : memref<96x64xf32, #tpu.memory_space<vmem>>, vector<9x16xf32>
    tpu.vector_store %arg19[%c36_105, %c16_106], %105 {strides = array<i32>} : memref<96x64xf32, #tpu.memory_space<vmem>>, vector<9x16xf32>,
    %c180 = arith.constant 180 : index
    %c0_107 = arith.constant 0 : index
    %107 = tpu.strided_load %arg18[%c180, %c0_107] {strides = array<i32: 2, 1>} : memref<360x16xf32, #tpu.memory_space<vmem>>, vector<9x16xf32>
    %c36_108 = arith.constant 36 : index
    %c32_109 = arith.constant 32 : index
    %108 = vector.load %arg19[%c36_108, %c32_109] : memref<96x64xf32, #tpu.memory_space<vmem>>, vector<9x16xf32>
    tpu.vector_store %arg19[%c36_108, %c32_109], %107 {strides = array<i32>} : memref<96x64xf32, #tpu.memory_space<vmem>>, vector<9x16xf32>,
    %c181 = arith.constant 181 : index
    %c0_110 = arith.constant 0 : index
    %109 = tpu.strided_load %arg18[%c181, %c0_110] {strides = array<i32: 2, 1>} : memref<360x16xf32, #tpu.memory_space<vmem>>, vector<9x16xf32>
    %c36_111 = arith.constant 36 : index
    %c48_112 = arith.constant 48 : index
    %110 = vector.load %arg19[%c36_111, %c48_112] : memref<96x64xf32, #tpu.memory_space<vmem>>, vector<9x16xf32>
    tpu.vector_store %arg19[%c36_111, %c48_112], %109 {strides = array<i32>} : memref<96x64xf32, #tpu.memory_space<vmem>>, vector<9x16xf32>,
    %c200 = arith.constant 200 : index
    %c0_113 = arith.constant 0 : index
    %111 = tpu.strided_load %arg18[%c200, %c0_113] {strides = array<i32: 2, 1>} : memref<360x16xf32, #tpu.memory_space<vmem>>, vector<9x16xf32>
    %c45 = arith.constant 45 : index
    %c0_114 = arith.constant 0 : index
    %112 = vector.load %arg19[%c45, %c0_114] : memref<96x64xf32, #tpu.memory_space<vmem>>, vector<9x16xf32>
    tpu.vector_store %arg19[%c45, %c0_114], %111 {strides = array<i32>} : memref<96x64xf32, #tpu.memory_space<vmem>>, vector<9x16xf32>,
    %c201 = arith.constant 201 : index
    %c0_115 = arith.constant 0 : index
    %113 = tpu.strided_load %arg18[%c201, %c0_115] {strides = array<i32: 2, 1>} : memref<360x16xf32, #tpu.memory_space<vmem>>, vector<9x16xf32>
    %c45_116 = arith.constant 45 : index
    %c16_117 = arith.constant 16 : index
    %114 = vector.load %arg19[%c45_116, %c16_117] : memref<96x64xf32, #tpu.memory_space<vmem>>, vector<9x16xf32>
    tpu.vector_store %arg19[%c45_116, %c16_117], %113 {strides = array<i32>} : memref<96x64xf32, #tpu.memory_space<vmem>>, vector<9x16xf32>,
    %c220 = arith.constant 220 : index
    %c0_118 = arith.constant 0 : index
    %115 = tpu.strided_load %arg18[%c220, %c0_118] {strides = array<i32: 2, 1>} : memref<360x16xf32, #tpu.memory_space<vmem>>, vector<9x16xf32>
    %c45_119 = arith.constant 45 : index
    %c32_120 = arith.constant 32 : index
    %116 = vector.load %arg19[%c45_119, %c32_120] : memref<96x64xf32, #tpu.memory_space<vmem>>, vector<9x16xf32>
    tpu.vector_store %arg19[%c45_119, %c32_120], %115 {strides = array<i32>} : memref<96x64xf32, #tpu.memory_space<vmem>>, vector<9x16xf32>,
    %c221 = arith.constant 221 : index
    %c0_121 = arith.constant 0 : index
    %117 = tpu.strided_load %arg18[%c221, %c0_121] {strides = array<i32: 2, 1>} : memref<360x16xf32, #tpu.memory_space<vmem>>, vector<9x16xf32>
    %c45_122 = arith.constant 45 : index
    %c48_123 = arith.constant 48 : index
    %118 = vector.load %arg19[%c45_122, %c48_123] : memref<96x64xf32, #tpu.memory_space<vmem>>, vector<9x16xf32>
    tpu.vector_store %arg19[%c45_122, %c48_123], %117 {strides = array<i32>} : memref<96x64xf32, #tpu.memory_space<vmem>>, vector<9x16xf32>,
    %c240 = arith.constant 240 : index
    %c0_124 = arith.constant 0 : index
    %119 = tpu.strided_load %arg18[%c240, %c0_124] {strides = array<i32: 2, 1>} : memref<360x16xf32, #tpu.memory_space<vmem>>, vector<9x16xf32>
    %c54 = arith.constant 54 : index
    %c0_125 = arith.constant 0 : index
    %120 = vector.load %arg19[%c54, %c0_125] : memref<96x64xf32, #tpu.memory_space<vmem>>, vector<9x16xf32>
    tpu.vector_store %arg19[%c54, %c0_125], %119 {strides = array<i32>} : memref<96x64xf32, #tpu.memory_space<vmem>>, vector<9x16xf32>,
    %c241 = arith.constant 241 : index
    %c0_126 = arith.constant 0 : index
    %121 = tpu.strided_load %arg18[%c241, %c0_126] {strides = array<i32: 2, 1>} : memref<360x16xf32, #tpu.memory_space<vmem>>, vector<9x16xf32>
    %c54_127 = arith.constant 54 : index
    %c16_128 = arith.constant 16 : index
    %122 = vector.load %arg19[%c54_127, %c16_128] : memref<96x64xf32, #tpu.memory_space<vmem>>, vector<9x16xf32>
    tpu.vector_store %arg19[%c54_127, %c16_128], %121 {strides = array<i32>} : memref<96x64xf32, #tpu.memory_space<vmem>>, vector<9x16xf32>,
    %c260 = arith.constant 260 : index
    %c0_129 = arith.constant 0 : index
    %123 = tpu.strided_load %arg18[%c260, %c0_129] {strides = array<i32: 2, 1>} : memref<360x16xf32, #tpu.memory_space<vmem>>, vector<9x16xf32>
    %c54_130 = arith.constant 54 : index
    %c32_131 = arith.constant 32 : index
    %124 = vector.load %arg19[%c54_130, %c32_131] : memref<96x64xf32, #tpu.memory_space<vmem>>, vector<9x16xf32>
    tpu.vector_store %arg19[%c54_130, %c32_131], %123 {strides = array<i32>} : memref<96x64xf32, #tpu.memory_space<vmem>>, vector<9x16xf32>,
    %c261 = arith.constant 261 : index
    %c0_132 = arith.constant 0 : index
    %125 = tpu.strided_load %arg18[%c261, %c0_132] {strides = array<i32: 2, 1>} : memref<360x16xf32, #tpu.memory_space<vmem>>, vector<9x16xf32>
    %c54_133 = arith.constant 54 : index
    %c48_134 = arith.constant 48 : index
    %126 = vector.load %arg19[%c54_133, %c48_134] : memref<96x64xf32, #tpu.memory_space<vmem>>, vector<9x16xf32>
    tpu.vector_store %arg19[%c54_133, %c48_134], %125 {strides = array<i32>} : memref<96x64xf32, #tpu.memory_space<vmem>>, vector<9x16xf32>,
    %c280 = arith.constant 280 : index
    %c0_135 = arith.constant 0 : index
    %127 = tpu.strided_load %arg18[%c280, %c0_135] {strides = array<i32: 2, 1>} : memref<360x16xf32, #tpu.memory_space<vmem>>, vector<9x16xf32>
    %c63 = arith.constant 63 : index
    %c0_136 = arith.constant 0 : index
    %128 = vector.load %arg19[%c63, %c0_136] : memref<96x64xf32, #tpu.memory_space<vmem>>, vector<9x16xf32>
    tpu.vector_store %arg19[%c63, %c0_136], %127 {strides = array<i32>} : memref<96x64xf32, #tpu.memory_space<vmem>>, vector<9x16xf32>,
    %c281 = arith.constant 281 : index
    %c0_137 = arith.constant 0 : index
    %129 = tpu.strided_load %arg18[%c281, %c0_137] {strides = array<i32: 2, 1>} : memref<360x16xf32, #tpu.memory_space<vmem>>, vector<9x16xf32>
    %c63_138 = arith.constant 63 : index
    %c16_139 = arith.constant 16 : index
    %130 = vector.load %arg19[%c63_138, %c16_139] : memref<96x64xf32, #tpu.memory_space<vmem>>, vector<9x16xf32>
    tpu.vector_store %arg19[%c63_138, %c16_139], %129 {strides = array<i32>} : memref<96x64xf32, #tpu.memory_space<vmem>>, vector<9x16xf32>,
    %c300 = arith.constant 300 : index
    %c0_140 = arith.constant 0 : index
    %131 = tpu.strided_load %arg18[%c300, %c0_140] {strides = array<i32: 2, 1>} : memref<360x16xf32, #tpu.memory_space<vmem>>, vector<9x16xf32>
    %c63_141 = arith.constant 63 : index
    %c32_142 = arith.constant 32 : index
    %132 = vector.load %arg19[%c63_141, %c32_142] : memref<96x64xf32, #tpu.memory_space<vmem>>, vector<9x16xf32>
    tpu.vector_store %arg19[%c63_141, %c32_142], %131 {strides = array<i32>} : memref<96x64xf32, #tpu.memory_space<vmem>>, vector<9x16xf32>,
    %c301 = arith.constant 301 : index
    %c0_143 = arith.constant 0 : index
    %133 = tpu.strided_load %arg18[%c301, %c0_143] {strides = array<i32: 2, 1>} : memref<360x16xf32, #tpu.memory_space<vmem>>, vector<9x16xf32>
    %c63_144 = arith.constant 63 : index
    %c48_145 = arith.constant 48 : index
    %134 = vector.load %arg19[%c63_144, %c48_145] : memref<96x64xf32, #tpu.memory_space<vmem>>, vector<9x16xf32>
    tpu.vector_store %arg19[%c63_144, %c48_145], %133 {strides = array<i32>} : memref<96x64xf32, #tpu.memory_space<vmem>>, vector<9x16xf32>,
    %c320 = arith.constant 320 : index
    %c0_146 = arith.constant 0 : index
    %135 = tpu.strided_load %arg18[%c320, %c0_146] {strides = array<i32: 2, 1>} : memref<360x16xf32, #tpu.memory_space<vmem>>, vector<9x16xf32>
    %c72 = arith.constant 72 : index
    %c0_147 = arith.constant 0 : index
    %136 = vector.load %arg19[%c72, %c0_147] : memref<96x64xf32, #tpu.memory_space<vmem>>, vector<9x16xf32>
    tpu.vector_store %arg19[%c72, %c0_147], %135 {strides = array<i32>} : memref<96x64xf32, #tpu.memory_space<vmem>>, vector<9x16xf32>,
    %c321 = arith.constant 321 : index
    %c0_148 = arith.constant 0 : index
    %137 = tpu.strided_load %arg18[%c321, %c0_148] {strides = array<i32: 2, 1>} : memref<360x16xf32, #tpu.memory_space<vmem>>, vector<9x16xf32>
    %c72_149 = arith.constant 72 : index
    %c16_150 = arith.constant 16 : index
    %138 = vector.load %arg19[%c72_149, %c16_150] : memref<96x64xf32, #tpu.memory_space<vmem>>, vector<9x16xf32>
    tpu.vector_store %arg19[%c72_149, %c16_150], %137 {strides = array<i32>} : memref<96x64xf32, #tpu.memory_space<vmem>>, vector<9x16xf32>,
    %c340 = arith.constant 340 : index
    %c0_151 = arith.constant 0 : index
    %139 = tpu.strided_load %arg18[%c340, %c0_151] {strides = array<i32: 2, 1>} : memref<360x16xf32, #tpu.memory_space<vmem>>, vector<9x16xf32>
    %c72_152 = arith.constant 72 : index
    %c32_153 = arith.constant 32 : index
    %140 = vector.load %arg19[%c72_152, %c32_153] : memref<96x64xf32, #tpu.memory_space<vmem>>, vector<9x16xf32>
    tpu.vector_store %arg19[%c72_152, %c32_153], %139 {strides = array<i32>} : memref<96x64xf32, #tpu.memory_space<vmem>>, vector<9x16xf32>,
    %c341 = arith.constant 341 : index
    %c0_154 = arith.constant 0 : index
    %141 = tpu.strided_load %arg18[%c341, %c0_154] {strides = array<i32: 2, 1>} : memref<360x16xf32, #tpu.memory_space<vmem>>, vector<9x16xf32>
    %c72_155 = arith.constant 72 : index
    %c48_156 = arith.constant 48 : index
    %142 = vector.load %arg19[%c72_155, %c48_156] : memref<96x64xf32, #tpu.memory_space<vmem>>, vector<9x16xf32>
    tpu.vector_store %arg19[%c72_155, %c48_156], %141 {strides = array<i32>} : memref<96x64xf32, #tpu.memory_space<vmem>>, vector<9x16xf32>,
    %c0_157 = arith.constant 0 : index
    %c0_158 = arith.constant 0 : index
    %143 = vector.load %arg19[%c0_157, %c0_158] : memref<96x64xf32, #tpu.memory_space<vmem>>, vector<72x64xf32>
    %c0_159 = arith.constant 0 : index
    %c0_160 = arith.constant 0 : index
    %144 = vector.load %arg6[%c0_159, %c0_160] : memref<576x128xf32, #tpu.memory_space<vmem>>, vector<64x128xf32>
    %cst_161 = arith.constant dense<0.000000e+00> : vector<72x128xf32>
    %145 = tpu.matmul %143, %144, %cst_161 {dimension_numbers = #tpu.dot_dimension_numbers<[1], [0], [0], [1], [0, 0, 1, 1], [], []>} : vector<72x64xf32>, vector<64x128xf32>, vector<72x128xf32> -> vector<72x128xf32>
    %c1_162 = arith.constant 1 : index
    %c0_163 = arith.constant 0 : index
    %146 = vector.load %arg19[%c1_162, %c0_163] : memref<96x64xf32, #tpu.memory_space<vmem>>, vector<72x64xf32>
    %c64_164 = arith.constant 64 : index
    %c0_165 = arith.constant 0 : index
    %147 = vector.load %arg6[%c64_164, %c0_165] : memref<576x128xf32, #tpu.memory_space<vmem>>, vector<64x128xf32>
    %cst_166 = arith.constant dense<0.000000e+00> : vector<72x128xf32>
    %148 = tpu.matmul %146, %147, %cst_166 {dimension_numbers = #tpu.dot_dimension_numbers<[1], [0], [0], [1], [0, 0, 1, 1], [], []>} : vector<72x64xf32>, vector<64x128xf32>, vector<72x128xf32> -> vector<72x128xf32>
    %149 = arith.addf %145, %148 : vector<72x128xf32>
    %c2_167 = arith.constant 2 : index
    %c0_168 = arith.constant 0 : index
    %150 = vector.load %arg19[%c2_167, %c0_168] : memref<96x64xf32, #tpu.memory_space<vmem>>, vector<72x64xf32>
    %c128_169 = arith.constant 128 : index
    %c0_170 = arith.constant 0 : index
    %151 = vector.load %arg6[%c128_169, %c0_170] : memref<576x128xf32, #tpu.memory_space<vmem>>, vector<64x128xf32>
    %cst_171 = arith.constant dense<0.000000e+00> : vector<72x128xf32>
    %152 = tpu.matmul %150, %151, %cst_171 {dimension_numbers = #tpu.dot_dimension_numbers<[1], [0], [0], [1], [0, 0, 1, 1], [], []>} : vector<72x64xf32>, vector<64x128xf32>, vector<72x128xf32> -> vector<72x128xf32>
    %153 = arith.addf %149, %152 : vector<72x128xf32>
    %c9_172 = arith.constant 9 : index
    %c0_173 = arith.constant 0 : index
    %154 = vector.load %arg19[%c9_172, %c0_173] : memref<96x64xf32, #tpu.memory_space<vmem>>, vector<72x64xf32>
    %c192_174 = arith.constant 192 : index
    %c0_175 = arith.constant 0 : index
    %155 = vector.load %arg6[%c192_174, %c0_175] : memref<576x128xf32, #tpu.memory_space<vmem>>, vector<64x128xf32>
    %cst_176 = arith.constant dense<0.000000e+00> : vector<72x128xf32>
    %156 = tpu.matmul %154, %155, %cst_176 {dimension_numbers = #tpu.dot_dimension_numbers<[1], [0], [0], [1], [0, 0, 1, 1], [], []>} : vector<72x64xf32>, vector<64x128xf32>, vector<72x128xf32> -> vector<72x128xf32>
    %157 = arith.addf %153, %156 : vector<72x128xf32>
    %c10 = arith.constant 10 : index
    %c0_177 = arith.constant 0 : index
    %158 = vector.load %arg19[%c10, %c0_177] : memref<96x64xf32, #tpu.memory_space<vmem>>, vector<72x64xf32>
    %c256_178 = arith.constant 256 : index
    %c0_179 = arith.constant 0 : index
    %159 = vector.load %arg6[%c256_178, %c0_179] : memref<576x128xf32, #tpu.memory_space<vmem>>, vector<64x128xf32>
    %cst_180 = arith.constant dense<0.000000e+00> : vector<72x128xf32>
    %160 = tpu.matmul %158, %159, %cst_180 {dimension_numbers = #tpu.dot_dimension_numbers<[1], [0], [0], [1], [0, 0, 1, 1], [], []>} : vector<72x64xf32>, vector<64x128xf32>, vector<72x128xf32> -> vector<72x128xf32>
    %161 = arith.addf %157, %160 : vector<72x128xf32>
    %c11 = arith.constant 11 : index
    %c0_181 = arith.constant 0 : index
    %162 = vector.load %arg19[%c11, %c0_181] : memref<96x64xf32, #tpu.memory_space<vmem>>, vector<72x64xf32>
    %c320_182 = arith.constant 320 : index
    %c0_183 = arith.constant 0 : index
    %163 = vector.load %arg6[%c320_182, %c0_183] : memref<576x128xf32, #tpu.memory_space<vmem>>, vector<64x128xf32>
    %cst_184 = arith.constant dense<0.000000e+00> : vector<72x128xf32>
    %164 = tpu.matmul %162, %163, %cst_184 {dimension_numbers = #tpu.dot_dimension_numbers<[1], [0], [0], [1], [0, 0, 1, 1], [], []>} : vector<72x64xf32>, vector<64x128xf32>, vector<72x128xf32> -> vector<72x128xf32>
    %165 = arith.addf %161, %164 : vector<72x128xf32>
    %c18_185 = arith.constant 18 : index
    %c0_186 = arith.constant 0 : index
    %166 = vector.load %arg19[%c18_185, %c0_186] : memref<96x64xf32, #tpu.memory_space<vmem>>, vector<72x64xf32>
    %c384 = arith.constant 384 : index
    %c0_187 = arith.constant 0 : index
    %167 = vector.load %arg6[%c384, %c0_187] : memref<576x128xf32, #tpu.memory_space<vmem>>, vector<64x128xf32>
    %cst_188 = arith.constant dense<0.000000e+00> : vector<72x128xf32>
    %168 = tpu.matmul %166, %167, %cst_188 {dimension_numbers = #tpu.dot_dimension_numbers<[1], [0], [0], [1], [0, 0, 1, 1], [], []>} : vector<72x64xf32>, vector<64x128xf32>, vector<72x128xf32> -> vector<72x128xf32>
    %169 = arith.addf %165, %168 : vector<72x128xf32>
    %c19 = arith.constant 19 : index
    %c0_189 = arith.constant 0 : index
    %170 = vector.load %arg19[%c19, %c0_189] : memref<96x64xf32, #tpu.memory_space<vmem>>, vector<72x64xf32>
    %c448 = arith.constant 448 : index
    %c0_190 = arith.constant 0 : index
    %171 = vector.load %arg6[%c448, %c0_190] : memref<576x128xf32, #tpu.memory_space<vmem>>, vector<64x128xf32>
    %cst_191 = arith.constant dense<0.000000e+00> : vector<72x128xf32>
    %172 = tpu.matmul %170, %171, %cst_191 {dimension_numbers = #tpu.dot_dimension_numbers<[1], [0], [0], [1], [0, 0, 1, 1], [], []>} : vector<72x64xf32>, vector<64x128xf32>, vector<72x128xf32> -> vector<72x128xf32>
    %173 = arith.addf %169, %172 : vector<72x128xf32>
    %c20_192 = arith.constant 20 : index
    %c0_193 = arith.constant 0 : index
    %174 = vector.load %arg19[%c20_192, %c0_193] : memref<96x64xf32, #tpu.memory_space<vmem>>, vector<72x64xf32>
    %c512 = arith.constant 512 : index
    %c0_194 = arith.constant 0 : index
    %175 = vector.load %arg6[%c512, %c0_194] : memref<576x128xf32, #tpu.memory_space<vmem>>, vector<64x128xf32>
    %cst_195 = arith.constant dense<0.000000e+00> : vector<72x128xf32>
    %176 = tpu.matmul %174, %175, %cst_195 {dimension_numbers = #tpu.dot_dimension_numbers<[1], [0], [0], [1], [0, 0, 1, 1], [], []>} : vector<72x64xf32>, vector<64x128xf32>, vector<72x128xf32> -> vector<72x128xf32>
    %177 = arith.addf %173, %176 : vector<72x128xf32>
    %c0_196 = arith.constant 0 : index
    %c0_197 = arith.constant 0 : index
    %178 = vector.load %arg7[%c0_196, %c0_197] : memref<1x128xf32, #tpu.memory_space<vmem>>, vector<1x128xf32>
    %179 = vector.broadcast %178 : vector<1x128xf32> to vector<72x128xf32>
    %180 = arith.addf %177, %179 : vector<72x128xf32>
    %cst_198 = arith.constant 0.000000e+00 : f32
    %181 = vector.broadcast %cst_198 : f32 to vector<72x128xf32>
    %182 = arith.maximumf %180, %181 : vector<72x128xf32>
    %183 = vector.extract_strided_slice %182 {offsets = [0, 0], sizes = [72, 32], strides = [1, 1]} : vector<72x128xf32> to vector<72x32xf32>
    %184 = vector.extract_strided_slice %182 {offsets = [0, 32], sizes = [72, 32], strides = [1, 1]} : vector<72x128xf32> to vector<72x32xf32>
    %185 = arith.maximumf %183, %184 : vector<72x32xf32>
    %186 = vector.extract_strided_slice %182 {offsets = [0, 64], sizes = [72, 32], strides = [1, 1]} : vector<72x128xf32> to vector<72x32xf32>
    %187 = vector.extract_strided_slice %182 {offsets = [0, 96], sizes = [72, 32], strides = [1, 1]} : vector<72x128xf32> to vector<72x32xf32>
    %188 = arith.maximumf %186, %187 : vector<72x32xf32>
    %189 = arith.maximumf %185, %188 : vector<72x32xf32>
    %c0_199 = arith.constant 0 : index
    %c0_200 = arith.constant 0 : index
    %190 = vector.load %arg20[%c0_199, %c0_200] : memref<72x32xf32, #tpu.memory_space<vmem>>, vector<72x32xf32>
    tpu.vector_store %arg20[%c0_199, %c0_200], %189 {strides = array<i32>} : memref<72x32xf32, #tpu.memory_space<vmem>>, vector<72x32xf32>,
    %c0_201 = arith.constant 0 : index
    %c0_202 = arith.constant 0 : index
    %191 = tpu.strided_load %arg20[%c0_201, %c0_202] {strides = array<i32: 2, 1>} : memref<72x32xf32, #tpu.memory_space<vmem>>, vector<4x32xf32>
    %c0_203 = arith.constant 0 : index
    %c0_204 = arith.constant 0 : index
    %192 = vector.load %arg21[%c0_203, %c0_204] : memref<16x128xf32, #tpu.memory_space<vmem>>, vector<4x32xf32>
    tpu.vector_store %arg21[%c0_203, %c0_204], %191 {strides = array<i32>} : memref<16x128xf32, #tpu.memory_space<vmem>>, vector<4x32xf32>,
    %c1_205 = arith.constant 1 : index
    %c0_206 = arith.constant 0 : index
    %193 = tpu.strided_load %arg20[%c1_205, %c0_206] {strides = array<i32: 2, 1>} : memref<72x32xf32, #tpu.memory_space<vmem>>, vector<4x32xf32>
    %c0_207 = arith.constant 0 : index
    %c32_208 = arith.constant 32 : index
    %194 = vector.load %arg21[%c0_207, %c32_208] : memref<16x128xf32, #tpu.memory_space<vmem>>, vector<4x32xf32>
    tpu.vector_store %arg21[%c0_207, %c32_208], %193 {strides = array<i32>} : memref<16x128xf32, #tpu.memory_space<vmem>>, vector<4x32xf32>,
    %c9_209 = arith.constant 9 : index
    %c0_210 = arith.constant 0 : index
    %195 = tpu.strided_load %arg20[%c9_209, %c0_210] {strides = array<i32: 2, 1>} : memref<72x32xf32, #tpu.memory_space<vmem>>, vector<4x32xf32>
    %c0_211 = arith.constant 0 : index
    %c64_212 = arith.constant 64 : index
    %196 = vector.load %arg21[%c0_211, %c64_212] : memref<16x128xf32, #tpu.memory_space<vmem>>, vector<4x32xf32>
    tpu.vector_store %arg21[%c0_211, %c64_212], %195 {strides = array<i32>} : memref<16x128xf32, #tpu.memory_space<vmem>>, vector<4x32xf32>,
    %c10_213 = arith.constant 10 : index
    %c0_214 = arith.constant 0 : index
    %197 = tpu.strided_load %arg20[%c10_213, %c0_214] {strides = array<i32: 2, 1>} : memref<72x32xf32, #tpu.memory_space<vmem>>, vector<4x32xf32>
    %c0_215 = arith.constant 0 : index
    %c96_216 = arith.constant 96 : index
    %198 = vector.load %arg21[%c0_215, %c96_216] : memref<16x128xf32, #tpu.memory_space<vmem>>, vector<4x32xf32>
    tpu.vector_store %arg21[%c0_215, %c96_216], %197 {strides = array<i32>} : memref<16x128xf32, #tpu.memory_space<vmem>>, vector<4x32xf32>,
    %c18_217 = arith.constant 18 : index
    %c0_218 = arith.constant 0 : index
    %199 = tpu.strided_load %arg20[%c18_217, %c0_218] {strides = array<i32: 2, 1>} : memref<72x32xf32, #tpu.memory_space<vmem>>, vector<4x32xf32>
    %c4 = arith.constant 4 : index
    %c0_219 = arith.constant 0 : index
    %200 = vector.load %arg21[%c4, %c0_219] : memref<16x128xf32, #tpu.memory_space<vmem>>, vector<4x32xf32>
    tpu.vector_store %arg21[%c4, %c0_219], %199 {strides = array<i32>} : memref<16x128xf32, #tpu.memory_space<vmem>>, vector<4x32xf32>,
    %c19_220 = arith.constant 19 : index
    %c0_221 = arith.constant 0 : index
    %201 = tpu.strided_load %arg20[%c19_220, %c0_221] {strides = array<i32: 2, 1>} : memref<72x32xf32, #tpu.memory_space<vmem>>, vector<4x32xf32>
    %c4_222 = arith.constant 4 : index
    %c32_223 = arith.constant 32 : index
    %202 = vector.load %arg21[%c4_222, %c32_223] : memref<16x128xf32, #tpu.memory_space<vmem>>, vector<4x32xf32>
    tpu.vector_store %arg21[%c4_222, %c32_223], %201 {strides = array<i32>} : memref<16x128xf32, #tpu.memory_space<vmem>>, vector<4x32xf32>,
    %c27_224 = arith.constant 27 : index
    %c0_225 = arith.constant 0 : index
    %203 = tpu.strided_load %arg20[%c27_224, %c0_225] {strides = array<i32: 2, 1>} : memref<72x32xf32, #tpu.memory_space<vmem>>, vector<4x32xf32>
    %c4_226 = arith.constant 4 : index
    %c64_227 = arith.constant 64 : index
    %204 = vector.load %arg21[%c4_226, %c64_227] : memref<16x128xf32, #tpu.memory_space<vmem>>, vector<4x32xf32>
    tpu.vector_store %arg21[%c4_226, %c64_227], %203 {strides = array<i32>} : memref<16x128xf32, #tpu.memory_space<vmem>>, vector<4x32xf32>,
    %c28 = arith.constant 28 : index
    %c0_228 = arith.constant 0 : index
    %205 = tpu.strided_load %arg20[%c28, %c0_228] {strides = array<i32: 2, 1>} : memref<72x32xf32, #tpu.memory_space<vmem>>, vector<4x32xf32>
    %c4_229 = arith.constant 4 : index
    %c96_230 = arith.constant 96 : index
    %206 = vector.load %arg21[%c4_229, %c96_230] : memref<16x128xf32, #tpu.memory_space<vmem>>, vector<4x32xf32>
    tpu.vector_store %arg21[%c4_229, %c96_230], %205 {strides = array<i32>} : memref<16x128xf32, #tpu.memory_space<vmem>>, vector<4x32xf32>,
    %c36_231 = arith.constant 36 : index
    %c0_232 = arith.constant 0 : index
    %207 = tpu.strided_load %arg20[%c36_231, %c0_232] {strides = array<i32: 2, 1>} : memref<72x32xf32, #tpu.memory_space<vmem>>, vector<4x32xf32>
    %c8 = arith.constant 8 : index
    %c0_233 = arith.constant 0 : index
    %208 = vector.load %arg21[%c8, %c0_233] : memref<16x128xf32, #tpu.memory_space<vmem>>, vector<4x32xf32>
    tpu.vector_store %arg21[%c8, %c0_233], %207 {strides = array<i32>} : memref<16x128xf32, #tpu.memory_space<vmem>>, vector<4x32xf32>,
    %c37 = arith.constant 37 : index
    %c0_234 = arith.constant 0 : index
    %209 = tpu.strided_load %arg20[%c37, %c0_234] {strides = array<i32: 2, 1>} : memref<72x32xf32, #tpu.memory_space<vmem>>, vector<4x32xf32>
    %c8_235 = arith.constant 8 : index
    %c32_236 = arith.constant 32 : index
    %210 = vector.load %arg21[%c8_235, %c32_236] : memref<16x128xf32, #tpu.memory_space<vmem>>, vector<4x32xf32>
    tpu.vector_store %arg21[%c8_235, %c32_236], %209 {strides = array<i32>} : memref<16x128xf32, #tpu.memory_space<vmem>>, vector<4x32xf32>,
    %c45_237 = arith.constant 45 : index
    %c0_238 = arith.constant 0 : index
    %211 = tpu.strided_load %arg20[%c45_237, %c0_238] {strides = array<i32: 2, 1>} : memref<72x32xf32, #tpu.memory_space<vmem>>, vector<4x32xf32>
    %c8_239 = arith.constant 8 : index
    %c64_240 = arith.constant 64 : index
    %212 = vector.load %arg21[%c8_239, %c64_240] : memref<16x128xf32, #tpu.memory_space<vmem>>, vector<4x32xf32>
    tpu.vector_store %arg21[%c8_239, %c64_240], %211 {strides = array<i32>} : memref<16x128xf32, #tpu.memory_space<vmem>>, vector<4x32xf32>,
    %c46 = arith.constant 46 : index
    %c0_241 = arith.constant 0 : index
    %213 = tpu.strided_load %arg20[%c46, %c0_241] {strides = array<i32: 2, 1>} : memref<72x32xf32, #tpu.memory_space<vmem>>, vector<4x32xf32>
    %c8_242 = arith.constant 8 : index
    %c96_243 = arith.constant 96 : index
    %214 = vector.load %arg21[%c8_242, %c96_243] : memref<16x128xf32, #tpu.memory_space<vmem>>, vector<4x32xf32>
    tpu.vector_store %arg21[%c8_242, %c96_243], %213 {strides = array<i32>} : memref<16x128xf32, #tpu.memory_space<vmem>>, vector<4x32xf32>,
    %c54_244 = arith.constant 54 : index
    %c0_245 = arith.constant 0 : index
    %215 = tpu.strided_load %arg20[%c54_244, %c0_245] {strides = array<i32: 2, 1>} : memref<72x32xf32, #tpu.memory_space<vmem>>, vector<4x32xf32>
    %c12 = arith.constant 12 : index
    %c0_246 = arith.constant 0 : index
    %216 = vector.load %arg21[%c12, %c0_246] : memref<16x128xf32, #tpu.memory_space<vmem>>, vector<4x32xf32>
    tpu.vector_store %arg21[%c12, %c0_246], %215 {strides = array<i32>} : memref<16x128xf32, #tpu.memory_space<vmem>>, vector<4x32xf32>,
    %c55 = arith.constant 55 : index
    %c0_247 = arith.constant 0 : index
    %217 = tpu.strided_load %arg20[%c55, %c0_247] {strides = array<i32: 2, 1>} : memref<72x32xf32, #tpu.memory_space<vmem>>, vector<4x32xf32>
    %c12_248 = arith.constant 12 : index
    %c32_249 = arith.constant 32 : index
    %218 = vector.load %arg21[%c12_248, %c32_249] : memref<16x128xf32, #tpu.memory_space<vmem>>, vector<4x32xf32>
    tpu.vector_store %arg21[%c12_248, %c32_249], %217 {strides = array<i32>} : memref<16x128xf32, #tpu.memory_space<vmem>>, vector<4x32xf32>,
    %c63_250 = arith.constant 63 : index
    %c0_251 = arith.constant 0 : index
    %219 = tpu.strided_load %arg20[%c63_250, %c0_251] {strides = array<i32: 2, 1>} : memref<72x32xf32, #tpu.memory_space<vmem>>, vector<4x32xf32>
    %c12_252 = arith.constant 12 : index
    %c64_253 = arith.constant 64 : index
    %220 = vector.load %arg21[%c12_252, %c64_253] : memref<16x128xf32, #tpu.memory_space<vmem>>, vector<4x32xf32>
    tpu.vector_store %arg21[%c12_252, %c64_253], %219 {strides = array<i32>} : memref<16x128xf32, #tpu.memory_space<vmem>>, vector<4x32xf32>,
    %c64_254 = arith.constant 64 : index
    %c0_255 = arith.constant 0 : index
    %221 = tpu.strided_load %arg20[%c64_254, %c0_255] {strides = array<i32: 2, 1>} : memref<72x32xf32, #tpu.memory_space<vmem>>, vector<4x32xf32>
    %c12_256 = arith.constant 12 : index
    %c96_257 = arith.constant 96 : index
    %222 = vector.load %arg21[%c12_256, %c96_257] : memref<16x128xf32, #tpu.memory_space<vmem>>, vector<4x32xf32>
    tpu.vector_store %arg21[%c12_256, %c96_257], %221 {strides = array<i32>} : memref<16x128xf32, #tpu.memory_space<vmem>>, vector<4x32xf32>,
    %c0_258 = arith.constant 0 : index
    %c0_259 = arith.constant 0 : index
    %223 = vector.load %arg21[%c0_258, %c0_259] : memref<16x128xf32, #tpu.memory_space<vmem>>, vector<4x128xf32>
    %c0_260 = arith.constant 0 : index
    %c0_261 = arith.constant 0 : index
    %224 = vector.load %arg8[%c0_260, %c0_261] : memref<1152x256xf32, #tpu.memory_space<vmem>>, vector<128x256xf32>
    %cst_262 = arith.constant dense<0.000000e+00> : vector<4x256xf32>
    %225 = tpu.matmul %223, %224, %cst_262 {dimension_numbers = #tpu.dot_dimension_numbers<[1], [0], [0], [1], [0, 0, 1, 1], [], []>} : vector<4x128xf32>, vector<128x256xf32>, vector<4x256xf32> -> vector<4x256xf32>
    %c1_263 = arith.constant 1 : index
    %c0_264 = arith.constant 0 : index
    %226 = vector.load %arg21[%c1_263, %c0_264] : memref<16x128xf32, #tpu.memory_space<vmem>>, vector<4x128xf32>
    %c128_265 = arith.constant 128 : index
    %c0_266 = arith.constant 0 : index
    %227 = vector.load %arg8[%c128_265, %c0_266] : memref<1152x256xf32, #tpu.memory_space<vmem>>, vector<128x256xf32>
    %cst_267 = arith.constant dense<0.000000e+00> : vector<4x256xf32>
    %228 = tpu.matmul %226, %227, %cst_267 {dimension_numbers = #tpu.dot_dimension_numbers<[1], [0], [0], [1], [0, 0, 1, 1], [], []>} : vector<4x128xf32>, vector<128x256xf32>, vector<4x256xf32> -> vector<4x256xf32>
    %229 = arith.addf %225, %228 : vector<4x256xf32>
    %c2_268 = arith.constant 2 : index
    %c0_269 = arith.constant 0 : index
    %230 = vector.load %arg21[%c2_268, %c0_269] : memref<16x128xf32, #tpu.memory_space<vmem>>, vector<4x128xf32>
    %c256_270 = arith.constant 256 : index
    %c0_271 = arith.constant 0 : index
    %231 = vector.load %arg8[%c256_270, %c0_271] : memref<1152x256xf32, #tpu.memory_space<vmem>>, vector<128x256xf32>
    %cst_272 = arith.constant dense<0.000000e+00> : vector<4x256xf32>
    %232 = tpu.matmul %230, %231, %cst_272 {dimension_numbers = #tpu.dot_dimension_numbers<[1], [0], [0], [1], [0, 0, 1, 1], [], []>} : vector<4x128xf32>, vector<128x256xf32>, vector<4x256xf32> -> vector<4x256xf32>
    %233 = arith.addf %229, %232 : vector<4x256xf32>
    %c4_273 = arith.constant 4 : index
    %c0_274 = arith.constant 0 : index
    %234 = vector.load %arg21[%c4_273, %c0_274] : memref<16x128xf32, #tpu.memory_space<vmem>>, vector<4x128xf32>
    %c384_275 = arith.constant 384 : index
    %c0_276 = arith.constant 0 : index
    %235 = vector.load %arg8[%c384_275, %c0_276] : memref<1152x256xf32, #tpu.memory_space<vmem>>, vector<128x256xf32>
    %cst_277 = arith.constant dense<0.000000e+00> : vector<4x256xf32>
    %236 = tpu.matmul %234, %235, %cst_277 {dimension_numbers = #tpu.dot_dimension_numbers<[1], [0], [0], [1], [0, 0, 1, 1], [], []>} : vector<4x128xf32>, vector<128x256xf32>, vector<4x256xf32> -> vector<4x256xf32>
    %237 = arith.addf %233, %236 : vector<4x256xf32>
    %c5 = arith.constant 5 : index
    %c0_278 = arith.constant 0 : index
    %238 = vector.load %arg21[%c5, %c0_278] : memref<16x128xf32, #tpu.memory_space<vmem>>, vector<4x128xf32>
    %c512_279 = arith.constant 512 : index
    %c0_280 = arith.constant 0 : index
    %239 = vector.load %arg8[%c512_279, %c0_280] : memref<1152x256xf32, #tpu.memory_space<vmem>>, vector<128x256xf32>
    %cst_281 = arith.constant dense<0.000000e+00> : vector<4x256xf32>
    %240 = tpu.matmul %238, %239, %cst_281 {dimension_numbers = #tpu.dot_dimension_numbers<[1], [0], [0], [1], [0, 0, 1, 1], [], []>} : vector<4x128xf32>, vector<128x256xf32>, vector<4x256xf32> -> vector<4x256xf32>
    %241 = arith.addf %237, %240 : vector<4x256xf32>
    %c6 = arith.constant 6 : index
    %c0_282 = arith.constant 0 : index
    %242 = vector.load %arg21[%c6, %c0_282] : memref<16x128xf32, #tpu.memory_space<vmem>>, vector<4x128xf32>
    %c640 = arith.constant 640 : index
    %c0_283 = arith.constant 0 : index
    %243 = vector.load %arg8[%c640, %c0_283] : memref<1152x256xf32, #tpu.memory_space<vmem>>, vector<128x256xf32>
    %cst_284 = arith.constant dense<0.000000e+00> : vector<4x256xf32>
    %244 = tpu.matmul %242, %243, %cst_284 {dimension_numbers = #tpu.dot_dimension_numbers<[1], [0], [0], [1], [0, 0, 1, 1], [], []>} : vector<4x128xf32>, vector<128x256xf32>, vector<4x256xf32> -> vector<4x256xf32>
    %245 = arith.addf %241, %244 : vector<4x256xf32>
    %c8_285 = arith.constant 8 : index
    %c0_286 = arith.constant 0 : index
    %246 = vector.load %arg21[%c8_285, %c0_286] : memref<16x128xf32, #tpu.memory_space<vmem>>, vector<4x128xf32>
    %c768 = arith.constant 768 : index
    %c0_287 = arith.constant 0 : index
    %247 = vector.load %arg8[%c768, %c0_287] : memref<1152x256xf32, #tpu.memory_space<vmem>>, vector<128x256xf32>
    %cst_288 = arith.constant dense<0.000000e+00> : vector<4x256xf32>
    %248 = tpu.matmul %246, %247, %cst_288 {dimension_numbers = #tpu.dot_dimension_numbers<[1], [0], [0], [1], [0, 0, 1, 1], [], []>} : vector<4x128xf32>, vector<128x256xf32>, vector<4x256xf32> -> vector<4x256xf32>
    %249 = arith.addf %245, %248 : vector<4x256xf32>
    %c9_289 = arith.constant 9 : index
    %c0_290 = arith.constant 0 : index
    %250 = vector.load %arg21[%c9_289, %c0_290] : memref<16x128xf32, #tpu.memory_space<vmem>>, vector<4x128xf32>
    %c896 = arith.constant 896 : index
    %c0_291 = arith.constant 0 : index
    %251 = vector.load %arg8[%c896, %c0_291] : memref<1152x256xf32, #tpu.memory_space<vmem>>, vector<128x256xf32>
    %cst_292 = arith.constant dense<0.000000e+00> : vector<4x256xf32>
    %252 = tpu.matmul %250, %251, %cst_292 {dimension_numbers = #tpu.dot_dimension_numbers<[1], [0], [0], [1], [0, 0, 1, 1], [], []>} : vector<4x128xf32>, vector<128x256xf32>, vector<4x256xf32> -> vector<4x256xf32>
    %253 = arith.addf %249, %252 : vector<4x256xf32>
    %c10_293 = arith.constant 10 : index
    %c0_294 = arith.constant 0 : index
    %254 = vector.load %arg21[%c10_293, %c0_294] : memref<16x128xf32, #tpu.memory_space<vmem>>, vector<4x128xf32>
    %c1024 = arith.constant 1024 : index
    %c0_295 = arith.constant 0 : index
    %255 = vector.load %arg8[%c1024, %c0_295] : memref<1152x256xf32, #tpu.memory_space<vmem>>, vector<128x256xf32>
    %cst_296 = arith.constant dense<0.000000e+00> : vector<4x256xf32>
    %256 = tpu.matmul %254, %255, %cst_296 {dimension_numbers = #tpu.dot_dimension_numbers<[1], [0], [0], [1], [0, 0, 1, 1], [], []>} : vector<4x128xf32>, vector<128x256xf32>, vector<4x256xf32> -> vector<4x256xf32>
    %257 = arith.addf %253, %256 : vector<4x256xf32>
    %c0_297 = arith.constant 0 : index
    %c0_298 = arith.constant 0 : index
    %258 = vector.load %arg9[%c0_297, %c0_298] : memref<1x256xf32, #tpu.memory_space<vmem>>, vector<1x256xf32>
    %259 = vector.broadcast %258 : vector<1x256xf32> to vector<4x256xf32>
    %260 = arith.addf %257, %259 : vector<4x256xf32>
    %cst_299 = arith.constant 0.000000e+00 : f32
    %261 = vector.broadcast %cst_299 : f32 to vector<4x256xf32>
    %262 = arith.maximumf %260, %261 : vector<4x256xf32>
    %263 = vector.extract_strided_slice %262 {offsets = [0, 0], sizes = [4, 64], strides = [1, 1]} : vector<4x256xf32> to vector<4x64xf32>
    %264 = vector.extract_strided_slice %262 {offsets = [0, 64], sizes = [4, 64], strides = [1, 1]} : vector<4x256xf32> to vector<4x64xf32>
    %265 = arith.maximumf %263, %264 : vector<4x64xf32>
    %266 = vector.extract_strided_slice %262 {offsets = [0, 128], sizes = [4, 64], strides = [1, 1]} : vector<4x256xf32> to vector<4x64xf32>
    %267 = vector.extract_strided_slice %262 {offsets = [0, 192], sizes = [4, 64], strides = [1, 1]} : vector<4x256xf32> to vector<4x64xf32>
    %268 = arith.maximumf %266, %267 : vector<4x64xf32>
    %269 = arith.maximumf %265, %268 : vector<4x64xf32>
    %270 = vector.extract_strided_slice %269 {offsets = [0, 0], sizes = [1, 64], strides = [1, 1]} : vector<4x64xf32> to vector<1x64xf32>
    %c0_300 = arith.constant 0 : index
    %c0_301 = arith.constant 0 : index
    %271 = vector.load %arg10[%c0_300, %c0_301] : memref<64x256xf32, #tpu.memory_space<vmem>>, vector<64x256xf32>
    %cst_302 = arith.constant dense<0.000000e+00> : vector<1x256xf32>
    %272 = tpu.matmul %270, %271, %cst_302 {dimension_numbers = #tpu.dot_dimension_numbers<[1], [0], [0], [1], [0, 0, 1, 1], [], []>} : vector<1x64xf32>, vector<64x256xf32>, vector<1x256xf32> -> vector<1x256xf32>
    %c0_303 = arith.constant 0 : index
    %c0_304 = arith.constant 0 : index
    %273 = vector.load %arg11[%c0_303, %c0_304] : memref<1x256xf32, #tpu.memory_space<vmem>>, vector<1x256xf32>
    %274 = arith.addf %272, %273 : vector<1x256xf32>
    %cst_305 = arith.constant 0.000000e+00 : f32
    %275 = vector.broadcast %cst_305 : f32 to vector<1x256xf32>
    %276 = arith.maximumf %274, %275 : vector<1x256xf32>
    %c0_306 = arith.constant 0 : index
    %c0_307 = arith.constant 0 : index
    %277 = vector.load %arg12[%c0_306, %c0_307] : memref<256x256xf32, #tpu.memory_space<vmem>>, vector<256x256xf32>
    %cst_308 = arith.constant dense<0.000000e+00> : vector<1x256xf32>
    %278 = tpu.matmul %276, %277, %cst_308 {dimension_numbers = #tpu.dot_dimension_numbers<[1], [0], [0], [1], [0, 0, 1, 1], [], []>} : vector<1x256xf32>, vector<256x256xf32>, vector<1x256xf32> -> vector<1x256xf32>
    %c0_309 = arith.constant 0 : index
    %c0_310 = arith.constant 0 : index
    %279 = vector.load %arg13[%c0_309, %c0_310] : memref<1x256xf32, #tpu.memory_space<vmem>>, vector<1x256xf32>
    %280 = arith.addf %278, %279 : vector<1x256xf32>
    %cst_311 = arith.constant 0.000000e+00 : f32
    %281 = vector.broadcast %cst_311 : f32 to vector<1x256xf32>
    %282 = arith.maximumf %280, %281 : vector<1x256xf32>
    %c0_312 = arith.constant 0 : index
    %c0_313 = arith.constant 0 : index
    %283 = vector.load %arg14[%c0_312, %c0_313] : memref<256x128xf32, #tpu.memory_space<vmem>>, vector<256x128xf32>
    %cst_314 = arith.constant dense<0.000000e+00> : vector<1x128xf32>
    %284 = tpu.matmul %282, %283, %cst_314 {dimension_numbers = #tpu.dot_dimension_numbers<[1], [0], [0], [1], [0, 0, 1, 1], [], []>} : vector<1x256xf32>, vector<256x128xf32>, vector<1x128xf32> -> vector<1x128xf32>
    %c0_315 = arith.constant 0 : index
    %c0_316 = arith.constant 0 : index
    %285 = vector.load %arg15[%c0_315, %c0_316] : memref<1x128xf32, #tpu.memory_space<vmem>>, vector<1x128xf32>
    %286 = arith.addf %284, %285 : vector<1x128xf32>
    %c0_317 = arith.constant 0 : index
    %c0_318 = arith.constant 0 : index
    %c0_319 = arith.constant 0 : index
    %287 = vector.load %arg16[%c0_317, %c0_318, %c0_319] : memref<1x1x128xf32, #tpu.memory_space<vmem>>, vector<1x1x128xf32>
    %288 = vector.shape_cast %287 : vector<1x1x128xf32> to vector<1x128xf32>
    %289 = vector.shape_cast %286 : vector<1x128xf32> to vector<1x1x128xf32>
    tpu.vector_store %arg16[%c0_317, %c0_318, %c0_319], %289 {strides = array<i32>} : memref<1x1x128xf32, #tpu.memory_space<vmem>>, vector<1x1x128xf32>,
    return
  }
  func.func @transform_0(%arg0: i32) -> (i32, i32, i32) {
    %c0_i32 = arith.constant 0 : i32
    %c0_i32_0 = arith.constant 0 : i32
    %c0_i32_1 = arith.constant 0 : i32
    return %arg0, %c0_i32, %c0_i32_0 : i32, i32, i32
  }
  func.func @transform_1(%arg0: i32) -> (i32, i32) {
    %c0_i32 = arith.constant 0 : i32
    %c0_i32_0 = arith.constant 0 : i32
    %c0_i32_1 = arith.constant 0 : i32
    return %c0_i32, %c0_i32_0 : i32, i32
  }
  func.func @transform_2(%arg0: i32) -> (i32, i32) {
    %c0_i32 = arith.constant 0 : i32
    %c0_i32_0 = arith.constant 0 : i32
    %c0_i32_1 = arith.constant 0 : i32
    return %c0_i32, %c0_i32_0 : i32, i32
  }
  func.func @transform_3(%arg0: i32) -> (i32, i32) {
    %c0_i32 = arith.constant 0 : i32
    %c0_i32_0 = arith.constant 0 : i32
    %c0_i32_1 = arith.constant 0 : i32
    return %c0_i32, %c0_i32_0 : i32, i32
  }
  func.func @transform_4(%arg0: i32) -> (i32, i32) {
    %c0_i32 = arith.constant 0 : i32
    %c0_i32_0 = arith.constant 0 : i32
    %c0_i32_1 = arith.constant 0 : i32
    return %c0_i32, %c0_i32_0 : i32, i32
  }
  func.func @transform_5(%arg0: i32) -> (i32, i32) {
    %c0_i32 = arith.constant 0 : i32
    %c0_i32_0 = arith.constant 0 : i32
    %c0_i32_1 = arith.constant 0 : i32
    return %c0_i32, %c0_i32_0 : i32, i32
  }
  func.func @transform_6(%arg0: i32) -> (i32, i32) {
    %c0_i32 = arith.constant 0 : i32
    %c0_i32_0 = arith.constant 0 : i32
    %c0_i32_1 = arith.constant 0 : i32
    return %c0_i32, %c0_i32_0 : i32, i32
  }
  func.func @transform_7(%arg0: i32) -> (i32, i32) {
    %c0_i32 = arith.constant 0 : i32
    %c0_i32_0 = arith.constant 0 : i32
    %c0_i32_1 = arith.constant 0 : i32
    return %c0_i32, %c0_i32_0 : i32, i32
  }
  func.func @transform_8(%arg0: i32) -> (i32, i32) {
    %c0_i32 = arith.constant 0 : i32
    %c0_i32_0 = arith.constant 0 : i32
    %c0_i32_1 = arith.constant 0 : i32
    return %c0_i32, %c0_i32_0 : i32, i32
  }
  func.func @transform_9(%arg0: i32) -> (i32, i32) {
    %c0_i32 = arith.constant 0 : i32
    %c0_i32_0 = arith.constant 0 : i32
    %c0_i32_1 = arith.constant 0 : i32
    return %c0_i32, %c0_i32_0 : i32, i32
  }
  func.func @transform_10(%arg0: i32) -> (i32, i32) {
    %c0_i32 = arith.constant 0 : i32
    %c0_i32_0 = arith.constant 0 : i32
    %c0_i32_1 = arith.constant 0 : i32
    return %c0_i32, %c0_i32_0 : i32, i32
  }
  func.func @transform_11(%arg0: i32) -> (i32, i32) {
    %c0_i32 = arith.constant 0 : i32
    %c0_i32_0 = arith.constant 0 : i32
    %c0_i32_1 = arith.constant 0 : i32
    return %c0_i32, %c0_i32_0 : i32, i32
  }
  func.func @transform_12(%arg0: i32) -> (i32, i32) {
    %c0_i32 = arith.constant 0 : i32
    %c0_i32_0 = arith.constant 0 : i32
    %c0_i32_1 = arith.constant 0 : i32
    return %c0_i32, %c0_i32_0 : i32, i32
  }
  func.func @transform_13(%arg0: i32) -> (i32, i32) {
    %c0_i32 = arith.constant 0 : i32
    %c0_i32_0 = arith.constant 0 : i32
    %c0_i32_1 = arith.constant 0 : i32
    return %c0_i32, %c0_i32_0 : i32, i32
  }
  func.func @transform_14(%arg0: i32) -> (i32, i32) {
    %c0_i32 = arith.constant 0 : i32
    %c0_i32_0 = arith.constant 0 : i32
    %c0_i32_1 = arith.constant 0 : i32
    return %c0_i32, %c0_i32_0 : i32, i32
  }
  func.func @transform_15(%arg0: i32) -> (i32, i32, i32) {
    %c0_i32 = arith.constant 0 : i32
    %c0_i32_0 = arith.constant 0 : i32
    %c0_i32_1 = arith.constant 0 : i32
    return %arg0, %c0_i32, %c0_i32_0 : i32, i32, i32
  }
}

</mosaic_0001>

<llo_original>
// kernel: depth_maps_classifier_forward.1
$region0: #{depth_maps_classifier_forward.1}
  #allocation0 [shape = 'u32[]', space=smem, size = 0x4, offset = 0x4, fixed_abs, tag = 'smem constant byte address 0x4 - core index']
  #allocation1 [shape = 'u32[72,128]{1,0:T(1,128)}', space=vmem, size = 0x9000, scoped, tag = 'internal scratch']
  #allocation2 [shape = 'f32[408,32]{1,0:T(8,128)}', space=vmem, size = 0x33000, scoped, tag = 'scratch operand']
  #allocation3 [shape = 'f32[360,16]{1,0:T(8,128)}', space=vmem, size = 0x2d000, scoped, tag = 'scratch operand']
  #allocation4 [shape = 'f32[96,64]{1,0:T(8,128)}', space=vmem, size = 0xc000, scoped, tag = 'scratch operand']
  #allocation5 [shape = 'f32[72,32]{1,0:T(8,128)}', space=vmem, size = 0x9000, scoped, tag = 'scratch operand']
  #allocation6 [shape = 'f32[16,128]{1,0:T(8,128)}', space=vmem, size = 0x2000, scoped, tag = 'scratch operand']
  %s0 = inlined_call_operand.vmem [shape: f32[2,400,64], index: 0, kind: input, shape index: {}]
  %s1 = inlined_call_operand.vmem [shape: f32[64,128], index: 1, kind: input, shape index: {}]
  %s2 = inlined_call_operand.vmem [shape: f32[1,128], index: 2, kind: input, shape index: {}]
  %s3 = inlined_call_operand.vmem [shape: f32[288,128], index: 3, kind: input, shape index: {}]
  %s4 = inlined_call_operand.vmem [shape: f32[1,128], index: 4, kind: input, shape index: {}]
  %s5 = inlined_call_operand.vmem [shape: f32[576,128], index: 5, kind: input, shape index: {}]
  %s6 = inlined_call_operand.vmem [shape: f32[1,128], index: 6, kind: input, shape index: {}]
  %s7 = inlined_call_operand.vmem [shape: f32[1152,256], index: 7, kind: input, shape index: {}]
  %s8 = inlined_call_operand.vmem [shape: f32[1,256], index: 8, kind: input, shape index: {}]
  %s9 = inlined_call_operand.vmem [shape: f32[64,256], index: 9, kind: input, shape index: {}]
  %s10 = inlined_call_operand.vmem [shape: f32[1,256], index: 10, kind: input, shape index: {}]
  %s11 = inlined_call_operand.vmem [shape: f32[256,256], index: 11, kind: input, shape index: {}]
  %s12 = inlined_call_operand.vmem [shape: f32[1,256], index: 12, kind: input, shape index: {}]
  %s13 = inlined_call_operand.vmem [shape: f32[256,128], index: 13, kind: input, shape index: {}]
  %s14 = inlined_call_operand.vmem [shape: f32[1,128], index: 14, kind: input, shape index: {}]
  %s15 = inlined_call_operand.hbm [shape: f32[2,1,128], index: 15, kind: output, shape index: {}]
  %s16 = sld [smem:[#allocation0]]
  $region93: #{depth_maps_classifier_forward.1} parent=0
    _
  %s18 = ssub.s32 1, %s16
  %s19 = scalar_select 0, %s18, %s16
  $region1: #{depth_maps_classifier_forward.1} parent=0
    #allocation7 [shape = 'u8[1024]{0}', space=vmem, size = 0x400, scoped, tag = 'output window, operand 0']
    #allocation8 [shape = 's32[2]{0}', space=sflag, size = 0x8, scoped, tag = 'scoped memory for depth_maps_classifier_forward.1']
    %20 = vsyncpa [#allocation8], 0
    %s21 = scalar_lea.sflag [#allocation8], 1
    %22 = vsyncpa %s21, 0
    loop: start=0, step=1, limit=4
    $region2: #{depth_maps_classifier_forward.1} parent=1 // loop_pre_header
      _
    $region3: #{depth_maps_classifier_forward.1} parent=1 // loop_header
      %s24 = sphi 0, %s28
      %p25 = scmp.ge.s32.totalorder %s24, 4
      %s34 = sphi 0, %s36
      %s37 = sphi 0, %s34
      %s38 = sphi 0, %s37
      %s54 = sphi 0, %s38
      %s58 = sphi 0, %s58
      %s60 = sphi 0, %s58
      %s61 = sphi 0, %s60
      %s75 = sphi 0, %s61
      %s79 = sphi 0, %s79
      %s81 = sphi 0, %s79
      %s82 = sphi 0, %s81
      %s96 = sphi 0, %s82
      %s100 = sphi 0, %s100
      %s102 = sphi 0, %s100
      %s103 = sphi 0, %s102
      %s117 = sphi 0, %s103
      %s121 = sphi 0, %s121
      %s123 = sphi 0, %s121
      %s124 = sphi 0, %s123
      %s138 = sphi 0, %s124
      %s142 = sphi 0, %s142
      %s144 = sphi 0, %s142
      %s145 = sphi 0, %s144
      %s159 = sphi 0, %s145
      %s163 = sphi 0, %s163
      %s165 = sphi 0, %s163
      %s166 = sphi 0, %s165
      %s180 = sphi 0, %s166
      %s184 = sphi 0, %s184
      %s186 = sphi 0, %s184
      %s187 = sphi 0, %s186
      %s201 = sphi 0, %s187
      %s205 = sphi 0, %s205
      %s207 = sphi 0, %s205
      %s208 = sphi 0, %s207
      %s222 = sphi 0, %s208
      %s226 = sphi 0, %s226
      %s228 = sphi 0, %s226
      %s229 = sphi 0, %s228
      %s243 = sphi 0, %s229
      %s247 = sphi 0, %s247
      %s249 = sphi 0, %s247
      %s250 = sphi 0, %s249
      %s264 = sphi 0, %s250
      %s268 = sphi 0, %s268
      %s270 = sphi 0, %s268
      %s271 = sphi 0, %s270
      %s285 = sphi 0, %s271
      %s289 = sphi 0, %s289
      %s291 = sphi 0, %s289
      %s292 = sphi 0, %s291
      %s306 = sphi 0, %s292
      %s310 = sphi 0, %s310
      %s312 = sphi 0, %s310
      %s313 = sphi 0, %s312
      %s327 = sphi 0, %s313
      %s331 = sphi 0, %s331
      %s333 = sphi 0, %s331
      %s334 = sphi 0, %s333
      %s348 = sphi 0, %s334
      %s354 = sphi 0, %s356
      %s357 = sphi 0, %s354
      %s358 = sphi 0, %s357
      %s374 = sphi 0, %s358
    $region4: #{depth_maps_classifier_forward.1} parent=1 // loop_header_branch
      %27 = sbr.rel (%p25) target = $region8
    $region5: #{depth_maps_classifier_forward.1} parent=1 // loop_body
      %s29 = ssub.s32 %s24, 1
      %s30 = ssub.s32 %s24, 2
      %s31 = sadd.s32 %s24, 1
      %s32 = ssub.s32 %s24, %s31
      %p33 = scmp.eq.s32.totalorder %s32, 0
      %s35 = sadd.s32 %s34, 1
      %s36 = scalar_select %p33, %s34, %s35
      %p39 = pneg %p33
      %p40 = scmp.eq.s32.totalorder %s24, 1
      %p41 = por %p39, %p40
      %p42 = scmp.ne.s32.totalorder %s34, %s37
      %p43 = scmp.eq.s32.totalorder %s24, 0
      %p44 = por %p42, %p43
      %p45 = scmp.ne.s32.totalorder %s34, %s37
      %p46 = scmp.eq.s32.totalorder %s29, 1
      %p47 = por %p45, %p46
      %p48 = scmp.ne.s32.totalorder %s37, %s38
      %p49 = scmp.eq.s32.totalorder %s29, 0
      %p50 = por %p48, %p49
      %p51 = scmp.ne.s32.totalorder %s37, %s38
      %p52 = scmp.eq.s32.totalorder %s30, 1
      %p53 = por %p51, %p52
      %p55 = scmp.ne.s32.totalorder %s38, %s54
      %p56 = scmp.eq.s32.totalorder %s30, 0
      %p57 = por %p55, %p56
      %s59 = sadd.s32 %s58, 1
      %p62 = scmp.eq.s32.totalorder %s24, 1
      %p63 = scmp.ne.s32.totalorder %s58, %s60
      %p64 = scmp.eq.s32.totalorder %s24, 0
      %p65 = por %p63, %p64
      %p66 = scmp.ne.s32.totalorder %s58, %s60
      %p67 = scmp.eq.s32.totalorder %s29, 1
      %p68 = por %p66, %p67
      %p69 = scmp.ne.s32.totalorder %s60, %s61
      %p70 = scmp.eq.s32.totalorder %s29, 0
      %p71 = por %p69, %p70
      %p72 = scmp.ne.s32.totalorder %s60, %s61
      %p73 = scmp.eq.s32.totalorder %s30, 1
      %p74 = por %p72, %p73
      %p76 = scmp.ne.s32.totalorder %s61, %s75
      %p77 = scmp.eq.s32.totalorder %s30, 0
      %p78 = por %p76, %p77
      %s80 = sadd.s32 %s79, 1
      %p83 = scmp.eq.s32.totalorder %s24, 1
      %p84 = scmp.ne.s32.totalorder %s79, %s81
      %p85 = scmp.eq.s32.totalorder %s24, 0
      %p86 = por %p84, %p85
      %p87 = scmp.ne.s32.totalorder %s79, %s81
      %p88 = scmp.eq.s32.totalorder %s29, 1
      %p89 = por %p87, %p88
      %p90 = scmp.ne.s32.totalorder %s81, %s82
      %p91 = scmp.eq.s32.totalorder %s29, 0
      %p92 = por %p90, %p91
      %p93 = scmp.ne.s32.totalorder %s81, %s82
      %p94 = scmp.eq.s32.totalorder %s30, 1
      %p95 = por %p93, %p94
      %p97 = scmp.ne.s32.totalorder %s82, %s96
      %p98 = scmp.eq.s32.totalorder %s30, 0
      %p99 = por %p97, %p98
      %s101 = sadd.s32 %s100, 1
      %p104 = scmp.eq.s32.totalorder %s24, 1
      %p105 = scmp.ne.s32.totalorder %s100, %s102
      %p106 = scmp.eq.s32.totalorder %s24, 0
      %p107 = por %p105, %p106
      %p108 = scmp.ne.s32.totalorder %s100, %s102
      %p109 = scmp.eq.s32.totalorder %s29, 1
      %p110 = por %p108, %p109
      %p111 = scmp.ne.s32.totalorder %s102, %s103
      %p112 = scmp.eq.s32.totalorder %s29, 0
      %p113 = por %p111, %p112
      %p114 = scmp.ne.s32.totalorder %s102, %s103
      %p115 = scmp.eq.s32.totalorder %s30, 1
      %p116 = por %p114, %p115
      %p118 = scmp.ne.s32.totalorder %s103, %s117
      %p119 = scmp.eq.s32.totalorder %s30, 0
      %p120 = por %p118, %p119
      %s122 = sadd.s32 %s121, 1
      %p125 = scmp.eq.s32.totalorder %s24, 1
      %p126 = scmp.ne.s32.totalorder %s121, %s123
      %p127 = scmp.eq.s32.totalorder %s24, 0
      %p128 = por %p126, %p127
      %p129 = scmp.ne.s32.totalorder %s121, %s123
      %p130 = scmp.eq.s32.totalorder %s29, 1
      %p131 = por %p129, %p130
      %p132 = scmp.ne.s32.totalorder %s123, %s124
      %p133 = scmp.eq.s32.totalorder %s29, 0
      %p134 = por %p132, %p133
      %p135 = scmp.ne.s32.totalorder %s123, %s124
      %p136 = scmp.eq.s32.totalorder %s30, 1
      %p137 = por %p135, %p136
      %p139 = scmp.ne.s32.totalorder %s124, %s138
      %p140 = scmp.eq.s32.totalorder %s30, 0
      %p141 = por %p139, %p140
      %s143 = sadd.s32 %s142, 1
      %p146 = scmp.eq.s32.totalorder %s24, 1
      %p147 = scmp.ne.s32.totalorder %s142, %s144
      %p148 = scmp.eq.s32.totalorder %s24, 0
      %p149 = por %p147, %p148
      %p150 = scmp.ne.s32.totalorder %s142, %s144
      %p151 = scmp.eq.s32.totalorder %s29, 1
      %p152 = por %p150, %p151
      %p153 = scmp.ne.s32.totalorder %s144, %s145
      %p154 = scmp.eq.s32.totalorder %s29, 0
      %p155 = por %p153, %p154
      %p156 = scmp.ne.s32.totalorder %s144, %s145
      %p157 = scmp.eq.s32.totalorder %s30, 1
      %p158 = por %p156, %p157
      %p160 = scmp.ne.s32.totalorder %s145, %s159
      %p161 = scmp.eq.s32.totalorder %s30, 0
      %p162 = por %p160, %p161
      %s164 = sadd.s32 %s163, 1
      %p167 = scmp.eq.s32.totalorder %s24, 1
      %p168 = scmp.ne.s32.totalorder %s163, %s165
      %p169 = scmp.eq.s32.totalorder %s24, 0
      %p170 = por %p168, %p169
      %p171 = scmp.ne.s32.totalorder %s163, %s165
      %p172 = scmp.eq.s32.totalorder %s29, 1
      %p173 = por %p171, %p172
      %p174 = scmp.ne.s32.totalorder %s165, %s166
      %p175 = scmp.eq.s32.totalorder %s29, 0
      %p176 = por %p174, %p175
      %p177 = scmp.ne.s32.totalorder %s165, %s166
      %p178 = scmp.eq.s32.totalorder %s30, 1
      %p179 = por %p177, %p178
      %p181 = scmp.ne.s32.totalorder %s166, %s180
      %p182 = scmp.eq.s32.totalorder %s30, 0
      %p183 = por %p181, %p182
      %s185 = sadd.s32 %s184, 1
      %p188 = scmp.eq.s32.totalorder %s24, 1
      %p189 = scmp.ne.s32.totalorder %s184, %s186
      %p190 = scmp.eq.s32.totalorder %s24, 0
      %p191 = por %p189, %p190
      %p192 = scmp.ne.s32.totalorder %s184, %s186
      %p193 = scmp.eq.s32.totalorder %s29, 1
      %p194 = por %p192, %p193
      %p195 = scmp.ne.s32.totalorder %s186, %s187
      %p196 = scmp.eq.s32.totalorder %s29, 0
      %p197 = por %p195, %p196
      %p198 = scmp.ne.s32.totalorder %s186, %s187
      %p199 = scmp.eq.s32.totalorder %s30, 1
      %p200 = por %p198, %p199
      %p202 = scmp.ne.s32.totalorder %s187, %s201
      %p203 = scmp.eq.s32.totalorder %s30, 0
      %p204 = por %p202, %p203
      %s206 = sadd.s32 %s205, 1
      %p209 = scmp.eq.s32.totalorder %s24, 1
      %p210 = scmp.ne.s32.totalorder %s205, %s207
      %p211 = scmp.eq.s32.totalorder %s24, 0
      %p212 = por %p210, %p211
      %p213 = scmp.ne.s32.totalorder %s205, %s207
      %p214 = scmp.eq.s32.totalorder %s29, 1
      %p215 = por %p213, %p214
      %p216 = scmp.ne.s32.totalorder %s207, %s208
      %p217 = scmp.eq.s32.totalorder %s29, 0
      %p218 = por %p216, %p217
      %p219 = scmp.ne.s32.totalorder %s207, %s208
      %p220 = scmp.eq.s32.totalorder %s30, 1
      %p221 = por %p219, %p220
      %p223 = scmp.ne.s32.totalorder %s208, %s222
      %p224 = scmp.eq.s32.totalorder %s30, 0
      %p225 = por %p223, %p224
      %s227 = sadd.s32 %s226, 1
      %p230 = scmp.eq.s32.totalorder %s24, 1
      %p231 = scmp.ne.s32.totalorder %s226, %s228
      %p232 = scmp.eq.s32.totalorder %s24, 0
      %p233 = por %p231, %p232
      %p234 = scmp.ne.s32.totalorder %s226, %s228
      %p235 = scmp.eq.s32.totalorder %s29, 1
      %p236 = por %p234, %p235
      %p237 = scmp.ne.s32.totalorder %s228, %s229
      %p238 = scmp.eq.s32.totalorder %s29, 0
      %p239 = por %p237, %p238
      %p240 = scmp.ne.s32.totalorder %s228, %s229
      %p241 = scmp.eq.s32.totalorder %s30, 1
      %p242 = por %p240, %p241
      %p244 = scmp.ne.s32.totalorder %s229, %s243
      %p245 = scmp.eq.s32.totalorder %s30, 0
      %p246 = por %p244, %p245
      %s248 = sadd.s32 %s247, 1
      %p251 = scmp.eq.s32.totalorder %s24, 1
      %p252 = scmp.ne.s32.totalorder %s247, %s249
      %p253 = scmp.eq.s32.totalorder %s24, 0
      %p254 = por %p252, %p253
      %p255 = scmp.ne.s32.totalorder %s247, %s249
      %p256 = scmp.eq.s32.totalorder %s29, 1
      %p257 = por %p255, %p256
      %p258 = scmp.ne.s32.totalorder %s249, %s250
      %p259 = scmp.eq.s32.totalorder %s29, 0
      %p260 = por %p258, %p259
      %p261 = scmp.ne.s32.totalorder %s249, %s250
      %p262 = scmp.eq.s32.totalorder %s30, 1
      %p263 = por %p261, %p262
      %p265 = scmp.ne.s32.totalorder %s250, %s264
      %p266 = scmp.eq.s32.totalorder %s30, 0
      %p267 = por %p265, %p266
      %s269 = sadd.s32 %s268, 1
      %p272 = scmp.eq.s32.totalorder %s24, 1
      %p273 = scmp.ne.s32.totalorder %s268, %s270
      %p274 = scmp.eq.s32.totalorder %s24, 0
      %p275 = por %p273, %p274
      %p276 = scmp.ne.s32.totalorder %s268, %s270
      %p277 = scmp.eq.s32.totalorder %s29, 1
      %p278 = por %p276, %p277
      %p279 = scmp.ne.s32.totalorder %s270, %s271
      %p280 = scmp.eq.s32.totalorder %s29, 0
      %p281 = por %p279, %p280
      %p282 = scmp.ne.s32.totalorder %s270, %s271
      %p283 = scmp.eq.s32.totalorder %s30, 1
      %p284 = por %p282, %p283
      %p286 = scmp.ne.s32.totalorder %s271, %s285
      %p287 = scmp.eq.s32.totalorder %s30, 0
      %p288 = por %p286, %p287
      %s290 = sadd.s32 %s289, 1
      %p293 = scmp.eq.s32.totalorder %s24, 1
      %p294 = scmp.ne.s32.totalorder %s289, %s291
      %p295 = scmp.eq.s32.totalorder %s24, 0
      %p296 = por %p294, %p295
      %p297 = scmp.ne.s32.totalorder %s289, %s291
      %p298 = scmp.eq.s32.totalorder %s29, 1
      %p299 = por %p297, %p298
      %p300 = scmp.ne.s32.totalorder %s291, %s292
      %p301 = scmp.eq.s32.totalorder %s29, 0
      %p302 = por %p300, %p301
      %p303 = scmp.ne.s32.totalorder %s291, %s292
      %p304 = scmp.eq.s32.totalorder %s30, 1
      %p305 = por %p303, %p304
      %p307 = scmp.ne.s32.totalorder %s292, %s306
      %p308 = scmp.eq.s32.totalorder %s30, 0
      %p309 = por %p307, %p308
      %s311 = sadd.s32 %s310, 1
      %p314 = scmp.eq.s32.totalorder %s24, 1
      %p315 = scmp.ne.s32.totalorder %s310, %s312
      %p316 = scmp.eq.s32.totalorder %s24, 0
      %p317 = por %p315, %p316
      %p318 = scmp.ne.s32.totalorder %s310, %s312
      %p319 = scmp.eq.s32.totalorder %s29, 1
      %p320 = por %p318, %p319
      %p321 = scmp.ne.s32.totalorder %s312, %s313
      %p322 = scmp.eq.s32.totalorder %s29, 0
      %p323 = por %p321, %p322
      %p324 = scmp.ne.s32.totalorder %s312, %s313
      %p325 = scmp.eq.s32.totalorder %s30, 1
      %p326 = por %p324, %p325
      %p328 = scmp.ne.s32.totalorder %s313, %s327
      %p329 = scmp.eq.s32.totalorder %s30, 0
      %p330 = por %p328, %p329
      %s332 = sadd.s32 %s331, 1
      %p335 = scmp.eq.s32.totalorder %s24, 1
      %p336 = scmp.ne.s32.totalorder %s331, %s333
      %p337 = scmp.eq.s32.totalorder %s24, 0
      %p338 = por %p336, %p337
      %p339 = scmp.ne.s32.totalorder %s331, %s333
      %p340 = scmp.eq.s32.totalorder %s29, 1
      %p341 = por %p339, %p340
      %p342 = scmp.ne.s32.totalorder %s333, %s334
      %p343 = scmp.eq.s32.totalorder %s29, 0
      %p344 = por %p342, %p343
      %p345 = scmp.ne.s32.totalorder %s333, %s334
      %p346 = scmp.eq.s32.totalorder %s30, 1
      %p347 = por %p345, %p346
      %p349 = scmp.ne.s32.totalorder %s334, %s348
      %p350 = scmp.eq.s32.totalorder %s30, 0
      %p351 = por %p349, %p350
      %s352 = ssub.s32 %s24, %s31
      %p353 = scmp.eq.s32.totalorder %s352, 0
      %s355 = sadd.s32 %s354, 1
      %s356 = scalar_select %p353, %s354, %s355
      %p359 = pneg %p353
      %p360 = scmp.eq.s32.totalorder %s24, 1
      %p361 = por %p359, %p360
      %p362 = scmp.ne.s32.totalorder %s354, %s357
      %p363 = scmp.eq.s32.totalorder %s24, 0
      %p364 = por %p362, %p363
      %p365 = scmp.ne.s32.totalorder %s354, %s357
      %p366 = scmp.eq.s32.totalorder %s29, 1
      %p367 = por %p365, %p366
      %p368 = scmp.ne.s32.totalorder %s357, %s358
      %p369 = scmp.eq.s32.totalorder %s29, 0
      %p370 = por %p368, %p369
      %p371 = scmp.ne.s32.totalorder %s357, %s358
      %p372 = scmp.eq.s32.totalorder %s30, 1
      %p373 = por %p371, %p372
      %p375 = scmp.ne.s32.totalorder %s358, %s374
      %p376 = scmp.eq.s32.totalorder %s30, 0
      %p377 = por %p375, %p376
      %p378 = scmp.le.s32.totalorder 1, %s24
      %p379 = scmp.lt.s32.totalorder %s24, 3
      %p380 = pnand %p378, %p379
      %p381 = pneg %p380
      // Predicated region
      $region9: #{depth_maps_classifier_forward.1} parent=5 // pred_check
        _
      $region10: #{depth_maps_classifier_forward.1} parent=5 // pred_check_branch
        %383 = sbr.rel (%p380) target = $region12
      $region11: #{depth_maps_classifier_forward.1} parent=5 // pred_region
        %s384 = ssub.s32 %s24, 1
        // Predicated region
        $region13: #{depth_maps_classifier_forward.1} parent=11 // pred_check
          %p385 = pneg %p71
        $region14: #{depth_maps_classifier_forward.1} parent=11 // pred_check_branch
          %387 = sbr.rel (%p385) target = $region16
        $region15: #{depth_maps_classifier_forward.1} parent=11 // pred_region
          _
        $region16: #{depth_maps_classifier_forward.1} parent=11 // pred_fallthru
          _
        // Predicated region
        $region17: #{depth_maps_classifier_forward.1} parent=11 // pred_check
          %p388 = pneg %p92
        $region18: #{depth_maps_classifier_forward.1} parent=11 // pred_check_branch
          %390 = sbr.rel (%p388) target = $region20
        $region19: #{depth_maps_classifier_forward.1} parent=11 // pred_region
          _
        $region20: #{depth_maps_classifier_forward.1} parent=11 // pred_fallthru
          _
        // Predicated region
        $region21: #{depth_maps_classifier_forward.1} parent=11 // pred_check
          %p391 = pneg %p113
        $region22: #{depth_maps_classifier_forward.1} parent=11 // pred_check_branch
          %393 = sbr.rel (%p391) target = $region24
        $region23: #{depth_maps_classifier_forward.1} parent=11 // pred_region
          _
        $region24: #{depth_maps_classifier_forward.1} parent=11 // pred_fallthru
          _
        // Predicated region
        $region25: #{depth_maps_classifier_forward.1} parent=11 // pred_check
          %p394 = pneg %p134
        $region26: #{depth_maps_classifier_forward.1} parent=11 // pred_check_branch
          %396 = sbr.rel (%p394) target = $region28
        $region27: #{depth_maps_classifier_forward.1} parent=11 // pred_region
          _
        $region28: #{depth_maps_classifier_forward.1} parent=11 // pred_fallthru
          _
        // Predicated region
        $region29: #{depth_maps_classifier_forward.1} parent=11 // pred_check
          %p397 = pneg %p155
        $region30: #{depth_maps_classifier_forward.1} parent=11 // pred_check_branch
          %399 = sbr.rel (%p397) target = $region32
        $region31: #{depth_maps_classifier_forward.1} parent=11 // pred_region
          _
        $region32: #{depth_maps_classifier_forward.1} parent=11 // pred_fallthru
          _
        // Predicated region
        $region33: #{depth_maps_classifier_forward.1} parent=11 // pred_check
          %p400 = pneg %p176
        $region34: #{depth_maps_classifier_forward.1} parent=11 // pred_check_branch
          %402 = sbr.rel (%p400) target = $region36
        $region35: #{depth_maps_classifier_forward.1} parent=11 // pred_region
          _
        $region36: #{depth_maps_classifier_forward.1} parent=11 // pred_fallthru
          _
        // Predicated region
        $region37: #{depth_maps_classifier_forward.1} parent=11 // pred_check
          %p403 = pneg %p197
        $region38: #{depth_maps_classifier_forward.1} parent=11 // pred_check_branch
          %405 = sbr.rel (%p403) target = $region40
        $region39: #{depth_maps_classifier_forward.1} parent=11 // pred_region
          _
        $region40: #{depth_maps_classifier_forward.1} parent=11 // pred_fallthru
          _
        // Predicated region
        $region41: #{depth_maps_classifier_forward.1} parent=11 // pred_check
          %p406 = pneg %p218
        $region42: #{depth_maps_classifier_forward.1} parent=11 // pred_check_branch
          %408 = sbr.rel (%p406) target = $region44
        $region43: #{depth_maps_classifier_forward.1} parent=11 // pred_region
          _
        $region44: #{depth_maps_classifier_forward.1} parent=11 // pred_fallthru
          _
        // Predicated region
        $region45: #{depth_maps_classifier_forward.1} parent=11 // pred_check
          %p409 = pneg %p239
        $region46: #{depth_maps_classifier_forward.1} parent=11 // pred_check_branch
          %411 = sbr.rel (%p409) target = $region48
        $region47: #{depth_maps_classifier_forward.1} parent=11 // pred_region
          _
        $region48: #{depth_maps_classifier_forward.1} parent=11 // pred_fallthru
          _
        // Predicated region
        $region49: #{depth_maps_classifier_forward.1} parent=11 // pred_check
          %p412 = pneg %p260
        $region50: #{depth_maps_classifier_forward.1} parent=11 // pred_check_branch
          %414 = sbr.rel (%p412) target = $region52
        $region51: #{depth_maps_classifier_forward.1} parent=11 // pred_region
          _
        $region52: #{depth_maps_classifier_forward.1} parent=11 // pred_fallthru
          _
        // Predicated region
        $region53: #{depth_maps_classifier_forward.1} parent=11 // pred_check
          %p415 = pneg %p281
        $region54: #{depth_maps_classifier_forward.1} parent=11 // pred_check_branch
          %417 = sbr.rel (%p415) target = $region56
        $region55: #{depth_maps_classifier_forward.1} parent=11 // pred_region
          _
        $region56: #{depth_maps_classifier_forward.1} parent=11 // pred_fallthru
          _
        // Predicated region
        $region57: #{depth_maps_classifier_forward.1} parent=11 // pred_check
          %p418 = pneg %p302
        $region58: #{depth_maps_classifier_forward.1} parent=11 // pred_check_branch
          %420 = sbr.rel (%p418) target = $region60
        $region59: #{depth_maps_classifier_forward.1} parent=11 // pred_region
          _
        $region60: #{depth_maps_classifier_forward.1} parent=11 // pred_fallthru
          _
        // Predicated region
        $region61: #{depth_maps_classifier_forward.1} parent=11 // pred_check
          %p421 = pneg %p323
        $region62: #{depth_maps_classifier_forward.1} parent=11 // pred_check_branch
          %423 = sbr.rel (%p421) target = $region64
        $region63: #{depth_maps_classifier_forward.1} parent=11 // pred_region
          _
        $region64: #{depth_maps_classifier_forward.1} parent=11 // pred_fallthru
          _
        // Predicated region
        $region65: #{depth_maps_classifier_forward.1} parent=11 // pred_check
          %p424 = pneg %p344
        $region66: #{depth_maps_classifier_forward.1} parent=11 // pred_check_branch
          %426 = sbr.rel (%p424) target = $region68
        $region67: #{depth_maps_classifier_forward.1} parent=11 // pred_region
          _
        $region68: #{depth_maps_classifier_forward.1} parent=11 // pred_fallthru
          _
      $region12: #{depth_maps_classifier_forward.1} parent=5 // pred_fallthru
        _
      %p427 = scmp.lt.s32.totalorder %s24, 2
      // Predicated region
      $region69: #{depth_maps_classifier_forward.1} parent=5 // pred_check
        %p428 = pneg %p427
      $region70: #{depth_maps_classifier_forward.1} parent=5 // pred_check_branch
        %430 = sbr.rel (%p428) target = $region72
      $region71: #{depth_maps_classifier_forward.1} parent=5 // pred_region
        // Predicated region
        $region73: #{depth_maps_classifier_forward.1} parent=71 // pred_check
          %p431 = pneg %p44
        $region74: #{depth_maps_classifier_forward.1} parent=71 // pred_check_branch
          %433 = sbr.rel (%p431) target = $region76
        $region75: #{depth_maps_classifier_forward.1} parent=71 // pred_region
          %p434 = scmp.lt.s32.totalorder %s24, 1
          %s435 = scalar_select %p434, %s24, 1
          %s436 = smul.addr %s435, 50
          %s437 = smul.addr %s436, 8
          %s438 = scalar_lea.vmem %s0, %s437
        $region76: #{depth_maps_classifier_forward.1} parent=71 // pred_fallthru
          _
      $region72: #{depth_maps_classifier_forward.1} parent=5 // pred_fallthru
        _
      %p439 = scmp.le.s32.totalorder 1, %s24
      %p440 = scmp.lt.s32.totalorder %s24, 3
      %p441 = pnand %p439, %p440
      %p442 = pneg %p441
      // Predicated region
      $region77: #{depth_maps_classifier_forward.1} parent=5 // pred_check
        _
      $region78: #{depth_maps_classifier_forward.1} parent=5 // pred_check_branch
        %444 = sbr.rel (%p441) target = $region80
      $region79: #{depth_maps_classifier_forward.1} parent=5 // pred_region
        %s445 = ssub.s32 %s24, 1
        %p446 = scmp.lt.s32.totalorder %s29, 1
        %s447 = scalar_select %p446, %s29, 1
        %s448 = smul.addr %s447, 50
        %s449 = smul.addr %s448, 8
        %s450 = scalar_lea.vmem %s0, %s449
        %p451 = pneg %p50
        %p452 = pneg %p47
        %p453 = pneg %p71
        %p454 = pneg %p68
        %p455 = pneg %p92
        %p456 = pneg %p89
        %p457 = pneg %p113
        %p458 = pneg %p110
        %p459 = pneg %p134
        %p460 = pneg %p131
        %p461 = pneg %p155
        %p462 = pneg %p152
        %p463 = pneg %p176
        %p464 = pneg %p173
        %p465 = pneg %p197
        %p466 = pneg %p194
        %p467 = pneg %p218
        %p468 = pneg %p215
        %p469 = pneg %p239
        %p470 = pneg %p236
        %p471 = pneg %p260
        %p472 = pneg %p257
        %p473 = pneg %p281
        %p474 = pneg %p278
        %p475 = pneg %p302
        %p476 = pneg %p299
        %p477 = pneg %p323
        %p478 = pneg %p320
        %p479 = pneg %p344
        %p480 = pneg %p341
        %p481 = pneg %p370
        %p482 = pneg %p367
        %s483 = sand.u32 %s357, 1
        %s484 = scalar_lea.sflag [#allocation8], %s483
        %s485 = sand.u32 %s357, 1
        %s486 = scalar_lea.vmem [#allocation7], %s485
        %p487 = scmp.lt.s32.totalorder %s29, 1
        %s488 = scalar_select %p487, %s29, 1
        %s489 = smul.addr %s488, 50
        %s490 = smul.addr %s489, 8
        %s491 = scalar_lea.vmem %s0, %s490
        %vm492 = vcmask 261120
        %493 = vst.msk [vmem:[#allocation2] sm:$0xff] %vm492, 0.0
        %494 = vst.msk [vmem:[#allocation2 + $0x8] sm:$0xff] %vm492, 0.0
        %495 = vst.msk [vmem:[#allocation2 + $0x10] sm:$0xff] %vm492, 0.0
        %496 = vst.msk [vmem:[#allocation2 + $0x18] sm:$0xff] %vm492, 0.0
        %497 = vst.msk [vmem:[#allocation2 + $0x20] sm:$0xff] %vm492, 0.0
        %498 = vst.msk [vmem:[#allocation2 + $0x28] sm:$0xff] %vm492, 0.0
        %499 = vst.msk [vmem:[#allocation2 + $0x30] sm:$0xff] %vm492, 0.0
        %500 = vst.msk [vmem:[#allocation2 + $0x38] sm:$0xff] %vm492, 0.0
        %501 = vst.msk [vmem:[#allocation2 + $0x40] sm:$0xff] %vm492, 0.0
        %502 = vst.msk [vmem:[#allocation2 + $0x48] sm:$0xff] %vm492, 0.0
        %503 = vst.msk [vmem:[#allocation2 + $0x50] sm:$0xff] %vm492, 0.0
        %504 = vst.msk [vmem:[#allocation2 + $0x58] sm:$0xff] %vm492, 0.0
        %505 = vst.msk [vmem:[#allocation2 + $0x60] sm:$0xff] %vm492, 0.0
        %506 = vst.msk [vmem:[#allocation2 + $0x68] sm:$0xff] %vm492, 0.0
        %507 = vst.msk [vmem:[#allocation2 + $0x70] sm:$0xff] %vm492, 0.0
        %508 = vst.msk [vmem:[#allocation2 + $0x78] sm:$0xff] %vm492, 0.0
        %509 = vst.msk [vmem:[#allocation2 + $0x80] sm:$0xff] %vm492, 0.0
        %510 = vst.msk [vmem:[#allocation2 + $0x88] sm:$0xff] %vm492, 0.0
        %511 = vst.msk [vmem:[#allocation2 + $0x90] sm:$0xff] %vm492, 0.0
        %512 = vst.msk [vmem:[#allocation2 + $0x98] sm:$0xff] %vm492, 0.0
        %513 = vst.msk [vmem:[#allocation2 + $0xa0] sm:$0xff] %vm492, 0.0
        %514 = vst.msk [vmem:[#allocation2 + $0xa8] sm:$0xff] %vm492, 0.0
        %515 = vst.msk [vmem:[#allocation2 + $0xb0] sm:$0xff] %vm492, 0.0
        %516 = vst.msk [vmem:[#allocation2 + $0xb8] sm:$0xff] %vm492, 0.0
        %517 = vst.msk [vmem:[#allocation2 + $0xc0] sm:$0xff] %vm492, 0.0
        %518 = vst.msk [vmem:[#allocation2 + $0xc8] sm:$0xff] %vm492, 0.0
        %519 = vst.msk [vmem:[#allocation2 + $0xd0] sm:$0xff] %vm492, 0.0
        %520 = vst.msk [vmem:[#allocation2 + $0xd8] sm:$0xff] %vm492, 0.0
        %521 = vst.msk [vmem:[#allocation2 + $0xe0] sm:$0xff] %vm492, 0.0
        %522 = vst.msk [vmem:[#allocation2 + $0xe8] sm:$0xff] %vm492, 0.0
        %523 = vst.msk [vmem:[#allocation2 + $0xf0] sm:$0xff] %vm492, 0.0
        %524 = vst.msk [vmem:[#allocation2 + $0xf8] sm:$0xff] %vm492, 0.0
        %525 = vst.msk [vmem:[#allocation2 + $0x100] sm:$0xff] %vm492, 0.0
        %526 = vst.msk [vmem:[#allocation2 + $0x108] sm:$0xff] %vm492, 0.0
        %527 = vst.msk [vmem:[#allocation2 + $0x110] sm:$0xff] %vm492, 0.0
        %528 = vst.msk [vmem:[#allocation2 + $0x118] sm:$0xff] %vm492, 0.0
        %529 = vst.msk [vmem:[#allocation2 + $0x120] sm:$0xff] %vm492, 0.0
        %530 = vst.msk [vmem:[#allocation2 + $0x128] sm:$0xff] %vm492, 0.0
        %531 = vst.msk [vmem:[#allocation2 + $0x130] sm:$0xff] %vm492, 0.0
        %532 = vst.msk [vmem:[#allocation2 + $0x138] sm:$0xff] %vm492, 0.0
        %533 = vst.msk [vmem:[#allocation2 + $0x140] sm:$0xff] %vm492, 0.0
        %534 = vst.msk [vmem:[#allocation2 + $0x148] sm:$0xff] %vm492, 0.0
        %535 = vst.msk [vmem:[#allocation2 + $0x150] sm:$0xff] %vm492, 0.0
        %536 = vst.msk [vmem:[#allocation2 + $0x158] sm:$0xff] %vm492, 0.0
        %537 = vst.msk [vmem:[#allocation2 + $0x160] sm:$0xff] %vm492, 0.0
        %538 = vst.msk [vmem:[#allocation2 + $0x168] sm:$0xff] %vm492, 0.0
        %539 = vst.msk [vmem:[#allocation2 + $0x170] sm:$0xff] %vm492, 0.0
        %540 = vst.msk [vmem:[#allocation2 + $0x178] sm:$0xff] %vm492, 0.0
        %541 = vst.msk [vmem:[#allocation2 + $0x180] sm:$0xff] %vm492, 0.0
        %542 = vst.msk [vmem:[#allocation2 + $0x188] sm:$0xff] %vm492, 0.0
        %543 = vst.msk [vmem:[#allocation2 + $0x190] sm:$0xff] %vm492, 0.0
        %vm544 = vcmask 523264
        %545 = vst.msk [vmem:[#allocation4] sm:$0xff] %vm544, 0.0
        %546 = vst.msk [vmem:[#allocation4 + $0x8] sm:$0xff] %vm544, 0.0
        %547 = vst.msk [vmem:[#allocation4 + $0x10] sm:$0xff] %vm544, 0.0
        %548 = vst.msk [vmem:[#allocation4 + $0x18] sm:$0xff] %vm544, 0.0
        %549 = vst.msk [vmem:[#allocation4 + $0x20] sm:$0xff] %vm544, 0.0
        %550 = vst.msk [vmem:[#allocation4 + $0x28] sm:$0xff] %vm544, 0.0
        %551 = vst.msk [vmem:[#allocation4 + $0x30] sm:$0xff] %vm544, 0.0
        %552 = vst.msk [vmem:[#allocation4 + $0x38] sm:$0xff] %vm544, 0.0
        %553 = vst.msk [vmem:[#allocation4 + $0x40] sm:$0xff] %vm544, 0.0
        %554 = vst.msk [vmem:[#allocation4 + $0x48] sm:$0xff] %vm544, 0.0
        %555 = vst.msk [vmem:[#allocation4 + $0x50] sm:$0xff] %vm544, 0.0
        %556 = vst.msk [vmem:[#allocation4 + $0x58] sm:$0xff] %vm544, 0.0
        %557 = vst [vmem:[#allocation6] sm:$0xff] 0.0
        %558 = vst [vmem:[#allocation6 + $0x8] sm:$0xff] 0.0
        %v559 = vld [vmem:[%s491] sm:$0xff]
        %v560 = vld [vmem:[%s491 + $0x8] sm:$0xff]
        %v561 = vld [vmem:[%s491 + $0x10] sm:$0xff]
        %v562 = vld [vmem:[%s491 + $0x18] sm:$0xff]
        %v563 = vld [vmem:[%s491 + $0x20] sm:$0xff]
        %v564 = vld [vmem:[%s491 + $0x28] sm:$0xff]
        %v565 = vld [vmem:[%s491 + $0x30] sm:$0xff]
        %v566 = vld [vmem:[%s491 + $0x38] sm:$0xff]
        %v567 = vld [vmem:[%s491 + $0x40] sm:$0xff]
        %v568 = vld [vmem:[%s491 + $0x48] sm:$0xff]
        %v569 = vld [vmem:[%s491 + $0x50] sm:$0xff]
        %v570 = vld [vmem:[%s491 + $0x58] sm:$0xff]
        %v571 = vld [vmem:[%s491 + $0x60] sm:$0xff]
        %v572 = vld [vmem:[%s491 + $0x68] sm:$0xff]
        %v573 = vld [vmem:[%s491 + $0x70] sm:$0xff]
        %v574 = vld [vmem:[%s491 + $0x78] sm:$0xff]
        %v575 = vld [vmem:[%s491 + $0x80] sm:$0xff]
        %v576 = vld [vmem:[%s491 + $0x88] sm:$0xff]
        %v577 = vld [vmem:[%s491 + $0x90] sm:$0xff]
        %v578 = vld [vmem:[%s491 + $0x98] sm:$0xff]
        %v579 = vld [vmem:[%s491 + $0xa0] sm:$0xff]
        %v580 = vld [vmem:[%s491 + $0xa8] sm:$0xff]
        %v581 = vld [vmem:[%s491 + $0xb0] sm:$0xff]
        %v582 = vld [vmem:[%s491 + $0xb8] sm:$0xff]
        %v583 = vld [vmem:[%s491 + $0xc0] sm:$0xff]
        %v584 = vld [vmem:[%s491 + $0xc8] sm:$0xff]
        %v585 = vld [vmem:[%s491 + $0xd0] sm:$0xff]
        %v586 = vld [vmem:[%s491 + $0xd8] sm:$0xff]
        %v587 = vld [vmem:[%s491 + $0xe0] sm:$0xff]
        %v588 = vld [vmem:[%s491 + $0xe8] sm:$0xff]
        %v589 = vld [vmem:[%s491 + $0xf0] sm:$0xff]
        %v590 = vld [vmem:[%s491 + $0xf8] sm:$0xff]
        %v591 = vld [vmem:[%s491 + $0x100] sm:$0xff]
        %v592 = vld [vmem:[%s491 + $0x108] sm:$0xff]
        %v593 = vld [vmem:[%s491 + $0x110] sm:$0xff]
        %v594 = vld [vmem:[%s491 + $0x118] sm:$0xff]
        %v595 = vld [vmem:[%s491 + $0x120] sm:$0xff]
        %v596 = vld [vmem:[%s491 + $0x128] sm:$0xff]
        %v597 = vld [vmem:[%s491 + $0x130] sm:$0xff]
        %v598 = vld [vmem:[%s491 + $0x138] sm:$0xff]
        %v599 = vld [vmem:[%s491 + $0x140] sm:$0xff]
        %v600 = vld [vmem:[%s491 + $0x148] sm:$0xff]
        %v601 = vld [vmem:[%s491 + $0x150] sm:$0xff]
        %v602 = vld [vmem:[%s491 + $0x158] sm:$0xff]
        %v603 = vld [vmem:[%s491 + $0x160] sm:$0xff]
        %v604 = vld [vmem:[%s491 + $0x168] sm:$0xff]
        %v605 = vld [vmem:[%s491 + $0x170] sm:$0xff]
        %v606 = vld [vmem:[%s491 + $0x178] sm:$0xff]
        %v607 = vld [vmem:[%s491 + $0x180] sm:$0xff]
        %v608 = vld [vmem:[%s491 + $0x188] sm:$0xff]
        %v609 = vld [vmem:[%s1] sm:$0xff]
        %v610 = vld [vmem:[%s1 + $0x8] sm:$0xff]
        %v611 = vld [vmem:[%s1 + $0x10] sm:$0xff]
        %v612 = vld [vmem:[%s1 + $0x18] sm:$0xff]
        %v613 = vld [vmem:[%s1 + $0x20] sm:$0xff]
        %v614 = vld [vmem:[%s1 + $0x28] sm:$0xff]
        %v615 = vld [vmem:[%s1 + $0x30] sm:$0xff]
        %v616 = vld [vmem:[%s1 + $0x38] sm:$0xff]
        %v617 = vld [vmem:[%s2] sm:$0x1]
        %v619 = vperm.slane %v617, 0
        %v622 = vsel %vm544, %v559, 0
        %v625 = vsel %vm544, %v560, 0
        %v628 = vsel %vm544, %v561, 0
        %v631 = vsel %vm544, %v562, 0
        %v634 = vsel %vm544, %v563, 0
        %v637 = vsel %vm544, %v564, 0
        %v640 = vsel %vm544, %v565, 0
        %v643 = vsel %vm544, %v566, 0
        %v646 = vsel %vm544, %v567, 0
        %v649 = vsel %vm544, %v568, 0
        %v652 = vsel %vm544, %v569, 0
        %v655 = vsel %vm544, %v570, 0
        %v658 = vsel %vm544, %v571, 0
        %v661 = vsel %vm544, %v572, 0
        %v664 = vsel %vm544, %v573, 0
        %v667 = vsel %vm544, %v574, 0
        %v670 = vsel %vm544, %v575, 0
        %v673 = vsel %vm544, %v576, 0
        %v676 = vsel %vm544, %v577, 0
        %v679 = vsel %vm544, %v578, 0
        %v682 = vsel %vm544, %v579, 0
        %v685 = vsel %vm544, %v580, 0
        %v688 = vsel %vm544, %v581, 0
        %v691 = vsel %vm544, %v582, 0
        %v694 = vsel %vm544, %v583, 0
        %v697 = vsel %vm544, %v584, 0
        %v700 = vsel %vm544, %v585, 0
        %v703 = vsel %vm544, %v586, 0
        %v706 = vsel %vm544, %v587, 0
        %v709 = vsel %vm544, %v588, 0
        %v712 = vsel %vm544, %v589, 0
        %v715 = vsel %vm544, %v590, 0
        %v718 = vsel %vm544, %v591, 0
        %v721 = vsel %vm544, %v592, 0
        %v724 = vsel %vm544, %v593, 0
        %v727 = vsel %vm544, %v594, 0
        %v730 = vsel %vm544, %v595, 0
        %v733 = vsel %vm544, %v596, 0
        %v736 = vsel %vm544, %v597, 0
        %v739 = vsel %vm544, %v598, 0
        %v742 = vsel %vm544, %v599, 0
        %v745 = vsel %vm544, %v600, 0
        %v748 = vsel %vm544, %v601, 0
        %v751 = vsel %vm544, %v602, 0
        %v754 = vsel %vm544, %v603, 0
        %v757 = vsel %vm544, %v604, 0
        %v760 = vsel %vm544, %v605, 0
        %v763 = vsel %vm544, %v606, 0
        %v766 = vsel %vm544, %v607, 0
        %v769 = vsel %vm544, %v608, 0
        %771 = vmatpush.msra.mxu0 0.0
        %772 = vmatpush.msra.mxu0 0.0
        %773 = vmatpush.msra.mxu0 0.0
        %774 = vmatpush.msra.mxu0 0.0
        %775 = vmatpush.msra.mxu0 0.0
        %776 = vmatpush.msra.mxu0 0.0
        %777 = vmatpush.msra.mxu0 0.0
        %778 = vmatpush.msra.mxu0 0.0
        %779 = vmatpush.msra.mxu0 %v616
        %780 = vmatpush.msra.mxu0 %v615
        %781 = vmatpush.msra.mxu0 %v614
        %782 = vmatpush.msra.mxu0 %v613
        %783 = vmatpush.msra.mxu0 %v612
        %784 = vmatpush.msra.mxu0 %v611
        %785 = vmatpush.msra.mxu0 %v610
        %786 = vmatpush.msra.mxu0 %v609
        %787 = vmatmul.f32.gmra.mxu0 %v622
        %v788 = vpop.f32.mrf.mxu0
        %v789 = vadd.f32 %v619, %v788
        %790 = vmatmul.f32.gmra.mxu0 %v625
        %v791 = vpop.f32.mrf.mxu0
        %v792 = vadd.f32 %v619, %v791
        %793 = vmatmul.f32.gmra.mxu0 %v628
        %v794 = vpop.f32.mrf.mxu0
        %v795 = vadd.f32 %v619, %v794
        %796 = vmatmul.f32.gmra.mxu0 %v631
        %v797 = vpop.f32.mrf.mxu0
        %v798 = vadd.f32 %v619, %v797
        %799 = vmatmul.f32.gmra.mxu0 %v634
        %v800 = vpop.f32.mrf.mxu0
        %v801 = vadd.f32 %v619, %v800
        %802 = vmatmul.f32.gmra.mxu0 %v637
        %v803 = vpop.f32.mrf.mxu0
        %v804 = vadd.f32 %v619, %v803
        %805 = vmatmul.f32.gmra.mxu0 %v640
        %v806 = vpop.f32.mrf.mxu0
        %v807 = vadd.f32 %v619, %v806
        %808 = vmatmul.f32.gmra.mxu0 %v643
        %v809 = vpop.f32.mrf.mxu0
        %v810 = vadd.f32 %v619, %v809
        %811 = vmatmul.f32.gmra.mxu0 %v646
        %v812 = vpop.f32.mrf.mxu0
        %v813 = vadd.f32 %v619, %v812
        %814 = vmatmul.f32.gmra.mxu0 %v649
        %v815 = vpop.f32.mrf.mxu0
        %v816 = vadd.f32 %v619, %v815
        %817 = vmatmul.f32.gmra.mxu0 %v652
        %v818 = vpop.f32.mrf.mxu0
        %v819 = vadd.f32 %v619, %v818
        %820 = vmatmul.f32.gmra.mxu0 %v655
        %v821 = vpop.f32.mrf.mxu0
        %v822 = vadd.f32 %v619, %v821
        %823 = vmatmul.f32.gmra.mxu0 %v658
        %v824 = vpop.f32.mrf.mxu0
        %v825 = vadd.f32 %v619, %v824
        %826 = vmatmul.f32.gmra.mxu0 %v661
        %v827 = vpop.f32.mrf.mxu0
        %v828 = vadd.f32 %v619, %v827
        %829 = vmatmul.f32.gmra.mxu0 %v664
        %v830 = vpop.f32.mrf.mxu0
        %v831 = vadd.f32 %v619, %v830
        %832 = vmatmul.f32.gmra.mxu0 %v667
        %v833 = vpop.f32.mrf.mxu0
        %v834 = vadd.f32 %v619, %v833
        %835 = vmatmul.f32.gmra.mxu0 %v670
        %v836 = vpop.f32.mrf.mxu0
        %v837 = vadd.f32 %v619, %v836
        %838 = vmatmul.f32.gmra.mxu0 %v673
        %v839 = vpop.f32.mrf.mxu0
        %v840 = vadd.f32 %v619, %v839
        %841 = vmatmul.f32.gmra.mxu0 %v676
        %v842 = vpop.f32.mrf.mxu0
        %v843 = vadd.f32 %v619, %v842
        %844 = vmatmul.f32.gmra.mxu0 %v679
        %v845 = vpop.f32.mrf.mxu0
        %v846 = vadd.f32 %v619, %v845
        %847 = vmatmul.f32.gmra.mxu0 %v682
        %v848 = vpop.f32.mrf.mxu0
        %v849 = vadd.f32 %v619, %v848
        %850 = vmatmul.f32.gmra.mxu0 %v685
        %v851 = vpop.f32.mrf.mxu0
        %v852 = vadd.f32 %v619, %v851
        %853 = vmatmul.f32.gmra.mxu0 %v688
        %v854 = vpop.f32.mrf.mxu0
        %v855 = vadd.f32 %v619, %v854
        %856 = vmatmul.f32.gmra.mxu0 %v691
        %v857 = vpop.f32.mrf.mxu0
        %v858 = vadd.f32 %v619, %v857
        %859 = vmatmul.f32.gmra.mxu0 %v694
        %v860 = vpop.f32.mrf.mxu0
        %v861 = vadd.f32 %v619, %v860
        %862 = vmatmul.f32.gmra.mxu0 %v697
        %v863 = vpop.f32.mrf.mxu0
        %v864 = vadd.f32 %v619, %v863
        %865 = vmatmul.f32.gmra.mxu0 %v700
        %v866 = vpop.f32.mrf.mxu0
        %v867 = vadd.f32 %v619, %v866
        %868 = vmatmul.f32.gmra.mxu0 %v703
        %v869 = vpop.f32.mrf.mxu0
        %v870 = vadd.f32 %v619, %v869
        %871 = vmatmul.f32.gmra.mxu0 %v706
        %v872 = vpop.f32.mrf.mxu0
        %v873 = vadd.f32 %v619, %v872
        %874 = vmatmul.f32.gmra.mxu0 %v709
        %v875 = vpop.f32.mrf.mxu0
        %v876 = vadd.f32 %v619, %v875
        %877 = vmatmul.f32.gmra.mxu0 %v712
        %v878 = vpop.f32.mrf.mxu0
        %v879 = vadd.f32 %v619, %v878
        %880 = vmatmul.f32.gmra.mxu0 %v715
        %v881 = vpop.f32.mrf.mxu0
        %v882 = vadd.f32 %v619, %v881
        %883 = vmatmul.f32.gmra.mxu0 %v718
        %v884 = vpop.f32.mrf.mxu0
        %v885 = vadd.f32 %v619, %v884
        %886 = vmatmul.f32.gmra.mxu0 %v721
        %v887 = vpop.f32.mrf.mxu0
        %v888 = vadd.f32 %v619, %v887
        %889 = vmatmul.f32.gmra.mxu0 %v724
        %v890 = vpop.f32.mrf.mxu0
        %v891 = vadd.f32 %v619, %v890
        %892 = vmatmul.f32.gmra.mxu0 %v727
        %v893 = vpop.f32.mrf.mxu0
        %v894 = vadd.f32 %v619, %v893
        %895 = vmatmul.f32.gmra.mxu0 %v730
        %v896 = vpop.f32.mrf.mxu0
        %v897 = vadd.f32 %v619, %v896
        %898 = vmatmul.f32.gmra.mxu0 %v733
        %v899 = vpop.f32.mrf.mxu0
        %v900 = vadd.f32 %v619, %v899
        %901 = vmatmul.f32.gmra.mxu0 %v736
        %v902 = vpop.f32.mrf.mxu0
        %v903 = vadd.f32 %v619, %v902
        %904 = vmatmul.f32.gmra.mxu0 %v739
        %v905 = vpop.f32.mrf.mxu0
        %v906 = vadd.f32 %v619, %v905
        %907 = vmatmul.f32.gmra.mxu0 %v742
        %v908 = vpop.f32.mrf.mxu0
        %v909 = vadd.f32 %v619, %v908
        %910 = vmatmul.f32.gmra.mxu0 %v745
        %v911 = vpop.f32.mrf.mxu0
        %v912 = vadd.f32 %v619, %v911
        %913 = vmatmul.f32.gmra.mxu0 %v748
        %v914 = vpop.f32.mrf.mxu0
        %v915 = vadd.f32 %v619, %v914
        %916 = vmatmul.f32.gmra.mxu0 %v751
        %v917 = vpop.f32.mrf.mxu0
        %v918 = vadd.f32 %v619, %v917
        %919 = vmatmul.f32.gmra.mxu0 %v754
        %v920 = vpop.f32.mrf.mxu0
        %v921 = vadd.f32 %v619, %v920
        %922 = vmatmul.f32.gmra.mxu0 %v757
        %v923 = vpop.f32.mrf.mxu0
        %v924 = vadd.f32 %v619, %v923
        %925 = vmatmul.f32.gmra.mxu0 %v760
        %v926 = vpop.f32.mrf.mxu0
        %v927 = vadd.f32 %v619, %v926
        %928 = vmatmul.f32.gmra.mxu0 %v763
        %v929 = vpop.f32.mrf.mxu0
        %v930 = vadd.f32 %v619, %v929
        %931 = vmatmul.f32.gmra.mxu0 %v766
        %v932 = vpop.f32.mrf.mxu0
        %v933 = vadd.f32 %v619, %v932
        %934 = vmatmul.f32.gmra.mxu0 %v769
        %v935 = vpop.f32.mrf.mxu0
        %v936 = vadd.f32 %v619, %v935
        %937 = vdwg.mxu0
        %v938 = vmax.f32 %v789, 0.0
        %v939 = vmax.f32 %v792, 0.0
        %v940 = vmax.f32 %v795, 0.0
        %v941 = vmax.f32 %v798, 0.0
        %v942 = vmax.f32 %v801, 0.0
        %v943 = vmax.f32 %v804, 0.0
        %v944 = vmax.f32 %v807, 0.0
        %v945 = vmax.f32 %v810, 0.0
        %v946 = vmax.f32 %v813, 0.0
        %v947 = vmax.f32 %v816, 0.0
        %v948 = vmax.f32 %v819, 0.0
        %v949 = vmax.f32 %v822, 0.0
        %v950 = vmax.f32 %v825, 0.0
        %v951 = vmax.f32 %v828, 0.0
        %v952 = vmax.f32 %v831, 0.0
        %v953 = vmax.f32 %v834, 0.0
        %v954 = vmax.f32 %v837, 0.0
        %v955 = vmax.f32 %v840, 0.0
        %v956 = vmax.f32 %v843, 0.0
        %v957 = vmax.f32 %v846, 0.0
        %v958 = vmax.f32 %v849, 0.0
        %v959 = vmax.f32 %v852, 0.0
        %v960 = vmax.f32 %v855, 0.0
        %v961 = vmax.f32 %v858, 0.0
        %v962 = vmax.f32 %v861, 0.0
        %v963 = vmax.f32 %v864, 0.0
        %v964 = vmax.f32 %v867, 0.0
        %v965 = vmax.f32 %v870, 0.0
        %v966 = vmax.f32 %v873, 0.0
        %v967 = vmax.f32 %v876, 0.0
        %v968 = vmax.f32 %v879, 0.0
        %v969 = vmax.f32 %v882, 0.0
        %v970 = vmax.f32 %v885, 0.0
        %v971 = vmax.f32 %v888, 0.0
        %v972 = vmax.f32 %v891, 0.0
        %v973 = vmax.f32 %v894, 0.0
        %v974 = vmax.f32 %v897, 0.0
        %v975 = vmax.f32 %v900, 0.0
        %v976 = vmax.f32 %v903, 0.0
        %v977 = vmax.f32 %v906, 0.0
        %v978 = vmax.f32 %v909, 0.0
        %v979 = vmax.f32 %v912, 0.0
        %v980 = vmax.f32 %v915, 0.0
        %v981 = vmax.f32 %v918, 0.0
        %v982 = vmax.f32 %v921, 0.0
        %v983 = vmax.f32 %v924, 0.0
        %v984 = vmax.f32 %v927, 0.0
        %v985 = vmax.f32 %v930, 0.0
        %v986 = vmax.f32 %v933, 0.0
        %v987 = vmax.f32 %v936, 0.0
        %1038 = vrot.lane.b32.xlu0 %v938, 96
        %v1039 = vpop.permute.xlu0 %1038
        %1040 = vrot.lane.b32.xlu0 %v939, 96
        %v1041 = vpop.permute.xlu0 %1040
        %1042 = vrot.lane.b32.xlu0 %v940, 96
        %v1043 = vpop.permute.xlu0 %1042
        %1044 = vrot.lane.b32.xlu0 %v941, 96
        %v1045 = vpop.permute.xlu0 %1044
        %1046 = vrot.lane.b32.xlu0 %v942, 96
        %v1047 = vpop.permute.xlu0 %1046
        %1048 = vrot.lane.b32.xlu0 %v943, 96
        %v1049 = vpop.permute.xlu0 %1048
        %1050 = vrot.lane.b32.xlu0 %v944, 96
        %v1051 = vpop.permute.xlu0 %1050
        %1052 = vrot.lane.b32.xlu0 %v945, 96
        %v1053 = vpop.permute.xlu0 %1052
        %1054 = vrot.lane.b32.xlu0 %v946, 96
        %v1055 = vpop.permute.xlu0 %1054
        %1056 = vrot.lane.b32.xlu0 %v947, 96
        %v1057 = vpop.permute.xlu0 %1056
        %1058 = vrot.lane.b32.xlu0 %v948, 96
        %v1059 = vpop.permute.xlu0 %1058
        %1060 = vrot.lane.b32.xlu0 %v949, 96
        %v1061 = vpop.permute.xlu0 %1060
        %1062 = vrot.lane.b32.xlu0 %v950, 96
        %v1063 = vpop.permute.xlu0 %1062
        %1064 = vrot.lane.b32.xlu0 %v951, 96
        %v1065 = vpop.permute.xlu0 %1064
        %1066 = vrot.lane.b32.xlu0 %v952, 96
        %v1067 = vpop.permute.xlu0 %1066
        %1068 = vrot.lane.b32.xlu0 %v953, 96
        %v1069 = vpop.permute.xlu0 %1068
        %1070 = vrot.lane.b32.xlu0 %v954, 96
        %v1071 = vpop.permute.xlu0 %1070
        %1072 = vrot.lane.b32.xlu0 %v955, 96
        %v1073 = vpop.permute.xlu0 %1072
        %1074 = vrot.lane.b32.xlu0 %v956, 96
        %v1075 = vpop.permute.xlu0 %1074
        %1076 = vrot.lane.b32.xlu0 %v957, 96
        %v1077 = vpop.permute.xlu0 %1076
        %1078 = vrot.lane.b32.xlu0 %v958, 96
        %v1079 = vpop.permute.xlu0 %1078
        %1080 = vrot.lane.b32.xlu0 %v959, 96
        %v1081 = vpop.permute.xlu0 %1080
        %1082 = vrot.lane.b32.xlu0 %v960, 96
        %v1083 = vpop.permute.xlu0 %1082
        %1084 = vrot.lane.b32.xlu0 %v961, 96
        %v1085 = vpop.permute.xlu0 %1084
        %1086 = vrot.lane.b32.xlu0 %v962, 96
        %v1087 = vpop.permute.xlu0 %1086
        %1088 = vrot.lane.b32.xlu0 %v963, 96
        %v1089 = vpop.permute.xlu0 %1088
        %1090 = vrot.lane.b32.xlu0 %v964, 96
        %v1091 = vpop.permute.xlu0 %1090
        %1092 = vrot.lane.b32.xlu0 %v965, 96
        %v1093 = vpop.permute.xlu0 %1092
        %1094 = vrot.lane.b32.xlu0 %v966, 96
        %v1095 = vpop.permute.xlu0 %1094
        %1096 = vrot.lane.b32.xlu0 %v967, 96
        %v1097 = vpop.permute.xlu0 %1096
        %1098 = vrot.lane.b32.xlu0 %v968, 96
        %v1099 = vpop.permute.xlu0 %1098
        %1100 = vrot.lane.b32.xlu0 %v969, 96
        %v1101 = vpop.permute.xlu0 %1100
        %1102 = vrot.lane.b32.xlu0 %v970, 96
        %v1103 = vpop.permute.xlu0 %1102
        %1104 = vrot.lane.b32.xlu0 %v971, 96
        %v1105 = vpop.permute.xlu0 %1104
        %1106 = vrot.lane.b32.xlu0 %v972, 96
        %v1107 = vpop.permute.xlu0 %1106
        %1108 = vrot.lane.b32.xlu0 %v973, 96
        %v1109 = vpop.permute.xlu0 %1108
        %1110 = vrot.lane.b32.xlu0 %v974, 96
        %v1111 = vpop.permute.xlu0 %1110
        %1112 = vrot.lane.b32.xlu0 %v975, 96
        %v1113 = vpop.permute.xlu0 %1112
        %1114 = vrot.lane.b32.xlu0 %v976, 96
        %v1115 = vpop.permute.xlu0 %1114
        %1116 = vrot.lane.b32.xlu0 %v977, 96
        %v1117 = vpop.permute.xlu0 %1116
        %1118 = vrot.lane.b32.xlu0 %v978, 96
        %v1119 = vpop.permute.xlu0 %1118
        %1120 = vrot.lane.b32.xlu0 %v979, 96
        %v1121 = vpop.permute.xlu0 %1120
        %1122 = vrot.lane.b32.xlu0 %v980, 96
        %v1123 = vpop.permute.xlu0 %1122
        %1124 = vrot.lane.b32.xlu0 %v981, 96
        %v1125 = vpop.permute.xlu0 %1124
        %1126 = vrot.lane.b32.xlu0 %v982, 96
        %v1127 = vpop.permute.xlu0 %1126
        %1128 = vrot.lane.b32.xlu0 %v983, 96
        %v1129 = vpop.permute.xlu0 %1128
        %1130 = vrot.lane.b32.xlu0 %v984, 96
        %v1131 = vpop.permute.xlu0 %1130
        %1132 = vrot.lane.b32.xlu0 %v985, 96
        %v1133 = vpop.permute.xlu0 %1132
        %1134 = vrot.lane.b32.xlu0 %v986, 96
        %v1135 = vpop.permute.xlu0 %1134
        %1136 = vrot.lane.b32.xlu0 %v987, 96
        %v1137 = vpop.permute.xlu0 %1136
        %v1188 = vmax.f32 %v938, %v1039
        %v1189 = vmax.f32 %v939, %v1041
        %v1190 = vmax.f32 %v940, %v1043
        %v1191 = vmax.f32 %v941, %v1045
        %v1192 = vmax.f32 %v942, %v1047
        %v1193 = vmax.f32 %v943, %v1049
        %v1194 = vmax.f32 %v944, %v1051
        %v1195 = vmax.f32 %v945, %v1053
        %v1196 = vmax.f32 %v946, %v1055
        %v1197 = vmax.f32 %v947, %v1057
        %v1198 = vmax.f32 %v948, %v1059
        %v1199 = vmax.f32 %v949, %v1061
        %v1200 = vmax.f32 %v950, %v1063
        %v1201 = vmax.f32 %v951, %v1065
        %v1202 = vmax.f32 %v952, %v1067
        %v1203 = vmax.f32 %v953, %v1069
        %v1204 = vmax.f32 %v954, %v1071
        %v1205 = vmax.f32 %v955, %v1073
        %v1206 = vmax.f32 %v956, %v1075
        %v1207 = vmax.f32 %v957, %v1077
        %v1208 = vmax.f32 %v958, %v1079
        %v1209 = vmax.f32 %v959, %v1081
        %v1210 = vmax.f32 %v960, %v1083
        %v1211 = vmax.f32 %v961, %v1085
        %v1212 = vmax.f32 %v962, %v1087
        %v1213 = vmax.f32 %v963, %v1089
        %v1214 = vmax.f32 %v964, %v1091
        %v1215 = vmax.f32 %v965, %v1093
        %v1216 = vmax.f32 %v966, %v1095
        %v1217 = vmax.f32 %v967, %v1097
        %v1218 = vmax.f32 %v968, %v1099
        %v1219 = vmax.f32 %v969, %v1101
        %v1220 = vmax.f32 %v970, %v1103
        %v1221 = vmax.f32 %v971, %v1105
        %v1222 = vmax.f32 %v972, %v1107
        %v1223 = vmax.f32 %v973, %v1109
        %v1224 = vmax.f32 %v974, %v1111
        %v1225 = vmax.f32 %v975, %v1113
        %v1226 = vmax.f32 %v976, %v1115
        %v1227 = vmax.f32 %v977, %v1117
        %v1228 = vmax.f32 %v978, %v1119
        %v1229 = vmax.f32 %v979, %v1121
        %v1230 = vmax.f32 %v980, %v1123
        %v1231 = vmax.f32 %v981, %v1125
        %v1232 = vmax.f32 %v982, %v1127
        %v1233 = vmax.f32 %v983, %v1129
        %v1234 = vmax.f32 %v984, %v1131
        %v1235 = vmax.f32 %v985, %v1133
        %v1236 = vmax.f32 %v986, %v1135
        %v1237 = vmax.f32 %v987, %v1137
        %1288 = vrot.lane.b32.xlu0 %v1188, 64
        %v1289 = vpop.permute.xlu0 %1288
        %1290 = vrot.lane.b32.xlu0 %v1189, 64
        %v1291 = vpop.permute.xlu0 %1290
        %1292 = vrot.lane.b32.xlu0 %v1190, 64
        %v1293 = vpop.permute.xlu0 %1292
        %1294 = vrot.lane.b32.xlu0 %v1191, 64
        %v1295 = vpop.permute.xlu0 %1294
        %1296 = vrot.lane.b32.xlu0 %v1192, 64
        %v1297 = vpop.permute.xlu0 %1296
        %1298 = vrot.lane.b32.xlu0 %v1193, 64
        %v1299 = vpop.permute.xlu0 %1298
        %1300 = vrot.lane.b32.xlu0 %v1194, 64
        %v1301 = vpop.permute.xlu0 %1300
        %1302 = vrot.lane.b32.xlu0 %v1195, 64
        %v1303 = vpop.permute.xlu0 %1302
        %1304 = vrot.lane.b32.xlu0 %v1196, 64
        %v1305 = vpop.permute.xlu0 %1304
        %1306 = vrot.lane.b32.xlu0 %v1197, 64
        %v1307 = vpop.permute.xlu0 %1306
        %1308 = vrot.lane.b32.xlu0 %v1198, 64
        %v1309 = vpop.permute.xlu0 %1308
        %1310 = vrot.lane.b32.xlu0 %v1199, 64
        %v1311 = vpop.permute.xlu0 %1310
        %1312 = vrot.lane.b32.xlu0 %v1200, 64
        %v1313 = vpop.permute.xlu0 %1312
        %1314 = vrot.lane.b32.xlu0 %v1201, 64
        %v1315 = vpop.permute.xlu0 %1314
        %1316 = vrot.lane.b32.xlu0 %v1202, 64
        %v1317 = vpop.permute.xlu0 %1316
        %1318 = vrot.lane.b32.xlu0 %v1203, 64
        %v1319 = vpop.permute.xlu0 %1318
        %1320 = vrot.lane.b32.xlu0 %v1204, 64
        %v1321 = vpop.permute.xlu0 %1320
        %1322 = vrot.lane.b32.xlu0 %v1205, 64
        %v1323 = vpop.permute.xlu0 %1322
        %1324 = vrot.lane.b32.xlu0 %v1206, 64
        %v1325 = vpop.permute.xlu0 %1324
        %1326 = vrot.lane.b32.xlu0 %v1207, 64
        %v1327 = vpop.permute.xlu0 %1326
        %1328 = vrot.lane.b32.xlu0 %v1208, 64
        %v1329 = vpop.permute.xlu0 %1328
        %1330 = vrot.lane.b32.xlu0 %v1209, 64
        %v1331 = vpop.permute.xlu0 %1330
        %1332 = vrot.lane.b32.xlu0 %v1210, 64
        %v1333 = vpop.permute.xlu0 %1332
        %1334 = vrot.lane.b32.xlu0 %v1211, 64
        %v1335 = vpop.permute.xlu0 %1334
        %1336 = vrot.lane.b32.xlu0 %v1212, 64
        %v1337 = vpop.permute.xlu0 %1336
        %1338 = vrot.lane.b32.xlu0 %v1213, 64
        %v1339 = vpop.permute.xlu0 %1338
        %1340 = vrot.lane.b32.xlu0 %v1214, 64
        %v1341 = vpop.permute.xlu0 %1340
        %1342 = vrot.lane.b32.xlu0 %v1215, 64
        %v1343 = vpop.permute.xlu0 %1342
        %1344 = vrot.lane.b32.xlu0 %v1216, 64
        %v1345 = vpop.permute.xlu0 %1344
        %1346 = vrot.lane.b32.xlu0 %v1217, 64
        %v1347 = vpop.permute.xlu0 %1346
        %1348 = vrot.lane.b32.xlu0 %v1218, 64
        %v1349 = vpop.permute.xlu0 %1348
        %1350 = vrot.lane.b32.xlu0 %v1219, 64
        %v1351 = vpop.permute.xlu0 %1350
        %1352 = vrot.lane.b32.xlu0 %v1220, 64
        %v1353 = vpop.permute.xlu0 %1352
        %1354 = vrot.lane.b32.xlu0 %v1221, 64
        %v1355 = vpop.permute.xlu0 %1354
        %1356 = vrot.lane.b32.xlu0 %v1222, 64
        %v1357 = vpop.permute.xlu0 %1356
        %1358 = vrot.lane.b32.xlu0 %v1223, 64
        %v1359 = vpop.permute.xlu0 %1358
        %1360 = vrot.lane.b32.xlu0 %v1224, 64
        %v1361 = vpop.permute.xlu0 %1360
        %1362 = vrot.lane.b32.xlu0 %v1225, 64
        %v1363 = vpop.permute.xlu0 %1362
        %1364 = vrot.lane.b32.xlu0 %v1226, 64
        %v1365 = vpop.permute.xlu0 %1364
        %1366 = vrot.lane.b32.xlu0 %v1227, 64
        %v1367 = vpop.permute.xlu0 %1366
        %1368 = vrot.lane.b32.xlu0 %v1228, 64
        %v1369 = vpop.permute.xlu0 %1368
        %1370 = vrot.lane.b32.xlu0 %v1229, 64
        %v1371 = vpop.permute.xlu0 %1370
        %1372 = vrot.lane.b32.xlu0 %v1230, 64
        %v1373 = vpop.permute.xlu0 %1372
        %1374 = vrot.lane.b32.xlu0 %v1231, 64
        %v1375 = vpop.permute.xlu0 %1374
        %1376 = vrot.lane.b32.xlu0 %v1232, 64
        %v1377 = vpop.permute.xlu0 %1376
        %1378 = vrot.lane.b32.xlu0 %v1233, 64
        %v1379 = vpop.permute.xlu0 %1378
        %1380 = vrot.lane.b32.xlu0 %v1234, 64
        %v1381 = vpop.permute.xlu0 %1380
        %1382 = vrot.lane.b32.xlu0 %v1235, 64
        %v1383 = vpop.permute.xlu0 %1382
        %1384 = vrot.lane.b32.xlu0 %v1236, 64
        %v1385 = vpop.permute.xlu0 %1384
        %1386 = vrot.lane.b32.xlu0 %v1237, 64
        %v1387 = vpop.permute.xlu0 %1386
        %v1438 = vmax.f32 %v1188, %v1289
        %v1439 = vmax.f32 %v1189, %v1291
        %v1440 = vmax.f32 %v1190, %v1293
        %v1441 = vmax.f32 %v1191, %v1295
        %v1442 = vmax.f32 %v1192, %v1297
        %v1443 = vmax.f32 %v1193, %v1299
        %v1444 = vmax.f32 %v1194, %v1301
        %v1445 = vmax.f32 %v1195, %v1303
        %v1446 = vmax.f32 %v1196, %v1305
        %v1447 = vmax.f32 %v1197, %v1307
        %v1448 = vmax.f32 %v1198, %v1309
        %v1449 = vmax.f32 %v1199, %v1311
        %v1450 = vmax.f32 %v1200, %v1313
        %v1451 = vmax.f32 %v1201, %v1315
        %v1452 = vmax.f32 %v1202, %v1317
        %v1453 = vmax.f32 %v1203, %v1319
        %v1454 = vmax.f32 %v1204, %v1321
        %v1455 = vmax.f32 %v1205, %v1323
        %v1456 = vmax.f32 %v1206, %v1325
        %v1457 = vmax.f32 %v1207, %v1327
        %v1458 = vmax.f32 %v1208, %v1329
        %v1459 = vmax.f32 %v1209, %v1331
        %v1460 = vmax.f32 %v1210, %v1333
        %v1461 = vmax.f32 %v1211, %v1335
        %v1462 = vmax.f32 %v1212, %v1337
        %v1463 = vmax.f32 %v1213, %v1339
        %v1464 = vmax.f32 %v1214, %v1341
        %v1465 = vmax.f32 %v1215, %v1343
        %v1466 = vmax.f32 %v1216, %v1345
        %v1467 = vmax.f32 %v1217, %v1347
        %v1468 = vmax.f32 %v1218, %v1349
        %v1469 = vmax.f32 %v1219, %v1351
        %v1470 = vmax.f32 %v1220, %v1353
        %v1471 = vmax.f32 %v1221, %v1355
        %v1472 = vmax.f32 %v1222, %v1357
        %v1473 = vmax.f32 %v1223, %v1359
        %v1474 = vmax.f32 %v1224, %v1361
        %v1475 = vmax.f32 %v1225, %v1363
        %v1476 = vmax.f32 %v1226, %v1365
        %v1477 = vmax.f32 %v1227, %v1367
        %v1478 = vmax.f32 %v1228, %v1369
        %v1479 = vmax.f32 %v1229, %v1371
        %v1480 = vmax.f32 %v1230, %v1373
        %v1481 = vmax.f32 %v1231, %v1375
        %v1482 = vmax.f32 %v1232, %v1377
        %v1483 = vmax.f32 %v1233, %v1379
        %v1484 = vmax.f32 %v1234, %v1381
        %v1485 = vmax.f32 %v1235, %v1383
        %v1486 = vmax.f32 %v1236, %v1385
        %v1487 = vmax.f32 %v1237, %v1387
        %1488 = vst.msk [vmem:[#allocation2] sm:$0xff] %vm492, %v1438
        %1489 = vst.msk [vmem:[#allocation2 + $0x8] sm:$0xff] %vm492, %v1439
        %1490 = vst.msk [vmem:[#allocation2 + $0x10] sm:$0xff] %vm492, %v1440
        %1491 = vst.msk [vmem:[#allocation2 + $0x18] sm:$0xff] %vm492, %v1441
        %1492 = vst.msk [vmem:[#allocation2 + $0x20] sm:$0xff] %vm492, %v1442
        %1493 = vst.msk [vmem:[#allocation2 + $0x28] sm:$0xff] %vm492, %v1443
        %1494 = vst.msk [vmem:[#allocation2 + $0x30] sm:$0xff] %vm492, %v1444
        %1495 = vst.msk [vmem:[#allocation2 + $0x38] sm:$0xff] %vm492, %v1445
        %1496 = vst.msk [vmem:[#allocation2 + $0x40] sm:$0xff] %vm492, %v1446
        %1497 = vst.msk [vmem:[#allocation2 + $0x48] sm:$0xff] %vm492, %v1447
        %1498 = vst.msk [vmem:[#allocation2 + $0x50] sm:$0xff] %vm492, %v1448
        %1499 = vst.msk [vmem:[#allocation2 + $0x58] sm:$0xff] %vm492, %v1449
        %1500 = vst.msk [vmem:[#allocation2 + $0x60] sm:$0xff] %vm492, %v1450
        %1501 = vst.msk [vmem:[#allocation2 + $0x68] sm:$0xff] %vm492, %v1451
        %1502 = vst.msk [vmem:[#allocation2 + $0x70] sm:$0xff] %vm492, %v1452
        %1503 = vst.msk [vmem:[#allocation2 + $0x78] sm:$0xff] %vm492, %v1453
        %1504 = vst.msk [vmem:[#allocation2 + $0x80] sm:$0xff] %vm492, %v1454
        %1505 = vst.msk [vmem:[#allocation2 + $0x88] sm:$0xff] %vm492, %v1455
        %1506 = vst.msk [vmem:[#allocation2 + $0x90] sm:$0xff] %vm492, %v1456
        %1507 = vst.msk [vmem:[#allocation2 + $0x98] sm:$0xff] %vm492, %v1457
        %1508 = vst.msk [vmem:[#allocation2 + $0xa0] sm:$0xff] %vm492, %v1458
        %1509 = vst.msk [vmem:[#allocation2 + $0xa8] sm:$0xff] %vm492, %v1459
        %1510 = vst.msk [vmem:[#allocation2 + $0xb0] sm:$0xff] %vm492, %v1460
        %1511 = vst.msk [vmem:[#allocation2 + $0xb8] sm:$0xff] %vm492, %v1461
        %1512 = vst.msk [vmem:[#allocation2 + $0xc0] sm:$0xff] %vm492, %v1462
        %1513 = vst.msk [vmem:[#allocation2 + $0xc8] sm:$0xff] %vm492, %v1463
        %1514 = vst.msk [vmem:[#allocation2 + $0xd0] sm:$0xff] %vm492, %v1464
        %1515 = vst.msk [vmem:[#allocation2 + $0xd8] sm:$0xff] %vm492, %v1465
        %1516 = vst.msk [vmem:[#allocation2 + $0xe0] sm:$0xff] %vm492, %v1466
        %1517 = vst.msk [vmem:[#allocation2 + $0xe8] sm:$0xff] %vm492, %v1467
        %1518 = vst.msk [vmem:[#allocation2 + $0xf0] sm:$0xff] %vm492, %v1468
        %1519 = vst.msk [vmem:[#allocation2 + $0xf8] sm:$0xff] %vm492, %v1469
        %1520 = vst.msk [vmem:[#allocation2 + $0x100] sm:$0xff] %vm492, %v1470
        %1521 = vst.msk [vmem:[#allocation2 + $0x108] sm:$0xff] %vm492, %v1471
        %1522 = vst.msk [vmem:[#allocation2 + $0x110] sm:$0xff] %vm492, %v1472
        %1523 = vst.msk [vmem:[#allocation2 + $0x118] sm:$0xff] %vm492, %v1473
        %1524 = vst.msk [vmem:[#allocation2 + $0x120] sm:$0xff] %vm492, %v1474
        %1525 = vst.msk [vmem:[#allocation2 + $0x128] sm:$0xff] %vm492, %v1475
        %1526 = vst.msk [vmem:[#allocation2 + $0x130] sm:$0xff] %vm492, %v1476
        %1527 = vst.msk [vmem:[#allocation2 + $0x138] sm:$0xff] %vm492, %v1477
        %1528 = vst.msk [vmem:[#allocation2 + $0x140] sm:$0xff] %vm492, %v1478
        %1529 = vst.msk [vmem:[#allocation2 + $0x148] sm:$0xff] %vm492, %v1479
        %1530 = vst.msk [vmem:[#allocation2 + $0x150] sm:$0xff] %vm492, %v1480
        %1531 = vst.msk [vmem:[#allocation2 + $0x158] sm:$0xff] %vm492, %v1481
        %1532 = vst.msk [vmem:[#allocation2 + $0x160] sm:$0xff] %vm492, %v1482
        %1533 = vst.msk [vmem:[#allocation2 + $0x168] sm:$0xff] %vm492, %v1483
        %1534 = vst.msk [vmem:[#allocation2 + $0x170] sm:$0xff] %vm492, %v1484
        %1535 = vst.msk [vmem:[#allocation2 + $0x178] sm:$0xff] %vm492, %v1485
        %1536 = vst.msk [vmem:[#allocation2 + $0x180] sm:$0xff] %vm492, %v1486
        %1537 = vst.msk [vmem:[#allocation2 + $0x188] sm:$0xff] %vm492, %v1487
        %v1538 = vld [vmem:[#allocation2] sm:$0xff]
        %v1539 = vld [vmem:[#allocation2 + $0x8] sm:$0xff]
        %v1540 = vld [vmem:[#allocation2 + $0x10] sm:$0xff]
        %v1541 = vld [vmem:[#allocation2 + $0x18] sm:$0xff]
        %v1542 = vld [vmem:[#allocation2 + $0x20] sm:$0xff]
        %v1543 = vld [vmem:[#allocation2 + $0x28] sm:$0xff]
        %v1544 = vld [vmem:[#allocation2 + $0x30] sm:$0xff]
        %v1545 = vld [vmem:[#allocation2 + $0x38] sm:$0xff]
        %v1546 = vld [vmem:[#allocation2 + $0x40] sm:$0xff]
        %v1547 = vld [vmem:[#allocation2 + $0x48] sm:$0xff]
        %v1548 = vld [vmem:[#allocation2 + $0x50] sm:$0xff]
        %v1549 = vld [vmem:[#allocation2 + $0x58] sm:$0xff]
        %v1550 = vld [vmem:[#allocation2 + $0x60] sm:$0xff]
        %v1551 = vld [vmem:[#allocation2 + $0x68] sm:$0xff]
        %v1552 = vld [vmem:[#allocation2 + $0x70] sm:$0xff]
        %v1553 = vld [vmem:[#allocation2 + $0x78] sm:$0xff]
        %v1554 = vld [vmem:[#allocation2 + $0x80] sm:$0xff]
        %v1555 = vld [vmem:[#allocation2 + $0x88] sm:$0xff]
        %v1556 = vld [vmem:[#allocation2 + $0x90] sm:$0xff]
        %v1557 = vld [vmem:[#allocation2 + $0x98] sm:$0xff]
        %v1558 = vld [vmem:[#allocation2 + $0xa0] sm:$0xff]
        %v1559 = vld [vmem:[#allocation2 + $0xa8] sm:$0xff]
        %v1560 = vld [vmem:[#allocation2 + $0xb0] sm:$0xff]
        %v1561 = vld [vmem:[#allocation2 + $0xb8] sm:$0xff]
        %v1562 = vld [vmem:[#allocation2 + $0xc0] sm:$0xff]
        %v1563 = vld [vmem:[#allocation2 + $0xc8] sm:$0xff]
        %v1564 = vld [vmem:[#allocation2 + $0xd0] sm:$0xff]
        %v1565 = vld [vmem:[#allocation2 + $0xd8] sm:$0xff]
        %v1566 = vld [vmem:[#allocation2 + $0xe0] sm:$0xff]
        %v1567 = vld [vmem:[#allocation2 + $0xe8] sm:$0xff]
        %v1568 = vld [vmem:[#allocation2 + $0xf0] sm:$0xff]
        %v1569 = vld [vmem:[#allocation2 + $0xf8] sm:$0xff]
        %v1570 = vld [vmem:[#allocation2 + $0x100] sm:$0xff]
        %v1571 = vld [vmem:[#allocation2 + $0x108] sm:$0xff]
        %v1572 = vld [vmem:[#allocation2 + $0x110] sm:$0xff]
        %v1573 = vld [vmem:[#allocation2 + $0x118] sm:$0xff]
        %v1574 = vld [vmem:[#allocation2 + $0x120] sm:$0xff]
        %v1575 = vld [vmem:[#allocation2 + $0x128] sm:$0xff]
        %v1576 = vld [vmem:[#allocation2 + $0x130] sm:$0xff]
        %v1577 = vld [vmem:[#allocation2 + $0x138] sm:$0xff]
        %v1578 = vld [vmem:[#allocation2 + $0x140] sm:$0xff]
        %v1579 = vld [vmem:[#allocation2 + $0x148] sm:$0xff]
        %v1580 = vld [vmem:[#allocation2 + $0x150] sm:$0xff]
        %v1581 = vld [vmem:[#allocation2 + $0x158] sm:$0xff]
        %v1582 = vld [vmem:[#allocation2 + $0x160] sm:$0xff]
        %v1583 = vld [vmem:[%s3] sm:$0xff]
        %v1584 = vld [vmem:[%s3 + $0x8] sm:$0xff]
        %v1585 = vld [vmem:[%s3 + $0x10] sm:$0xff]
        %v1586 = vld [vmem:[%s3 + $0x18] sm:$0xff]
        %v1587 = vld [vmem:[#allocation2 + $0x1] sm:$0xff]
        %v1588 = vld [vmem:[#allocation2 + $0x9] sm:$0xff]
        %v1589 = vld [vmem:[#allocation2 + $0x11] sm:$0xff]
        %v1590 = vld [vmem:[#allocation2 + $0x19] sm:$0xff]
        %v1591 = vld [vmem:[#allocation2 + $0x21] sm:$0xff]
        %v1592 = vld [vmem:[#allocation2 + $0x29] sm:$0xff]
        %v1593 = vld [vmem:[#allocation2 + $0x31] sm:$0xff]
        %v1594 = vld [vmem:[#allocation2 + $0x39] sm:$0xff]
        %v1595 = vld [vmem:[#allocation2 + $0x41] sm:$0xff]
        %v1596 = vld [vmem:[#allocation2 + $0x49] sm:$0xff]
        %v1597 = vld [vmem:[#allocation2 + $0x51] sm:$0xff]
        %v1598 = vld [vmem:[#allocation2 + $0x59] sm:$0xff]
        %v1599 = vld [vmem:[#allocation2 + $0x61] sm:$0xff]
        %v1600 = vld [vmem:[#allocation2 + $0x69] sm:$0xff]
        %v1601 = vld [vmem:[#allocation2 + $0x71] sm:$0xff]
        %v1602 = vld [vmem:[#allocation2 + $0x79] sm:$0xff]
        %v1603 = vld [vmem:[#allocation2 + $0x81] sm:$0xff]
        %v1604 = vld [vmem:[#allocation2 + $0x89] sm:$0xff]
        %v1605 = vld [vmem:[#allocation2 + $0x91] sm:$0xff]
        %v1606 = vld [vmem:[#allocation2 + $0x99] sm:$0xff]
        %v1607 = vld [vmem:[#allocation2 + $0xa1] sm:$0xff]
        %v1608 = vld [vmem:[#allocation2 + $0xa9] sm:$0xff]
        %v1609 = vld [vmem:[#allocation2 + $0xb1] sm:$0xff]
        %v1610 = vld [vmem:[#allocation2 + $0xb9] sm:$0xff]
        %v1611 = vld [vmem:[#allocation2 + $0xc1] sm:$0xff]
        %v1612 = vld [vmem:[#allocation2 + $0xc9] sm:$0xff]
        %v1613 = vld [vmem:[#allocation2 + $0xd1] sm:$0xff]
        %v1614 = vld [vmem:[#allocation2 + $0xd9] sm:$0xff]
        %v1615 = vld [vmem:[#allocation2 + $0xe1] sm:$0xff]
        %v1616 = vld [vmem:[#allocation2 + $0xe9] sm:$0xff]
        %v1617 = vld [vmem:[#allocation2 + $0xf1] sm:$0xff]
        %v1618 = vld [vmem:[#allocation2 + $0xf9] sm:$0xff]
        %v1619 = vld [vmem:[#allocation2 + $0x101] sm:$0xff]
        %v1620 = vld [vmem:[#allocation2 + $0x109] sm:$0xff]
        %v1621 = vld [vmem:[#allocation2 + $0x111] sm:$0xff]
        %v1622 = vld [vmem:[#allocation2 + $0x119] sm:$0xff]
        %v1623 = vld [vmem:[#allocation2 + $0x121] sm:$0xff]
        %v1624 = vld [vmem:[#allocation2 + $0x129] sm:$0xff]
        %v1625 = vld [vmem:[#allocation2 + $0x131] sm:$0xff]
        %v1626 = vld [vmem:[#allocation2 + $0x139] sm:$0xff]
        %v1627 = vld [vmem:[#allocation2 + $0x141] sm:$0xff]
        %v1628 = vld [vmem:[#allocation2 + $0x149] sm:$0xff]
        %v1629 = vld [vmem:[#allocation2 + $0x151] sm:$0xff]
        %v1630 = vld [vmem:[#allocation2 + $0x159] sm:$0xff]
        %v1631 = vld [vmem:[#allocation2 + $0x161] sm:$0xff]
        %v1632 = vld [vmem:[%s3 + $0x20] sm:$0xff]
        %v1633 = vld [vmem:[%s3 + $0x28] sm:$0xff]
        %v1634 = vld [vmem:[%s3 + $0x30] sm:$0xff]
        %v1635 = vld [vmem:[%s3 + $0x38] sm:$0xff]
        %v1637 = vsel %vm492, %v1587, 0
        %v1640 = vsel %vm492, %v1588, 0
        %v1643 = vsel %vm492, %v1589, 0
        %v1646 = vsel %vm492, %v1590, 0
        %v1649 = vsel %vm492, %v1591, 0
        %v1652 = vsel %vm492, %v1592, 0
        %v1655 = vsel %vm492, %v1593, 0
        %v1658 = vsel %vm492, %v1594, 0
        %v1661 = vsel %vm492, %v1595, 0
        %v1664 = vsel %vm492, %v1596, 0
        %v1667 = vsel %vm492, %v1597, 0
        %v1670 = vsel %vm492, %v1598, 0
        %v1673 = vsel %vm492, %v1599, 0
        %v1676 = vsel %vm492, %v1600, 0
        %v1679 = vsel %vm492, %v1601, 0
        %v1682 = vsel %vm492, %v1602, 0
        %v1685 = vsel %vm492, %v1603, 0
        %v1688 = vsel %vm492, %v1604, 0
        %v1691 = vsel %vm492, %v1605, 0
        %v1694 = vsel %vm492, %v1606, 0
        %v1697 = vsel %vm492, %v1607, 0
        %v1700 = vsel %vm492, %v1608, 0
        %v1703 = vsel %vm492, %v1609, 0
        %v1706 = vsel %vm492, %v1610, 0
        %v1709 = vsel %vm492, %v1611, 0
        %v1712 = vsel %vm492, %v1612, 0
        %v1715 = vsel %vm492, %v1613, 0
        %v1718 = vsel %vm492, %v1614, 0
        %v1721 = vsel %vm492, %v1615, 0
        %v1724 = vsel %vm492, %v1616, 0
        %v1727 = vsel %vm492, %v1617, 0
        %v1730 = vsel %vm492, %v1618, 0
        %v1733 = vsel %vm492, %v1619, 0
        %v1736 = vsel %vm492, %v1620, 0
        %v1739 = vsel %vm492, %v1621, 0
        %v1742 = vsel %vm492, %v1622, 0
        %v1745 = vsel %vm492, %v1623, 0
        %v1748 = vsel %vm492, %v1624, 0
        %v1751 = vsel %vm492, %v1625, 0
        %v1754 = vsel %vm492, %v1626, 0
        %v1757 = vsel %vm492, %v1627, 0
        %v1760 = vsel %vm492, %v1628, 0
        %v1763 = vsel %vm492, %v1629, 0
        %v1766 = vsel %vm492, %v1630, 0
        %v1769 = vsel %vm492, %v1631, 0
        %1771 = vmatpush.msra.mxu0 0.0
        %1772 = vmatpush.msra.mxu0 0.0
        %1773 = vmatpush.msra.mxu0 0.0
        %1774 = vmatpush.msra.mxu0 0.0
        %1775 = vmatpush.msra.mxu0 0.0
        %1776 = vmatpush.msra.mxu0 0.0
        %1777 = vmatpush.msra.mxu0 0.0
        %1778 = vmatpush.msra.mxu0 0.0
        %1779 = vmatpush.msra.mxu0 0.0
        %1780 = vmatpush.msra.mxu0 0.0
        %1781 = vmatpush.msra.mxu0 0.0
        %1782 = vmatpush.msra.mxu0 0.0
        %1783 = vmatpush.msra.mxu0 %v1635
        %1784 = vmatpush.msra.mxu0 %v1634
        %1785 = vmatpush.msra.mxu0 %v1633
        %1786 = vmatpush.msra.mxu0 %v1632
        %1787 = vmatmul.f32.gmra.mxu0 %v1637
        %v1788 = vpop.f32.mrf.mxu0
        %v1789 = vadd.f32 0.0, %v1788
        %1790 = vmatmul.f32.gmra.mxu0 %v1640
        %v1791 = vpop.f32.mrf.mxu0
        %v1792 = vadd.f32 0.0, %v1791
        %1793 = vmatmul.f32.gmra.mxu0 %v1643
        %v1794 = vpop.f32.mrf.mxu0
        %v1795 = vadd.f32 0.0, %v1794
        %1796 = vmatmul.f32.gmra.mxu0 %v1646
        %v1797 = vpop.f32.mrf.mxu0
        %v1798 = vadd.f32 0.0, %v1797
        %1799 = vmatmul.f32.gmra.mxu0 %v1649
        %v1800 = vpop.f32.mrf.mxu0
        %v1801 = vadd.f32 0.0, %v1800
        %1802 = vmatmul.f32.gmra.mxu0 %v1652
        %v1803 = vpop.f32.mrf.mxu0
        %v1804 = vadd.f32 0.0, %v1803
        %1805 = vmatmul.f32.gmra.mxu0 %v1655
        %v1806 = vpop.f32.mrf.mxu0
        %v1807 = vadd.f32 0.0, %v1806
        %1808 = vmatmul.f32.gmra.mxu0 %v1658
        %v1809 = vpop.f32.mrf.mxu0
        %v1810 = vadd.f32 0.0, %v1809
        %1811 = vmatmul.f32.gmra.mxu0 %v1661
        %v1812 = vpop.f32.mrf.mxu0
        %v1813 = vadd.f32 0.0, %v1812
        %1814 = vmatmul.f32.gmra.mxu0 %v1664
        %v1815 = vpop.f32.mrf.mxu0
        %v1816 = vadd.f32 0.0, %v1815
        %1817 = vmatmul.f32.gmra.mxu0 %v1667
        %v1818 = vpop.f32.mrf.mxu0
        %v1819 = vadd.f32 0.0, %v1818
        %1820 = vmatmul.f32.gmra.mxu0 %v1670
        %v1821 = vpop.f32.mrf.mxu0
        %v1822 = vadd.f32 0.0, %v1821
        %1823 = vmatmul.f32.gmra.mxu0 %v1673
        %v1824 = vpop.f32.mrf.mxu0
        %v1825 = vadd.f32 0.0, %v1824
        %1826 = vmatmul.f32.gmra.mxu0 %v1676
        %v1827 = vpop.f32.mrf.mxu0
        %v1828 = vadd.f32 0.0, %v1827
        %1829 = vmatmul.f32.gmra.mxu0 %v1679
        %v1830 = vpop.f32.mrf.mxu0
        %v1831 = vadd.f32 0.0, %v1830
        %1832 = vmatmul.f32.gmra.mxu0 %v1682
        %v1833 = vpop.f32.mrf.mxu0
        %v1834 = vadd.f32 0.0, %v1833
        %1835 = vmatmul.f32.gmra.mxu0 %v1685
        %v1836 = vpop.f32.mrf.mxu0
        %v1837 = vadd.f32 0.0, %v1836
        %1838 = vmatmul.f32.gmra.mxu0 %v1688
        %v1839 = vpop.f32.mrf.mxu0
        %v1840 = vadd.f32 0.0, %v1839
        %1841 = vmatmul.f32.gmra.mxu0 %v1691
        %v1842 = vpop.f32.mrf.mxu0
        %v1843 = vadd.f32 0.0, %v1842
        %1844 = vmatmul.f32.gmra.mxu0 %v1694
        %v1845 = vpop.f32.mrf.mxu0
        %v1846 = vadd.f32 0.0, %v1845
        %1847 = vmatmul.f32.gmra.mxu0 %v1697
        %v1848 = vpop.f32.mrf.mxu0
        %v1849 = vadd.f32 0.0, %v1848
        %1850 = vmatmul.f32.gmra.mxu0 %v1700
        %v1851 = vpop.f32.mrf.mxu0
        %v1852 = vadd.f32 0.0, %v1851
        %1853 = vmatmul.f32.gmra.mxu0 %v1703
        %v1854 = vpop.f32.mrf.mxu0
        %v1855 = vadd.f32 0.0, %v1854
        %1856 = vmatmul.f32.gmra.mxu0 %v1706
        %v1857 = vpop.f32.mrf.mxu0
        %v1858 = vadd.f32 0.0, %v1857
        %1859 = vmatmul.f32.gmra.mxu0 %v1709
        %v1860 = vpop.f32.mrf.mxu0
        %v1861 = vadd.f32 0.0, %v1860
        %1862 = vmatmul.f32.gmra.mxu0 %v1712
        %v1863 = vpop.f32.mrf.mxu0
        %v1864 = vadd.f32 0.0, %v1863
        %1865 = vmatmul.f32.gmra.mxu0 %v1715
        %v1866 = vpop.f32.mrf.mxu0
        %v1867 = vadd.f32 0.0, %v1866
        %1868 = vmatmul.f32.gmra.mxu0 %v1718
        %v1869 = vpop.f32.mrf.mxu0
        %v1870 = vadd.f32 0.0, %v1869
        %1871 = vmatmul.f32.gmra.mxu0 %v1721
        %v1872 = vpop.f32.mrf.mxu0
        %v1873 = vadd.f32 0.0, %v1872
        %1874 = vmatmul.f32.gmra.mxu0 %v1724
        %v1875 = vpop.f32.mrf.mxu0
        %v1876 = vadd.f32 0.0, %v1875
        %1877 = vmatmul.f32.gmra.mxu0 %v1727
        %v1878 = vpop.f32.mrf.mxu0
        %v1879 = vadd.f32 0.0, %v1878
        %1880 = vmatmul.f32.gmra.mxu0 %v1730
        %v1881 = vpop.f32.mrf.mxu0
        %v1882 = vadd.f32 0.0, %v1881
        %1883 = vmatmul.f32.gmra.mxu0 %v1733
        %v1884 = vpop.f32.mrf.mxu0
        %v1885 = vadd.f32 0.0, %v1884
        %1886 = vmatmul.f32.gmra.mxu0 %v1736
        %v1887 = vpop.f32.mrf.mxu0
        %v1888 = vadd.f32 0.0, %v1887
        %1889 = vmatmul.f32.gmra.mxu0 %v1739
        %v1890 = vpop.f32.mrf.mxu0
        %v1891 = vadd.f32 0.0, %v1890
        %1892 = vmatmul.f32.gmra.mxu0 %v1742
        %v1893 = vpop.f32.mrf.mxu0
        %v1894 = vadd.f32 0.0, %v1893
        %1895 = vmatmul.f32.gmra.mxu0 %v1745
        %v1896 = vpop.f32.mrf.mxu0
        %v1897 = vadd.f32 0.0, %v1896
        %1898 = vmatmul.f32.gmra.mxu0 %v1748
        %v1899 = vpop.f32.mrf.mxu0
        %v1900 = vadd.f32 0.0, %v1899
        %1901 = vmatmul.f32.gmra.mxu0 %v1751
        %v1902 = vpop.f32.mrf.mxu0
        %v1903 = vadd.f32 0.0, %v1902
        %1904 = vmatmul.f32.gmra.mxu0 %v1754
        %v1905 = vpop.f32.mrf.mxu0
        %v1906 = vadd.f32 0.0, %v1905
        %1907 = vmatmul.f32.gmra.mxu0 %v1757
        %v1908 = vpop.f32.mrf.mxu0
        %v1909 = vadd.f32 0.0, %v1908
        %1910 = vmatmul.f32.gmra.mxu0 %v1760
        %v1911 = vpop.f32.mrf.mxu0
        %v1912 = vadd.f32 0.0, %v1911
        %1913 = vmatmul.f32.gmra.mxu0 %v1763
        %v1914 = vpop.f32.mrf.mxu0
        %v1915 = vadd.f32 0.0, %v1914
        %1916 = vmatmul.f32.gmra.mxu0 %v1766
        %v1917 = vpop.f32.mrf.mxu0
        %v1918 = vadd.f32 0.0, %v1917
        %1919 = vmatmul.f32.gmra.mxu0 %v1769
        %v1920 = vpop.f32.mrf.mxu0
        %v1921 = vadd.f32 0.0, %v1920
        %1922 = vdwg.mxu0
        %v1924 = vsel %vm492, %v1538, 0
        %v1927 = vsel %vm492, %v1539, 0
        %v1930 = vsel %vm492, %v1540, 0
        %v1933 = vsel %vm492, %v1541, 0
        %v1936 = vsel %vm492, %v1542, 0
        %v1939 = vsel %vm492, %v1543, 0
        %v1942 = vsel %vm492, %v1544, 0
        %v1945 = vsel %vm492, %v1545, 0
        %v1948 = vsel %vm492, %v1546, 0
        %v1951 = vsel %vm492, %v1547, 0
        %v1954 = vsel %vm492, %v1548, 0
        %v1957 = vsel %vm492, %v1549, 0
        %v1960 = vsel %vm492, %v1550, 0
        %v1963 = vsel %vm492, %v1551, 0
        %v1966 = vsel %vm492, %v1552, 0
        %v1969 = vsel %vm492, %v1553, 0
        %v1972 = vsel %vm492, %v1554, 0
        %v1975 = vsel %vm492, %v1555, 0
        %v1978 = vsel %vm492, %v1556, 0
        %v1981 = vsel %vm492, %v1557, 0
        %v1984 = vsel %vm492, %v1558, 0
        %v1987 = vsel %vm492, %v1559, 0
        %v1990 = vsel %vm492, %v1560, 0
        %v1993 = vsel %vm492, %v1561, 0
        %v1996 = vsel %vm492, %v1562, 0
        %v1999 = vsel %vm492, %v1563, 0
        %v2002 = vsel %vm492, %v1564, 0
        %v2005 = vsel %vm492, %v1565, 0
        %v2008 = vsel %vm492, %v1566, 0
        %v2011 = vsel %vm492, %v1567, 0
        %v2014 = vsel %vm492, %v1568, 0
        %v2017 = vsel %vm492, %v1569, 0
        %v2020 = vsel %vm492, %v1570, 0
        %v2023 = vsel %vm492, %v1571, 0
        %v2026 = vsel %vm492, %v1572, 0
        %v2029 = vsel %vm492, %v1573, 0
        %v2032 = vsel %vm492, %v1574, 0
        %v2035 = vsel %vm492, %v1575, 0
        %v2038 = vsel %vm492, %v1576, 0
        %v2041 = vsel %vm492, %v1577, 0
        %v2044 = vsel %vm492, %v1578, 0
        %v2047 = vsel %vm492, %v1579, 0
        %v2050 = vsel %vm492, %v1580, 0
        %v2053 = vsel %vm492, %v1581, 0
        %v2056 = vsel %vm492, %v1582, 0
        %2058 = vmatpush.msra.mxu0 0.0
        %2059 = vmatpush.msra.mxu0 0.0
        %2060 = vmatpush.msra.mxu0 0.0
        %2061 = vmatpush.msra.mxu0 0.0
        %2062 = vmatpush.msra.mxu0 0.0
        %2063 = vmatpush.msra.mxu0 0.0
        %2064 = vmatpush.msra.mxu0 0.0
        %2065 = vmatpush.msra.mxu0 0.0
        %2066 = vmatpush.msra.mxu0 0.0
        %2067 = vmatpush.msra.mxu0 0.0
        %2068 = vmatpush.msra.mxu0 0.0
        %2069 = vmatpush.msra.mxu0 0.0
        %2070 = vmatpush.msra.mxu0 %v1586
        %2071 = vmatpush.msra.mxu0 %v1585
        %2072 = vmatpush.msra.mxu0 %v1584
        %2073 = vmatpush.msra.mxu0 %v1583
        %2074 = vmatmul.f32.gmra.mxu0 %v1924
        %v2075 = vpop.f32.mrf.mxu0
        %v2076 = vadd.f32 %v1789, %v2075
        %2077 = vmatmul.f32.gmra.mxu0 %v1927
        %v2078 = vpop.f32.mrf.mxu0
        %v2079 = vadd.f32 %v1792, %v2078
        %2080 = vmatmul.f32.gmra.mxu0 %v1930
        %v2081 = vpop.f32.mrf.mxu0
        %v2082 = vadd.f32 %v1795, %v2081
        %2083 = vmatmul.f32.gmra.mxu0 %v1933
        %v2084 = vpop.f32.mrf.mxu0
        %v2085 = vadd.f32 %v1798, %v2084
        %2086 = vmatmul.f32.gmra.mxu0 %v1936
        %v2087 = vpop.f32.mrf.mxu0
        %v2088 = vadd.f32 %v1801, %v2087
        %2089 = vmatmul.f32.gmra.mxu0 %v1939
        %v2090 = vpop.f32.mrf.mxu0
        %v2091 = vadd.f32 %v1804, %v2090
        %2092 = vmatmul.f32.gmra.mxu0 %v1942
        %v2093 = vpop.f32.mrf.mxu0
        %v2094 = vadd.f32 %v1807, %v2093
        %2095 = vmatmul.f32.gmra.mxu0 %v1945
        %v2096 = vpop.f32.mrf.mxu0
        %v2097 = vadd.f32 %v1810, %v2096
        %2098 = vmatmul.f32.gmra.mxu0 %v1948
        %v2099 = vpop.f32.mrf.mxu0
        %v2100 = vadd.f32 %v1813, %v2099
        %2101 = vmatmul.f32.gmra.mxu0 %v1951
        %v2102 = vpop.f32.mrf.mxu0
        %v2103 = vadd.f32 %v1816, %v2102
        %2104 = vmatmul.f32.gmra.mxu0 %v1954
        %v2105 = vpop.f32.mrf.mxu0
        %v2106 = vadd.f32 %v1819, %v2105
        %2107 = vmatmul.f32.gmra.mxu0 %v1957
        %v2108 = vpop.f32.mrf.mxu0
        %v2109 = vadd.f32 %v1822, %v2108
        %2110 = vmatmul.f32.gmra.mxu0 %v1960
        %v2111 = vpop.f32.mrf.mxu0
        %v2112 = vadd.f32 %v1825, %v2111
        %2113 = vmatmul.f32.gmra.mxu0 %v1963
        %v2114 = vpop.f32.mrf.mxu0
        %v2115 = vadd.f32 %v1828, %v2114
        %2116 = vmatmul.f32.gmra.mxu0 %v1966
        %v2117 = vpop.f32.mrf.mxu0
        %v2118 = vadd.f32 %v1831, %v2117
        %2119 = vmatmul.f32.gmra.mxu0 %v1969
        %v2120 = vpop.f32.mrf.mxu0
        %v2121 = vadd.f32 %v1834, %v2120
        %2122 = vmatmul.f32.gmra.mxu0 %v1972
        %v2123 = vpop.f32.mrf.mxu0
        %v2124 = vadd.f32 %v1837, %v2123
        %2125 = vmatmul.f32.gmra.mxu0 %v1975
        %v2126 = vpop.f32.mrf.mxu0
        %v2127 = vadd.f32 %v1840, %v2126
        %2128 = vmatmul.f32.gmra.mxu0 %v1978
        %v2129 = vpop.f32.mrf.mxu0
        %v2130 = vadd.f32 %v1843, %v2129
        %2131 = vmatmul.f32.gmra.mxu0 %v1981
        %v2132 = vpop.f32.mrf.mxu0
        %v2133 = vadd.f32 %v1846, %v2132
        %2134 = vmatmul.f32.gmra.mxu0 %v1984
        %v2135 = vpop.f32.mrf.mxu0
        %v2136 = vadd.f32 %v1849, %v2135
        %2137 = vmatmul.f32.gmra.mxu0 %v1987
        %v2138 = vpop.f32.mrf.mxu0
        %v2139 = vadd.f32 %v1852, %v2138
        %2140 = vmatmul.f32.gmra.mxu0 %v1990
        %v2141 = vpop.f32.mrf.mxu0
        %v2142 = vadd.f32 %v1855, %v2141
        %2143 = vmatmul.f32.gmra.mxu0 %v1993
        %v2144 = vpop.f32.mrf.mxu0
        %v2145 = vadd.f32 %v1858, %v2144
        %2146 = vmatmul.f32.gmra.mxu0 %v1996
        %v2147 = vpop.f32.mrf.mxu0
        %v2148 = vadd.f32 %v1861, %v2147
        %2149 = vmatmul.f32.gmra.mxu0 %v1999
        %v2150 = vpop.f32.mrf.mxu0
        %v2151 = vadd.f32 %v1864, %v2150
        %2152 = vmatmul.f32.gmra.mxu0 %v2002
        %v2153 = vpop.f32.mrf.mxu0
        %v2154 = vadd.f32 %v1867, %v2153
        %2155 = vmatmul.f32.gmra.mxu0 %v2005
        %v2156 = vpop.f32.mrf.mxu0
        %v2157 = vadd.f32 %v1870, %v2156
        %2158 = vmatmul.f32.gmra.mxu0 %v2008
        %v2159 = vpop.f32.mrf.mxu0
        %v2160 = vadd.f32 %v1873, %v2159
        %2161 = vmatmul.f32.gmra.mxu0 %v2011
        %v2162 = vpop.f32.mrf.mxu0
        %v2163 = vadd.f32 %v1876, %v2162
        %2164 = vmatmul.f32.gmra.mxu0 %v2014
        %v2165 = vpop.f32.mrf.mxu0
        %v2166 = vadd.f32 %v1879, %v2165
        %2167 = vmatmul.f32.gmra.mxu0 %v2017
        %v2168 = vpop.f32.mrf.mxu0
        %v2169 = vadd.f32 %v1882, %v2168
        %2170 = vmatmul.f32.gmra.mxu0 %v2020
        %v2171 = vpop.f32.mrf.mxu0
        %v2172 = vadd.f32 %v1885, %v2171
        %2173 = vmatmul.f32.gmra.mxu0 %v2023
        %v2174 = vpop.f32.mrf.mxu0
        %v2175 = vadd.f32 %v1888, %v2174
        %2176 = vmatmul.f32.gmra.mxu0 %v2026
        %v2177 = vpop.f32.mrf.mxu0
        %v2178 = vadd.f32 %v1891, %v2177
        %2179 = vmatmul.f32.gmra.mxu0 %v2029
        %v2180 = vpop.f32.mrf.mxu0
        %v2181 = vadd.f32 %v1894, %v2180
        %2182 = vmatmul.f32.gmra.mxu0 %v2032
        %v2183 = vpop.f32.mrf.mxu0
        %v2184 = vadd.f32 %v1897, %v2183
        %2185 = vmatmul.f32.gmra.mxu0 %v2035
        %v2186 = vpop.f32.mrf.mxu0
        %v2187 = vadd.f32 %v1900, %v2186
        %2188 = vmatmul.f32.gmra.mxu0 %v2038
        %v2189 = vpop.f32.mrf.mxu0
        %v2190 = vadd.f32 %v1903, %v2189
        %2191 = vmatmul.f32.gmra.mxu0 %v2041
        %v2192 = vpop.f32.mrf.mxu0
        %v2193 = vadd.f32 %v1906, %v2192
        %2194 = vmatmul.f32.gmra.mxu0 %v2044
        %v2195 = vpop.f32.mrf.mxu0
        %v2196 = vadd.f32 %v1909, %v2195
        %2197 = vmatmul.f32.gmra.mxu0 %v2047
        %v2198 = vpop.f32.mrf.mxu0
        %v2199 = vadd.f32 %v1912, %v2198
        %2200 = vmatmul.f32.gmra.mxu0 %v2050
        %v2201 = vpop.f32.mrf.mxu0
        %v2202 = vadd.f32 %v1915, %v2201
        %2203 = vmatmul.f32.gmra.mxu0 %v2053
        %v2204 = vpop.f32.mrf.mxu0
        %v2205 = vadd.f32 %v1918, %v2204
        %2206 = vmatmul.f32.gmra.mxu0 %v2056
        %v2207 = vpop.f32.mrf.mxu0
        %v2208 = vadd.f32 %v1921, %v2207
        %2209 = vdwg.mxu0
        %v2210 = vld [vmem:[#allocation2 + $0x2] sm:$0xff]
        %v2211 = vld [vmem:[#allocation2 + $0xa] sm:$0xff]
        %v2212 = vld [vmem:[#allocation2 + $0x12] sm:$0xff]
        %v2213 = vld [vmem:[#allocation2 + $0x1a] sm:$0xff]
        %v2214 = vld [vmem:[#allocation2 + $0x22] sm:$0xff]
        %v2215 = vld [vmem:[#allocation2 + $0x2a] sm:$0xff]
        %v2216 = vld [vmem:[#allocation2 + $0x32] sm:$0xff]
        %v2217 = vld [vmem:[#allocation2 + $0x3a] sm:$0xff]
        %v2218 = vld [vmem:[#allocation2 + $0x42] sm:$0xff]
        %v2219 = vld [vmem:[#allocation2 + $0x4a] sm:$0xff]
        %v2220 = vld [vmem:[#allocation2 + $0x52] sm:$0xff]
        %v2221 = vld [vmem:[#allocation2 + $0x5a] sm:$0xff]
        %v2222 = vld [vmem:[#allocation2 + $0x62] sm:$0xff]
        %v2223 = vld [vmem:[#allocation2 + $0x6a] sm:$0xff]
        %v2224 = vld [vmem:[#allocation2 + $0x72] sm:$0xff]
        %v2225 = vld [vmem:[#allocation2 + $0x7a] sm:$0xff]
        %v2226 = vld [vmem:[#allocation2 + $0x82] sm:$0xff]
        %v2227 = vld [vmem:[#allocation2 + $0x8a] sm:$0xff]
        %v2228 = vld [vmem:[#allocation2 + $0x92] sm:$0xff]
        %v2229 = vld [vmem:[#allocation2 + $0x9a] sm:$0xff]
        %v2230 = vld [vmem:[#allocation2 + $0xa2] sm:$0xff]
        %v2231 = vld [vmem:[#allocation2 + $0xaa] sm:$0xff]
        %v2232 = vld [vmem:[#allocation2 + $0xb2] sm:$0xff]
        %v2233 = vld [vmem:[#allocation2 + $0xba] sm:$0xff]
        %v2234 = vld [vmem:[#allocation2 + $0xc2] sm:$0xff]
        %v2235 = vld [vmem:[#allocation2 + $0xca] sm:$0xff]
        %v2236 = vld [vmem:[#allocation2 + $0xd2] sm:$0xff]
        %v2237 = vld [vmem:[#allocation2 + $0xda] sm:$0xff]
        %v2238 = vld [vmem:[#allocation2 + $0xe2] sm:$0xff]
        %v2239 = vld [vmem:[#allocation2 + $0xea] sm:$0xff]
        %v2240 = vld [vmem:[#allocation2 + $0xf2] sm:$0xff]
        %v2241 = vld [vmem:[#allocation2 + $0xfa] sm:$0xff]
        %v2242 = vld [vmem:[#allocation2 + $0x102] sm:$0xff]
        %v2243 = vld [vmem:[#allocation2 + $0x10a] sm:$0xff]
        %v2244 = vld [vmem:[#allocation2 + $0x112] sm:$0xff]
        %v2245 = vld [vmem:[#allocation2 + $0x11a] sm:$0xff]
        %v2246 = vld [vmem:[#allocation2 + $0x122] sm:$0xff]
        %v2247 = vld [vmem:[#allocation2 + $0x12a] sm:$0xff]
        %v2248 = vld [vmem:[#allocation2 + $0x132] sm:$0xff]
        %v2249 = vld [vmem:[#allocation2 + $0x13a] sm:$0xff]
        %v2250 = vld [vmem:[#allocation2 + $0x142] sm:$0xff]
        %v2251 = vld [vmem:[#allocation2 + $0x14a] sm:$0xff]
        %v2252 = vld [vmem:[#allocation2 + $0x152] sm:$0xff]
        %v2253 = vld [vmem:[#allocation2 + $0x15a] sm:$0xff]
        %v2254 = vld [vmem:[#allocation2 + $0x162] sm:$0xff]
        %v2255 = vld [vmem:[%s3 + $0x40] sm:$0xff]
        %v2256 = vld [vmem:[%s3 + $0x48] sm:$0xff]
        %v2257 = vld [vmem:[%s3 + $0x50] sm:$0xff]
        %v2258 = vld [vmem:[%s3 + $0x58] sm:$0xff]
        %v2260 = vsel %vm492, %v2210, 0
        %v2263 = vsel %vm492, %v2211, 0
        %v2266 = vsel %vm492, %v2212, 0
        %v2269 = vsel %vm492, %v2213, 0
        %v2272 = vsel %vm492, %v2214, 0
        %v2275 = vsel %vm492, %v2215, 0
        %v2278 = vsel %vm492, %v2216, 0
        %v2281 = vsel %vm492, %v2217, 0
        %v2284 = vsel %vm492, %v2218, 0
        %v2287 = vsel %vm492, %v2219, 0
        %v2290 = vsel %vm492, %v2220, 0
        %v2293 = vsel %vm492, %v2221, 0
        %v2296 = vsel %vm492, %v2222, 0
        %v2299 = vsel %vm492, %v2223, 0
        %v2302 = vsel %vm492, %v2224, 0
        %v2305 = vsel %vm492, %v2225, 0
        %v2308 = vsel %vm492, %v2226, 0
        %v2311 = vsel %vm492, %v2227, 0
        %v2314 = vsel %vm492, %v2228, 0
        %v2317 = vsel %vm492, %v2229, 0
        %v2320 = vsel %vm492, %v2230, 0
        %v2323 = vsel %vm492, %v2231, 0
        %v2326 = vsel %vm492, %v2232, 0
        %v2329 = vsel %vm492, %v2233, 0
        %v2332 = vsel %vm492, %v2234, 0
        %v2335 = vsel %vm492, %v2235, 0
        %v2338 = vsel %vm492, %v2236, 0
        %v2341 = vsel %vm492, %v2237, 0
        %v2344 = vsel %vm492, %v2238, 0
        %v2347 = vsel %vm492, %v2239, 0
        %v2350 = vsel %vm492, %v2240, 0
        %v2353 = vsel %vm492, %v2241, 0
        %v2356 = vsel %vm492, %v2242, 0
        %v2359 = vsel %vm492, %v2243, 0
        %v2362 = vsel %vm492, %v2244, 0
        %v2365 = vsel %vm492, %v2245, 0
        %v2368 = vsel %vm492, %v2246, 0
        %v2371 = vsel %vm492, %v2247, 0
        %v2374 = vsel %vm492, %v2248, 0
        %v2377 = vsel %vm492, %v2249, 0
        %v2380 = vsel %vm492, %v2250, 0
        %v2383 = vsel %vm492, %v2251, 0
        %v2386 = vsel %vm492, %v2252, 0
        %v2389 = vsel %vm492, %v2253, 0
        %v2392 = vsel %vm492, %v2254, 0
        %2394 = vmatpush.msra.mxu0 0.0
        %2395 = vmatpush.msra.mxu0 0.0
        %2396 = vmatpush.msra.mxu0 0.0
        %2397 = vmatpush.msra.mxu0 0.0
        %2398 = vmatpush.msra.mxu0 0.0
        %2399 = vmatpush.msra.mxu0 0.0
        %2400 = vmatpush.msra.mxu0 0.0
        %2401 = vmatpush.msra.mxu0 0.0
        %2402 = vmatpush.msra.mxu0 0.0
        %2403 = vmatpush.msra.mxu0 0.0
        %2404 = vmatpush.msra.mxu0 0.0
        %2405 = vmatpush.msra.mxu0 0.0
        %2406 = vmatpush.msra.mxu0 %v2258
        %2407 = vmatpush.msra.mxu0 %v2257
        %2408 = vmatpush.msra.mxu0 %v2256
        %2409 = vmatpush.msra.mxu0 %v2255
        %2410 = vmatmul.f32.gmra.mxu0 %v2260
        %v2411 = vpop.f32.mrf.mxu0
        %v2412 = vadd.f32 0.0, %v2411
        %2413 = vmatmul.f32.gmra.mxu0 %v2263
        %v2414 = vpop.f32.mrf.mxu0
        %v2415 = vadd.f32 0.0, %v2414
        %2416 = vmatmul.f32.gmra.mxu0 %v2266
        %v2417 = vpop.f32.mrf.mxu0
        %v2418 = vadd.f32 0.0, %v2417
        %2419 = vmatmul.f32.gmra.mxu0 %v2269
        %v2420 = vpop.f32.mrf.mxu0
        %v2421 = vadd.f32 0.0, %v2420
        %2422 = vmatmul.f32.gmra.mxu0 %v2272
        %v2423 = vpop.f32.mrf.mxu0
        %v2424 = vadd.f32 0.0, %v2423
        %2425 = vmatmul.f32.gmra.mxu0 %v2275
        %v2426 = vpop.f32.mrf.mxu0
        %v2427 = vadd.f32 0.0, %v2426
        %2428 = vmatmul.f32.gmra.mxu0 %v2278
        %v2429 = vpop.f32.mrf.mxu0
        %v2430 = vadd.f32 0.0, %v2429
        %2431 = vmatmul.f32.gmra.mxu0 %v2281
        %v2432 = vpop.f32.mrf.mxu0
        %v2433 = vadd.f32 0.0, %v2432
        %2434 = vmatmul.f32.gmra.mxu0 %v2284
        %v2435 = vpop.f32.mrf.mxu0
        %v2436 = vadd.f32 0.0, %v2435
        %2437 = vmatmul.f32.gmra.mxu0 %v2287
        %v2438 = vpop.f32.mrf.mxu0
        %v2439 = vadd.f32 0.0, %v2438
        %2440 = vmatmul.f32.gmra.mxu0 %v2290
        %v2441 = vpop.f32.mrf.mxu0
        %v2442 = vadd.f32 0.0, %v2441
        %2443 = vmatmul.f32.gmra.mxu0 %v2293
        %v2444 = vpop.f32.mrf.mxu0
        %v2445 = vadd.f32 0.0, %v2444
        %2446 = vmatmul.f32.gmra.mxu0 %v2296
        %v2447 = vpop.f32.mrf.mxu0
        %v2448 = vadd.f32 0.0, %v2447
        %2449 = vmatmul.f32.gmra.mxu0 %v2299
        %v2450 = vpop.f32.mrf.mxu0
        %v2451 = vadd.f32 0.0, %v2450
        %2452 = vmatmul.f32.gmra.mxu0 %v2302
        %v2453 = vpop.f32.mrf.mxu0
        %v2454 = vadd.f32 0.0, %v2453
        %2455 = vmatmul.f32.gmra.mxu0 %v2305
        %v2456 = vpop.f32.mrf.mxu0
        %v2457 = vadd.f32 0.0, %v2456
        %2458 = vmatmul.f32.gmra.mxu0 %v2308
        %v2459 = vpop.f32.mrf.mxu0
        %v2460 = vadd.f32 0.0, %v2459
        %2461 = vmatmul.f32.gmra.mxu0 %v2311
        %v2462 = vpop.f32.mrf.mxu0
        %v2463 = vadd.f32 0.0, %v2462
        %2464 = vmatmul.f32.gmra.mxu0 %v2314
        %v2465 = vpop.f32.mrf.mxu0
        %v2466 = vadd.f32 0.0, %v2465
        %2467 = vmatmul.f32.gmra.mxu0 %v2317
        %v2468 = vpop.f32.mrf.mxu0
        %v2469 = vadd.f32 0.0, %v2468
        %2470 = vmatmul.f32.gmra.mxu0 %v2320
        %v2471 = vpop.f32.mrf.mxu0
        %v2472 = vadd.f32 0.0, %v2471
        %2473 = vmatmul.f32.gmra.mxu0 %v2323
        %v2474 = vpop.f32.mrf.mxu0
        %v2475 = vadd.f32 0.0, %v2474
        %2476 = vmatmul.f32.gmra.mxu0 %v2326
        %v2477 = vpop.f32.mrf.mxu0
        %v2478 = vadd.f32 0.0, %v2477
        %2479 = vmatmul.f32.gmra.mxu0 %v2329
        %v2480 = vpop.f32.mrf.mxu0
        %v2481 = vadd.f32 0.0, %v2480
        %2482 = vmatmul.f32.gmra.mxu0 %v2332
        %v2483 = vpop.f32.mrf.mxu0
        %v2484 = vadd.f32 0.0, %v2483
        %2485 = vmatmul.f32.gmra.mxu0 %v2335
        %v2486 = vpop.f32.mrf.mxu0
        %v2487 = vadd.f32 0.0, %v2486
        %2488 = vmatmul.f32.gmra.mxu0 %v2338
        %v2489 = vpop.f32.mrf.mxu0
        %v2490 = vadd.f32 0.0, %v2489
        %2491 = vmatmul.f32.gmra.mxu0 %v2341
        %v2492 = vpop.f32.mrf.mxu0
        %v2493 = vadd.f32 0.0, %v2492
        %2494 = vmatmul.f32.gmra.mxu0 %v2344
        %v2495 = vpop.f32.mrf.mxu0
        %v2496 = vadd.f32 0.0, %v2495
        %2497 = vmatmul.f32.gmra.mxu0 %v2347
        %v2498 = vpop.f32.mrf.mxu0
        %v2499 = vadd.f32 0.0, %v2498
        %2500 = vmatmul.f32.gmra.mxu0 %v2350
        %v2501 = vpop.f32.mrf.mxu0
        %v2502 = vadd.f32 0.0, %v2501
        %2503 = vmatmul.f32.gmra.mxu0 %v2353
        %v2504 = vpop.f32.mrf.mxu0
        %v2505 = vadd.f32 0.0, %v2504
        %2506 = vmatmul.f32.gmra.mxu0 %v2356
        %v2507 = vpop.f32.mrf.mxu0
        %v2508 = vadd.f32 0.0, %v2507
        %2509 = vmatmul.f32.gmra.mxu0 %v2359
        %v2510 = vpop.f32.mrf.mxu0
        %v2511 = vadd.f32 0.0, %v2510
        %2512 = vmatmul.f32.gmra.mxu0 %v2362
        %v2513 = vpop.f32.mrf.mxu0
        %v2514 = vadd.f32 0.0, %v2513
        %2515 = vmatmul.f32.gmra.mxu0 %v2365
        %v2516 = vpop.f32.mrf.mxu0
        %v2517 = vadd.f32 0.0, %v2516
        %2518 = vmatmul.f32.gmra.mxu0 %v2368
        %v2519 = vpop.f32.mrf.mxu0
        %v2520 = vadd.f32 0.0, %v2519
        %2521 = vmatmul.f32.gmra.mxu0 %v2371
        %v2522 = vpop.f32.mrf.mxu0
        %v2523 = vadd.f32 0.0, %v2522
        %2524 = vmatmul.f32.gmra.mxu0 %v2374
        %v2525 = vpop.f32.mrf.mxu0
        %v2526 = vadd.f32 0.0, %v2525
        %2527 = vmatmul.f32.gmra.mxu0 %v2377
        %v2528 = vpop.f32.mrf.mxu0
        %v2529 = vadd.f32 0.0, %v2528
        %2530 = vmatmul.f32.gmra.mxu0 %v2380
        %v2531 = vpop.f32.mrf.mxu0
        %v2532 = vadd.f32 0.0, %v2531
        %2533 = vmatmul.f32.gmra.mxu0 %v2383
        %v2534 = vpop.f32.mrf.mxu0
        %v2535 = vadd.f32 0.0, %v2534
        %2536 = vmatmul.f32.gmra.mxu0 %v2386
        %v2537 = vpop.f32.mrf.mxu0
        %v2538 = vadd.f32 0.0, %v2537
        %2539 = vmatmul.f32.gmra.mxu0 %v2389
        %v2540 = vpop.f32.mrf.mxu0
        %v2541 = vadd.f32 0.0, %v2540
        %2542 = vmatmul.f32.gmra.mxu0 %v2392
        %v2543 = vpop.f32.mrf.mxu0
        %v2544 = vadd.f32 0.0, %v2543
        %2545 = vdwg.mxu0
        %v2546 = vadd.f32 %v2076, %v2412
        %v2547 = vadd.f32 %v2079, %v2415
        %v2548 = vadd.f32 %v2082, %v2418
        %v2549 = vadd.f32 %v2085, %v2421
        %v2550 = vadd.f32 %v2088, %v2424
        %v2551 = vadd.f32 %v2091, %v2427
        %v2552 = vadd.f32 %v2094, %v2430
        %v2553 = vadd.f32 %v2097, %v2433
        %v2554 = vadd.f32 %v2100, %v2436
        %v2555 = vadd.f32 %v2103, %v2439
        %v2556 = vadd.f32 %v2106, %v2442
        %v2557 = vadd.f32 %v2109, %v2445
        %v2558 = vadd.f32 %v2112, %v2448
        %v2559 = vadd.f32 %v2115, %v2451
        %v2560 = vadd.f32 %v2118, %v2454
        %v2561 = vadd.f32 %v2121, %v2457
        %v2562 = vadd.f32 %v2124, %v2460
        %v2563 = vadd.f32 %v2127, %v2463
        %v2564 = vadd.f32 %v2130, %v2466
        %v2565 = vadd.f32 %v2133, %v2469
        %v2566 = vadd.f32 %v2136, %v2472
        %v2567 = vadd.f32 %v2139, %v2475
        %v2568 = vadd.f32 %v2142, %v2478
        %v2569 = vadd.f32 %v2145, %v2481
        %v2570 = vadd.f32 %v2148, %v2484
        %v2571 = vadd.f32 %v2151, %v2487
        %v2572 = vadd.f32 %v2154, %v2490
        %v2573 = vadd.f32 %v2157, %v2493
        %v2574 = vadd.f32 %v2160, %v2496
        %v2575 = vadd.f32 %v2163, %v2499
        %v2576 = vadd.f32 %v2166, %v2502
        %v2577 = vadd.f32 %v2169, %v2505
        %v2578 = vadd.f32 %v2172, %v2508
        %v2579 = vadd.f32 %v2175, %v2511
        %v2580 = vadd.f32 %v2178, %v2514
        %v2581 = vadd.f32 %v2181, %v2517
        %v2582 = vadd.f32 %v2184, %v2520
        %v2583 = vadd.f32 %v2187, %v2523
        %v2584 = vadd.f32 %v2190, %v2526
        %v2585 = vadd.f32 %v2193, %v2529
        %v2586 = vadd.f32 %v2196, %v2532
        %v2587 = vadd.f32 %v2199, %v2535
        %v2588 = vadd.f32 %v2202, %v2538
        %v2589 = vadd.f32 %v2205, %v2541
        %v2590 = vadd.f32 %v2208, %v2544
        %v2591 = vld [vmem:[#allocation2 + $0x14] sm:$0xff]
        %v2592 = vld [vmem:[#allocation2 + $0x1c] sm:$0xff]
        %v2593 = vld [vmem:[#allocation2 + $0x24] sm:$0xff]
        %v2594 = vld [vmem:[#allocation2 + $0x2c] sm:$0xff]
        %v2595 = vld [vmem:[#allocation2 + $0x34] sm:$0xff]
        %v2596 = vld [vmem:[#allocation2 + $0x3c] sm:$0xff]
        %v2597 = vld [vmem:[#allocation2 + $0x44] sm:$0xff]
        %v2598 = vld [vmem:[#allocation2 + $0x4c] sm:$0xff]
        %v2599 = vld [vmem:[#allocation2 + $0x54] sm:$0xff]
        %v2600 = vld [vmem:[#allocation2 + $0x5c] sm:$0xff]
        %v2601 = vld [vmem:[#allocation2 + $0x64] sm:$0xff]
        %v2602 = vld [vmem:[#allocation2 + $0x6c] sm:$0xff]
        %v2603 = vld [vmem:[#allocation2 + $0x74] sm:$0xff]
        %v2604 = vld [vmem:[#allocation2 + $0x7c] sm:$0xff]
        %v2605 = vld [vmem:[#allocation2 + $0x84] sm:$0xff]
        %v2606 = vld [vmem:[#allocation2 + $0x8c] sm:$0xff]
        %v2607 = vld [vmem:[#allocation2 + $0x94] sm:$0xff]
        %v2608 = vld [vmem:[#allocation2 + $0x9c] sm:$0xff]
        %v2609 = vld [vmem:[#allocation2 + $0xa4] sm:$0xff]
        %v2610 = vld [vmem:[#allocation2 + $0xac] sm:$0xff]
        %v2611 = vld [vmem:[#allocation2 + $0xb4] sm:$0xff]
        %v2612 = vld [vmem:[#allocation2 + $0xbc] sm:$0xff]
        %v2613 = vld [vmem:[#allocation2 + $0xc4] sm:$0xff]
        %v2614 = vld [vmem:[#allocation2 + $0xcc] sm:$0xff]
        %v2615 = vld [vmem:[#allocation2 + $0xd4] sm:$0xff]
        %v2616 = vld [vmem:[#allocation2 + $0xdc] sm:$0xff]
        %v2617 = vld [vmem:[#allocation2 + $0xe4] sm:$0xff]
        %v2618 = vld [vmem:[#allocation2 + $0xec] sm:$0xff]
        %v2619 = vld [vmem:[#allocation2 + $0xf4] sm:$0xff]
        %v2620 = vld [vmem:[#allocation2 + $0xfc] sm:$0xff]
        %v2621 = vld [vmem:[#allocation2 + $0x104] sm:$0xff]
        %v2622 = vld [vmem:[#allocation2 + $0x10c] sm:$0xff]
        %v2623 = vld [vmem:[#allocation2 + $0x114] sm:$0xff]
        %v2624 = vld [vmem:[#allocation2 + $0x11c] sm:$0xff]
        %v2625 = vld [vmem:[#allocation2 + $0x124] sm:$0xff]
        %v2626 = vld [vmem:[#allocation2 + $0x12c] sm:$0xff]
        %v2627 = vld [vmem:[#allocation2 + $0x134] sm:$0xff]
        %v2628 = vld [vmem:[#allocation2 + $0x13c] sm:$0xff]
        %v2629 = vld [vmem:[#allocation2 + $0x144] sm:$0xff]
        %v2630 = vld [vmem:[#allocation2 + $0x14c] sm:$0xff]
        %v2631 = vld [vmem:[#allocation2 + $0x154] sm:$0xff]
        %v2632 = vld [vmem:[#allocation2 + $0x15c] sm:$0xff]
        %v2633 = vld [vmem:[#allocation2 + $0x164] sm:$0xff]
        %v2634 = vld [vmem:[#allocation2 + $0x16c] sm:$0xff]
        %v2635 = vld [vmem:[#allocation2 + $0x174] sm:$0xff]
        %v2636 = vld [vmem:[%s3 + $0x60] sm:$0xff]
        %v2637 = vld [vmem:[%s3 + $0x68] sm:$0xff]
        %v2638 = vld [vmem:[%s3 + $0x70] sm:$0xff]
        %v2639 = vld [vmem:[%s3 + $0x78] sm:$0xff]
        %v2641 = vsel %vm492, %v2591, 0
        %v2644 = vsel %vm492, %v2592, 0
        %v2647 = vsel %vm492, %v2593, 0
        %v2650 = vsel %vm492, %v2594, 0
        %v2653 = vsel %vm492, %v2595, 0
        %v2656 = vsel %vm492, %v2596, 0
        %v2659 = vsel %vm492, %v2597, 0
        %v2662 = vsel %vm492, %v2598, 0
        %v2665 = vsel %vm492, %v2599, 0
        %v2668 = vsel %vm492, %v2600, 0
        %v2671 = vsel %vm492, %v2601, 0
        %v2674 = vsel %vm492, %v2602, 0
        %v2677 = vsel %vm492, %v2603, 0
        %v2680 = vsel %vm492, %v2604, 0
        %v2683 = vsel %vm492, %v2605, 0
        %v2686 = vsel %vm492, %v2606, 0
        %v2689 = vsel %vm492, %v2607, 0
        %v2692 = vsel %vm492, %v2608, 0
        %v2695 = vsel %vm492, %v2609, 0
        %v2698 = vsel %vm492, %v2610, 0
        %v2701 = vsel %vm492, %v2611, 0
        %v2704 = vsel %vm492, %v2612, 0
        %v2707 = vsel %vm492, %v2613, 0
        %v2710 = vsel %vm492, %v2614, 0
        %v2713 = vsel %vm492, %v2615, 0
        %v2716 = vsel %vm492, %v2616, 0
        %v2719 = vsel %vm492, %v2617, 0
        %v2722 = vsel %vm492, %v2618, 0
        %v2725 = vsel %vm492, %v2619, 0
        %v2728 = vsel %vm492, %v2620, 0
        %v2731 = vsel %vm492, %v2621, 0
        %v2734 = vsel %vm492, %v2622, 0
        %v2737 = vsel %vm492, %v2623, 0
        %v2740 = vsel %vm492, %v2624, 0
        %v2743 = vsel %vm492, %v2625, 0
        %v2746 = vsel %vm492, %v2626, 0
        %v2749 = vsel %vm492, %v2627, 0
        %v2752 = vsel %vm492, %v2628, 0
        %v2755 = vsel %vm492, %v2629, 0
        %v2758 = vsel %vm492, %v2630, 0
        %v2761 = vsel %vm492, %v2631, 0
        %v2764 = vsel %vm492, %v2632, 0
        %v2767 = vsel %vm492, %v2633, 0
        %v2770 = vsel %vm492, %v2634, 0
        %v2773 = vsel %vm492, %v2635, 0
        %2775 = vmatpush.msra.mxu0 0.0
        %2776 = vmatpush.msra.mxu0 0.0
        %2777 = vmatpush.msra.mxu0 0.0
        %2778 = vmatpush.msra.mxu0 0.0
        %2779 = vmatpush.msra.mxu0 0.0
        %2780 = vmatpush.msra.mxu0 0.0
        %2781 = vmatpush.msra.mxu0 0.0
        %2782 = vmatpush.msra.mxu0 0.0
        %2783 = vmatpush.msra.mxu0 0.0
        %2784 = vmatpush.msra.mxu0 0.0
        %2785 = vmatpush.msra.mxu0 0.0
        %2786 = vmatpush.msra.mxu0 0.0
        %2787 = vmatpush.msra.mxu0 %v2639
        %2788 = vmatpush.msra.mxu0 %v2638
        %2789 = vmatpush.msra.mxu0 %v2637
        %2790 = vmatpush.msra.mxu0 %v2636
        %2791 = vmatmul.f32.gmra.mxu0 %v2641
        %v2792 = vpop.f32.mrf.mxu0
        %v2793 = vadd.f32 0.0, %v2792
        %2794 = vmatmul.f32.gmra.mxu0 %v2644
        %v2795 = vpop.f32.mrf.mxu0
        %v2796 = vadd.f32 0.0, %v2795
        %2797 = vmatmul.f32.gmra.mxu0 %v2647
        %v2798 = vpop.f32.mrf.mxu0
        %v2799 = vadd.f32 0.0, %v2798
        %2800 = vmatmul.f32.gmra.mxu0 %v2650
        %v2801 = vpop.f32.mrf.mxu0
        %v2802 = vadd.f32 0.0, %v2801
        %2803 = vmatmul.f32.gmra.mxu0 %v2653
        %v2804 = vpop.f32.mrf.mxu0
        %v2805 = vadd.f32 0.0, %v2804
        %2806 = vmatmul.f32.gmra.mxu0 %v2656
        %v2807 = vpop.f32.mrf.mxu0
        %v2808 = vadd.f32 0.0, %v2807
        %2809 = vmatmul.f32.gmra.mxu0 %v2659
        %v2810 = vpop.f32.mrf.mxu0
        %v2811 = vadd.f32 0.0, %v2810
        %2812 = vmatmul.f32.gmra.mxu0 %v2662
        %v2813 = vpop.f32.mrf.mxu0
        %v2814 = vadd.f32 0.0, %v2813
        %2815 = vmatmul.f32.gmra.mxu0 %v2665
        %v2816 = vpop.f32.mrf.mxu0
        %v2817 = vadd.f32 0.0, %v2816
        %2818 = vmatmul.f32.gmra.mxu0 %v2668
        %v2819 = vpop.f32.mrf.mxu0
        %v2820 = vadd.f32 0.0, %v2819
        %2821 = vmatmul.f32.gmra.mxu0 %v2671
        %v2822 = vpop.f32.mrf.mxu0
        %v2823 = vadd.f32 0.0, %v2822
        %2824 = vmatmul.f32.gmra.mxu0 %v2674
        %v2825 = vpop.f32.mrf.mxu0
        %v2826 = vadd.f32 0.0, %v2825
        %2827 = vmatmul.f32.gmra.mxu0 %v2677
        %v2828 = vpop.f32.mrf.mxu0
        %v2829 = vadd.f32 0.0, %v2828
        %2830 = vmatmul.f32.gmra.mxu0 %v2680
        %v2831 = vpop.f32.mrf.mxu0
        %v2832 = vadd.f32 0.0, %v2831
        %2833 = vmatmul.f32.gmra.mxu0 %v2683
        %v2834 = vpop.f32.mrf.mxu0
        %v2835 = vadd.f32 0.0, %v2834
        %2836 = vmatmul.f32.gmra.mxu0 %v2686
        %v2837 = vpop.f32.mrf.mxu0
        %v2838 = vadd.f32 0.0, %v2837
        %2839 = vmatmul.f32.gmra.mxu0 %v2689
        %v2840 = vpop.f32.mrf.mxu0
        %v2841 = vadd.f32 0.0, %v2840
        %2842 = vmatmul.f32.gmra.mxu0 %v2692
        %v2843 = vpop.f32.mrf.mxu0
        %v2844 = vadd.f32 0.0, %v2843
        %2845 = vmatmul.f32.gmra.mxu0 %v2695
        %v2846 = vpop.f32.mrf.mxu0
        %v2847 = vadd.f32 0.0, %v2846
        %2848 = vmatmul.f32.gmra.mxu0 %v2698
        %v2849 = vpop.f32.mrf.mxu0
        %v2850 = vadd.f32 0.0, %v2849
        %2851 = vmatmul.f32.gmra.mxu0 %v2701
        %v2852 = vpop.f32.mrf.mxu0
        %v2853 = vadd.f32 0.0, %v2852
        %2854 = vmatmul.f32.gmra.mxu0 %v2704
        %v2855 = vpop.f32.mrf.mxu0
        %v2856 = vadd.f32 0.0, %v2855
        %2857 = vmatmul.f32.gmra.mxu0 %v2707
        %v2858 = vpop.f32.mrf.mxu0
        %v2859 = vadd.f32 0.0, %v2858
        %2860 = vmatmul.f32.gmra.mxu0 %v2710
        %v2861 = vpop.f32.mrf.mxu0
        %v2862 = vadd.f32 0.0, %v2861
        %2863 = vmatmul.f32.gmra.mxu0 %v2713
        %v2864 = vpop.f32.mrf.mxu0
        %v2865 = vadd.f32 0.0, %v2864
        %2866 = vmatmul.f32.gmra.mxu0 %v2716
        %v2867 = vpop.f32.mrf.mxu0
        %v2868 = vadd.f32 0.0, %v2867
        %2869 = vmatmul.f32.gmra.mxu0 %v2719
        %v2870 = vpop.f32.mrf.mxu0
        %v2871 = vadd.f32 0.0, %v2870
        %2872 = vmatmul.f32.gmra.mxu0 %v2722
        %v2873 = vpop.f32.mrf.mxu0
        %v2874 = vadd.f32 0.0, %v2873
        %2875 = vmatmul.f32.gmra.mxu0 %v2725
        %v2876 = vpop.f32.mrf.mxu0
        %v2877 = vadd.f32 0.0, %v2876
        %2878 = vmatmul.f32.gmra.mxu0 %v2728
        %v2879 = vpop.f32.mrf.mxu0
        %v2880 = vadd.f32 0.0, %v2879
        %2881 = vmatmul.f32.gmra.mxu0 %v2731
        %v2882 = vpop.f32.mrf.mxu0
        %v2883 = vadd.f32 0.0, %v2882
        %2884 = vmatmul.f32.gmra.mxu0 %v2734
        %v2885 = vpop.f32.mrf.mxu0
        %v2886 = vadd.f32 0.0, %v2885
        %2887 = vmatmul.f32.gmra.mxu0 %v2737
        %v2888 = vpop.f32.mrf.mxu0
        %v2889 = vadd.f32 0.0, %v2888
        %2890 = vmatmul.f32.gmra.mxu0 %v2740
        %v2891 = vpop.f32.mrf.mxu0
        %v2892 = vadd.f32 0.0, %v2891
        %2893 = vmatmul.f32.gmra.mxu0 %v2743
        %v2894 = vpop.f32.mrf.mxu0
        %v2895 = vadd.f32 0.0, %v2894
        %2896 = vmatmul.f32.gmra.mxu0 %v2746
        %v2897 = vpop.f32.mrf.mxu0
        %v2898 = vadd.f32 0.0, %v2897
        %2899 = vmatmul.f32.gmra.mxu0 %v2749
        %v2900 = vpop.f32.mrf.mxu0
        %v2901 = vadd.f32 0.0, %v2900
        %2902 = vmatmul.f32.gmra.mxu0 %v2752
        %v2903 = vpop.f32.mrf.mxu0
        %v2904 = vadd.f32 0.0, %v2903
        %2905 = vmatmul.f32.gmra.mxu0 %v2755
        %v2906 = vpop.f32.mrf.mxu0
        %v2907 = vadd.f32 0.0, %v2906
        %2908 = vmatmul.f32.gmra.mxu0 %v2758
        %v2909 = vpop.f32.mrf.mxu0
        %v2910 = vadd.f32 0.0, %v2909
        %2911 = vmatmul.f32.gmra.mxu0 %v2761
        %v2912 = vpop.f32.mrf.mxu0
        %v2913 = vadd.f32 0.0, %v2912
        %2914 = vmatmul.f32.gmra.mxu0 %v2764
        %v2915 = vpop.f32.mrf.mxu0
        %v2916 = vadd.f32 0.0, %v2915
        %2917 = vmatmul.f32.gmra.mxu0 %v2767
        %v2918 = vpop.f32.mrf.mxu0
        %v2919 = vadd.f32 0.0, %v2918
        %2920 = vmatmul.f32.gmra.mxu0 %v2770
        %v2921 = vpop.f32.mrf.mxu0
        %v2922 = vadd.f32 0.0, %v2921
        %2923 = vmatmul.f32.gmra.mxu0 %v2773
        %v2924 = vpop.f32.mrf.mxu0
        %v2925 = vadd.f32 0.0, %v2924
        %2926 = vdwg.mxu0
        %v2927 = vadd.f32 %v2546, %v2793
        %v2928 = vadd.f32 %v2547, %v2796
        %v2929 = vadd.f32 %v2548, %v2799
        %v2930 = vadd.f32 %v2549, %v2802
        %v2931 = vadd.f32 %v2550, %v2805
        %v2932 = vadd.f32 %v2551, %v2808
        %v2933 = vadd.f32 %v2552, %v2811
        %v2934 = vadd.f32 %v2553, %v2814
        %v2935 = vadd.f32 %v2554, %v2817
        %v2936 = vadd.f32 %v2555, %v2820
        %v2937 = vadd.f32 %v2556, %v2823
        %v2938 = vadd.f32 %v2557, %v2826
        %v2939 = vadd.f32 %v2558, %v2829
        %v2940 = vadd.f32 %v2559, %v2832
        %v2941 = vadd.f32 %v2560, %v2835
        %v2942 = vadd.f32 %v2561, %v2838
        %v2943 = vadd.f32 %v2562, %v2841
        %v2944 = vadd.f32 %v2563, %v2844
        %v2945 = vadd.f32 %v2564, %v2847
        %v2946 = vadd.f32 %v2565, %v2850
        %v2947 = vadd.f32 %v2566, %v2853
        %v2948 = vadd.f32 %v2567, %v2856
        %v2949 = vadd.f32 %v2568, %v2859
        %v2950 = vadd.f32 %v2569, %v2862
        %v2951 = vadd.f32 %v2570, %v2865
        %v2952 = vadd.f32 %v2571, %v2868
        %v2953 = vadd.f32 %v2572, %v2871
        %v2954 = vadd.f32 %v2573, %v2874
        %v2955 = vadd.f32 %v2574, %v2877
        %v2956 = vadd.f32 %v2575, %v2880
        %v2957 = vadd.f32 %v2576, %v2883
        %v2958 = vadd.f32 %v2577, %v2886
        %v2959 = vadd.f32 %v2578, %v2889
        %v2960 = vadd.f32 %v2579, %v2892
        %v2961 = vadd.f32 %v2580, %v2895
        %v2962 = vadd.f32 %v2581, %v2898
        %v2963 = vadd.f32 %v2582, %v2901
        %v2964 = vadd.f32 %v2583, %v2904
        %v2965 = vadd.f32 %v2584, %v2907
        %v2966 = vadd.f32 %v2585, %v2910
        %v2967 = vadd.f32 %v2586, %v2913
        %v2968 = vadd.f32 %v2587, %v2916
        %v2969 = vadd.f32 %v2588, %v2919
        %v2970 = vadd.f32 %v2589, %v2922
        %v2971 = vadd.f32 %v2590, %v2925
        %v2972 = vld [vmem:[#allocation2 + $0x15] sm:$0xff]
        %v2973 = vld [vmem:[#allocation2 + $0x1d] sm:$0xff]
        %v2974 = vld [vmem:[#allocation2 + $0x25] sm:$0xff]
        %v2975 = vld [vmem:[#allocation2 + $0x2d] sm:$0xff]
        %v2976 = vld [vmem:[#allocation2 + $0x35] sm:$0xff]
        %v2977 = vld [vmem:[#allocation2 + $0x3d] sm:$0xff]
        %v2978 = vld [vmem:[#allocation2 + $0x45] sm:$0xff]
        %v2979 = vld [vmem:[#allocation2 + $0x4d] sm:$0xff]
        %v2980 = vld [vmem:[#allocation2 + $0x55] sm:$0xff]
        %v2981 = vld [vmem:[#allocation2 + $0x5d] sm:$0xff]
        %v2982 = vld [vmem:[#allocation2 + $0x65] sm:$0xff]
        %v2983 = vld [vmem:[#allocation2 + $0x6d] sm:$0xff]
        %v2984 = vld [vmem:[#allocation2 + $0x75] sm:$0xff]
        %v2985 = vld [vmem:[#allocation2 + $0x7d] sm:$0xff]
        %v2986 = vld [vmem:[#allocation2 + $0x85] sm:$0xff]
        %v2987 = vld [vmem:[#allocation2 + $0x8d] sm:$0xff]
        %v2988 = vld [vmem:[#allocation2 + $0x95] sm:$0xff]
        %v2989 = vld [vmem:[#allocation2 + $0x9d] sm:$0xff]
        %v2990 = vld [vmem:[#allocation2 + $0xa5] sm:$0xff]
        %v2991 = vld [vmem:[#allocation2 + $0xad] sm:$0xff]
        %v2992 = vld [vmem:[#allocation2 + $0xb5] sm:$0xff]
        %v2993 = vld [vmem:[#allocation2 + $0xbd] sm:$0xff]
        %v2994 = vld [vmem:[#allocation2 + $0xc5] sm:$0xff]
        %v2995 = vld [vmem:[#allocation2 + $0xcd] sm:$0xff]
        %v2996 = vld [vmem:[#allocation2 + $0xd5] sm:$0xff]
        %v2997 = vld [vmem:[#allocation2 + $0xdd] sm:$0xff]
        %v2998 = vld [vmem:[#allocation2 + $0xe5] sm:$0xff]
        %v2999 = vld [vmem:[#allocation2 + $0xed] sm:$0xff]
        %v3000 = vld [vmem:[#allocation2 + $0xf5] sm:$0xff]
        %v3001 = vld [vmem:[#allocation2 + $0xfd] sm:$0xff]
        %v3002 = vld [vmem:[#allocation2 + $0x105] sm:$0xff]
        %v3003 = vld [vmem:[#allocation2 + $0x10d] sm:$0xff]
        %v3004 = vld [vmem:[#allocation2 + $0x115] sm:$0xff]
        %v3005 = vld [vmem:[#allocation2 + $0x11d] sm:$0xff]
        %v3006 = vld [vmem:[#allocation2 + $0x125] sm:$0xff]
        %v3007 = vld [vmem:[#allocation2 + $0x12d] sm:$0xff]
        %v3008 = vld [vmem:[#allocation2 + $0x135] sm:$0xff]
        %v3009 = vld [vmem:[#allocation2 + $0x13d] sm:$0xff]
        %v3010 = vld [vmem:[#allocation2 + $0x145] sm:$0xff]
        %v3011 = vld [vmem:[#allocation2 + $0x14d] sm:$0xff]
        %v3012 = vld [vmem:[#allocation2 + $0x155] sm:$0xff]
        %v3013 = vld [vmem:[#allocation2 + $0x15d] sm:$0xff]
        %v3014 = vld [vmem:[#allocation2 + $0x165] sm:$0xff]
        %v3015 = vld [vmem:[#allocation2 + $0x16d] sm:$0xff]
        %v3016 = vld [vmem:[#allocation2 + $0x175] sm:$0xff]
        %v3017 = vld [vmem:[%s3 + $0x80] sm:$0xff]
        %v3018 = vld [vmem:[%s3 + $0x88] sm:$0xff]
        %v3019 = vld [vmem:[%s3 + $0x90] sm:$0xff]
        %v3020 = vld [vmem:[%s3 + $0x98] sm:$0xff]
        %v3022 = vsel %vm492, %v2972, 0
        %v3025 = vsel %vm492, %v2973, 0
        %v3028 = vsel %vm492, %v2974, 0
        %v3031 = vsel %vm492, %v2975, 0
        %v3034 = vsel %vm492, %v2976, 0
        %v3037 = vsel %vm492, %v2977, 0
        %v3040 = vsel %vm492, %v2978, 0
        %v3043 = vsel %vm492, %v2979, 0
        %v3046 = vsel %vm492, %v2980, 0
        %v3049 = vsel %vm492, %v2981, 0
        %v3052 = vsel %vm492, %v2982, 0
        %v3055 = vsel %vm492, %v2983, 0
        %v3058 = vsel %vm492, %v2984, 0
        %v3061 = vsel %vm492, %v2985, 0
        %v3064 = vsel %vm492, %v2986, 0
        %v3067 = vsel %vm492, %v2987, 0
        %v3070 = vsel %vm492, %v2988, 0
        %v3073 = vsel %vm492, %v2989, 0
        %v3076 = vsel %vm492, %v2990, 0
        %v3079 = vsel %vm492, %v2991, 0
        %v3082 = vsel %vm492, %v2992, 0
        %v3085 = vsel %vm492, %v2993, 0
        %v3088 = vsel %vm492, %v2994, 0
        %v3091 = vsel %vm492, %v2995, 0
        %v3094 = vsel %vm492, %v2996, 0
        %v3097 = vsel %vm492, %v2997, 0
        %v3100 = vsel %vm492, %v2998, 0
        %v3103 = vsel %vm492, %v2999, 0
        %v3106 = vsel %vm492, %v3000, 0
        %v3109 = vsel %vm492, %v3001, 0
        %v3112 = vsel %vm492, %v3002, 0
        %v3115 = vsel %vm492, %v3003, 0
        %v3118 = vsel %vm492, %v3004, 0
        %v3121 = vsel %vm492, %v3005, 0
        %v3124 = vsel %vm492, %v3006, 0
        %v3127 = vsel %vm492, %v3007, 0
        %v3130 = vsel %vm492, %v3008, 0
        %v3133 = vsel %vm492, %v3009, 0
        %v3136 = vsel %vm492, %v3010, 0
        %v3139 = vsel %vm492, %v3011, 0
        %v3142 = vsel %vm492, %v3012, 0
        %v3145 = vsel %vm492, %v3013, 0
        %v3148 = vsel %vm492, %v3014, 0
        %v3151 = vsel %vm492, %v3015, 0
        %v3154 = vsel %vm492, %v3016, 0
        %3156 = vmatpush.msra.mxu0 0.0
        %3157 = vmatpush.msra.mxu0 0.0
        %3158 = vmatpush.msra.mxu0 0.0
        %3159 = vmatpush.msra.mxu0 0.0
        %3160 = vmatpush.msra.mxu0 0.0
        %3161 = vmatpush.msra.mxu0 0.0
        %3162 = vmatpush.msra.mxu0 0.0
        %3163 = vmatpush.msra.mxu0 0.0
        %3164 = vmatpush.msra.mxu0 0.0
        %3165 = vmatpush.msra.mxu0 0.0
        %3166 = vmatpush.msra.mxu0 0.0
        %3167 = vmatpush.msra.mxu0 0.0
        %3168 = vmatpush.msra.mxu0 %v3020
        %3169 = vmatpush.msra.mxu0 %v3019
        %3170 = vmatpush.msra.mxu0 %v3018
        %3171 = vmatpush.msra.mxu0 %v3017
        %3172 = vmatmul.f32.gmra.mxu0 %v3022
        %v3173 = vpop.f32.mrf.mxu0
        %v3174 = vadd.f32 0.0, %v3173
        %3175 = vmatmul.f32.gmra.mxu0 %v3025
        %v3176 = vpop.f32.mrf.mxu0
        %v3177 = vadd.f32 0.0, %v3176
        %3178 = vmatmul.f32.gmra.mxu0 %v3028
        %v3179 = vpop.f32.mrf.mxu0
        %v3180 = vadd.f32 0.0, %v3179
        %3181 = vmatmul.f32.gmra.mxu0 %v3031
        %v3182 = vpop.f32.mrf.mxu0
        %v3183 = vadd.f32 0.0, %v3182
        %3184 = vmatmul.f32.gmra.mxu0 %v3034
        %v3185 = vpop.f32.mrf.mxu0
        %v3186 = vadd.f32 0.0, %v3185
        %3187 = vmatmul.f32.gmra.mxu0 %v3037
        %v3188 = vpop.f32.mrf.mxu0
        %v3189 = vadd.f32 0.0, %v3188
        %3190 = vmatmul.f32.gmra.mxu0 %v3040
        %v3191 = vpop.f32.mrf.mxu0
        %v3192 = vadd.f32 0.0, %v3191
        %3193 = vmatmul.f32.gmra.mxu0 %v3043
        %v3194 = vpop.f32.mrf.mxu0
        %v3195 = vadd.f32 0.0, %v3194
        %3196 = vmatmul.f32.gmra.mxu0 %v3046
        %v3197 = vpop.f32.mrf.mxu0
        %v3198 = vadd.f32 0.0, %v3197
        %3199 = vmatmul.f32.gmra.mxu0 %v3049
        %v3200 = vpop.f32.mrf.mxu0
        %v3201 = vadd.f32 0.0, %v3200
        %3202 = vmatmul.f32.gmra.mxu0 %v3052
        %v3203 = vpop.f32.mrf.mxu0
        %v3204 = vadd.f32 0.0, %v3203
        %3205 = vmatmul.f32.gmra.mxu0 %v3055
        %v3206 = vpop.f32.mrf.mxu0
        %v3207 = vadd.f32 0.0, %v3206
        %3208 = vmatmul.f32.gmra.mxu0 %v3058
        %v3209 = vpop.f32.mrf.mxu0
        %v3210 = vadd.f32 0.0, %v3209
        %3211 = vmatmul.f32.gmra.mxu0 %v3061
        %v3212 = vpop.f32.mrf.mxu0
        %v3213 = vadd.f32 0.0, %v3212
        %3214 = vmatmul.f32.gmra.mxu0 %v3064
        %v3215 = vpop.f32.mrf.mxu0
        %v3216 = vadd.f32 0.0, %v3215
        %3217 = vmatmul.f32.gmra.mxu0 %v3067
        %v3218 = vpop.f32.mrf.mxu0
        %v3219 = vadd.f32 0.0, %v3218
        %3220 = vmatmul.f32.gmra.mxu0 %v3070
        %v3221 = vpop.f32.mrf.mxu0
        %v3222 = vadd.f32 0.0, %v3221
        %3223 = vmatmul.f32.gmra.mxu0 %v3073
        %v3224 = vpop.f32.mrf.mxu0
        %v3225 = vadd.f32 0.0, %v3224
        %3226 = vmatmul.f32.gmra.mxu0 %v3076
        %v3227 = vpop.f32.mrf.mxu0
        %v3228 = vadd.f32 0.0, %v3227
        %3229 = vmatmul.f32.gmra.mxu0 %v3079
        %v3230 = vpop.f32.mrf.mxu0
        %v3231 = vadd.f32 0.0, %v3230
        %3232 = vmatmul.f32.gmra.mxu0 %v3082
        %v3233 = vpop.f32.mrf.mxu0
        %v3234 = vadd.f32 0.0, %v3233
        %3235 = vmatmul.f32.gmra.mxu0 %v3085
        %v3236 = vpop.f32.mrf.mxu0
        %v3237 = vadd.f32 0.0, %v3236
        %3238 = vmatmul.f32.gmra.mxu0 %v3088
        %v3239 = vpop.f32.mrf.mxu0
        %v3240 = vadd.f32 0.0, %v3239
        %3241 = vmatmul.f32.gmra.mxu0 %v3091
        %v3242 = vpop.f32.mrf.mxu0
        %v3243 = vadd.f32 0.0, %v3242
        %3244 = vmatmul.f32.gmra.mxu0 %v3094
        %v3245 = vpop.f32.mrf.mxu0
        %v3246 = vadd.f32 0.0, %v3245
        %3247 = vmatmul.f32.gmra.mxu0 %v3097
        %v3248 = vpop.f32.mrf.mxu0
        %v3249 = vadd.f32 0.0, %v3248
        %3250 = vmatmul.f32.gmra.mxu0 %v3100
        %v3251 = vpop.f32.mrf.mxu0
        %v3252 = vadd.f32 0.0, %v3251
        %3253 = vmatmul.f32.gmra.mxu0 %v3103
        %v3254 = vpop.f32.mrf.mxu0
        %v3255 = vadd.f32 0.0, %v3254
        %3256 = vmatmul.f32.gmra.mxu0 %v3106
        %v3257 = vpop.f32.mrf.mxu0
        %v3258 = vadd.f32 0.0, %v3257
        %3259 = vmatmul.f32.gmra.mxu0 %v3109
        %v3260 = vpop.f32.mrf.mxu0
        %v3261 = vadd.f32 0.0, %v3260
        %3262 = vmatmul.f32.gmra.mxu0 %v3112
        %v3263 = vpop.f32.mrf.mxu0
        %v3264 = vadd.f32 0.0, %v3263
        %3265 = vmatmul.f32.gmra.mxu0 %v3115
        %v3266 = vpop.f32.mrf.mxu0
        %v3267 = vadd.f32 0.0, %v3266
        %3268 = vmatmul.f32.gmra.mxu0 %v3118
        %v3269 = vpop.f32.mrf.mxu0
        %v3270 = vadd.f32 0.0, %v3269
        %3271 = vmatmul.f32.gmra.mxu0 %v3121
        %v3272 = vpop.f32.mrf.mxu0
        %v3273 = vadd.f32 0.0, %v3272
        %3274 = vmatmul.f32.gmra.mxu0 %v3124
        %v3275 = vpop.f32.mrf.mxu0
        %v3276 = vadd.f32 0.0, %v3275
        %3277 = vmatmul.f32.gmra.mxu0 %v3127
        %v3278 = vpop.f32.mrf.mxu0
        %v3279 = vadd.f32 0.0, %v3278
        %3280 = vmatmul.f32.gmra.mxu0 %v3130
        %v3281 = vpop.f32.mrf.mxu0
        %v3282 = vadd.f32 0.0, %v3281
        %3283 = vmatmul.f32.gmra.mxu0 %v3133
        %v3284 = vpop.f32.mrf.mxu0
        %v3285 = vadd.f32 0.0, %v3284
        %3286 = vmatmul.f32.gmra.mxu0 %v3136
        %v3287 = vpop.f32.mrf.mxu0
        %v3288 = vadd.f32 0.0, %v3287
        %3289 = vmatmul.f32.gmra.mxu0 %v3139
        %v3290 = vpop.f32.mrf.mxu0
        %v3291 = vadd.f32 0.0, %v3290
        %3292 = vmatmul.f32.gmra.mxu0 %v3142
        %v3293 = vpop.f32.mrf.mxu0
        %v3294 = vadd.f32 0.0, %v3293
        %3295 = vmatmul.f32.gmra.mxu0 %v3145
        %v3296 = vpop.f32.mrf.mxu0
        %v3297 = vadd.f32 0.0, %v3296
        %3298 = vmatmul.f32.gmra.mxu0 %v3148
        %v3299 = vpop.f32.mrf.mxu0
        %v3300 = vadd.f32 0.0, %v3299
        %3301 = vmatmul.f32.gmra.mxu0 %v3151
        %v3302 = vpop.f32.mrf.mxu0
        %v3303 = vadd.f32 0.0, %v3302
        %3304 = vmatmul.f32.gmra.mxu0 %v3154
        %v3305 = vpop.f32.mrf.mxu0
        %v3306 = vadd.f32 0.0, %v3305
        %3307 = vdwg.mxu0
        %v3308 = vadd.f32 %v2927, %v3174
        %v3309 = vadd.f32 %v2928, %v3177
        %v3310 = vadd.f32 %v2929, %v3180
        %v3311 = vadd.f32 %v2930, %v3183
        %v3312 = vadd.f32 %v2931, %v3186
        %v3313 = vadd.f32 %v2932, %v3189
        %v3314 = vadd.f32 %v2933, %v3192
        %v3315 = vadd.f32 %v2934, %v3195
        %v3316 = vadd.f32 %v2935, %v3198
        %v3317 = vadd.f32 %v2936, %v3201
        %v3318 = vadd.f32 %v2937, %v3204
        %v3319 = vadd.f32 %v2938, %v3207
        %v3320 = vadd.f32 %v2939, %v3210
        %v3321 = vadd.f32 %v2940, %v3213
        %v3322 = vadd.f32 %v2941, %v3216
        %v3323 = vadd.f32 %v2942, %v3219
        %v3324 = vadd.f32 %v2943, %v3222
        %v3325 = vadd.f32 %v2944, %v3225
        %v3326 = vadd.f32 %v2945, %v3228
        %v3327 = vadd.f32 %v2946, %v3231
        %v3328 = vadd.f32 %v2947, %v3234
        %v3329 = vadd.f32 %v2948, %v3237
        %v3330 = vadd.f32 %v2949, %v3240
        %v3331 = vadd.f32 %v2950, %v3243
        %v3332 = vadd.f32 %v2951, %v3246
        %v3333 = vadd.f32 %v2952, %v3249
        %v3334 = vadd.f32 %v2953, %v3252
        %v3335 = vadd.f32 %v2954, %v3255
        %v3336 = vadd.f32 %v2955, %v3258
        %v3337 = vadd.f32 %v2956, %v3261
        %v3338 = vadd.f32 %v2957, %v3264
        %v3339 = vadd.f32 %v2958, %v3267
        %v3340 = vadd.f32 %v2959, %v3270
        %v3341 = vadd.f32 %v2960, %v3273
        %v3342 = vadd.f32 %v2961, %v3276
        %v3343 = vadd.f32 %v2962, %v3279
        %v3344 = vadd.f32 %v2963, %v3282
        %v3345 = vadd.f32 %v2964, %v3285
        %v3346 = vadd.f32 %v2965, %v3288
        %v3347 = vadd.f32 %v2966, %v3291
        %v3348 = vadd.f32 %v2967, %v3294
        %v3349 = vadd.f32 %v2968, %v3297
        %v3350 = vadd.f32 %v2969, %v3300
        %v3351 = vadd.f32 %v2970, %v3303
        %v3352 = vadd.f32 %v2971, %v3306
        %v3353 = vld [vmem:[#allocation2 + $0x16] sm:$0xff]
        %v3354 = vld [vmem:[#allocation2 + $0x1e] sm:$0xff]
        %v3355 = vld [vmem:[#allocation2 + $0x26] sm:$0xff]
        %v3356 = vld [vmem:[#allocation2 + $0x2e] sm:$0xff]
        %v3357 = vld [vmem:[#allocation2 + $0x36] sm:$0xff]
        %v3358 = vld [vmem:[#allocation2 + $0x3e] sm:$0xff]
        %v3359 = vld [vmem:[#allocation2 + $0x46] sm:$0xff]
        %v3360 = vld [vmem:[#allocation2 + $0x4e] sm:$0xff]
        %v3361 = vld [vmem:[#allocation2 + $0x56] sm:$0xff]
        %v3362 = vld [vmem:[#allocation2 + $0x5e] sm:$0xff]
        %v3363 = vld [vmem:[#allocation2 + $0x66] sm:$0xff]
        %v3364 = vld [vmem:[#allocation2 + $0x6e] sm:$0xff]
        %v3365 = vld [vmem:[#allocation2 + $0x76] sm:$0xff]
        %v3366 = vld [vmem:[#allocation2 + $0x7e] sm:$0xff]
        %v3367 = vld [vmem:[#allocation2 + $0x86] sm:$0xff]
        %v3368 = vld [vmem:[#allocation2 + $0x8e] sm:$0xff]
        %v3369 = vld [vmem:[#allocation2 + $0x96] sm:$0xff]
        %v3370 = vld [vmem:[#allocation2 + $0x9e] sm:$0xff]
        %v3371 = vld [vmem:[#allocation2 + $0xa6] sm:$0xff]
        %v3372 = vld [vmem:[#allocation2 + $0xae] sm:$0xff]
        %v3373 = vld [vmem:[#allocation2 + $0xb6] sm:$0xff]
        %v3374 = vld [vmem:[#allocation2 + $0xbe] sm:$0xff]
        %v3375 = vld [vmem:[#allocation2 + $0xc6] sm:$0xff]
        %v3376 = vld [vmem:[#allocation2 + $0xce] sm:$0xff]
        %v3377 = vld [vmem:[#allocation2 + $0xd6] sm:$0xff]
        %v3378 = vld [vmem:[#allocation2 + $0xde] sm:$0xff]
        %v3379 = vld [vmem:[#allocation2 + $0xe6] sm:$0xff]
        %v3380 = vld [vmem:[#allocation2 + $0xee] sm:$0xff]
        %v3381 = vld [vmem:[#allocation2 + $0xf6] sm:$0xff]
        %v3382 = vld [vmem:[#allocation2 + $0xfe] sm:$0xff]
        %v3383 = vld [vmem:[#allocation2 + $0x106] sm:$0xff]
        %v3384 = vld [vmem:[#allocation2 + $0x10e] sm:$0xff]
        %v3385 = vld [vmem:[#allocation2 + $0x116] sm:$0xff]
        %v3386 = vld [vmem:[#allocation2 + $0x11e] sm:$0xff]
        %v3387 = vld [vmem:[#allocation2 + $0x126] sm:$0xff]
        %v3388 = vld [vmem:[#allocation2 + $0x12e] sm:$0xff]
        %v3389 = vld [vmem:[#allocation2 + $0x136] sm:$0xff]
        %v3390 = vld [vmem:[#allocation2 + $0x13e] sm:$0xff]
        %v3391 = vld [vmem:[#allocation2 + $0x146] sm:$0xff]
        %v3392 = vld [vmem:[#allocation2 + $0x14e] sm:$0xff]
        %v3393 = vld [vmem:[#allocation2 + $0x156] sm:$0xff]
        %v3394 = vld [vmem:[#allocation2 + $0x15e] sm:$0xff]
        %v3395 = vld [vmem:[#allocation2 + $0x166] sm:$0xff]
        %v3396 = vld [vmem:[#allocation2 + $0x16e] sm:$0xff]
        %v3397 = vld [vmem:[#allocation2 + $0x176] sm:$0xff]
        %v3398 = vld [vmem:[%s3 + $0xa0] sm:$0xff]
        %v3399 = vld [vmem:[%s3 + $0xa8] sm:$0xff]
        %v3400 = vld [vmem:[%s3 + $0xb0] sm:$0xff]
        %v3401 = vld [vmem:[%s3 + $0xb8] sm:$0xff]
        %v3403 = vsel %vm492, %v3353, 0
        %v3406 = vsel %vm492, %v3354, 0
        %v3409 = vsel %vm492, %v3355, 0
        %v3412 = vsel %vm492, %v3356, 0
        %v3415 = vsel %vm492, %v3357, 0
        %v3418 = vsel %vm492, %v3358, 0
        %v3421 = vsel %vm492, %v3359, 0
        %v3424 = vsel %vm492, %v3360, 0
        %v3427 = vsel %vm492, %v3361, 0
        %v3430 = vsel %vm492, %v3362, 0
        %v3433 = vsel %vm492, %v3363, 0
        %v3436 = vsel %vm492, %v3364, 0
        %v3439 = vsel %vm492, %v3365, 0
        %v3442 = vsel %vm492, %v3366, 0
        %v3445 = vsel %vm492, %v3367, 0
        %v3448 = vsel %vm492, %v3368, 0
        %v3451 = vsel %vm492, %v3369, 0
        %v3454 = vsel %vm492, %v3370, 0
        %v3457 = vsel %vm492, %v3371, 0
        %v3460 = vsel %vm492, %v3372, 0
        %v3463 = vsel %vm492, %v3373, 0
        %v3466 = vsel %vm492, %v3374, 0
        %v3469 = vsel %vm492, %v3375, 0
        %v3472 = vsel %vm492, %v3376, 0
        %v3475 = vsel %vm492, %v3377, 0
        %v3478 = vsel %vm492, %v3378, 0
        %v3481 = vsel %vm492, %v3379, 0
        %v3484 = vsel %vm492, %v3380, 0
        %v3487 = vsel %vm492, %v3381, 0
        %v3490 = vsel %vm492, %v3382, 0
        %v3493 = vsel %vm492, %v3383, 0
        %v3496 = vsel %vm492, %v3384, 0
        %v3499 = vsel %vm492, %v3385, 0
        %v3502 = vsel %vm492, %v3386, 0
        %v3505 = vsel %vm492, %v3387, 0
        %v3508 = vsel %vm492, %v3388, 0
        %v3511 = vsel %vm492, %v3389, 0
        %v3514 = vsel %vm492, %v3390, 0
        %v3517 = vsel %vm492, %v3391, 0
        %v3520 = vsel %vm492, %v3392, 0
        %v3523 = vsel %vm492, %v3393, 0
        %v3526 = vsel %vm492, %v3394, 0
        %v3529 = vsel %vm492, %v3395, 0
        %v3532 = vsel %vm492, %v3396, 0
        %v3535 = vsel %vm492, %v3397, 0
        %3537 = vmatpush.msra.mxu0 0.0
        %3538 = vmatpush.msra.mxu0 0.0
        %3539 = vmatpush.msra.mxu0 0.0
        %3540 = vmatpush.msra.mxu0 0.0
        %3541 = vmatpush.msra.mxu0 0.0
        %3542 = vmatpush.msra.mxu0 0.0
        %3543 = vmatpush.msra.mxu0 0.0
        %3544 = vmatpush.msra.mxu0 0.0
        %3545 = vmatpush.msra.mxu0 0.0
        %3546 = vmatpush.msra.mxu0 0.0
        %3547 = vmatpush.msra.mxu0 0.0
        %3548 = vmatpush.msra.mxu0 0.0
        %3549 = vmatpush.msra.mxu0 %v3401
        %3550 = vmatpush.msra.mxu0 %v3400
        %3551 = vmatpush.msra.mxu0 %v3399
        %3552 = vmatpush.msra.mxu0 %v3398
        %3553 = vmatmul.f32.gmra.mxu0 %v3403
        %v3554 = vpop.f32.mrf.mxu0
        %v3555 = vadd.f32 0.0, %v3554
        %3556 = vmatmul.f32.gmra.mxu0 %v3406
        %v3557 = vpop.f32.mrf.mxu0
        %v3558 = vadd.f32 0.0, %v3557
        %3559 = vmatmul.f32.gmra.mxu0 %v3409
        %v3560 = vpop.f32.mrf.mxu0
        %v3561 = vadd.f32 0.0, %v3560
        %3562 = vmatmul.f32.gmra.mxu0 %v3412
        %v3563 = vpop.f32.mrf.mxu0
        %v3564 = vadd.f32 0.0, %v3563
        %3565 = vmatmul.f32.gmra.mxu0 %v3415
        %v3566 = vpop.f32.mrf.mxu0
        %v3567 = vadd.f32 0.0, %v3566
        %3568 = vmatmul.f32.gmra.mxu0 %v3418
        %v3569 = vpop.f32.mrf.mxu0
        %v3570 = vadd.f32 0.0, %v3569
        %3571 = vmatmul.f32.gmra.mxu0 %v3421
        %v3572 = vpop.f32.mrf.mxu0
        %v3573 = vadd.f32 0.0, %v3572
        %3574 = vmatmul.f32.gmra.mxu0 %v3424
        %v3575 = vpop.f32.mrf.mxu0
        %v3576 = vadd.f32 0.0, %v3575
        %3577 = vmatmul.f32.gmra.mxu0 %v3427
        %v3578 = vpop.f32.mrf.mxu0
        %v3579 = vadd.f32 0.0, %v3578
        %3580 = vmatmul.f32.gmra.mxu0 %v3430
        %v3581 = vpop.f32.mrf.mxu0
        %v3582 = vadd.f32 0.0, %v3581
        %3583 = vmatmul.f32.gmra.mxu0 %v3433
        %v3584 = vpop.f32.mrf.mxu0
        %v3585 = vadd.f32 0.0, %v3584
        %3586 = vmatmul.f32.gmra.mxu0 %v3436
        %v3587 = vpop.f32.mrf.mxu0
        %v3588 = vadd.f32 0.0, %v3587
        %3589 = vmatmul.f32.gmra.mxu0 %v3439
        %v3590 = vpop.f32.mrf.mxu0
        %v3591 = vadd.f32 0.0, %v3590
        %3592 = vmatmul.f32.gmra.mxu0 %v3442
        %v3593 = vpop.f32.mrf.mxu0
        %v3594 = vadd.f32 0.0, %v3593
        %3595 = vmatmul.f32.gmra.mxu0 %v3445
        %v3596 = vpop.f32.mrf.mxu0
        %v3597 = vadd.f32 0.0, %v3596
        %3598 = vmatmul.f32.gmra.mxu0 %v3448
        %v3599 = vpop.f32.mrf.mxu0
        %v3600 = vadd.f32 0.0, %v3599
        %3601 = vmatmul.f32.gmra.mxu0 %v3451
        %v3602 = vpop.f32.mrf.mxu0
        %v3603 = vadd.f32 0.0, %v3602
        %3604 = vmatmul.f32.gmra.mxu0 %v3454
        %v3605 = vpop.f32.mrf.mxu0
        %v3606 = vadd.f32 0.0, %v3605
        %3607 = vmatmul.f32.gmra.mxu0 %v3457
        %v3608 = vpop.f32.mrf.mxu0
        %v3609 = vadd.f32 0.0, %v3608
        %3610 = vmatmul.f32.gmra.mxu0 %v3460
        %v3611 = vpop.f32.mrf.mxu0
        %v3612 = vadd.f32 0.0, %v3611
        %3613 = vmatmul.f32.gmra.mxu0 %v3463
        %v3614 = vpop.f32.mrf.mxu0
        %v3615 = vadd.f32 0.0, %v3614
        %3616 = vmatmul.f32.gmra.mxu0 %v3466
        %v3617 = vpop.f32.mrf.mxu0
        %v3618 = vadd.f32 0.0, %v3617
        %3619 = vmatmul.f32.gmra.mxu0 %v3469
        %v3620 = vpop.f32.mrf.mxu0
        %v3621 = vadd.f32 0.0, %v3620
        %3622 = vmatmul.f32.gmra.mxu0 %v3472
        %v3623 = vpop.f32.mrf.mxu0
        %v3624 = vadd.f32 0.0, %v3623
        %3625 = vmatmul.f32.gmra.mxu0 %v3475
        %v3626 = vpop.f32.mrf.mxu0
        %v3627 = vadd.f32 0.0, %v3626
        %3628 = vmatmul.f32.gmra.mxu0 %v3478
        %v3629 = vpop.f32.mrf.mxu0
        %v3630 = vadd.f32 0.0, %v3629
        %3631 = vmatmul.f32.gmra.mxu0 %v3481
        %v3632 = vpop.f32.mrf.mxu0
        %v3633 = vadd.f32 0.0, %v3632
        %3634 = vmatmul.f32.gmra.mxu0 %v3484
        %v3635 = vpop.f32.mrf.mxu0
        %v3636 = vadd.f32 0.0, %v3635
        %3637 = vmatmul.f32.gmra.mxu0 %v3487
        %v3638 = vpop.f32.mrf.mxu0
        %v3639 = vadd.f32 0.0, %v3638
        %3640 = vmatmul.f32.gmra.mxu0 %v3490
        %v3641 = vpop.f32.mrf.mxu0
        %v3642 = vadd.f32 0.0, %v3641
        %3643 = vmatmul.f32.gmra.mxu0 %v3493
        %v3644 = vpop.f32.mrf.mxu0
        %v3645 = vadd.f32 0.0, %v3644
        %3646 = vmatmul.f32.gmra.mxu0 %v3496
        %v3647 = vpop.f32.mrf.mxu0
        %v3648 = vadd.f32 0.0, %v3647
        %3649 = vmatmul.f32.gmra.mxu0 %v3499
        %v3650 = vpop.f32.mrf.mxu0
        %v3651 = vadd.f32 0.0, %v3650
        %3652 = vmatmul.f32.gmra.mxu0 %v3502
        %v3653 = vpop.f32.mrf.mxu0
        %v3654 = vadd.f32 0.0, %v3653
        %3655 = vmatmul.f32.gmra.mxu0 %v3505
        %v3656 = vpop.f32.mrf.mxu0
        %v3657 = vadd.f32 0.0, %v3656
        %3658 = vmatmul.f32.gmra.mxu0 %v3508
        %v3659 = vpop.f32.mrf.mxu0
        %v3660 = vadd.f32 0.0, %v3659
        %3661 = vmatmul.f32.gmra.mxu0 %v3511
        %v3662 = vpop.f32.mrf.mxu0
        %v3663 = vadd.f32 0.0, %v3662
        %3664 = vmatmul.f32.gmra.mxu0 %v3514
        %v3665 = vpop.f32.mrf.mxu0
        %v3666 = vadd.f32 0.0, %v3665
        %3667 = vmatmul.f32.gmra.mxu0 %v3517
        %v3668 = vpop.f32.mrf.mxu0
        %v3669 = vadd.f32 0.0, %v3668
        %3670 = vmatmul.f32.gmra.mxu0 %v3520
        %v3671 = vpop.f32.mrf.mxu0
        %v3672 = vadd.f32 0.0, %v3671
        %3673 = vmatmul.f32.gmra.mxu0 %v3523
        %v3674 = vpop.f32.mrf.mxu0
        %v3675 = vadd.f32 0.0, %v3674
        %3676 = vmatmul.f32.gmra.mxu0 %v3526
        %v3677 = vpop.f32.mrf.mxu0
        %v3678 = vadd.f32 0.0, %v3677
        %3679 = vmatmul.f32.gmra.mxu0 %v3529
        %v3680 = vpop.f32.mrf.mxu0
        %v3681 = vadd.f32 0.0, %v3680
        %3682 = vmatmul.f32.gmra.mxu0 %v3532
        %v3683 = vpop.f32.mrf.mxu0
        %v3684 = vadd.f32 0.0, %v3683
        %3685 = vmatmul.f32.gmra.mxu0 %v3535
        %v3686 = vpop.f32.mrf.mxu0
        %v3687 = vadd.f32 0.0, %v3686
        %3688 = vdwg.mxu0
        %v3689 = vadd.f32 %v3308, %v3555
        %v3690 = vadd.f32 %v3309, %v3558
        %v3691 = vadd.f32 %v3310, %v3561
        %v3692 = vadd.f32 %v3311, %v3564
        %v3693 = vadd.f32 %v3312, %v3567
        %v3694 = vadd.f32 %v3313, %v3570
        %v3695 = vadd.f32 %v3314, %v3573
        %v3696 = vadd.f32 %v3315, %v3576
        %v3697 = vadd.f32 %v3316, %v3579
        %v3698 = vadd.f32 %v3317, %v3582
        %v3699 = vadd.f32 %v3318, %v3585
        %v3700 = vadd.f32 %v3319, %v3588
        %v3701 = vadd.f32 %v3320, %v3591
        %v3702 = vadd.f32 %v3321, %v3594
        %v3703 = vadd.f32 %v3322, %v3597
        %v3704 = vadd.f32 %v3323, %v3600
        %v3705 = vadd.f32 %v3324, %v3603
        %v3706 = vadd.f32 %v3325, %v3606
        %v3707 = vadd.f32 %v3326, %v3609
        %v3708 = vadd.f32 %v3327, %v3612
        %v3709 = vadd.f32 %v3328, %v3615
        %v3710 = vadd.f32 %v3329, %v3618
        %v3711 = vadd.f32 %v3330, %v3621
        %v3712 = vadd.f32 %v3331, %v3624
        %v3713 = vadd.f32 %v3332, %v3627
        %v3714 = vadd.f32 %v3333, %v3630
        %v3715 = vadd.f32 %v3334, %v3633
        %v3716 = vadd.f32 %v3335, %v3636
        %v3717 = vadd.f32 %v3336, %v3639
        %v3718 = vadd.f32 %v3337, %v3642
        %v3719 = vadd.f32 %v3338, %v3645
        %v3720 = vadd.f32 %v3339, %v3648
        %v3721 = vadd.f32 %v3340, %v3651
        %v3722 = vadd.f32 %v3341, %v3654
        %v3723 = vadd.f32 %v3342, %v3657
        %v3724 = vadd.f32 %v3343, %v3660
        %v3725 = vadd.f32 %v3344, %v3663
        %v3726 = vadd.f32 %v3345, %v3666
        %v3727 = vadd.f32 %v3346, %v3669
        %v3728 = vadd.f32 %v3347, %v3672
        %v3729 = vadd.f32 %v3348, %v3675
        %v3730 = vadd.f32 %v3349, %v3678
        %v3731 = vadd.f32 %v3350, %v3681
        %v3732 = vadd.f32 %v3351, %v3684
        %v3733 = vadd.f32 %v3352, %v3687
        %v3734 = vld [vmem:[#allocation2 + $0x28] sm:$0xff]
        %v3735 = vld [vmem:[#allocation2 + $0x30] sm:$0xff]
        %v3736 = vld [vmem:[#allocation2 + $0x38] sm:$0xff]
        %v3737 = vld [vmem:[#allocation2 + $0x40] sm:$0xff]
        %v3738 = vld [vmem:[#allocation2 + $0x48] sm:$0xff]
        %v3739 = vld [vmem:[#allocation2 + $0x50] sm:$0xff]
        %v3740 = vld [vmem:[#allocation2 + $0x58] sm:$0xff]
        %v3741 = vld [vmem:[#allocation2 + $0x60] sm:$0xff]
        %v3742 = vld [vmem:[#allocation2 + $0x68] sm:$0xff]
        %v3743 = vld [vmem:[#allocation2 + $0x70] sm:$0xff]
        %v3744 = vld [vmem:[#allocation2 + $0x78] sm:$0xff]
        %v3745 = vld [vmem:[#allocation2 + $0x80] sm:$0xff]
        %v3746 = vld [vmem:[#allocation2 + $0x88] sm:$0xff]
        %v3747 = vld [vmem:[#allocation2 + $0x90] sm:$0xff]
        %v3748 = vld [vmem:[#allocation2 + $0x98] sm:$0xff]
        %v3749 = vld [vmem:[#allocation2 + $0xa0] sm:$0xff]
        %v3750 = vld [vmem:[#allocation2 + $0xa8] sm:$0xff]
        %v3751 = vld [vmem:[#allocation2 + $0xb0] sm:$0xff]
        %v3752 = vld [vmem:[#allocation2 + $0xb8] sm:$0xff]
        %v3753 = vld [vmem:[#allocation2 + $0xc0] sm:$0xff]
        %v3754 = vld [vmem:[#allocation2 + $0xc8] sm:$0xff]
        %v3755 = vld [vmem:[#allocation2 + $0xd0] sm:$0xff]
        %v3756 = vld [vmem:[#allocation2 + $0xd8] sm:$0xff]
        %v3757 = vld [vmem:[#allocation2 + $0xe0] sm:$0xff]
        %v3758 = vld [vmem:[#allocation2 + $0xe8] sm:$0xff]
        %v3759 = vld [vmem:[#allocation2 + $0xf0] sm:$0xff]
        %v3760 = vld [vmem:[#allocation2 + $0xf8] sm:$0xff]
        %v3761 = vld [vmem:[#allocation2 + $0x100] sm:$0xff]
        %v3762 = vld [vmem:[#allocation2 + $0x108] sm:$0xff]
        %v3763 = vld [vmem:[#allocation2 + $0x110] sm:$0xff]
        %v3764 = vld [vmem:[#allocation2 + $0x118] sm:$0xff]
        %v3765 = vld [vmem:[#allocation2 + $0x120] sm:$0xff]
        %v3766 = vld [vmem:[#allocation2 + $0x128] sm:$0xff]
        %v3767 = vld [vmem:[#allocation2 + $0x130] sm:$0xff]
        %v3768 = vld [vmem:[#allocation2 + $0x138] sm:$0xff]
        %v3769 = vld [vmem:[#allocation2 + $0x140] sm:$0xff]
        %v3770 = vld [vmem:[#allocation2 + $0x148] sm:$0xff]
        %v3771 = vld [vmem:[#allocation2 + $0x150] sm:$0xff]
        %v3772 = vld [vmem:[#allocation2 + $0x158] sm:$0xff]
        %v3773 = vld [vmem:[#allocation2 + $0x160] sm:$0xff]
        %v3774 = vld [vmem:[#allocation2 + $0x168] sm:$0xff]
        %v3775 = vld [vmem:[#allocation2 + $0x170] sm:$0xff]
        %v3776 = vld [vmem:[#allocation2 + $0x178] sm:$0xff]
        %v3777 = vld [vmem:[#allocation2 + $0x180] sm:$0xff]
        %v3778 = vld [vmem:[#allocation2 + $0x188] sm:$0xff]
        %v3779 = vld [vmem:[%s3 + $0xc0] sm:$0xff]
        %v3780 = vld [vmem:[%s3 + $0xc8] sm:$0xff]
        %v3781 = vld [vmem:[%s3 + $0xd0] sm:$0xff]
        %v3782 = vld [vmem:[%s3 + $0xd8] sm:$0xff]
        %v3784 = vsel %vm492, %v3734, 0
        %v3787 = vsel %vm492, %v3735, 0
        %v3790 = vsel %vm492, %v3736, 0
        %v3793 = vsel %vm492, %v3737, 0
        %v3796 = vsel %vm492, %v3738, 0
        %v3799 = vsel %vm492, %v3739, 0
        %v3802 = vsel %vm492, %v3740, 0
        %v3805 = vsel %vm492, %v3741, 0
        %v3808 = vsel %vm492, %v3742, 0
        %v3811 = vsel %vm492, %v3743, 0
        %v3814 = vsel %vm492, %v3744, 0
        %v3817 = vsel %vm492, %v3745, 0
        %v3820 = vsel %vm492, %v3746, 0
        %v3823 = vsel %vm492, %v3747, 0
        %v3826 = vsel %vm492, %v3748, 0
        %v3829 = vsel %vm492, %v3749, 0
        %v3832 = vsel %vm492, %v3750, 0
        %v3835 = vsel %vm492, %v3751, 0
        %v3838 = vsel %vm492, %v3752, 0
        %v3841 = vsel %vm492, %v3753, 0
        %v3844 = vsel %vm492, %v3754, 0
        %v3847 = vsel %vm492, %v3755, 0
        %v3850 = vsel %vm492, %v3756, 0
        %v3853 = vsel %vm492, %v3757, 0
        %v3856 = vsel %vm492, %v3758, 0
        %v3859 = vsel %vm492, %v3759, 0
        %v3862 = vsel %vm492, %v3760, 0
        %v3865 = vsel %vm492, %v3761, 0
        %v3868 = vsel %vm492, %v3762, 0
        %v3871 = vsel %vm492, %v3763, 0
        %v3874 = vsel %vm492, %v3764, 0
        %v3877 = vsel %vm492, %v3765, 0
        %v3880 = vsel %vm492, %v3766, 0
        %v3883 = vsel %vm492, %v3767, 0
        %v3886 = vsel %vm492, %v3768, 0
        %v3889 = vsel %vm492, %v3769, 0
        %v3892 = vsel %vm492, %v3770, 0
        %v3895 = vsel %vm492, %v3771, 0
        %v3898 = vsel %vm492, %v3772, 0
        %v3901 = vsel %vm492, %v3773, 0
        %v3904 = vsel %vm492, %v3774, 0
        %v3907 = vsel %vm492, %v3775, 0
        %v3910 = vsel %vm492, %v3776, 0
        %v3913 = vsel %vm492, %v3777, 0
        %v3916 = vsel %vm492, %v3778, 0
        %3918 = vmatpush.msra.mxu0 0.0
        %3919 = vmatpush.msra.mxu0 0.0
        %3920 = vmatpush.msra.mxu0 0.0
        %3921 = vmatpush.msra.mxu0 0.0
        %3922 = vmatpush.msra.mxu0 0.0
        %3923 = vmatpush.msra.mxu0 0.0
        %3924 = vmatpush.msra.mxu0 0.0
        %3925 = vmatpush.msra.mxu0 0.0
        %3926 = vmatpush.msra.mxu0 0.0
        %3927 = vmatpush.msra.mxu0 0.0
        %3928 = vmatpush.msra.mxu0 0.0
        %3929 = vmatpush.msra.mxu0 0.0
        %3930 = vmatpush.msra.mxu0 %v3782
        %3931 = vmatpush.msra.mxu0 %v3781
        %3932 = vmatpush.msra.mxu0 %v3780
        %3933 = vmatpush.msra.mxu0 %v3779
        %3934 = vmatmul.f32.gmra.mxu0 %v3784
        %v3935 = vpop.f32.mrf.mxu0
        %v3936 = vadd.f32 0.0, %v3935
        %3937 = vmatmul.f32.gmra.mxu0 %v3787
        %v3938 = vpop.f32.mrf.mxu0
        %v3939 = vadd.f32 0.0, %v3938
        %3940 = vmatmul.f32.gmra.mxu0 %v3790
        %v3941 = vpop.f32.mrf.mxu0
        %v3942 = vadd.f32 0.0, %v3941
        %3943 = vmatmul.f32.gmra.mxu0 %v3793
        %v3944 = vpop.f32.mrf.mxu0
        %v3945 = vadd.f32 0.0, %v3944
        %3946 = vmatmul.f32.gmra.mxu0 %v3796
        %v3947 = vpop.f32.mrf.mxu0
        %v3948 = vadd.f32 0.0, %v3947
        %3949 = vmatmul.f32.gmra.mxu0 %v3799
        %v3950 = vpop.f32.mrf.mxu0
        %v3951 = vadd.f32 0.0, %v3950
        %3952 = vmatmul.f32.gmra.mxu0 %v3802
        %v3953 = vpop.f32.mrf.mxu0
        %v3954 = vadd.f32 0.0, %v3953
        %3955 = vmatmul.f32.gmra.mxu0 %v3805
        %v3956 = vpop.f32.mrf.mxu0
        %v3957 = vadd.f32 0.0, %v3956
        %3958 = vmatmul.f32.gmra.mxu0 %v3808
        %v3959 = vpop.f32.mrf.mxu0
        %v3960 = vadd.f32 0.0, %v3959
        %3961 = vmatmul.f32.gmra.mxu0 %v3811
        %v3962 = vpop.f32.mrf.mxu0
        %v3963 = vadd.f32 0.0, %v3962
        %3964 = vmatmul.f32.gmra.mxu0 %v3814
        %v3965 = vpop.f32.mrf.mxu0
        %v3966 = vadd.f32 0.0, %v3965
        %3967 = vmatmul.f32.gmra.mxu0 %v3817
        %v3968 = vpop.f32.mrf.mxu0
        %v3969 = vadd.f32 0.0, %v3968
        %3970 = vmatmul.f32.gmra.mxu0 %v3820
        %v3971 = vpop.f32.mrf.mxu0
        %v3972 = vadd.f32 0.0, %v3971
        %3973 = vmatmul.f32.gmra.mxu0 %v3823
        %v3974 = vpop.f32.mrf.mxu0
        %v3975 = vadd.f32 0.0, %v3974
        %3976 = vmatmul.f32.gmra.mxu0 %v3826
        %v3977 = vpop.f32.mrf.mxu0
        %v3978 = vadd.f32 0.0, %v3977
        %3979 = vmatmul.f32.gmra.mxu0 %v3829
        %v3980 = vpop.f32.mrf.mxu0
        %v3981 = vadd.f32 0.0, %v3980
        %3982 = vmatmul.f32.gmra.mxu0 %v3832
        %v3983 = vpop.f32.mrf.mxu0
        %v3984 = vadd.f32 0.0, %v3983
        %3985 = vmatmul.f32.gmra.mxu0 %v3835
        %v3986 = vpop.f32.mrf.mxu0
        %v3987 = vadd.f32 0.0, %v3986
        %3988 = vmatmul.f32.gmra.mxu0 %v3838
        %v3989 = vpop.f32.mrf.mxu0
        %v3990 = vadd.f32 0.0, %v3989
        %3991 = vmatmul.f32.gmra.mxu0 %v3841
        %v3992 = vpop.f32.mrf.mxu0
        %v3993 = vadd.f32 0.0, %v3992
        %3994 = vmatmul.f32.gmra.mxu0 %v3844
        %v3995 = vpop.f32.mrf.mxu0
        %v3996 = vadd.f32 0.0, %v3995
        %3997 = vmatmul.f32.gmra.mxu0 %v3847
        %v3998 = vpop.f32.mrf.mxu0
        %v3999 = vadd.f32 0.0, %v3998
        %4000 = vmatmul.f32.gmra.mxu0 %v3850
        %v4001 = vpop.f32.mrf.mxu0
        %v4002 = vadd.f32 0.0, %v4001
        %4003 = vmatmul.f32.gmra.mxu0 %v3853
        %v4004 = vpop.f32.mrf.mxu0
        %v4005 = vadd.f32 0.0, %v4004
        %4006 = vmatmul.f32.gmra.mxu0 %v3856
        %v4007 = vpop.f32.mrf.mxu0
        %v4008 = vadd.f32 0.0, %v4007
        %4009 = vmatmul.f32.gmra.mxu0 %v3859
        %v4010 = vpop.f32.mrf.mxu0
        %v4011 = vadd.f32 0.0, %v4010
        %4012 = vmatmul.f32.gmra.mxu0 %v3862
        %v4013 = vpop.f32.mrf.mxu0
        %v4014 = vadd.f32 0.0, %v4013
        %4015 = vmatmul.f32.gmra.mxu0 %v3865
        %v4016 = vpop.f32.mrf.mxu0
        %v4017 = vadd.f32 0.0, %v4016
        %4018 = vmatmul.f32.gmra.mxu0 %v3868
        %v4019 = vpop.f32.mrf.mxu0
        %v4020 = vadd.f32 0.0, %v4019
        %4021 = vmatmul.f32.gmra.mxu0 %v3871
        %v4022 = vpop.f32.mrf.mxu0
        %v4023 = vadd.f32 0.0, %v4022
        %4024 = vmatmul.f32.gmra.mxu0 %v3874
        %v4025 = vpop.f32.mrf.mxu0
        %v4026 = vadd.f32 0.0, %v4025
        %4027 = vmatmul.f32.gmra.mxu0 %v3877
        %v4028 = vpop.f32.mrf.mxu0
        %v4029 = vadd.f32 0.0, %v4028
        %4030 = vmatmul.f32.gmra.mxu0 %v3880
        %v4031 = vpop.f32.mrf.mxu0
        %v4032 = vadd.f32 0.0, %v4031
        %4033 = vmatmul.f32.gmra.mxu0 %v3883
        %v4034 = vpop.f32.mrf.mxu0
        %v4035 = vadd.f32 0.0, %v4034
        %4036 = vmatmul.f32.gmra.mxu0 %v3886
        %v4037 = vpop.f32.mrf.mxu0
        %v4038 = vadd.f32 0.0, %v4037
        %4039 = vmatmul.f32.gmra.mxu0 %v3889
        %v4040 = vpop.f32.mrf.mxu0
        %v4041 = vadd.f32 0.0, %v4040
        %4042 = vmatmul.f32.gmra.mxu0 %v3892
        %v4043 = vpop.f32.mrf.mxu0
        %v4044 = vadd.f32 0.0, %v4043
        %4045 = vmatmul.f32.gmra.mxu0 %v3895
        %v4046 = vpop.f32.mrf.mxu0
        %v4047 = vadd.f32 0.0, %v4046
        %4048 = vmatmul.f32.gmra.mxu0 %v3898
        %v4049 = vpop.f32.mrf.mxu0
        %v4050 = vadd.f32 0.0, %v4049
        %4051 = vmatmul.f32.gmra.mxu0 %v3901
        %v4052 = vpop.f32.mrf.mxu0
        %v4053 = vadd.f32 0.0, %v4052
        %4054 = vmatmul.f32.gmra.mxu0 %v3904
        %v4055 = vpop.f32.mrf.mxu0
        %v4056 = vadd.f32 0.0, %v4055
        %4057 = vmatmul.f32.gmra.mxu0 %v3907
        %v4058 = vpop.f32.mrf.mxu0
        %v4059 = vadd.f32 0.0, %v4058
        %4060 = vmatmul.f32.gmra.mxu0 %v3910
        %v4061 = vpop.f32.mrf.mxu0
        %v4062 = vadd.f32 0.0, %v4061
        %4063 = vmatmul.f32.gmra.mxu0 %v3913
        %v4064 = vpop.f32.mrf.mxu0
        %v4065 = vadd.f32 0.0, %v4064
        %4066 = vmatmul.f32.gmra.mxu0 %v3916
        %v4067 = vpop.f32.mrf.mxu0
        %v4068 = vadd.f32 0.0, %v4067
        %4069 = vdwg.mxu0
        %v4070 = vadd.f32 %v3689, %v3936
        %v4071 = vadd.f32 %v3690, %v3939
        %v4072 = vadd.f32 %v3691, %v3942
        %v4073 = vadd.f32 %v3692, %v3945
        %v4074 = vadd.f32 %v3693, %v3948
        %v4075 = vadd.f32 %v3694, %v3951
        %v4076 = vadd.f32 %v3695, %v3954
        %v4077 = vadd.f32 %v3696, %v3957
        %v4078 = vadd.f32 %v3697, %v3960
        %v4079 = vadd.f32 %v3698, %v3963
        %v4080 = vadd.f32 %v3699, %v3966
        %v4081 = vadd.f32 %v3700, %v3969
        %v4082 = vadd.f32 %v3701, %v3972
        %v4083 = vadd.f32 %v3702, %v3975
        %v4084 = vadd.f32 %v3703, %v3978
        %v4085 = vadd.f32 %v3704, %v3981
        %v4086 = vadd.f32 %v3705, %v3984
        %v4087 = vadd.f32 %v3706, %v3987
        %v4088 = vadd.f32 %v3707, %v3990
        %v4089 = vadd.f32 %v3708, %v3993
        %v4090 = vadd.f32 %v3709, %v3996
        %v4091 = vadd.f32 %v3710, %v3999
        %v4092 = vadd.f32 %v3711, %v4002
        %v4093 = vadd.f32 %v3712, %v4005
        %v4094 = vadd.f32 %v3713, %v4008
        %v4095 = vadd.f32 %v3714, %v4011
        %v4096 = vadd.f32 %v3715, %v4014
        %v4097 = vadd.f32 %v3716, %v4017
        %v4098 = vadd.f32 %v3717, %v4020
        %v4099 = vadd.f32 %v3718, %v4023
        %v4100 = vadd.f32 %v3719, %v4026
        %v4101 = vadd.f32 %v3720, %v4029
        %v4102 = vadd.f32 %v3721, %v4032
        %v4103 = vadd.f32 %v3722, %v4035
        %v4104 = vadd.f32 %v3723, %v4038
        %v4105 = vadd.f32 %v3724, %v4041
        %v4106 = vadd.f32 %v3725, %v4044
        %v4107 = vadd.f32 %v3726, %v4047
        %v4108 = vadd.f32 %v3727, %v4050
        %v4109 = vadd.f32 %v3728, %v4053
        %v4110 = vadd.f32 %v3729, %v4056
        %v4111 = vadd.f32 %v3730, %v4059
        %v4112 = vadd.f32 %v3731, %v4062
        %v4113 = vadd.f32 %v3732, %v4065
        %v4114 = vadd.f32 %v3733, %v4068
        %v4115 = vld [vmem:[#allocation2 + $0x29] sm:$0xff]
        %v4116 = vld [vmem:[#allocation2 + $0x31] sm:$0xff]
        %v4117 = vld [vmem:[#allocation2 + $0x39] sm:$0xff]
        %v4118 = vld [vmem:[#allocation2 + $0x41] sm:$0xff]
        %v4119 = vld [vmem:[#allocation2 + $0x49] sm:$0xff]
        %v4120 = vld [vmem:[#allocation2 + $0x51] sm:$0xff]
        %v4121 = vld [vmem:[#allocation2 + $0x59] sm:$0xff]
        %v4122 = vld [vmem:[#allocation2 + $0x61] sm:$0xff]
        %v4123 = vld [vmem:[#allocation2 + $0x69] sm:$0xff]
        %v4124 = vld [vmem:[#allocation2 + $0x71] sm:$0xff]
        %v4125 = vld [vmem:[#allocation2 + $0x79] sm:$0xff]
        %v4126 = vld [vmem:[#allocation2 + $0x81] sm:$0xff]
        %v4127 = vld [vmem:[#allocation2 + $0x89] sm:$0xff]
        %v4128 = vld [vmem:[#allocation2 + $0x91] sm:$0xff]
        %v4129 = vld [vmem:[#allocation2 + $0x99] sm:$0xff]
        %v4130 = vld [vmem:[#allocation2 + $0xa1] sm:$0xff]
        %v4131 = vld [vmem:[#allocation2 + $0xa9] sm:$0xff]
        %v4132 = vld [vmem:[#allocation2 + $0xb1] sm:$0xff]
        %v4133 = vld [vmem:[#allocation2 + $0xb9] sm:$0xff]
        %v4134 = vld [vmem:[#allocation2 + $0xc1] sm:$0xff]
        %v4135 = vld [vmem:[#allocation2 + $0xc9] sm:$0xff]
        %v4136 = vld [vmem:[#allocation2 + $0xd1] sm:$0xff]
        %v4137 = vld [vmem:[#allocation2 + $0xd9] sm:$0xff]
        %v4138 = vld [vmem:[#allocation2 + $0xe1] sm:$0xff]
        %v4139 = vld [vmem:[#allocation2 + $0xe9] sm:$0xff]
        %v4140 = vld [vmem:[#allocation2 + $0xf1] sm:$0xff]
        %v4141 = vld [vmem:[#allocation2 + $0xf9] sm:$0xff]
        %v4142 = vld [vmem:[#allocation2 + $0x101] sm:$0xff]
        %v4143 = vld [vmem:[#allocation2 + $0x109] sm:$0xff]
        %v4144 = vld [vmem:[#allocation2 + $0x111] sm:$0xff]
        %v4145 = vld [vmem:[#allocation2 + $0x119] sm:$0xff]
        %v4146 = vld [vmem:[#allocation2 + $0x121] sm:$0xff]
        %v4147 = vld [vmem:[#allocation2 + $0x129] sm:$0xff]
        %v4148 = vld [vmem:[#allocation2 + $0x131] sm:$0xff]
        %v4149 = vld [vmem:[#allocation2 + $0x139] sm:$0xff]
        %v4150 = vld [vmem:[#allocation2 + $0x141] sm:$0xff]
        %v4151 = vld [vmem:[#allocation2 + $0x149] sm:$0xff]
        %v4152 = vld [vmem:[#allocation2 + $0x151] sm:$0xff]
        %v4153 = vld [vmem:[#allocation2 + $0x159] sm:$0xff]
        %v4154 = vld [vmem:[#allocation2 + $0x161] sm:$0xff]
        %v4155 = vld [vmem:[#allocation2 + $0x169] sm:$0xff]
        %v4156 = vld [vmem:[#allocation2 + $0x171] sm:$0xff]
        %v4157 = vld [vmem:[#allocation2 + $0x179] sm:$0xff]
        %v4158 = vld [vmem:[#allocation2 + $0x181] sm:$0xff]
        %v4159 = vld [vmem:[#allocation2 + $0x189] sm:$0xff]
        %v4160 = vld [vmem:[%s3 + $0xe0] sm:$0xff]
        %v4161 = vld [vmem:[%s3 + $0xe8] sm:$0xff]
        %v4162 = vld [vmem:[%s3 + $0xf0] sm:$0xff]
        %v4163 = vld [vmem:[%s3 + $0xf8] sm:$0xff]
        %v4165 = vsel %vm492, %v4115, 0
        %v4168 = vsel %vm492, %v4116, 0
        %v4171 = vsel %vm492, %v4117, 0
        %v4174 = vsel %vm492, %v4118, 0
        %v4177 = vsel %vm492, %v4119, 0
        %v4180 = vsel %vm492, %v4120, 0
        %v4183 = vsel %vm492, %v4121, 0
        %v4186 = vsel %vm492, %v4122, 0
        %v4189 = vsel %vm492, %v4123, 0
        %v4192 = vsel %vm492, %v4124, 0
        %v4195 = vsel %vm492, %v4125, 0
        %v4198 = vsel %vm492, %v4126, 0
        %v4201 = vsel %vm492, %v4127, 0
        %v4204 = vsel %vm492, %v4128, 0
        %v4207 = vsel %vm492, %v4129, 0
        %v4210 = vsel %vm492, %v4130, 0
        %v4213 = vsel %vm492, %v4131, 0
        %v4216 = vsel %vm492, %v4132, 0
        %v4219 = vsel %vm492, %v4133, 0
        %v4222 = vsel %vm492, %v4134, 0
        %v4225 = vsel %vm492, %v4135, 0
        %v4228 = vsel %vm492, %v4136, 0
        %v4231 = vsel %vm492, %v4137, 0
        %v4234 = vsel %vm492, %v4138, 0
        %v4237 = vsel %vm492, %v4139, 0
        %v4240 = vsel %vm492, %v4140, 0
        %v4243 = vsel %vm492, %v4141, 0
        %v4246 = vsel %vm492, %v4142, 0
        %v4249 = vsel %vm492, %v4143, 0
        %v4252 = vsel %vm492, %v4144, 0
        %v4255 = vsel %vm492, %v4145, 0
        %v4258 = vsel %vm492, %v4146, 0
        %v4261 = vsel %vm492, %v4147, 0
        %v4264 = vsel %vm492, %v4148, 0
        %v4267 = vsel %vm492, %v4149, 0
        %v4270 = vsel %vm492, %v4150, 0
        %v4273 = vsel %vm492, %v4151, 0
        %v4276 = vsel %vm492, %v4152, 0
        %v4279 = vsel %vm492, %v4153, 0
        %v4282 = vsel %vm492, %v4154, 0
        %v4285 = vsel %vm492, %v4155, 0
        %v4288 = vsel %vm492, %v4156, 0
        %v4291 = vsel %vm492, %v4157, 0
        %v4294 = vsel %vm492, %v4158, 0
        %v4297 = vsel %vm492, %v4159, 0
        %4299 = vmatpush.msra.mxu0 0.0
        %4300 = vmatpush.msra.mxu0 0.0
        %4301 = vmatpush.msra.mxu0 0.0
        %4302 = vmatpush.msra.mxu0 0.0
        %4303 = vmatpush.msra.mxu0 0.0
        %4304 = vmatpush.msra.mxu0 0.0
        %4305 = vmatpush.msra.mxu0 0.0
        %4306 = vmatpush.msra.mxu0 0.0
        %4307 = vmatpush.msra.mxu0 0.0
        %4308 = vmatpush.msra.mxu0 0.0
        %4309 = vmatpush.msra.mxu0 0.0
        %4310 = vmatpush.msra.mxu0 0.0
        %4311 = vmatpush.msra.mxu0 %v4163
        %4312 = vmatpush.msra.mxu0 %v4162
        %4313 = vmatpush.msra.mxu0 %v4161
        %4314 = vmatpush.msra.mxu0 %v4160
        %4315 = vmatmul.f32.gmra.mxu0 %v4165
        %v4316 = vpop.f32.mrf.mxu0
        %v4317 = vadd.f32 0.0, %v4316
        %4318 = vmatmul.f32.gmra.mxu0 %v4168
        %v4319 = vpop.f32.mrf.mxu0
        %v4320 = vadd.f32 0.0, %v4319
        %4321 = vmatmul.f32.gmra.mxu0 %v4171
        %v4322 = vpop.f32.mrf.mxu0
        %v4323 = vadd.f32 0.0, %v4322
        %4324 = vmatmul.f32.gmra.mxu0 %v4174
        %v4325 = vpop.f32.mrf.mxu0
        %v4326 = vadd.f32 0.0, %v4325
        %4327 = vmatmul.f32.gmra.mxu0 %v4177
        %v4328 = vpop.f32.mrf.mxu0
        %v4329 = vadd.f32 0.0, %v4328
        %4330 = vmatmul.f32.gmra.mxu0 %v4180
        %v4331 = vpop.f32.mrf.mxu0
        %v4332 = vadd.f32 0.0, %v4331
        %4333 = vmatmul.f32.gmra.mxu0 %v4183
        %v4334 = vpop.f32.mrf.mxu0
        %v4335 = vadd.f32 0.0, %v4334
        %4336 = vmatmul.f32.gmra.mxu0 %v4186
        %v4337 = vpop.f32.mrf.mxu0
        %v4338 = vadd.f32 0.0, %v4337
        %4339 = vmatmul.f32.gmra.mxu0 %v4189
        %v4340 = vpop.f32.mrf.mxu0
        %v4341 = vadd.f32 0.0, %v4340
        %4342 = vmatmul.f32.gmra.mxu0 %v4192
        %v4343 = vpop.f32.mrf.mxu0
        %v4344 = vadd.f32 0.0, %v4343
        %4345 = vmatmul.f32.gmra.mxu0 %v4195
        %v4346 = vpop.f32.mrf.mxu0
        %v4347 = vadd.f32 0.0, %v4346
        %4348 = vmatmul.f32.gmra.mxu0 %v4198
        %v4349 = vpop.f32.mrf.mxu0
        %v4350 = vadd.f32 0.0, %v4349
        %4351 = vmatmul.f32.gmra.mxu0 %v4201
        %v4352 = vpop.f32.mrf.mxu0
        %v4353 = vadd.f32 0.0, %v4352
        %4354 = vmatmul.f32.gmra.mxu0 %v4204
        %v4355 = vpop.f32.mrf.mxu0
        %v4356 = vadd.f32 0.0, %v4355
        %4357 = vmatmul.f32.gmra.mxu0 %v4207
        %v4358 = vpop.f32.mrf.mxu0
        %v4359 = vadd.f32 0.0, %v4358
        %4360 = vmatmul.f32.gmra.mxu0 %v4210
        %v4361 = vpop.f32.mrf.mxu0
        %v4362 = vadd.f32 0.0, %v4361
        %4363 = vmatmul.f32.gmra.mxu0 %v4213
        %v4364 = vpop.f32.mrf.mxu0
        %v4365 = vadd.f32 0.0, %v4364
        %4366 = vmatmul.f32.gmra.mxu0 %v4216
        %v4367 = vpop.f32.mrf.mxu0
        %v4368 = vadd.f32 0.0, %v4367
        %4369 = vmatmul.f32.gmra.mxu0 %v4219
        %v4370 = vpop.f32.mrf.mxu0
        %v4371 = vadd.f32 0.0, %v4370
        %4372 = vmatmul.f32.gmra.mxu0 %v4222
        %v4373 = vpop.f32.mrf.mxu0
        %v4374 = vadd.f32 0.0, %v4373
        %4375 = vmatmul.f32.gmra.mxu0 %v4225
        %v4376 = vpop.f32.mrf.mxu0
        %v4377 = vadd.f32 0.0, %v4376
        %4378 = vmatmul.f32.gmra.mxu0 %v4228
        %v4379 = vpop.f32.mrf.mxu0
        %v4380 = vadd.f32 0.0, %v4379
        %4381 = vmatmul.f32.gmra.mxu0 %v4231
        %v4382 = vpop.f32.mrf.mxu0
        %v4383 = vadd.f32 0.0, %v4382
        %4384 = vmatmul.f32.gmra.mxu0 %v4234
        %v4385 = vpop.f32.mrf.mxu0
        %v4386 = vadd.f32 0.0, %v4385
        %4387 = vmatmul.f32.gmra.mxu0 %v4237
        %v4388 = vpop.f32.mrf.mxu0
        %v4389 = vadd.f32 0.0, %v4388
        %4390 = vmatmul.f32.gmra.mxu0 %v4240
        %v4391 = vpop.f32.mrf.mxu0
        %v4392 = vadd.f32 0.0, %v4391
        %4393 = vmatmul.f32.gmra.mxu0 %v4243
        %v4394 = vpop.f32.mrf.mxu0
        %v4395 = vadd.f32 0.0, %v4394
        %4396 = vmatmul.f32.gmra.mxu0 %v4246
        %v4397 = vpop.f32.mrf.mxu0
        %v4398 = vadd.f32 0.0, %v4397
        %4399 = vmatmul.f32.gmra.mxu0 %v4249
        %v4400 = vpop.f32.mrf.mxu0
        %v4401 = vadd.f32 0.0, %v4400
        %4402 = vmatmul.f32.gmra.mxu0 %v4252
        %v4403 = vpop.f32.mrf.mxu0
        %v4404 = vadd.f32 0.0, %v4403
        %4405 = vmatmul.f32.gmra.mxu0 %v4255
        %v4406 = vpop.f32.mrf.mxu0
        %v4407 = vadd.f32 0.0, %v4406
        %4408 = vmatmul.f32.gmra.mxu0 %v4258
        %v4409 = vpop.f32.mrf.mxu0
        %v4410 = vadd.f32 0.0, %v4409
        %4411 = vmatmul.f32.gmra.mxu0 %v4261
        %v4412 = vpop.f32.mrf.mxu0
        %v4413 = vadd.f32 0.0, %v4412
        %4414 = vmatmul.f32.gmra.mxu0 %v4264
        %v4415 = vpop.f32.mrf.mxu0
        %v4416 = vadd.f32 0.0, %v4415
        %4417 = vmatmul.f32.gmra.mxu0 %v4267
        %v4418 = vpop.f32.mrf.mxu0
        %v4419 = vadd.f32 0.0, %v4418
        %4420 = vmatmul.f32.gmra.mxu0 %v4270
        %v4421 = vpop.f32.mrf.mxu0
        %v4422 = vadd.f32 0.0, %v4421
        %4423 = vmatmul.f32.gmra.mxu0 %v4273
        %v4424 = vpop.f32.mrf.mxu0
        %v4425 = vadd.f32 0.0, %v4424
        %4426 = vmatmul.f32.gmra.mxu0 %v4276
        %v4427 = vpop.f32.mrf.mxu0
        %v4428 = vadd.f32 0.0, %v4427
        %4429 = vmatmul.f32.gmra.mxu0 %v4279
        %v4430 = vpop.f32.mrf.mxu0
        %v4431 = vadd.f32 0.0, %v4430
        %4432 = vmatmul.f32.gmra.mxu0 %v4282
        %v4433 = vpop.f32.mrf.mxu0
        %v4434 = vadd.f32 0.0, %v4433
        %4435 = vmatmul.f32.gmra.mxu0 %v4285
        %v4436 = vpop.f32.mrf.mxu0
        %v4437 = vadd.f32 0.0, %v4436
        %4438 = vmatmul.f32.gmra.mxu0 %v4288
        %v4439 = vpop.f32.mrf.mxu0
        %v4440 = vadd.f32 0.0, %v4439
        %4441 = vmatmul.f32.gmra.mxu0 %v4291
        %v4442 = vpop.f32.mrf.mxu0
        %v4443 = vadd.f32 0.0, %v4442
        %4444 = vmatmul.f32.gmra.mxu0 %v4294
        %v4445 = vpop.f32.mrf.mxu0
        %v4446 = vadd.f32 0.0, %v4445
        %4447 = vmatmul.f32.gmra.mxu0 %v4297
        %v4448 = vpop.f32.mrf.mxu0
        %v4449 = vadd.f32 0.0, %v4448
        %4450 = vdwg.mxu0
        %v4451 = vadd.f32 %v4070, %v4317
        %v4452 = vadd.f32 %v4071, %v4320
        %v4453 = vadd.f32 %v4072, %v4323
        %v4454 = vadd.f32 %v4073, %v4326
        %v4455 = vadd.f32 %v4074, %v4329
        %v4456 = vadd.f32 %v4075, %v4332
        %v4457 = vadd.f32 %v4076, %v4335
        %v4458 = vadd.f32 %v4077, %v4338
        %v4459 = vadd.f32 %v4078, %v4341
        %v4460 = vadd.f32 %v4079, %v4344
        %v4461 = vadd.f32 %v4080, %v4347
        %v4462 = vadd.f32 %v4081, %v4350
        %v4463 = vadd.f32 %v4082, %v4353
        %v4464 = vadd.f32 %v4083, %v4356
        %v4465 = vadd.f32 %v4084, %v4359
        %v4466 = vadd.f32 %v4085, %v4362
        %v4467 = vadd.f32 %v4086, %v4365
        %v4468 = vadd.f32 %v4087, %v4368
        %v4469 = vadd.f32 %v4088, %v4371
        %v4470 = vadd.f32 %v4089, %v4374
        %v4471 = vadd.f32 %v4090, %v4377
        %v4472 = vadd.f32 %v4091, %v4380
        %v4473 = vadd.f32 %v4092, %v4383
        %v4474 = vadd.f32 %v4093, %v4386
        %v4475 = vadd.f32 %v4094, %v4389
        %v4476 = vadd.f32 %v4095, %v4392
        %v4477 = vadd.f32 %v4096, %v4395
        %v4478 = vadd.f32 %v4097, %v4398
        %v4479 = vadd.f32 %v4098, %v4401
        %v4480 = vadd.f32 %v4099, %v4404
        %v4481 = vadd.f32 %v4100, %v4407
        %v4482 = vadd.f32 %v4101, %v4410
        %v4483 = vadd.f32 %v4102, %v4413
        %v4484 = vadd.f32 %v4103, %v4416
        %v4485 = vadd.f32 %v4104, %v4419
        %v4486 = vadd.f32 %v4105, %v4422
        %v4487 = vadd.f32 %v4106, %v4425
        %v4488 = vadd.f32 %v4107, %v4428
        %v4489 = vadd.f32 %v4108, %v4431
        %v4490 = vadd.f32 %v4109, %v4434
        %v4491 = vadd.f32 %v4110, %v4437
        %v4492 = vadd.f32 %v4111, %v4440
        %v4493 = vadd.f32 %v4112, %v4443
        %v4494 = vadd.f32 %v4113, %v4446
        %v4495 = vadd.f32 %v4114, %v4449
        %v4496 = vld [vmem:[#allocation2 + $0x2a] sm:$0xff]
        %v4497 = vld [vmem:[#allocation2 + $0x32] sm:$0xff]
        %v4498 = vld [vmem:[#allocation2 + $0x3a] sm:$0xff]
        %v4499 = vld [vmem:[#allocation2 + $0x42] sm:$0xff]
        %v4500 = vld [vmem:[#allocation2 + $0x4a] sm:$0xff]
        %v4501 = vld [vmem:[#allocation2 + $0x52] sm:$0xff]
        %v4502 = vld [vmem:[#allocation2 + $0x5a] sm:$0xff]
        %v4503 = vld [vmem:[#allocation2 + $0x62] sm:$0xff]
        %v4504 = vld [vmem:[#allocation2 + $0x6a] sm:$0xff]
        %v4505 = vld [vmem:[#allocation2 + $0x72] sm:$0xff]
        %v4506 = vld [vmem:[#allocation2 + $0x7a] sm:$0xff]
        %v4507 = vld [vmem:[#allocation2 + $0x82] sm:$0xff]
        %v4508 = vld [vmem:[#allocation2 + $0x8a] sm:$0xff]
        %v4509 = vld [vmem:[#allocation2 + $0x92] sm:$0xff]
        %v4510 = vld [vmem:[#allocation2 + $0x9a] sm:$0xff]
        %v4511 = vld [vmem:[#allocation2 + $0xa2] sm:$0xff]
        %v4512 = vld [vmem:[#allocation2 + $0xaa] sm:$0xff]
        %v4513 = vld [vmem:[#allocation2 + $0xb2] sm:$0xff]
        %v4514 = vld [vmem:[#allocation2 + $0xba] sm:$0xff]
        %v4515 = vld [vmem:[#allocation2 + $0xc2] sm:$0xff]
        %v4516 = vld [vmem:[#allocation2 + $0xca] sm:$0xff]
        %v4517 = vld [vmem:[#allocation2 + $0xd2] sm:$0xff]
        %v4518 = vld [vmem:[#allocation2 + $0xda] sm:$0xff]
        %v4519 = vld [vmem:[#allocation2 + $0xe2] sm:$0xff]
        %v4520 = vld [vmem:[#allocation2 + $0xea] sm:$0xff]
        %v4521 = vld [vmem:[#allocation2 + $0xf2] sm:$0xff]
        %v4522 = vld [vmem:[#allocation2 + $0xfa] sm:$0xff]
        %v4523 = vld [vmem:[#allocation2 + $0x102] sm:$0xff]
        %v4524 = vld [vmem:[#allocation2 + $0x10a] sm:$0xff]
        %v4525 = vld [vmem:[#allocation2 + $0x112] sm:$0xff]
        %v4526 = vld [vmem:[#allocation2 + $0x11a] sm:$0xff]
        %v4527 = vld [vmem:[#allocation2 + $0x122] sm:$0xff]
        %v4528 = vld [vmem:[#allocation2 + $0x12a] sm:$0xff]
        %v4529 = vld [vmem:[#allocation2 + $0x132] sm:$0xff]
        %v4530 = vld [vmem:[#allocation2 + $0x13a] sm:$0xff]
        %v4531 = vld [vmem:[#allocation2 + $0x142] sm:$0xff]
        %v4532 = vld [vmem:[#allocation2 + $0x14a] sm:$0xff]
        %v4533 = vld [vmem:[#allocation2 + $0x152] sm:$0xff]
        %v4534 = vld [vmem:[#allocation2 + $0x15a] sm:$0xff]
        %v4535 = vld [vmem:[#allocation2 + $0x162] sm:$0xff]
        %v4536 = vld [vmem:[#allocation2 + $0x16a] sm:$0xff]
        %v4537 = vld [vmem:[#allocation2 + $0x172] sm:$0xff]
        %v4538 = vld [vmem:[#allocation2 + $0x17a] sm:$0xff]
        %v4539 = vld [vmem:[#allocation2 + $0x182] sm:$0xff]
        %v4540 = vld [vmem:[#allocation2 + $0x18a] sm:$0xff]
        %v4541 = vld [vmem:[%s3 + $0x100] sm:$0xff]
        %v4542 = vld [vmem:[%s3 + $0x108] sm:$0xff]
        %v4543 = vld [vmem:[%s3 + $0x110] sm:$0xff]
        %v4544 = vld [vmem:[%s3 + $0x118] sm:$0xff]
        %v4546 = vsel %vm492, %v4496, 0
        %v4549 = vsel %vm492, %v4497, 0
        %v4552 = vsel %vm492, %v4498, 0
        %v4555 = vsel %vm492, %v4499, 0
        %v4558 = vsel %vm492, %v4500, 0
        %v4561 = vsel %vm492, %v4501, 0
        %v4564 = vsel %vm492, %v4502, 0
        %v4567 = vsel %vm492, %v4503, 0
        %v4570 = vsel %vm492, %v4504, 0
        %v4573 = vsel %vm492, %v4505, 0
        %v4576 = vsel %vm492, %v4506, 0
        %v4579 = vsel %vm492, %v4507, 0
        %v4582 = vsel %vm492, %v4508, 0
        %v4585 = vsel %vm492, %v4509, 0
        %v4588 = vsel %vm492, %v4510, 0
        %v4591 = vsel %vm492, %v4511, 0
        %v4594 = vsel %vm492, %v4512, 0
        %v4597 = vsel %vm492, %v4513, 0
        %v4600 = vsel %vm492, %v4514, 0
        %v4603 = vsel %vm492, %v4515, 0
        %v4606 = vsel %vm492, %v4516, 0
        %v4609 = vsel %vm492, %v4517, 0
        %v4612 = vsel %vm492, %v4518, 0
        %v4615 = vsel %vm492, %v4519, 0
        %v4618 = vsel %vm492, %v4520, 0
        %v4621 = vsel %vm492, %v4521, 0
        %v4624 = vsel %vm492, %v4522, 0
        %v4627 = vsel %vm492, %v4523, 0
        %v4630 = vsel %vm492, %v4524, 0
        %v4633 = vsel %vm492, %v4525, 0
        %v4636 = vsel %vm492, %v4526, 0
        %v4639 = vsel %vm492, %v4527, 0
        %v4642 = vsel %vm492, %v4528, 0
        %v4645 = vsel %vm492, %v4529, 0
        %v4648 = vsel %vm492, %v4530, 0
        %v4651 = vsel %vm492, %v4531, 0
        %v4654 = vsel %vm492, %v4532, 0
        %v4657 = vsel %vm492, %v4533, 0
        %v4660 = vsel %vm492, %v4534, 0
        %v4663 = vsel %vm492, %v4535, 0
        %v4666 = vsel %vm492, %v4536, 0
        %v4669 = vsel %vm492, %v4537, 0
        %v4672 = vsel %vm492, %v4538, 0
        %v4675 = vsel %vm492, %v4539, 0
        %v4678 = vsel %vm492, %v4540, 0
        %4680 = vmatpush.msra.mxu0 0.0
        %4681 = vmatpush.msra.mxu0 0.0
        %4682 = vmatpush.msra.mxu0 0.0
        %4683 = vmatpush.msra.mxu0 0.0
        %4684 = vmatpush.msra.mxu0 0.0
        %4685 = vmatpush.msra.mxu0 0.0
        %4686 = vmatpush.msra.mxu0 0.0
        %4687 = vmatpush.msra.mxu0 0.0
        %4688 = vmatpush.msra.mxu0 0.0
        %4689 = vmatpush.msra.mxu0 0.0
        %4690 = vmatpush.msra.mxu0 0.0
        %4691 = vmatpush.msra.mxu0 0.0
        %4692 = vmatpush.msra.mxu0 %v4544
        %4693 = vmatpush.msra.mxu0 %v4543
        %4694 = vmatpush.msra.mxu0 %v4542
        %4695 = vmatpush.msra.mxu0 %v4541
        %4696 = vmatmul.f32.gmra.mxu0 %v4546
        %v4697 = vpop.f32.mrf.mxu0
        %v4698 = vadd.f32 0.0, %v4697
        %4699 = vmatmul.f32.gmra.mxu0 %v4549
        %v4700 = vpop.f32.mrf.mxu0
        %v4701 = vadd.f32 0.0, %v4700
        %4702 = vmatmul.f32.gmra.mxu0 %v4552
        %v4703 = vpop.f32.mrf.mxu0
        %v4704 = vadd.f32 0.0, %v4703
        %4705 = vmatmul.f32.gmra.mxu0 %v4555
        %v4706 = vpop.f32.mrf.mxu0
        %v4707 = vadd.f32 0.0, %v4706
        %4708 = vmatmul.f32.gmra.mxu0 %v4558
        %v4709 = vpop.f32.mrf.mxu0
        %v4710 = vadd.f32 0.0, %v4709
        %4711 = vmatmul.f32.gmra.mxu0 %v4561
        %v4712 = vpop.f32.mrf.mxu0
        %v4713 = vadd.f32 0.0, %v4712
        %4714 = vmatmul.f32.gmra.mxu0 %v4564
        %v4715 = vpop.f32.mrf.mxu0
        %v4716 = vadd.f32 0.0, %v4715
        %4717 = vmatmul.f32.gmra.mxu0 %v4567
        %v4718 = vpop.f32.mrf.mxu0
        %v4719 = vadd.f32 0.0, %v4718
        %4720 = vmatmul.f32.gmra.mxu0 %v4570
        %v4721 = vpop.f32.mrf.mxu0
        %v4722 = vadd.f32 0.0, %v4721
        %4723 = vmatmul.f32.gmra.mxu0 %v4573
        %v4724 = vpop.f32.mrf.mxu0
        %v4725 = vadd.f32 0.0, %v4724
        %4726 = vmatmul.f32.gmra.mxu0 %v4576
        %v4727 = vpop.f32.mrf.mxu0
        %v4728 = vadd.f32 0.0, %v4727
        %4729 = vmatmul.f32.gmra.mxu0 %v4579
        %v4730 = vpop.f32.mrf.mxu0
        %v4731 = vadd.f32 0.0, %v4730
        %4732 = vmatmul.f32.gmra.mxu0 %v4582
        %v4733 = vpop.f32.mrf.mxu0
        %v4734 = vadd.f32 0.0, %v4733
        %4735 = vmatmul.f32.gmra.mxu0 %v4585
        %v4736 = vpop.f32.mrf.mxu0
        %v4737 = vadd.f32 0.0, %v4736
        %4738 = vmatmul.f32.gmra.mxu0 %v4588
        %v4739 = vpop.f32.mrf.mxu0
        %v4740 = vadd.f32 0.0, %v4739
        %4741 = vmatmul.f32.gmra.mxu0 %v4591
        %v4742 = vpop.f32.mrf.mxu0
        %v4743 = vadd.f32 0.0, %v4742
        %4744 = vmatmul.f32.gmra.mxu0 %v4594
        %v4745 = vpop.f32.mrf.mxu0
        %v4746 = vadd.f32 0.0, %v4745
        %4747 = vmatmul.f32.gmra.mxu0 %v4597
        %v4748 = vpop.f32.mrf.mxu0
        %v4749 = vadd.f32 0.0, %v4748
        %4750 = vmatmul.f32.gmra.mxu0 %v4600
        %v4751 = vpop.f32.mrf.mxu0
        %v4752 = vadd.f32 0.0, %v4751
        %4753 = vmatmul.f32.gmra.mxu0 %v4603
        %v4754 = vpop.f32.mrf.mxu0
        %v4755 = vadd.f32 0.0, %v4754
        %4756 = vmatmul.f32.gmra.mxu0 %v4606
        %v4757 = vpop.f32.mrf.mxu0
        %v4758 = vadd.f32 0.0, %v4757
        %4759 = vmatmul.f32.gmra.mxu0 %v4609
        %v4760 = vpop.f32.mrf.mxu0
        %v4761 = vadd.f32 0.0, %v4760
        %4762 = vmatmul.f32.gmra.mxu0 %v4612
        %v4763 = vpop.f32.mrf.mxu0
        %v4764 = vadd.f32 0.0, %v4763
        %4765 = vmatmul.f32.gmra.mxu0 %v4615
        %v4766 = vpop.f32.mrf.mxu0
        %v4767 = vadd.f32 0.0, %v4766
        %4768 = vmatmul.f32.gmra.mxu0 %v4618
        %v4769 = vpop.f32.mrf.mxu0
        %v4770 = vadd.f32 0.0, %v4769
        %4771 = vmatmul.f32.gmra.mxu0 %v4621
        %v4772 = vpop.f32.mrf.mxu0
        %v4773 = vadd.f32 0.0, %v4772
        %4774 = vmatmul.f32.gmra.mxu0 %v4624
        %v4775 = vpop.f32.mrf.mxu0
        %v4776 = vadd.f32 0.0, %v4775
        %4777 = vmatmul.f32.gmra.mxu0 %v4627
        %v4778 = vpop.f32.mrf.mxu0
        %v4779 = vadd.f32 0.0, %v4778
        %4780 = vmatmul.f32.gmra.mxu0 %v4630
        %v4781 = vpop.f32.mrf.mxu0
        %v4782 = vadd.f32 0.0, %v4781
        %4783 = vmatmul.f32.gmra.mxu0 %v4633
        %v4784 = vpop.f32.mrf.mxu0
        %v4785 = vadd.f32 0.0, %v4784
        %4786 = vmatmul.f32.gmra.mxu0 %v4636
        %v4787 = vpop.f32.mrf.mxu0
        %v4788 = vadd.f32 0.0, %v4787
        %4789 = vmatmul.f32.gmra.mxu0 %v4639
        %v4790 = vpop.f32.mrf.mxu0
        %v4791 = vadd.f32 0.0, %v4790
        %4792 = vmatmul.f32.gmra.mxu0 %v4642
        %v4793 = vpop.f32.mrf.mxu0
        %v4794 = vadd.f32 0.0, %v4793
        %4795 = vmatmul.f32.gmra.mxu0 %v4645
        %v4796 = vpop.f32.mrf.mxu0
        %v4797 = vadd.f32 0.0, %v4796
        %4798 = vmatmul.f32.gmra.mxu0 %v4648
        %v4799 = vpop.f32.mrf.mxu0
        %v4800 = vadd.f32 0.0, %v4799
        %4801 = vmatmul.f32.gmra.mxu0 %v4651
        %v4802 = vpop.f32.mrf.mxu0
        %v4803 = vadd.f32 0.0, %v4802
        %4804 = vmatmul.f32.gmra.mxu0 %v4654
        %v4805 = vpop.f32.mrf.mxu0
        %v4806 = vadd.f32 0.0, %v4805
        %4807 = vmatmul.f32.gmra.mxu0 %v4657
        %v4808 = vpop.f32.mrf.mxu0
        %v4809 = vadd.f32 0.0, %v4808
        %4810 = vmatmul.f32.gmra.mxu0 %v4660
        %v4811 = vpop.f32.mrf.mxu0
        %v4812 = vadd.f32 0.0, %v4811
        %4813 = vmatmul.f32.gmra.mxu0 %v4663
        %v4814 = vpop.f32.mrf.mxu0
        %v4815 = vadd.f32 0.0, %v4814
        %4816 = vmatmul.f32.gmra.mxu0 %v4666
        %v4817 = vpop.f32.mrf.mxu0
        %v4818 = vadd.f32 0.0, %v4817
        %4819 = vmatmul.f32.gmra.mxu0 %v4669
        %v4820 = vpop.f32.mrf.mxu0
        %v4821 = vadd.f32 0.0, %v4820
        %4822 = vmatmul.f32.gmra.mxu0 %v4672
        %v4823 = vpop.f32.mrf.mxu0
        %v4824 = vadd.f32 0.0, %v4823
        %4825 = vmatmul.f32.gmra.mxu0 %v4675
        %v4826 = vpop.f32.mrf.mxu0
        %v4827 = vadd.f32 0.0, %v4826
        %4828 = vmatmul.f32.gmra.mxu0 %v4678
        %v4829 = vpop.f32.mrf.mxu0
        %v4830 = vadd.f32 0.0, %v4829
        %4831 = vdwg.mxu0
        %v4832 = vadd.f32 %v4451, %v4698
        %v4833 = vadd.f32 %v4452, %v4701
        %v4834 = vadd.f32 %v4453, %v4704
        %v4835 = vadd.f32 %v4454, %v4707
        %v4836 = vadd.f32 %v4455, %v4710
        %v4837 = vadd.f32 %v4456, %v4713
        %v4838 = vadd.f32 %v4457, %v4716
        %v4839 = vadd.f32 %v4458, %v4719
        %v4840 = vadd.f32 %v4459, %v4722
        %v4841 = vadd.f32 %v4460, %v4725
        %v4842 = vadd.f32 %v4461, %v4728
        %v4843 = vadd.f32 %v4462, %v4731
        %v4844 = vadd.f32 %v4463, %v4734
        %v4845 = vadd.f32 %v4464, %v4737
        %v4846 = vadd.f32 %v4465, %v4740
        %v4847 = vadd.f32 %v4466, %v4743
        %v4848 = vadd.f32 %v4467, %v4746
        %v4849 = vadd.f32 %v4468, %v4749
        %v4850 = vadd.f32 %v4469, %v4752
        %v4851 = vadd.f32 %v4470, %v4755
        %v4852 = vadd.f32 %v4471, %v4758
        %v4853 = vadd.f32 %v4472, %v4761
        %v4854 = vadd.f32 %v4473, %v4764
        %v4855 = vadd.f32 %v4474, %v4767
        %v4856 = vadd.f32 %v4475, %v4770
        %v4857 = vadd.f32 %v4476, %v4773
        %v4858 = vadd.f32 %v4477, %v4776
        %v4859 = vadd.f32 %v4478, %v4779
        %v4860 = vadd.f32 %v4479, %v4782
        %v4861 = vadd.f32 %v4480, %v4785
        %v4862 = vadd.f32 %v4481, %v4788
        %v4863 = vadd.f32 %v4482, %v4791
        %v4864 = vadd.f32 %v4483, %v4794
        %v4865 = vadd.f32 %v4484, %v4797
        %v4866 = vadd.f32 %v4485, %v4800
        %v4867 = vadd.f32 %v4486, %v4803
        %v4868 = vadd.f32 %v4487, %v4806
        %v4869 = vadd.f32 %v4488, %v4809
        %v4870 = vadd.f32 %v4489, %v4812
        %v4871 = vadd.f32 %v4490, %v4815
        %v4872 = vadd.f32 %v4491, %v4818
        %v4873 = vadd.f32 %v4492, %v4821
        %v4874 = vadd.f32 %v4493, %v4824
        %v4875 = vadd.f32 %v4494, %v4827
        %v4876 = vadd.f32 %v4495, %v4830
        %v4877 = vld [vmem:[%s4] sm:$0x1]
        %v4879 = vperm.slane %v4877, 0
        %v4881 = vadd.f32 %v4832, %v4879
        %v4882 = vadd.f32 %v4833, %v4879
        %v4883 = vadd.f32 %v4834, %v4879
        %v4884 = vadd.f32 %v4835, %v4879
        %v4885 = vadd.f32 %v4836, %v4879
        %v4886 = vadd.f32 %v4837, %v4879
        %v4887 = vadd.f32 %v4838, %v4879
        %v4888 = vadd.f32 %v4839, %v4879
        %v4889 = vadd.f32 %v4840, %v4879
        %v4890 = vadd.f32 %v4841, %v4879
        %v4891 = vadd.f32 %v4842, %v4879
        %v4892 = vadd.f32 %v4843, %v4879
        %v4893 = vadd.f32 %v4844, %v4879
        %v4894 = vadd.f32 %v4845, %v4879
        %v4895 = vadd.f32 %v4846, %v4879
        %v4896 = vadd.f32 %v4847, %v4879
        %v4897 = vadd.f32 %v4848, %v4879
        %v4898 = vadd.f32 %v4849, %v4879
        %v4899 = vadd.f32 %v4850, %v4879
        %v4900 = vadd.f32 %v4851, %v4879
        %v4901 = vadd.f32 %v4852, %v4879
        %v4902 = vadd.f32 %v4853, %v4879
        %v4903 = vadd.f32 %v4854, %v4879
        %v4904 = vadd.f32 %v4855, %v4879
        %v4905 = vadd.f32 %v4856, %v4879
        %v4906 = vadd.f32 %v4857, %v4879
        %v4907 = vadd.f32 %v4858, %v4879
        %v4908 = vadd.f32 %v4859, %v4879
        %v4909 = vadd.f32 %v4860, %v4879
        %v4910 = vadd.f32 %v4861, %v4879
        %v4911 = vadd.f32 %v4862, %v4879
        %v4912 = vadd.f32 %v4863, %v4879
        %v4913 = vadd.f32 %v4864, %v4879
        %v4914 = vadd.f32 %v4865, %v4879
        %v4915 = vadd.f32 %v4866, %v4879
        %v4916 = vadd.f32 %v4867, %v4879
        %v4917 = vadd.f32 %v4868, %v4879
        %v4918 = vadd.f32 %v4869, %v4879
        %v4919 = vadd.f32 %v4870, %v4879
        %v4920 = vadd.f32 %v4871, %v4879
        %v4921 = vadd.f32 %v4872, %v4879
        %v4922 = vadd.f32 %v4873, %v4879
        %v4923 = vadd.f32 %v4874, %v4879
        %v4924 = vadd.f32 %v4875, %v4879
        %v4925 = vadd.f32 %v4876, %v4879
        %v4926 = vmax.f32 %v4881, 0.0
        %v4927 = vmax.f32 %v4882, 0.0
        %v4928 = vmax.f32 %v4883, 0.0
        %v4929 = vmax.f32 %v4884, 0.0
        %v4930 = vmax.f32 %v4885, 0.0
        %v4931 = vmax.f32 %v4886, 0.0
        %v4932 = vmax.f32 %v4887, 0.0
        %v4933 = vmax.f32 %v4888, 0.0
        %v4934 = vmax.f32 %v4889, 0.0
        %v4935 = vmax.f32 %v4890, 0.0
        %v4936 = vmax.f32 %v4891, 0.0
        %v4937 = vmax.f32 %v4892, 0.0
        %v4938 = vmax.f32 %v4893, 0.0
        %v4939 = vmax.f32 %v4894, 0.0
        %v4940 = vmax.f32 %v4895, 0.0
        %v4941 = vmax.f32 %v4896, 0.0
        %v4942 = vmax.f32 %v4897, 0.0
        %v4943 = vmax.f32 %v4898, 0.0
        %v4944 = vmax.f32 %v4899, 0.0
        %v4945 = vmax.f32 %v4900, 0.0
        %v4946 = vmax.f32 %v4901, 0.0
        %v4947 = vmax.f32 %v4902, 0.0
        %v4948 = vmax.f32 %v4903, 0.0
        %v4949 = vmax.f32 %v4904, 0.0
        %v4950 = vmax.f32 %v4905, 0.0
        %v4951 = vmax.f32 %v4906, 0.0
        %v4952 = vmax.f32 %v4907, 0.0
        %v4953 = vmax.f32 %v4908, 0.0
        %v4954 = vmax.f32 %v4909, 0.0
        %v4955 = vmax.f32 %v4910, 0.0
        %v4956 = vmax.f32 %v4911, 0.0
        %v4957 = vmax.f32 %v4912, 0.0
        %v4958 = vmax.f32 %v4913, 0.0
        %v4959 = vmax.f32 %v4914, 0.0
        %v4960 = vmax.f32 %v4915, 0.0
        %v4961 = vmax.f32 %v4916, 0.0
        %v4962 = vmax.f32 %v4917, 0.0
        %v4963 = vmax.f32 %v4918, 0.0
        %v4964 = vmax.f32 %v4919, 0.0
        %v4965 = vmax.f32 %v4920, 0.0
        %v4966 = vmax.f32 %v4921, 0.0
        %v4967 = vmax.f32 %v4922, 0.0
        %v4968 = vmax.f32 %v4923, 0.0
        %v4969 = vmax.f32 %v4924, 0.0
        %v4970 = vmax.f32 %v4925, 0.0
        %5016 = vrot.lane.b32.xlu0 %v4926, 112
        %v5017 = vpop.permute.xlu0 %5016
        %5018 = vrot.lane.b32.xlu0 %v4927, 112
        %v5019 = vpop.permute.xlu0 %5018
        %5020 = vrot.lane.b32.xlu0 %v4928, 112
        %v5021 = vpop.permute.xlu0 %5020
        %5022 = vrot.lane.b32.xlu0 %v4929, 112
        %v5023 = vpop.permute.xlu0 %5022
        %5024 = vrot.lane.b32.xlu0 %v4930, 112
        %v5025 = vpop.permute.xlu0 %5024
        %5026 = vrot.lane.b32.xlu0 %v4931, 112
        %v5027 = vpop.permute.xlu0 %5026
        %5028 = vrot.lane.b32.xlu0 %v4932, 112
        %v5029 = vpop.permute.xlu0 %5028
        %5030 = vrot.lane.b32.xlu0 %v4933, 112
        %v5031 = vpop.permute.xlu0 %5030
        %5032 = vrot.lane.b32.xlu0 %v4934, 112
        %v5033 = vpop.permute.xlu0 %5032
        %5034 = vrot.lane.b32.xlu0 %v4935, 112
        %v5035 = vpop.permute.xlu0 %5034
        %5036 = vrot.lane.b32.xlu0 %v4936, 112
        %v5037 = vpop.permute.xlu0 %5036
        %5038 = vrot.lane.b32.xlu0 %v4937, 112
        %v5039 = vpop.permute.xlu0 %5038
        %5040 = vrot.lane.b32.xlu0 %v4938, 112
        %v5041 = vpop.permute.xlu0 %5040
        %5042 = vrot.lane.b32.xlu0 %v4939, 112
        %v5043 = vpop.permute.xlu0 %5042
        %5044 = vrot.lane.b32.xlu0 %v4940, 112
        %v5045 = vpop.permute.xlu0 %5044
        %5046 = vrot.lane.b32.xlu0 %v4941, 112
        %v5047 = vpop.permute.xlu0 %5046
        %5048 = vrot.lane.b32.xlu0 %v4942, 112
        %v5049 = vpop.permute.xlu0 %5048
        %5050 = vrot.lane.b32.xlu0 %v4943, 112
        %v5051 = vpop.permute.xlu0 %5050
        %5052 = vrot.lane.b32.xlu0 %v4944, 112
        %v5053 = vpop.permute.xlu0 %5052
        %5054 = vrot.lane.b32.xlu0 %v4945, 112
        %v5055 = vpop.permute.xlu0 %5054
        %5056 = vrot.lane.b32.xlu0 %v4946, 112
        %v5057 = vpop.permute.xlu0 %5056
        %5058 = vrot.lane.b32.xlu0 %v4947, 112
        %v5059 = vpop.permute.xlu0 %5058
        %5060 = vrot.lane.b32.xlu0 %v4948, 112
        %v5061 = vpop.permute.xlu0 %5060
        %5062 = vrot.lane.b32.xlu0 %v4949, 112
        %v5063 = vpop.permute.xlu0 %5062
        %5064 = vrot.lane.b32.xlu0 %v4950, 112
        %v5065 = vpop.permute.xlu0 %5064
        %5066 = vrot.lane.b32.xlu0 %v4951, 112
        %v5067 = vpop.permute.xlu0 %5066
        %5068 = vrot.lane.b32.xlu0 %v4952, 112
        %v5069 = vpop.permute.xlu0 %5068
        %5070 = vrot.lane.b32.xlu0 %v4953, 112
        %v5071 = vpop.permute.xlu0 %5070
        %5072 = vrot.lane.b32.xlu0 %v4954, 112
        %v5073 = vpop.permute.xlu0 %5072
        %5074 = vrot.lane.b32.xlu0 %v4955, 112
        %v5075 = vpop.permute.xlu0 %5074
        %5076 = vrot.lane.b32.xlu0 %v4956, 112
        %v5077 = vpop.permute.xlu0 %5076
        %5078 = vrot.lane.b32.xlu0 %v4957, 112
        %v5079 = vpop.permute.xlu0 %5078
        %5080 = vrot.lane.b32.xlu0 %v4958, 112
        %v5081 = vpop.permute.xlu0 %5080
        %5082 = vrot.lane.b32.xlu0 %v4959, 112
        %v5083 = vpop.permute.xlu0 %5082
        %5084 = vrot.lane.b32.xlu0 %v4960, 112
        %v5085 = vpop.permute.xlu0 %5084
        %5086 = vrot.lane.b32.xlu0 %v4961, 112
        %v5087 = vpop.permute.xlu0 %5086
        %5088 = vrot.lane.b32.xlu0 %v4962, 112
        %v5089 = vpop.permute.xlu0 %5088
        %5090 = vrot.lane.b32.xlu0 %v4963, 112
        %v5091 = vpop.permute.xlu0 %5090
        %5092 = vrot.lane.b32.xlu0 %v4964, 112
        %v5093 = vpop.permute.xlu0 %5092
        %5094 = vrot.lane.b32.xlu0 %v4965, 112
        %v5095 = vpop.permute.xlu0 %5094
        %5096 = vrot.lane.b32.xlu0 %v4966, 112
        %v5097 = vpop.permute.xlu0 %5096
        %5098 = vrot.lane.b32.xlu0 %v4967, 112
        %v5099 = vpop.permute.xlu0 %5098
        %5100 = vrot.lane.b32.xlu0 %v4968, 112
        %v5101 = vpop.permute.xlu0 %5100
        %5102 = vrot.lane.b32.xlu0 %v4969, 112
        %v5103 = vpop.permute.xlu0 %5102
        %5104 = vrot.lane.b32.xlu0 %v4970, 112
        %v5105 = vpop.permute.xlu0 %5104
        %v5151 = vmax.f32 %v4926, %v5017
        %v5152 = vmax.f32 %v4927, %v5019
        %v5153 = vmax.f32 %v4928, %v5021
        %v5154 = vmax.f32 %v4929, %v5023
        %v5155 = vmax.f32 %v4930, %v5025
        %v5156 = vmax.f32 %v4931, %v5027
        %v5157 = vmax.f32 %v4932, %v5029
        %v5158 = vmax.f32 %v4933, %v5031
        %v5159 = vmax.f32 %v4934, %v5033
        %v5160 = vmax.f32 %v4935, %v5035
        %v5161 = vmax.f32 %v4936, %v5037
        %v5162 = vmax.f32 %v4937, %v5039
        %v5163 = vmax.f32 %v4938, %v5041
        %v5164 = vmax.f32 %v4939, %v5043
        %v5165 = vmax.f32 %v4940, %v5045
        %v5166 = vmax.f32 %v4941, %v5047
        %v5167 = vmax.f32 %v4942, %v5049
        %v5168 = vmax.f32 %v4943, %v5051
        %v5169 = vmax.f32 %v4944, %v5053
        %v5170 = vmax.f32 %v4945, %v5055
        %v5171 = vmax.f32 %v4946, %v5057
        %v5172 = vmax.f32 %v4947, %v5059
        %v5173 = vmax.f32 %v4948, %v5061
        %v5174 = vmax.f32 %v4949, %v5063
        %v5175 = vmax.f32 %v4950, %v5065
        %v5176 = vmax.f32 %v4951, %v5067
        %v5177 = vmax.f32 %v4952, %v5069
        %v5178 = vmax.f32 %v4953, %v5071
        %v5179 = vmax.f32 %v4954, %v5073
        %v5180 = vmax.f32 %v4955, %v5075
        %v5181 = vmax.f32 %v4956, %v5077
        %v5182 = vmax.f32 %v4957, %v5079
        %v5183 = vmax.f32 %v4958, %v5081
        %v5184 = vmax.f32 %v4959, %v5083
        %v5185 = vmax.f32 %v4960, %v5085
        %v5186 = vmax.f32 %v4961, %v5087
        %v5187 = vmax.f32 %v4962, %v5089
        %v5188 = vmax.f32 %v4963, %v5091
        %v5189 = vmax.f32 %v4964, %v5093
        %v5190 = vmax.f32 %v4965, %v5095
        %v5191 = vmax.f32 %v4966, %v5097
        %v5192 = vmax.f32 %v4967, %v5099
        %v5193 = vmax.f32 %v4968, %v5101
        %v5194 = vmax.f32 %v4969, %v5103
        %v5195 = vmax.f32 %v4970, %v5105
        %5241 = vrot.lane.b32.xlu0 %v5151, 96
        %v5242 = vpop.permute.xlu0 %5241
        %5243 = vrot.lane.b32.xlu0 %v5152, 96
        %v5244 = vpop.permute.xlu0 %5243
        %5245 = vrot.lane.b32.xlu0 %v5153, 96
        %v5246 = vpop.permute.xlu0 %5245
        %5247 = vrot.lane.b32.xlu0 %v5154, 96
        %v5248 = vpop.permute.xlu0 %5247
        %5249 = vrot.lane.b32.xlu0 %v5155, 96
        %v5250 = vpop.permute.xlu0 %5249
        %5251 = vrot.lane.b32.xlu0 %v5156, 96
        %v5252 = vpop.permute.xlu0 %5251
        %5253 = vrot.lane.b32.xlu0 %v5157, 96
        %v5254 = vpop.permute.xlu0 %5253
        %5255 = vrot.lane.b32.xlu0 %v5158, 96
        %v5256 = vpop.permute.xlu0 %5255
        %5257 = vrot.lane.b32.xlu0 %v5159, 96
        %v5258 = vpop.permute.xlu0 %5257
        %5259 = vrot.lane.b32.xlu0 %v5160, 96
        %v5260 = vpop.permute.xlu0 %5259
        %5261 = vrot.lane.b32.xlu0 %v5161, 96
        %v5262 = vpop.permute.xlu0 %5261
        %5263 = vrot.lane.b32.xlu0 %v5162, 96
        %v5264 = vpop.permute.xlu0 %5263
        %5265 = vrot.lane.b32.xlu0 %v5163, 96
        %v5266 = vpop.permute.xlu0 %5265
        %5267 = vrot.lane.b32.xlu0 %v5164, 96
        %v5268 = vpop.permute.xlu0 %5267
        %5269 = vrot.lane.b32.xlu0 %v5165, 96
        %v5270 = vpop.permute.xlu0 %5269
        %5271 = vrot.lane.b32.xlu0 %v5166, 96
        %v5272 = vpop.permute.xlu0 %5271
        %5273 = vrot.lane.b32.xlu0 %v5167, 96
        %v5274 = vpop.permute.xlu0 %5273
        %5275 = vrot.lane.b32.xlu0 %v5168, 96
        %v5276 = vpop.permute.xlu0 %5275
        %5277 = vrot.lane.b32.xlu0 %v5169, 96
        %v5278 = vpop.permute.xlu0 %5277
        %5279 = vrot.lane.b32.xlu0 %v5170, 96
        %v5280 = vpop.permute.xlu0 %5279
        %5281 = vrot.lane.b32.xlu0 %v5171, 96
        %v5282 = vpop.permute.xlu0 %5281
        %5283 = vrot.lane.b32.xlu0 %v5172, 96
        %v5284 = vpop.permute.xlu0 %5283
        %5285 = vrot.lane.b32.xlu0 %v5173, 96
        %v5286 = vpop.permute.xlu0 %5285
        %5287 = vrot.lane.b32.xlu0 %v5174, 96
        %v5288 = vpop.permute.xlu0 %5287
        %5289 = vrot.lane.b32.xlu0 %v5175, 96
        %v5290 = vpop.permute.xlu0 %5289
        %5291 = vrot.lane.b32.xlu0 %v5176, 96
        %v5292 = vpop.permute.xlu0 %5291
        %5293 = vrot.lane.b32.xlu0 %v5177, 96
        %v5294 = vpop.permute.xlu0 %5293
        %5295 = vrot.lane.b32.xlu0 %v5178, 96
        %v5296 = vpop.permute.xlu0 %5295
        %5297 = vrot.lane.b32.xlu0 %v5179, 96
        %v5298 = vpop.permute.xlu0 %5297
        %5299 = vrot.lane.b32.xlu0 %v5180, 96
        %v5300 = vpop.permute.xlu0 %5299
        %5301 = vrot.lane.b32.xlu0 %v5181, 96
        %v5302 = vpop.permute.xlu0 %5301
        %5303 = vrot.lane.b32.xlu0 %v5182, 96
        %v5304 = vpop.permute.xlu0 %5303
        %5305 = vrot.lane.b32.xlu0 %v5183, 96
        %v5306 = vpop.permute.xlu0 %5305
        %5307 = vrot.lane.b32.xlu0 %v5184, 96
        %v5308 = vpop.permute.xlu0 %5307
        %5309 = vrot.lane.b32.xlu0 %v5185, 96
        %v5310 = vpop.permute.xlu0 %5309
        %5311 = vrot.lane.b32.xlu0 %v5186, 96
        %v5312 = vpop.permute.xlu0 %5311
        %5313 = vrot.lane.b32.xlu0 %v5187, 96
        %v5314 = vpop.permute.xlu0 %5313
        %5315 = vrot.lane.b32.xlu0 %v5188, 96
        %v5316 = vpop.permute.xlu0 %5315
        %5317 = vrot.lane.b32.xlu0 %v5189, 96
        %v5318 = vpop.permute.xlu0 %5317
        %5319 = vrot.lane.b32.xlu0 %v5190, 96
        %v5320 = vpop.permute.xlu0 %5319
        %5321 = vrot.lane.b32.xlu0 %v5191, 96
        %v5322 = vpop.permute.xlu0 %5321
        %5323 = vrot.lane.b32.xlu0 %v5192, 96
        %v5324 = vpop.permute.xlu0 %5323
        %5325 = vrot.lane.b32.xlu0 %v5193, 96
        %v5326 = vpop.permute.xlu0 %5325
        %5327 = vrot.lane.b32.xlu0 %v5194, 96
        %v5328 = vpop.permute.xlu0 %5327
        %5329 = vrot.lane.b32.xlu0 %v5195, 96
        %v5330 = vpop.permute.xlu0 %5329
        %v5376 = vmax.f32 %v5151, %v5242
        %v5377 = vmax.f32 %v5152, %v5244
        %v5378 = vmax.f32 %v5153, %v5246
        %v5379 = vmax.f32 %v5154, %v5248
        %v5380 = vmax.f32 %v5155, %v5250
        %v5381 = vmax.f32 %v5156, %v5252
        %v5382 = vmax.f32 %v5157, %v5254
        %v5383 = vmax.f32 %v5158, %v5256
        %v5384 = vmax.f32 %v5159, %v5258
        %v5385 = vmax.f32 %v5160, %v5260
        %v5386 = vmax.f32 %v5161, %v5262
        %v5387 = vmax.f32 %v5162, %v5264
        %v5388 = vmax.f32 %v5163, %v5266
        %v5389 = vmax.f32 %v5164, %v5268
        %v5390 = vmax.f32 %v5165, %v5270
        %v5391 = vmax.f32 %v5166, %v5272
        %v5392 = vmax.f32 %v5167, %v5274
        %v5393 = vmax.f32 %v5168, %v5276
        %v5394 = vmax.f32 %v5169, %v5278
        %v5395 = vmax.f32 %v5170, %v5280
        %v5396 = vmax.f32 %v5171, %v5282
        %v5397 = vmax.f32 %v5172, %v5284
        %v5398 = vmax.f32 %v5173, %v5286
        %v5399 = vmax.f32 %v5174, %v5288
        %v5400 = vmax.f32 %v5175, %v5290
        %v5401 = vmax.f32 %v5176, %v5292
        %v5402 = vmax.f32 %v5177, %v5294
        %v5403 = vmax.f32 %v5178, %v5296
        %v5404 = vmax.f32 %v5179, %v5298
        %v5405 = vmax.f32 %v5180, %v5300
        %v5406 = vmax.f32 %v5181, %v5302
        %v5407 = vmax.f32 %v5182, %v5304
        %v5408 = vmax.f32 %v5183, %v5306
        %v5409 = vmax.f32 %v5184, %v5308
        %v5410 = vmax.f32 %v5185, %v5310
        %v5411 = vmax.f32 %v5186, %v5312
        %v5412 = vmax.f32 %v5187, %v5314
        %v5413 = vmax.f32 %v5188, %v5316
        %v5414 = vmax.f32 %v5189, %v5318
        %v5415 = vmax.f32 %v5190, %v5320
        %v5416 = vmax.f32 %v5191, %v5322
        %v5417 = vmax.f32 %v5192, %v5324
        %v5418 = vmax.f32 %v5193, %v5326
        %v5419 = vmax.f32 %v5194, %v5328
        %v5420 = vmax.f32 %v5195, %v5330
        %vm5421 = vcmask 130048
        %5422 = vst.msk [vmem:[#allocation3] sm:$0xff] %vm5421, %v5376
        %5423 = vst.msk [vmem:[#allocation3 + $0x8] sm:$0xff] %vm5421, %v5377
        %5424 = vst.msk [vmem:[#allocation3 + $0x10] sm:$0xff] %vm5421, %v5378
        %5425 = vst.msk [vmem:[#allocation3 + $0x18] sm:$0xff] %vm5421, %v5379
        %5426 = vst.msk [vmem:[#allocation3 + $0x20] sm:$0xff] %vm5421, %v5380
        %5427 = vst.msk [vmem:[#allocation3 + $0x28] sm:$0xff] %vm5421, %v5381
        %5428 = vst.msk [vmem:[#allocation3 + $0x30] sm:$0xff] %vm5421, %v5382
        %5429 = vst.msk [vmem:[#allocation3 + $0x38] sm:$0xff] %vm5421, %v5383
        %5430 = vst.msk [vmem:[#allocation3 + $0x40] sm:$0xff] %vm5421, %v5384
        %5431 = vst.msk [vmem:[#allocation3 + $0x48] sm:$0xff] %vm5421, %v5385
        %5432 = vst.msk [vmem:[#allocation3 + $0x50] sm:$0xff] %vm5421, %v5386
        %5433 = vst.msk [vmem:[#allocation3 + $0x58] sm:$0xff] %vm5421, %v5387
        %5434 = vst.msk [vmem:[#allocation3 + $0x60] sm:$0xff] %vm5421, %v5388
        %5435 = vst.msk [vmem:[#allocation3 + $0x68] sm:$0xff] %vm5421, %v5389
        %5436 = vst.msk [vmem:[#allocation3 + $0x70] sm:$0xff] %vm5421, %v5390
        %5437 = vst.msk [vmem:[#allocation3 + $0x78] sm:$0xff] %vm5421, %v5391
        %5438 = vst.msk [vmem:[#allocation3 + $0x80] sm:$0xff] %vm5421, %v5392
        %5439 = vst.msk [vmem:[#allocation3 + $0x88] sm:$0xff] %vm5421, %v5393
        %5440 = vst.msk [vmem:[#allocation3 + $0x90] sm:$0xff] %vm5421, %v5394
        %5441 = vst.msk [vmem:[#allocation3 + $0x98] sm:$0xff] %vm5421, %v5395
        %5442 = vst.msk [vmem:[#allocation3 + $0xa0] sm:$0xff] %vm5421, %v5396
        %5443 = vst.msk [vmem:[#allocation3 + $0xa8] sm:$0xff] %vm5421, %v5397
        %5444 = vst.msk [vmem:[#allocation3 + $0xb0] sm:$0xff] %vm5421, %v5398
        %5445 = vst.msk [vmem:[#allocation3 + $0xb8] sm:$0xff] %vm5421, %v5399
        %5446 = vst.msk [vmem:[#allocation3 + $0xc0] sm:$0xff] %vm5421, %v5400
        %5447 = vst.msk [vmem:[#allocation3 + $0xc8] sm:$0xff] %vm5421, %v5401
        %5448 = vst.msk [vmem:[#allocation3 + $0xd0] sm:$0xff] %vm5421, %v5402
        %5449 = vst.msk [vmem:[#allocation3 + $0xd8] sm:$0xff] %vm5421, %v5403
        %5450 = vst.msk [vmem:[#allocation3 + $0xe0] sm:$0xff] %vm5421, %v5404
        %5451 = vst.msk [vmem:[#allocation3 + $0xe8] sm:$0xff] %vm5421, %v5405
        %5452 = vst.msk [vmem:[#allocation3 + $0xf0] sm:$0xff] %vm5421, %v5406
        %5453 = vst.msk [vmem:[#allocation3 + $0xf8] sm:$0xff] %vm5421, %v5407
        %5454 = vst.msk [vmem:[#allocation3 + $0x100] sm:$0xff] %vm5421, %v5408
        %5455 = vst.msk [vmem:[#allocation3 + $0x108] sm:$0xff] %vm5421, %v5409
        %5456 = vst.msk [vmem:[#allocation3 + $0x110] sm:$0xff] %vm5421, %v5410
        %5457 = vst.msk [vmem:[#allocation3 + $0x118] sm:$0xff] %vm5421, %v5411
        %5458 = vst.msk [vmem:[#allocation3 + $0x120] sm:$0xff] %vm5421, %v5412
        %5459 = vst.msk [vmem:[#allocation3 + $0x128] sm:$0xff] %vm5421, %v5413
        %5460 = vst.msk [vmem:[#allocation3 + $0x130] sm:$0xff] %vm5421, %v5414
        %5461 = vst.msk [vmem:[#allocation3 + $0x138] sm:$0xff] %vm5421, %v5415
        %5462 = vst.msk [vmem:[#allocation3 + $0x140] sm:$0xff] %vm5421, %v5416
        %5463 = vst.msk [vmem:[#allocation3 + $0x148] sm:$0xff] %vm5421, %v5417
        %5464 = vst.msk [vmem:[#allocation3 + $0x150] sm:$0xff] %vm5421, %v5418
        %5465 = vst.msk [vmem:[#allocation3 + $0x158] sm:$0xff] %vm5421, %v5419
        %5466 = vst.msk [vmem:[#allocation3 + $0x160] sm:$0xff] %vm5421, %v5420
        %v5467 = vld [vmem:[#allocation3] ss:$2 sm:$0xff]
        %s5468 = scalar_lea.vmem [#allocation3], 16
        %v5469 = vld [vmem:[%s5468] ss:$2 sm:$0x1]
        %5470 = vst.msk [vmem:[#allocation4] sm:$0xff] %vm5421, %v5467
        %vm5471 = vcmask 122880
        %5472 = vst.msk [vmem:[#allocation4 + $0x8] sm:$0x1] %vm5471, %v5469
        %s5473 = scalar_lea.vmem [#allocation3], 1
        %v5474 = vld [vmem:[%s5473] ss:$2 sm:$0xff]
        %s5475 = scalar_lea.vmem [#allocation3], 17
        %v5476 = vld [vmem:[%s5475] ss:$2 sm:$0x1]
        %5479 = vrot.lane.b32.xlu0 %v5474, 16
        %v5480 = vpop.permute.xlu0 %5479
        %5481 = vrot.lane.b32.xlu0 %v5476, 16
        %v5482 = vpop.permute.xlu0 %5481
        %vm5485 = vcmask 261248
        %5486 = vst.msk [vmem:[#allocation4] sm:$0xff] %vm5485, %v5480
        %vm5487 = vcmask 254080
        %5488 = vst.msk [vmem:[#allocation4 + $0x8] sm:$0x1] %vm5487, %v5482
        %s5489 = scalar_lea.vmem [#allocation3], 20
        %v5490 = vld [vmem:[%s5489] ss:$2 sm:$0xff]
        %s5491 = scalar_lea.vmem [#allocation3], 36
        %v5492 = vld [vmem:[%s5491] ss:$2 sm:$0x1]
        %5495 = vrot.lane.b32.xlu0 %v5490, 32
        %v5496 = vpop.permute.xlu0 %5495
        %5497 = vrot.lane.b32.xlu0 %v5492, 32
        %v5498 = vpop.permute.xlu0 %5497
        %vm5501 = vcmask 392448
        %5502 = vst.msk [vmem:[#allocation4] sm:$0xff] %vm5501, %v5496
        %vm5503 = vcmask 385280
        %5504 = vst.msk [vmem:[#allocation4 + $0x8] sm:$0x1] %vm5503, %v5498
        %s5505 = scalar_lea.vmem [#allocation3], 21
        %v5506 = vld [vmem:[%s5505] ss:$2 sm:$0xff]
        %s5507 = scalar_lea.vmem [#allocation3], 37
        %v5508 = vld [vmem:[%s5507] ss:$2 sm:$0x1]
        %5511 = vrot.lane.b32.xlu0 %v5506, 48
        %v5512 = vpop.permute.xlu0 %5511
        %5513 = vrot.lane.b32.xlu0 %v5508, 48
        %v5514 = vpop.permute.xlu0 %5513
        %vm5517 = vcmask 523648
        %5518 = vst.msk [vmem:[#allocation4] sm:$0xff] %vm5517, %v5512
        %vm5519 = vcmask 516480
        %5520 = vst.msk [vmem:[#allocation4 + $0x8] sm:$0x1] %vm5519, %v5514
        %s5521 = scalar_lea.vmem [#allocation3], 40
        %v5522 = vld [vmem:[%s5521] ss:$2 sm:$0xff]
        %s5523 = scalar_lea.vmem [#allocation3], 56
        %v5524 = vld [vmem:[%s5523] ss:$2 sm:$0x1]
        %5525 = vst.msk [vmem:[#allocation4 + $0x9] sm:$0xff] %vm5421, %v5522
        %5526 = vst.msk [vmem:[#allocation4 + $0x11] sm:$0x1] %vm5471, %v5524
        %s5527 = scalar_lea.vmem [#allocation3], 41
        %v5528 = vld [vmem:[%s5527] ss:$2 sm:$0xff]
        %s5529 = scalar_lea.vmem [#allocation3], 57
        %v5530 = vld [vmem:[%s5529] ss:$2 sm:$0x1]
        %5533 = vrot.lane.b32.xlu0 %v5528, 16
        %v5534 = vpop.permute.xlu0 %5533
        %5535 = vrot.lane.b32.xlu0 %v5530, 16
        %v5536 = vpop.permute.xlu0 %5535
        %5539 = vst.msk [vmem:[#allocation4 + $0x9] sm:$0xff] %vm5485, %v5534
        %5540 = vst.msk [vmem:[#allocation4 + $0x11] sm:$0x1] %vm5487, %v5536
        %s5541 = scalar_lea.vmem [#allocation3], 60
        %v5542 = vld [vmem:[%s5541] ss:$2 sm:$0xff]
        %s5543 = scalar_lea.vmem [#allocation3], 76
        %v5544 = vld [vmem:[%s5543] ss:$2 sm:$0x1]
        %5547 = vrot.lane.b32.xlu0 %v5542, 32
        %v5548 = vpop.permute.xlu0 %5547
        %5549 = vrot.lane.b32.xlu0 %v5544, 32
        %v5550 = vpop.permute.xlu0 %5549
        %5553 = vst.msk [vmem:[#allocation4 + $0x9] sm:$0xff] %vm5501, %v5548
        %5554 = vst.msk [vmem:[#allocation4 + $0x11] sm:$0x1] %vm5503, %v5550
        %s5555 = scalar_lea.vmem [#allocation3], 61
        %v5556 = vld [vmem:[%s5555] ss:$2 sm:$0xff]
        %s5557 = scalar_lea.vmem [#allocation3], 77
        %v5558 = vld [vmem:[%s5557] ss:$2 sm:$0x1]
        %5561 = vrot.lane.b32.xlu0 %v5556, 48
        %v5562 = vpop.permute.xlu0 %5561
        %5563 = vrot.lane.b32.xlu0 %v5558, 48
        %v5564 = vpop.permute.xlu0 %5563
        %5567 = vst.msk [vmem:[#allocation4 + $0x9] sm:$0xff] %vm5517, %v5562
        %5568 = vst.msk [vmem:[#allocation4 + $0x11] sm:$0x1] %vm5519, %v5564
        %s5569 = scalar_lea.vmem [#allocation3], 80
        %v5570 = vld [vmem:[%s5569] ss:$2 sm:$0xff]
        %s5571 = scalar_lea.vmem [#allocation3], 96
        %v5572 = vld [vmem:[%s5571] ss:$2 sm:$0x1]
        %5573 = vst.msk [vmem:[#allocation4 + $0x12] sm:$0xff] %vm5421, %v5570
        %5574 = vst.msk [vmem:[#allocation4 + $0x1a] sm:$0x1] %vm5471, %v5572
        %s5575 = scalar_lea.vmem [#allocation3], 81
        %v5576 = vld [vmem:[%s5575] ss:$2 sm:$0xff]
        %s5577 = scalar_lea.vmem [#allocation3], 97
        %v5578 = vld [vmem:[%s5577] ss:$2 sm:$0x1]
        %5581 = vrot.lane.b32.xlu0 %v5576, 16
        %v5582 = vpop.permute.xlu0 %5581
        %5583 = vrot.lane.b32.xlu0 %v5578, 16
        %v5584 = vpop.permute.xlu0 %5583
        %5587 = vst.msk [vmem:[#allocation4 + $0x12] sm:$0xff] %vm5485, %v5582
        %5588 = vst.msk [vmem:[#allocation4 + $0x1a] sm:$0x1] %vm5487, %v5584
        %s5589 = scalar_lea.vmem [#allocation3], 100
        %v5590 = vld [vmem:[%s5589] ss:$2 sm:$0xff]
        %s5591 = scalar_lea.vmem [#allocation3], 116
        %v5592 = vld [vmem:[%s5591] ss:$2 sm:$0x1]
        %5595 = vrot.lane.b32.xlu0 %v5590, 32
        %v5596 = vpop.permute.xlu0 %5595
        %5597 = vrot.lane.b32.xlu0 %v5592, 32
        %v5598 = vpop.permute.xlu0 %5597
        %5601 = vst.msk [vmem:[#allocation4 + $0x12] sm:$0xff] %vm5501, %v5596
        %5602 = vst.msk [vmem:[#allocation4 + $0x1a] sm:$0x1] %vm5503, %v5598
        %s5603 = scalar_lea.vmem [#allocation3], 101
        %v5604 = vld [vmem:[%s5603] ss:$2 sm:$0xff]
        %s5605 = scalar_lea.vmem [#allocation3], 117
        %v5606 = vld [vmem:[%s5605] ss:$2 sm:$0x1]
        %5609 = vrot.lane.b32.xlu0 %v5604, 48
        %v5610 = vpop.permute.xlu0 %5609
        %5611 = vrot.lane.b32.xlu0 %v5606, 48
        %v5612 = vpop.permute.xlu0 %5611
        %5615 = vst.msk [vmem:[#allocation4 + $0x12] sm:$0xff] %vm5517, %v5610
        %5616 = vst.msk [vmem:[#allocation4 + $0x1a] sm:$0x1] %vm5519, %v5612
        %s5617 = scalar_lea.vmem [#allocation3], 120
        %v5618 = vld [vmem:[%s5617] ss:$2 sm:$0xff]
        %s5619 = scalar_lea.vmem [#allocation3], 136
        %v5620 = vld [vmem:[%s5619] ss:$2 sm:$0x1]
        %5621 = vst.msk [vmem:[#allocation4 + $0x1b] sm:$0xff] %vm5421, %v5618
        %5622 = vst.msk [vmem:[#allocation4 + $0x23] sm:$0x1] %vm5471, %v5620
        %s5623 = scalar_lea.vmem [#allocation3], 121
        %v5624 = vld [vmem:[%s5623] ss:$2 sm:$0xff]
        %s5625 = scalar_lea.vmem [#allocation3], 137
        %v5626 = vld [vmem:[%s5625] ss:$2 sm:$0x1]
        %5629 = vrot.lane.b32.xlu0 %v5624, 16
        %v5630 = vpop.permute.xlu0 %5629
        %5631 = vrot.lane.b32.xlu0 %v5626, 16
        %v5632 = vpop.permute.xlu0 %5631
        %5635 = vst.msk [vmem:[#allocation4 + $0x1b] sm:$0xff] %vm5485, %v5630
        %5636 = vst.msk [vmem:[#allocation4 + $0x23] sm:$0x1] %vm5487, %v5632
        %s5637 = scalar_lea.vmem [#allocation3], 140
        %v5638 = vld [vmem:[%s5637] ss:$2 sm:$0xff]
        %s5639 = scalar_lea.vmem [#allocation3], 156
        %v5640 = vld [vmem:[%s5639] ss:$2 sm:$0x1]
        %5643 = vrot.lane.b32.xlu0 %v5638, 32
        %v5644 = vpop.permute.xlu0 %5643
        %5645 = vrot.lane.b32.xlu0 %v5640, 32
        %v5646 = vpop.permute.xlu0 %5645
        %5649 = vst.msk [vmem:[#allocation4 + $0x1b] sm:$0xff] %vm5501, %v5644
        %5650 = vst.msk [vmem:[#allocation4 + $0x23] sm:$0x1] %vm5503, %v5646
        %s5651 = scalar_lea.vmem [#allocation3], 141
        %v5652 = vld [vmem:[%s5651] ss:$2 sm:$0xff]
        %s5653 = scalar_lea.vmem [#allocation3], 157
        %v5654 = vld [vmem:[%s5653] ss:$2 sm:$0x1]
        %5657 = vrot.lane.b32.xlu0 %v5652, 48
        %v5658 = vpop.permute.xlu0 %5657
        %5659 = vrot.lane.b32.xlu0 %v5654, 48
        %v5660 = vpop.permute.xlu0 %5659
        %5663 = vst.msk [vmem:[#allocation4 + $0x1b] sm:$0xff] %vm5517, %v5658
        %5664 = vst.msk [vmem:[#allocation4 + $0x23] sm:$0x1] %vm5519, %v5660
        %s5665 = scalar_lea.vmem [#allocation3], 160
        %v5666 = vld [vmem:[%s5665] ss:$2 sm:$0xff]
        %s5667 = scalar_lea.vmem [#allocation3], 176
        %v5668 = vld [vmem:[%s5667] ss:$2 sm:$0x1]
        %5669 = vst.msk [vmem:[#allocation4 + $0x24] sm:$0xff] %vm5421, %v5666
        %5670 = vst.msk [vmem:[#allocation4 + $0x2c] sm:$0x1] %vm5471, %v5668
        %s5671 = scalar_lea.vmem [#allocation3], 161
        %v5672 = vld [vmem:[%s5671] ss:$2 sm:$0xff]
        %s5673 = scalar_lea.vmem [#allocation3], 177
        %v5674 = vld [vmem:[%s5673] ss:$2 sm:$0x1]
        %5677 = vrot.lane.b32.xlu0 %v5672, 16
        %v5678 = vpop.permute.xlu0 %5677
        %5679 = vrot.lane.b32.xlu0 %v5674, 16
        %v5680 = vpop.permute.xlu0 %5679
        %5683 = vst.msk [vmem:[#allocation4 + $0x24] sm:$0xff] %vm5485, %v5678
        %5684 = vst.msk [vmem:[#allocation4 + $0x2c] sm:$0x1] %vm5487, %v5680
        %s5685 = scalar_lea.vmem [#allocation3], 180
        %v5686 = vld [vmem:[%s5685] ss:$2 sm:$0xff]
        %s5687 = scalar_lea.vmem [#allocation3], 196
        %v5688 = vld [vmem:[%s5687] ss:$2 sm:$0x1]
        %5691 = vrot.lane.b32.xlu0 %v5686, 32
        %v5692 = vpop.permute.xlu0 %5691
        %5693 = vrot.lane.b32.xlu0 %v5688, 32
        %v5694 = vpop.permute.xlu0 %5693
        %5697 = vst.msk [vmem:[#allocation4 + $0x24] sm:$0xff] %vm5501, %v5692
        %5698 = vst.msk [vmem:[#allocation4 + $0x2c] sm:$0x1] %vm5503, %v5694
        %s5699 = scalar_lea.vmem [#allocation3], 181
        %v5700 = vld [vmem:[%s5699] ss:$2 sm:$0xff]
        %s5701 = scalar_lea.vmem [#allocation3], 197
        %v5702 = vld [vmem:[%s5701] ss:$2 sm:$0x1]
        %5705 = vrot.lane.b32.xlu0 %v5700, 48
        %v5706 = vpop.permute.xlu0 %5705
        %5707 = vrot.lane.b32.xlu0 %v5702, 48
        %v5708 = vpop.permute.xlu0 %5707
        %5711 = vst.msk [vmem:[#allocation4 + $0x24] sm:$0xff] %vm5517, %v5706
        %5712 = vst.msk [vmem:[#allocation4 + $0x2c] sm:$0x1] %vm5519, %v5708
        %s5713 = scalar_lea.vmem [#allocation3], 200
        %v5714 = vld [vmem:[%s5713] ss:$2 sm:$0xff]
        %s5715 = scalar_lea.vmem [#allocation3], 216
        %v5716 = vld [vmem:[%s5715] ss:$2 sm:$0x1]
        %5717 = vst.msk [vmem:[#allocation4 + $0x2d] sm:$0xff] %vm5421, %v5714
        %5718 = vst.msk [vmem:[#allocation4 + $0x35] sm:$0x1] %vm5471, %v5716
        %s5719 = scalar_lea.vmem [#allocation3], 201
        %v5720 = vld [vmem:[%s5719] ss:$2 sm:$0xff]
        %s5721 = scalar_lea.vmem [#allocation3], 217
        %v5722 = vld [vmem:[%s5721] ss:$2 sm:$0x1]
        %5725 = vrot.lane.b32.xlu0 %v5720, 16
        %v5726 = vpop.permute.xlu0 %5725
        %5727 = vrot.lane.b32.xlu0 %v5722, 16
        %v5728 = vpop.permute.xlu0 %5727
        %5731 = vst.msk [vmem:[#allocation4 + $0x2d] sm:$0xff] %vm5485, %v5726
        %5732 = vst.msk [vmem:[#allocation4 + $0x35] sm:$0x1] %vm5487, %v5728
        %s5733 = scalar_lea.vmem [#allocation3], 220
        %v5734 = vld [vmem:[%s5733] ss:$2 sm:$0xff]
        %s5735 = scalar_lea.vmem [#allocation3], 236
        %v5736 = vld [vmem:[%s5735] ss:$2 sm:$0x1]
        %5739 = vrot.lane.b32.xlu0 %v5734, 32
        %v5740 = vpop.permute.xlu0 %5739
        %5741 = vrot.lane.b32.xlu0 %v5736, 32
        %v5742 = vpop.permute.xlu0 %5741
        %5745 = vst.msk [vmem:[#allocation4 + $0x2d] sm:$0xff] %vm5501, %v5740
        %5746 = vst.msk [vmem:[#allocation4 + $0x35] sm:$0x1] %vm5503, %v5742
        %s5747 = scalar_lea.vmem [#allocation3], 221
        %v5748 = vld [vmem:[%s5747] ss:$2 sm:$0xff]
        %s5749 = scalar_lea.vmem [#allocation3], 237
        %v5750 = vld [vmem:[%s5749] ss:$2 sm:$0x1]
        %5753 = vrot.lane.b32.xlu0 %v5748, 48
        %v5754 = vpop.permute.xlu0 %5753
        %5755 = vrot.lane.b32.xlu0 %v5750, 48
        %v5756 = vpop.permute.xlu0 %5755
        %5759 = vst.msk [vmem:[#allocation4 + $0x2d] sm:$0xff] %vm5517, %v5754
        %5760 = vst.msk [vmem:[#allocation4 + $0x35] sm:$0x1] %vm5519, %v5756
        %s5761 = scalar_lea.vmem [#allocation3], 240
        %v5762 = vld [vmem:[%s5761] ss:$2 sm:$0xff]
        %s5763 = scalar_lea.vmem [#allocation3], 256
        %v5764 = vld [vmem:[%s5763] ss:$2 sm:$0x1]
        %5765 = vst.msk [vmem:[#allocation4 + $0x36] sm:$0xff] %vm5421, %v5762
        %5766 = vst.msk [vmem:[#allocation4 + $0x3e] sm:$0x1] %vm5471, %v5764
        %s5767 = scalar_lea.vmem [#allocation3], 241
        %v5768 = vld [vmem:[%s5767] ss:$2 sm:$0xff]
        %s5769 = scalar_lea.vmem [#allocation3], 257
        %v5770 = vld [vmem:[%s5769] ss:$2 sm:$0x1]
        %5773 = vrot.lane.b32.xlu0 %v5768, 16
        %v5774 = vpop.permute.xlu0 %5773
        %5775 = vrot.lane.b32.xlu0 %v5770, 16
        %v5776 = vpop.permute.xlu0 %5775
        %5779 = vst.msk [vmem:[#allocation4 + $0x36] sm:$0xff] %vm5485, %v5774
        %5780 = vst.msk [vmem:[#allocation4 + $0x3e] sm:$0x1] %vm5487, %v5776
        %s5781 = scalar_lea.vmem [#allocation3], 260
        %v5782 = vld [vmem:[%s5781] ss:$2 sm:$0xff]
        %s5783 = scalar_lea.vmem [#allocation3], 276
        %v5784 = vld [vmem:[%s5783] ss:$2 sm:$0x1]
        %5787 = vrot.lane.b32.xlu0 %v5782, 32
        %v5788 = vpop.permute.xlu0 %5787
        %5789 = vrot.lane.b32.xlu0 %v5784, 32
        %v5790 = vpop.permute.xlu0 %5789
        %5793 = vst.msk [vmem:[#allocation4 + $0x36] sm:$0xff] %vm5501, %v5788
        %5794 = vst.msk [vmem:[#allocation4 + $0x3e] sm:$0x1] %vm5503, %v5790
        %s5795 = scalar_lea.vmem [#allocation3], 261
        %v5796 = vld [vmem:[%s5795] ss:$2 sm:$0xff]
        %s5797 = scalar_lea.vmem [#allocation3], 277
        %v5798 = vld [vmem:[%s5797] ss:$2 sm:$0x1]
        %5801 = vrot.lane.b32.xlu0 %v5796, 48
        %v5802 = vpop.permute.xlu0 %5801
        %5803 = vrot.lane.b32.xlu0 %v5798, 48
        %v5804 = vpop.permute.xlu0 %5803
        %5807 = vst.msk [vmem:[#allocation4 + $0x36] sm:$0xff] %vm5517, %v5802
        %5808 = vst.msk [vmem:[#allocation4 + $0x3e] sm:$0x1] %vm5519, %v5804
        %s5809 = scalar_lea.vmem [#allocation3], 280
        %v5810 = vld [vmem:[%s5809] ss:$2 sm:$0xff]
        %s5811 = scalar_lea.vmem [#allocation3], 296
        %v5812 = vld [vmem:[%s5811] ss:$2 sm:$0x1]
        %5813 = vst.msk [vmem:[#allocation4 + $0x3f] sm:$0xff] %vm5421, %v5810
        %5814 = vst.msk [vmem:[#allocation4 + $0x47] sm:$0x1] %vm5471, %v5812
        %s5815 = scalar_lea.vmem [#allocation3], 281
        %v5816 = vld [vmem:[%s5815] ss:$2 sm:$0xff]
        %s5817 = scalar_lea.vmem [#allocation3], 297
        %v5818 = vld [vmem:[%s5817] ss:$2 sm:$0x1]
        %5821 = vrot.lane.b32.xlu0 %v5816, 16
        %v5822 = vpop.permute.xlu0 %5821
        %5823 = vrot.lane.b32.xlu0 %v5818, 16
        %v5824 = vpop.permute.xlu0 %5823
        %5827 = vst.msk [vmem:[#allocation4 + $0x3f] sm:$0xff] %vm5485, %v5822
        %5828 = vst.msk [vmem:[#allocation4 + $0x47] sm:$0x1] %vm5487, %v5824
        %s5829 = scalar_lea.vmem [#allocation3], 300
        %v5830 = vld [vmem:[%s5829] ss:$2 sm:$0xff]
        %s5831 = scalar_lea.vmem [#allocation3], 316
        %v5832 = vld [vmem:[%s5831] ss:$2 sm:$0x1]
        %5835 = vrot.lane.b32.xlu0 %v5830, 32
        %v5836 = vpop.permute.xlu0 %5835
        %5837 = vrot.lane.b32.xlu0 %v5832, 32
        %v5838 = vpop.permute.xlu0 %5837
        %5841 = vst.msk [vmem:[#allocation4 + $0x3f] sm:$0xff] %vm5501, %v5836
        %5842 = vst.msk [vmem:[#allocation4 + $0x47] sm:$0x1] %vm5503, %v5838
        %s5843 = scalar_lea.vmem [#allocation3], 301
        %v5844 = vld [vmem:[%s5843] ss:$2 sm:$0xff]
        %s5845 = scalar_lea.vmem [#allocation3], 317
        %v5846 = vld [vmem:[%s5845] ss:$2 sm:$0x1]
        %5849 = vrot.lane.b32.xlu0 %v5844, 48
        %v5850 = vpop.permute.xlu0 %5849
        %5851 = vrot.lane.b32.xlu0 %v5846, 48
        %v5852 = vpop.permute.xlu0 %5851
        %5855 = vst.msk [vmem:[#allocation4 + $0x3f] sm:$0xff] %vm5517, %v5850
        %5856 = vst.msk [vmem:[#allocation4 + $0x47] sm:$0x1] %vm5519, %v5852
        %s5857 = scalar_lea.vmem [#allocation3], 320
        %v5858 = vld [vmem:[%s5857] ss:$2 sm:$0xff]
        %s5859 = scalar_lea.vmem [#allocation3], 336
        %v5860 = vld [vmem:[%s5859] ss:$2 sm:$0x1]
        %5861 = vst.msk [vmem:[#allocation4 + $0x48] sm:$0xff] %vm5421, %v5858
        %5862 = vst.msk [vmem:[#allocation4 + $0x50] sm:$0x1] %vm5471, %v5860
        %s5863 = scalar_lea.vmem [#allocation3], 321
        %v5864 = vld [vmem:[%s5863] ss:$2 sm:$0xff]
        %s5865 = scalar_lea.vmem [#allocation3], 337
        %v5866 = vld [vmem:[%s5865] ss:$2 sm:$0x1]
        %5869 = vrot.lane.b32.xlu0 %v5864, 16
        %v5870 = vpop.permute.xlu0 %5869
        %5871 = vrot.lane.b32.xlu0 %v5866, 16
        %v5872 = vpop.permute.xlu0 %5871
        %5875 = vst.msk [vmem:[#allocation4 + $0x48] sm:$0xff] %vm5485, %v5870
        %5876 = vst.msk [vmem:[#allocation4 + $0x50] sm:$0x1] %vm5487, %v5872
        %s5877 = scalar_lea.vmem [#allocation3], 340
        %v5878 = vld [vmem:[%s5877] ss:$2 sm:$0xff]
        %s5879 = scalar_lea.vmem [#allocation3], 356
        %v5880 = vld [vmem:[%s5879] ss:$2 sm:$0x1]
        %5883 = vrot.lane.b32.xlu0 %v5878, 32
        %v5884 = vpop.permute.xlu0 %5883
        %5885 = vrot.lane.b32.xlu0 %v5880, 32
        %v5886 = vpop.permute.xlu0 %5885
        %5889 = vst.msk [vmem:[#allocation4 + $0x48] sm:$0xff] %vm5501, %v5884
        %5890 = vst.msk [vmem:[#allocation4 + $0x50] sm:$0x1] %vm5503, %v5886
        %s5891 = scalar_lea.vmem [#allocation3], 341
        %v5892 = vld [vmem:[%s5891] ss:$2 sm:$0xff]
        %s5893 = scalar_lea.vmem [#allocation3], 357
        %v5894 = vld [vmem:[%s5893] ss:$2 sm:$0x1]
        %5897 = vrot.lane.b32.xlu0 %v5892, 48
        %v5898 = vpop.permute.xlu0 %5897
        %5899 = vrot.lane.b32.xlu0 %v5894, 48
        %v5900 = vpop.permute.xlu0 %5899
        %5903 = vst.msk [vmem:[#allocation4 + $0x48] sm:$0xff] %vm5517, %v5898
        %5904 = vst.msk [vmem:[#allocation4 + $0x50] sm:$0x1] %vm5519, %v5900
        %v5905 = vld [vmem:[#allocation4] sm:$0xff]
        %v5906 = vld [vmem:[#allocation4 + $0x8] sm:$0xff]
        %v5907 = vld [vmem:[#allocation4 + $0x10] sm:$0xff]
        %v5908 = vld [vmem:[#allocation4 + $0x18] sm:$0xff]
        %v5909 = vld [vmem:[#allocation4 + $0x20] sm:$0xff]
        %v5910 = vld [vmem:[#allocation4 + $0x28] sm:$0xff]
        %v5911 = vld [vmem:[#allocation4 + $0x30] sm:$0xff]
        %v5912 = vld [vmem:[#allocation4 + $0x38] sm:$0xff]
        %v5913 = vld [vmem:[#allocation4 + $0x40] sm:$0xff]
        %v5914 = vld [vmem:[%s5] sm:$0xff]
        %v5915 = vld [vmem:[%s5 + $0x8] sm:$0xff]
        %v5916 = vld [vmem:[%s5 + $0x10] sm:$0xff]
        %v5917 = vld [vmem:[%s5 + $0x18] sm:$0xff]
        %v5918 = vld [vmem:[%s5 + $0x20] sm:$0xff]
        %v5919 = vld [vmem:[%s5 + $0x28] sm:$0xff]
        %v5920 = vld [vmem:[%s5 + $0x30] sm:$0xff]
        %v5921 = vld [vmem:[%s5 + $0x38] sm:$0xff]
        %v5922 = vld [vmem:[#allocation4 + $0x1] sm:$0xff]
        %v5923 = vld [vmem:[#allocation4 + $0x9] sm:$0xff]
        %v5924 = vld [vmem:[#allocation4 + $0x11] sm:$0xff]
        %v5925 = vld [vmem:[#allocation4 + $0x19] sm:$0xff]
        %v5926 = vld [vmem:[#allocation4 + $0x21] sm:$0xff]
        %v5927 = vld [vmem:[#allocation4 + $0x29] sm:$0xff]
        %v5928 = vld [vmem:[#allocation4 + $0x31] sm:$0xff]
        %v5929 = vld [vmem:[#allocation4 + $0x39] sm:$0xff]
        %v5930 = vld [vmem:[#allocation4 + $0x41] sm:$0xff]
        %v5931 = vld [vmem:[%s5 + $0x40] sm:$0xff]
        %v5932 = vld [vmem:[%s5 + $0x48] sm:$0xff]
        %v5933 = vld [vmem:[%s5 + $0x50] sm:$0xff]
        %v5934 = vld [vmem:[%s5 + $0x58] sm:$0xff]
        %v5935 = vld [vmem:[%s5 + $0x60] sm:$0xff]
        %v5936 = vld [vmem:[%s5 + $0x68] sm:$0xff]
        %v5937 = vld [vmem:[%s5 + $0x70] sm:$0xff]
        %v5938 = vld [vmem:[%s5 + $0x78] sm:$0xff]
        %v5940 = vsel %vm544, %v5922, 0
        %v5943 = vsel %vm544, %v5923, 0
        %v5946 = vsel %vm544, %v5924, 0
        %v5949 = vsel %vm544, %v5925, 0
        %v5952 = vsel %vm544, %v5926, 0
        %v5955 = vsel %vm544, %v5927, 0
        %v5958 = vsel %vm544, %v5928, 0
        %v5961 = vsel %vm544, %v5929, 0
        %v5964 = vsel %vm544, %v5930, 0
        %5966 = vmatpush.msra.mxu0 0.0
        %5967 = vmatpush.msra.mxu0 0.0
        %5968 = vmatpush.msra.mxu0 0.0
        %5969 = vmatpush.msra.mxu0 0.0
        %5970 = vmatpush.msra.mxu0 0.0
        %5971 = vmatpush.msra.mxu0 0.0
        %5972 = vmatpush.msra.mxu0 0.0
        %5973 = vmatpush.msra.mxu0 0.0
        %5974 = vmatpush.msra.mxu0 %v5938
        %5975 = vmatpush.msra.mxu0 %v5937
        %5976 = vmatpush.msra.mxu0 %v5936
        %5977 = vmatpush.msra.mxu0 %v5935
        %5978 = vmatpush.msra.mxu0 %v5934
        %5979 = vmatpush.msra.mxu0 %v5933
        %5980 = vmatpush.msra.mxu0 %v5932
        %5981 = vmatpush.msra.mxu0 %v5931
        %5982 = vmatmul.f32.gmra.mxu0 %v5940
        %v5983 = vpop.f32.mrf.mxu0
        %v5984 = vadd.f32 0.0, %v5983
        %5985 = vmatmul.f32.gmra.mxu0 %v5943
        %v5986 = vpop.f32.mrf.mxu0
        %v5987 = vadd.f32 0.0, %v5986
        %5988 = vmatmul.f32.gmra.mxu0 %v5946
        %v5989 = vpop.f32.mrf.mxu0
        %v5990 = vadd.f32 0.0, %v5989
        %5991 = vmatmul.f32.gmra.mxu0 %v5949
        %v5992 = vpop.f32.mrf.mxu0
        %v5993 = vadd.f32 0.0, %v5992
        %5994 = vmatmul.f32.gmra.mxu0 %v5952
        %v5995 = vpop.f32.mrf.mxu0
        %v5996 = vadd.f32 0.0, %v5995
        %5997 = vmatmul.f32.gmra.mxu0 %v5955
        %v5998 = vpop.f32.mrf.mxu0
        %v5999 = vadd.f32 0.0, %v5998
        %6000 = vmatmul.f32.gmra.mxu0 %v5958
        %v6001 = vpop.f32.mrf.mxu0
        %v6002 = vadd.f32 0.0, %v6001
        %6003 = vmatmul.f32.gmra.mxu0 %v5961
        %v6004 = vpop.f32.mrf.mxu0
        %v6005 = vadd.f32 0.0, %v6004
        %6006 = vmatmul.f32.gmra.mxu0 %v5964
        %v6007 = vpop.f32.mrf.mxu0
        %v6008 = vadd.f32 0.0, %v6007
        %6009 = vdwg.mxu0
        %v6011 = vsel %vm544, %v5905, 0
        %v6014 = vsel %vm544, %v5906, 0
        %v6017 = vsel %vm544, %v5907, 0
        %v6020 = vsel %vm544, %v5908, 0
        %v6023 = vsel %vm544, %v5909, 0
        %v6026 = vsel %vm544, %v5910, 0
        %v6029 = vsel %vm544, %v5911, 0
        %v6032 = vsel %vm544, %v5912, 0
        %v6035 = vsel %vm544, %v5913, 0
        %6037 = vmatpush.msra.mxu0 0.0
        %6038 = vmatpush.msra.mxu0 0.0
        %6039 = vmatpush.msra.mxu0 0.0
        %6040 = vmatpush.msra.mxu0 0.0
        %6041 = vmatpush.msra.mxu0 0.0
        %6042 = vmatpush.msra.mxu0 0.0
        %6043 = vmatpush.msra.mxu0 0.0
        %6044 = vmatpush.msra.mxu0 0.0
        %6045 = vmatpush.msra.mxu0 %v5921
        %6046 = vmatpush.msra.mxu0 %v5920
        %6047 = vmatpush.msra.mxu0 %v5919
        %6048 = vmatpush.msra.mxu0 %v5918
        %6049 = vmatpush.msra.mxu0 %v5917
        %6050 = vmatpush.msra.mxu0 %v5916
        %6051 = vmatpush.msra.mxu0 %v5915
        %6052 = vmatpush.msra.mxu0 %v5914
        %6053 = vmatmul.f32.gmra.mxu0 %v6011
        %v6054 = vpop.f32.mrf.mxu0
        %v6055 = vadd.f32 %v5984, %v6054
        %6056 = vmatmul.f32.gmra.mxu0 %v6014
        %v6057 = vpop.f32.mrf.mxu0
        %v6058 = vadd.f32 %v5987, %v6057
        %6059 = vmatmul.f32.gmra.mxu0 %v6017
        %v6060 = vpop.f32.mrf.mxu0
        %v6061 = vadd.f32 %v5990, %v6060
        %6062 = vmatmul.f32.gmra.mxu0 %v6020
        %v6063 = vpop.f32.mrf.mxu0
        %v6064 = vadd.f32 %v5993, %v6063
        %6065 = vmatmul.f32.gmra.mxu0 %v6023
        %v6066 = vpop.f32.mrf.mxu0
        %v6067 = vadd.f32 %v5996, %v6066
        %6068 = vmatmul.f32.gmra.mxu0 %v6026
        %v6069 = vpop.f32.mrf.mxu0
        %v6070 = vadd.f32 %v5999, %v6069
        %6071 = vmatmul.f32.gmra.mxu0 %v6029
        %v6072 = vpop.f32.mrf.mxu0
        %v6073 = vadd.f32 %v6002, %v6072
        %6074 = vmatmul.f32.gmra.mxu0 %v6032
        %v6075 = vpop.f32.mrf.mxu0
        %v6076 = vadd.f32 %v6005, %v6075
        %6077 = vmatmul.f32.gmra.mxu0 %v6035
        %v6078 = vpop.f32.mrf.mxu0
        %v6079 = vadd.f32 %v6008, %v6078
        %6080 = vdwg.mxu0
        %v6081 = vld [vmem:[#allocation4 + $0x2] sm:$0xff]
        %v6082 = vld [vmem:[#allocation4 + $0xa] sm:$0xff]
        %v6083 = vld [vmem:[#allocation4 + $0x12] sm:$0xff]
        %v6084 = vld [vmem:[#allocation4 + $0x1a] sm:$0xff]
        %v6085 = vld [vmem:[#allocation4 + $0x22] sm:$0xff]
        %v6086 = vld [vmem:[#allocation4 + $0x2a] sm:$0xff]
        %v6087 = vld [vmem:[#allocation4 + $0x32] sm:$0xff]
        %v6088 = vld [vmem:[#allocation4 + $0x3a] sm:$0xff]
        %v6089 = vld [vmem:[#allocation4 + $0x42] sm:$0xff]
        %v6090 = vld [vmem:[%s5 + $0x80] sm:$0xff]
        %v6091 = vld [vmem:[%s5 + $0x88] sm:$0xff]
        %v6092 = vld [vmem:[%s5 + $0x90] sm:$0xff]
        %v6093 = vld [vmem:[%s5 + $0x98] sm:$0xff]
        %v6094 = vld [vmem:[%s5 + $0xa0] sm:$0xff]
        %v6095 = vld [vmem:[%s5 + $0xa8] sm:$0xff]
        %v6096 = vld [vmem:[%s5 + $0xb0] sm:$0xff]
        %v6097 = vld [vmem:[%s5 + $0xb8] sm:$0xff]
        %v6099 = vsel %vm544, %v6081, 0
        %v6102 = vsel %vm544, %v6082, 0
        %v6105 = vsel %vm544, %v6083, 0
        %v6108 = vsel %vm544, %v6084, 0
        %v6111 = vsel %vm544, %v6085, 0
        %v6114 = vsel %vm544, %v6086, 0
        %v6117 = vsel %vm544, %v6087, 0
        %v6120 = vsel %vm544, %v6088, 0
        %v6123 = vsel %vm544, %v6089, 0
        %6125 = vmatpush.msra.mxu0 0.0
        %6126 = vmatpush.msra.mxu0 0.0
        %6127 = vmatpush.msra.mxu0 0.0
        %6128 = vmatpush.msra.mxu0 0.0
        %6129 = vmatpush.msra.mxu0 0.0
        %6130 = vmatpush.msra.mxu0 0.0
        %6131 = vmatpush.msra.mxu0 0.0
        %6132 = vmatpush.msra.mxu0 0.0
        %6133 = vmatpush.msra.mxu0 %v6097
        %6134 = vmatpush.msra.mxu0 %v6096
        %6135 = vmatpush.msra.mxu0 %v6095
        %6136 = vmatpush.msra.mxu0 %v6094
        %6137 = vmatpush.msra.mxu0 %v6093
        %6138 = vmatpush.msra.mxu0 %v6092
        %6139 = vmatpush.msra.mxu0 %v6091
        %6140 = vmatpush.msra.mxu0 %v6090
        %6141 = vmatmul.f32.gmra.mxu0 %v6099
        %v6142 = vpop.f32.mrf.mxu0
        %v6143 = vadd.f32 0.0, %v6142
        %6144 = vmatmul.f32.gmra.mxu0 %v6102
        %v6145 = vpop.f32.mrf.mxu0
        %v6146 = vadd.f32 0.0, %v6145
        %6147 = vmatmul.f32.gmra.mxu0 %v6105
        %v6148 = vpop.f32.mrf.mxu0
        %v6149 = vadd.f32 0.0, %v6148
        %6150 = vmatmul.f32.gmra.mxu0 %v6108
        %v6151 = vpop.f32.mrf.mxu0
        %v6152 = vadd.f32 0.0, %v6151
        %6153 = vmatmul.f32.gmra.mxu0 %v6111
        %v6154 = vpop.f32.mrf.mxu0
        %v6155 = vadd.f32 0.0, %v6154
        %6156 = vmatmul.f32.gmra.mxu0 %v6114
        %v6157 = vpop.f32.mrf.mxu0
        %v6158 = vadd.f32 0.0, %v6157
        %6159 = vmatmul.f32.gmra.mxu0 %v6117
        %v6160 = vpop.f32.mrf.mxu0
        %v6161 = vadd.f32 0.0, %v6160
        %6162 = vmatmul.f32.gmra.mxu0 %v6120
        %v6163 = vpop.f32.mrf.mxu0
        %v6164 = vadd.f32 0.0, %v6163
        %6165 = vmatmul.f32.gmra.mxu0 %v6123
        %v6166 = vpop.f32.mrf.mxu0
        %v6167 = vadd.f32 0.0, %v6166
        %6168 = vdwg.mxu0
        %v6169 = vadd.f32 %v6055, %v6143
        %v6170 = vadd.f32 %v6058, %v6146
        %v6171 = vadd.f32 %v6061, %v6149
        %v6172 = vadd.f32 %v6064, %v6152
        %v6173 = vadd.f32 %v6067, %v6155
        %v6174 = vadd.f32 %v6070, %v6158
        %v6175 = vadd.f32 %v6073, %v6161
        %v6176 = vadd.f32 %v6076, %v6164
        %v6177 = vadd.f32 %v6079, %v6167
        %v6178 = vld [vmem:[#allocation4 + $0x9] sm:$0xff]
        %v6179 = vld [vmem:[#allocation4 + $0x11] sm:$0xff]
        %v6180 = vld [vmem:[#allocation4 + $0x19] sm:$0xff]
        %v6181 = vld [vmem:[#allocation4 + $0x21] sm:$0xff]
        %v6182 = vld [vmem:[#allocation4 + $0x29] sm:$0xff]
        %v6183 = vld [vmem:[#allocation4 + $0x31] sm:$0xff]
        %v6184 = vld [vmem:[#allocation4 + $0x39] sm:$0xff]
        %v6185 = vld [vmem:[#allocation4 + $0x41] sm:$0xff]
        %v6186 = vld [vmem:[#allocation4 + $0x49] sm:$0xff]
        %v6187 = vld [vmem:[%s5 + $0xc0] sm:$0xff]
        %v6188 = vld [vmem:[%s5 + $0xc8] sm:$0xff]
        %v6189 = vld [vmem:[%s5 + $0xd0] sm:$0xff]
        %v6190 = vld [vmem:[%s5 + $0xd8] sm:$0xff]
        %v6191 = vld [vmem:[%s5 + $0xe0] sm:$0xff]
        %v6192 = vld [vmem:[%s5 + $0xe8] sm:$0xff]
        %v6193 = vld [vmem:[%s5 + $0xf0] sm:$0xff]
        %v6194 = vld [vmem:[%s5 + $0xf8] sm:$0xff]
        %v6196 = vsel %vm544, %v6178, 0
        %v6199 = vsel %vm544, %v6179, 0
        %v6202 = vsel %vm544, %v6180, 0
        %v6205 = vsel %vm544, %v6181, 0
        %v6208 = vsel %vm544, %v6182, 0
        %v6211 = vsel %vm544, %v6183, 0
        %v6214 = vsel %vm544, %v6184, 0
        %v6217 = vsel %vm544, %v6185, 0
        %v6220 = vsel %vm544, %v6186, 0
        %6222 = vmatpush.msra.mxu0 0.0
        %6223 = vmatpush.msra.mxu0 0.0
        %6224 = vmatpush.msra.mxu0 0.0
        %6225 = vmatpush.msra.mxu0 0.0
        %6226 = vmatpush.msra.mxu0 0.0
        %6227 = vmatpush.msra.mxu0 0.0
        %6228 = vmatpush.msra.mxu0 0.0
        %6229 = vmatpush.msra.mxu0 0.0
        %6230 = vmatpush.msra.mxu0 %v6194
        %6231 = vmatpush.msra.mxu0 %v6193
        %6232 = vmatpush.msra.mxu0 %v6192
        %6233 = vmatpush.msra.mxu0 %v6191
        %6234 = vmatpush.msra.mxu0 %v6190
        %6235 = vmatpush.msra.mxu0 %v6189
        %6236 = vmatpush.msra.mxu0 %v6188
        %6237 = vmatpush.msra.mxu0 %v6187
        %6238 = vmatmul.f32.gmra.mxu0 %v6196
        %v6239 = vpop.f32.mrf.mxu0
        %v6240 = vadd.f32 0.0, %v6239
        %6241 = vmatmul.f32.gmra.mxu0 %v6199
        %v6242 = vpop.f32.mrf.mxu0
        %v6243 = vadd.f32 0.0, %v6242
        %6244 = vmatmul.f32.gmra.mxu0 %v6202
        %v6245 = vpop.f32.mrf.mxu0
        %v6246 = vadd.f32 0.0, %v6245
        %6247 = vmatmul.f32.gmra.mxu0 %v6205
        %v6248 = vpop.f32.mrf.mxu0
        %v6249 = vadd.f32 0.0, %v6248
        %6250 = vmatmul.f32.gmra.mxu0 %v6208
        %v6251 = vpop.f32.mrf.mxu0
        %v6252 = vadd.f32 0.0, %v6251
        %6253 = vmatmul.f32.gmra.mxu0 %v6211
        %v6254 = vpop.f32.mrf.mxu0
        %v6255 = vadd.f32 0.0, %v6254
        %6256 = vmatmul.f32.gmra.mxu0 %v6214
        %v6257 = vpop.f32.mrf.mxu0
        %v6258 = vadd.f32 0.0, %v6257
        %6259 = vmatmul.f32.gmra.mxu0 %v6217
        %v6260 = vpop.f32.mrf.mxu0
        %v6261 = vadd.f32 0.0, %v6260
        %6262 = vmatmul.f32.gmra.mxu0 %v6220
        %v6263 = vpop.f32.mrf.mxu0
        %v6264 = vadd.f32 0.0, %v6263
        %6265 = vdwg.mxu0
        %v6266 = vadd.f32 %v6169, %v6240
        %v6267 = vadd.f32 %v6170, %v6243
        %v6268 = vadd.f32 %v6171, %v6246
        %v6269 = vadd.f32 %v6172, %v6249
        %v6270 = vadd.f32 %v6173, %v6252
        %v6271 = vadd.f32 %v6174, %v6255
        %v6272 = vadd.f32 %v6175, %v6258
        %v6273 = vadd.f32 %v6176, %v6261
        %v6274 = vadd.f32 %v6177, %v6264
        %v6275 = vld [vmem:[#allocation4 + $0xa] sm:$0xff]
        %v6276 = vld [vmem:[#allocation4 + $0x12] sm:$0xff]
        %v6277 = vld [vmem:[#allocation4 + $0x1a] sm:$0xff]
        %v6278 = vld [vmem:[#allocation4 + $0x22] sm:$0xff]
        %v6279 = vld [vmem:[#allocation4 + $0x2a] sm:$0xff]
        %v6280 = vld [vmem:[#allocation4 + $0x32] sm:$0xff]
        %v6281 = vld [vmem:[#allocation4 + $0x3a] sm:$0xff]
        %v6282 = vld [vmem:[#allocation4 + $0x42] sm:$0xff]
        %v6283 = vld [vmem:[#allocation4 + $0x4a] sm:$0xff]
        %v6284 = vld [vmem:[%s5 + $0x100] sm:$0xff]
        %v6285 = vld [vmem:[%s5 + $0x108] sm:$0xff]
        %v6286 = vld [vmem:[%s5 + $0x110] sm:$0xff]
        %v6287 = vld [vmem:[%s5 + $0x118] sm:$0xff]
        %v6288 = vld [vmem:[%s5 + $0x120] sm:$0xff]
        %v6289 = vld [vmem:[%s5 + $0x128] sm:$0xff]
        %v6290 = vld [vmem:[%s5 + $0x130] sm:$0xff]
        %v6291 = vld [vmem:[%s5 + $0x138] sm:$0xff]
        %v6293 = vsel %vm544, %v6275, 0
        %v6296 = vsel %vm544, %v6276, 0
        %v6299 = vsel %vm544, %v6277, 0
        %v6302 = vsel %vm544, %v6278, 0
        %v6305 = vsel %vm544, %v6279, 0
        %v6308 = vsel %vm544, %v6280, 0
        %v6311 = vsel %vm544, %v6281, 0
        %v6314 = vsel %vm544, %v6282, 0
        %v6317 = vsel %vm544, %v6283, 0
        %6319 = vmatpush.msra.mxu0 0.0
        %6320 = vmatpush.msra.mxu0 0.0
        %6321 = vmatpush.msra.mxu0 0.0
        %6322 = vmatpush.msra.mxu0 0.0
        %6323 = vmatpush.msra.mxu0 0.0
        %6324 = vmatpush.msra.mxu0 0.0
        %6325 = vmatpush.msra.mxu0 0.0
        %6326 = vmatpush.msra.mxu0 0.0
        %6327 = vmatpush.msra.mxu0 %v6291
        %6328 = vmatpush.msra.mxu0 %v6290
        %6329 = vmatpush.msra.mxu0 %v6289
        %6330 = vmatpush.msra.mxu0 %v6288
        %6331 = vmatpush.msra.mxu0 %v6287
        %6332 = vmatpush.msra.mxu0 %v6286
        %6333 = vmatpush.msra.mxu0 %v6285
        %6334 = vmatpush.msra.mxu0 %v6284
        %6335 = vmatmul.f32.gmra.mxu0 %v6293
        %v6336 = vpop.f32.mrf.mxu0
        %v6337 = vadd.f32 0.0, %v6336
        %6338 = vmatmul.f32.gmra.mxu0 %v6296
        %v6339 = vpop.f32.mrf.mxu0
        %v6340 = vadd.f32 0.0, %v6339
        %6341 = vmatmul.f32.gmra.mxu0 %v6299
        %v6342 = vpop.f32.mrf.mxu0
        %v6343 = vadd.f32 0.0, %v6342
        %6344 = vmatmul.f32.gmra.mxu0 %v6302
        %v6345 = vpop.f32.mrf.mxu0
        %v6346 = vadd.f32 0.0, %v6345
        %6347 = vmatmul.f32.gmra.mxu0 %v6305
        %v6348 = vpop.f32.mrf.mxu0
        %v6349 = vadd.f32 0.0, %v6348
        %6350 = vmatmul.f32.gmra.mxu0 %v6308
        %v6351 = vpop.f32.mrf.mxu0
        %v6352 = vadd.f32 0.0, %v6351
        %6353 = vmatmul.f32.gmra.mxu0 %v6311
        %v6354 = vpop.f32.mrf.mxu0
        %v6355 = vadd.f32 0.0, %v6354
        %6356 = vmatmul.f32.gmra.mxu0 %v6314
        %v6357 = vpop.f32.mrf.mxu0
        %v6358 = vadd.f32 0.0, %v6357
        %6359 = vmatmul.f32.gmra.mxu0 %v6317
        %v6360 = vpop.f32.mrf.mxu0
        %v6361 = vadd.f32 0.0, %v6360
        %6362 = vdwg.mxu0
        %v6363 = vadd.f32 %v6266, %v6337
        %v6364 = vadd.f32 %v6267, %v6340
        %v6365 = vadd.f32 %v6268, %v6343
        %v6366 = vadd.f32 %v6269, %v6346
        %v6367 = vadd.f32 %v6270, %v6349
        %v6368 = vadd.f32 %v6271, %v6352
        %v6369 = vadd.f32 %v6272, %v6355
        %v6370 = vadd.f32 %v6273, %v6358
        %v6371 = vadd.f32 %v6274, %v6361
        %v6372 = vld [vmem:[#allocation4 + $0xb] sm:$0xff]
        %v6373 = vld [vmem:[#allocation4 + $0x13] sm:$0xff]
        %v6374 = vld [vmem:[#allocation4 + $0x1b] sm:$0xff]
        %v6375 = vld [vmem:[#allocation4 + $0x23] sm:$0xff]
        %v6376 = vld [vmem:[#allocation4 + $0x2b] sm:$0xff]
        %v6377 = vld [vmem:[#allocation4 + $0x33] sm:$0xff]
        %v6378 = vld [vmem:[#allocation4 + $0x3b] sm:$0xff]
        %v6379 = vld [vmem:[#allocation4 + $0x43] sm:$0xff]
        %v6380 = vld [vmem:[#allocation4 + $0x4b] sm:$0xff]
        %v6381 = vld [vmem:[%s5 + $0x140] sm:$0xff]
        %v6382 = vld [vmem:[%s5 + $0x148] sm:$0xff]
        %v6383 = vld [vmem:[%s5 + $0x150] sm:$0xff]
        %v6384 = vld [vmem:[%s5 + $0x158] sm:$0xff]
        %v6385 = vld [vmem:[%s5 + $0x160] sm:$0xff]
        %v6386 = vld [vmem:[%s5 + $0x168] sm:$0xff]
        %v6387 = vld [vmem:[%s5 + $0x170] sm:$0xff]
        %v6388 = vld [vmem:[%s5 + $0x178] sm:$0xff]
        %v6390 = vsel %vm544, %v6372, 0
        %v6393 = vsel %vm544, %v6373, 0
        %v6396 = vsel %vm544, %v6374, 0
        %v6399 = vsel %vm544, %v6375, 0
        %v6402 = vsel %vm544, %v6376, 0
        %v6405 = vsel %vm544, %v6377, 0
        %v6408 = vsel %vm544, %v6378, 0
        %v6411 = vsel %vm544, %v6379, 0
        %v6414 = vsel %vm544, %v6380, 0
        %6416 = vmatpush.msra.mxu0 0.0
        %6417 = vmatpush.msra.mxu0 0.0
        %6418 = vmatpush.msra.mxu0 0.0
        %6419 = vmatpush.msra.mxu0 0.0
        %6420 = vmatpush.msra.mxu0 0.0
        %6421 = vmatpush.msra.mxu0 0.0
        %6422 = vmatpush.msra.mxu0 0.0
        %6423 = vmatpush.msra.mxu0 0.0
        %6424 = vmatpush.msra.mxu0 %v6388
        %6425 = vmatpush.msra.mxu0 %v6387
        %6426 = vmatpush.msra.mxu0 %v6386
        %6427 = vmatpush.msra.mxu0 %v6385
        %6428 = vmatpush.msra.mxu0 %v6384
        %6429 = vmatpush.msra.mxu0 %v6383
        %6430 = vmatpush.msra.mxu0 %v6382
        %6431 = vmatpush.msra.mxu0 %v6381
        %6432 = vmatmul.f32.gmra.mxu0 %v6390
        %v6433 = vpop.f32.mrf.mxu0
        %v6434 = vadd.f32 0.0, %v6433
        %6435 = vmatmul.f32.gmra.mxu0 %v6393
        %v6436 = vpop.f32.mrf.mxu0
        %v6437 = vadd.f32 0.0, %v6436
        %6438 = vmatmul.f32.gmra.mxu0 %v6396
        %v6439 = vpop.f32.mrf.mxu0
        %v6440 = vadd.f32 0.0, %v6439
        %6441 = vmatmul.f32.gmra.mxu0 %v6399
        %v6442 = vpop.f32.mrf.mxu0
        %v6443 = vadd.f32 0.0, %v6442
        %6444 = vmatmul.f32.gmra.mxu0 %v6402
        %v6445 = vpop.f32.mrf.mxu0
        %v6446 = vadd.f32 0.0, %v6445
        %6447 = vmatmul.f32.gmra.mxu0 %v6405
        %v6448 = vpop.f32.mrf.mxu0
        %v6449 = vadd.f32 0.0, %v6448
        %6450 = vmatmul.f32.gmra.mxu0 %v6408
        %v6451 = vpop.f32.mrf.mxu0
        %v6452 = vadd.f32 0.0, %v6451
        %6453 = vmatmul.f32.gmra.mxu0 %v6411
        %v6454 = vpop.f32.mrf.mxu0
        %v6455 = vadd.f32 0.0, %v6454
        %6456 = vmatmul.f32.gmra.mxu0 %v6414
        %v6457 = vpop.f32.mrf.mxu0
        %v6458 = vadd.f32 0.0, %v6457
        %6459 = vdwg.mxu0
        %v6460 = vadd.f32 %v6363, %v6434
        %v6461 = vadd.f32 %v6364, %v6437
        %v6462 = vadd.f32 %v6365, %v6440
        %v6463 = vadd.f32 %v6366, %v6443
        %v6464 = vadd.f32 %v6367, %v6446
        %v6465 = vadd.f32 %v6368, %v6449
        %v6466 = vadd.f32 %v6369, %v6452
        %v6467 = vadd.f32 %v6370, %v6455
        %v6468 = vadd.f32 %v6371, %v6458
        %v6469 = vld [vmem:[#allocation4 + $0x12] sm:$0xff]
        %v6470 = vld [vmem:[#allocation4 + $0x1a] sm:$0xff]
        %v6471 = vld [vmem:[#allocation4 + $0x22] sm:$0xff]
        %v6472 = vld [vmem:[#allocation4 + $0x2a] sm:$0xff]
        %v6473 = vld [vmem:[#allocation4 + $0x32] sm:$0xff]
        %v6474 = vld [vmem:[#allocation4 + $0x3a] sm:$0xff]
        %v6475 = vld [vmem:[#allocation4 + $0x42] sm:$0xff]
        %v6476 = vld [vmem:[#allocation4 + $0x4a] sm:$0xff]
        %v6477 = vld [vmem:[#allocation4 + $0x52] sm:$0xff]
        %v6478 = vld [vmem:[%s5 + $0x180] sm:$0xff]
        %v6479 = vld [vmem:[%s5 + $0x188] sm:$0xff]
        %v6480 = vld [vmem:[%s5 + $0x190] sm:$0xff]
        %v6481 = vld [vmem:[%s5 + $0x198] sm:$0xff]
        %v6482 = vld [vmem:[%s5 + $0x1a0] sm:$0xff]
        %v6483 = vld [vmem:[%s5 + $0x1a8] sm:$0xff]
        %v6484 = vld [vmem:[%s5 + $0x1b0] sm:$0xff]
        %v6485 = vld [vmem:[%s5 + $0x1b8] sm:$0xff]
        %v6487 = vsel %vm544, %v6469, 0
        %v6490 = vsel %vm544, %v6470, 0
        %v6493 = vsel %vm544, %v6471, 0
        %v6496 = vsel %vm544, %v6472, 0
        %v6499 = vsel %vm544, %v6473, 0
        %v6502 = vsel %vm544, %v6474, 0
        %v6505 = vsel %vm544, %v6475, 0
        %v6508 = vsel %vm544, %v6476, 0
        %v6511 = vsel %vm544, %v6477, 0
        %6513 = vmatpush.msra.mxu0 0.0
        %6514 = vmatpush.msra.mxu0 0.0
        %6515 = vmatpush.msra.mxu0 0.0
        %6516 = vmatpush.msra.mxu0 0.0
        %6517 = vmatpush.msra.mxu0 0.0
        %6518 = vmatpush.msra.mxu0 0.0
        %6519 = vmatpush.msra.mxu0 0.0
        %6520 = vmatpush.msra.mxu0 0.0
        %6521 = vmatpush.msra.mxu0 %v6485
        %6522 = vmatpush.msra.mxu0 %v6484
        %6523 = vmatpush.msra.mxu0 %v6483
        %6524 = vmatpush.msra.mxu0 %v6482
        %6525 = vmatpush.msra.mxu0 %v6481
        %6526 = vmatpush.msra.mxu0 %v6480
        %6527 = vmatpush.msra.mxu0 %v6479
        %6528 = vmatpush.msra.mxu0 %v6478
        %6529 = vmatmul.f32.gmra.mxu0 %v6487
        %v6530 = vpop.f32.mrf.mxu0
        %v6531 = vadd.f32 0.0, %v6530
        %6532 = vmatmul.f32.gmra.mxu0 %v6490
        %v6533 = vpop.f32.mrf.mxu0
        %v6534 = vadd.f32 0.0, %v6533
        %6535 = vmatmul.f32.gmra.mxu0 %v6493
        %v6536 = vpop.f32.mrf.mxu0
        %v6537 = vadd.f32 0.0, %v6536
        %6538 = vmatmul.f32.gmra.mxu0 %v6496
        %v6539 = vpop.f32.mrf.mxu0
        %v6540 = vadd.f32 0.0, %v6539
        %6541 = vmatmul.f32.gmra.mxu0 %v6499
        %v6542 = vpop.f32.mrf.mxu0
        %v6543 = vadd.f32 0.0, %v6542
        %6544 = vmatmul.f32.gmra.mxu0 %v6502
        %v6545 = vpop.f32.mrf.mxu0
        %v6546 = vadd.f32 0.0, %v6545
        %6547 = vmatmul.f32.gmra.mxu0 %v6505
        %v6548 = vpop.f32.mrf.mxu0
        %v6549 = vadd.f32 0.0, %v6548
        %6550 = vmatmul.f32.gmra.mxu0 %v6508
        %v6551 = vpop.f32.mrf.mxu0
        %v6552 = vadd.f32 0.0, %v6551
        %6553 = vmatmul.f32.gmra.mxu0 %v6511
        %v6554 = vpop.f32.mrf.mxu0
        %v6555 = vadd.f32 0.0, %v6554
        %6556 = vdwg.mxu0
        %v6557 = vadd.f32 %v6460, %v6531
        %v6558 = vadd.f32 %v6461, %v6534
        %v6559 = vadd.f32 %v6462, %v6537
        %v6560 = vadd.f32 %v6463, %v6540
        %v6561 = vadd.f32 %v6464, %v6543
        %v6562 = vadd.f32 %v6465, %v6546
        %v6563 = vadd.f32 %v6466, %v6549
        %v6564 = vadd.f32 %v6467, %v6552
        %v6565 = vadd.f32 %v6468, %v6555
        %v6566 = vld [vmem:[#allocation4 + $0x13] sm:$0xff]
        %v6567 = vld [vmem:[#allocation4 + $0x1b] sm:$0xff]
        %v6568 = vld [vmem:[#allocation4 + $0x23] sm:$0xff]
        %v6569 = vld [vmem:[#allocation4 + $0x2b] sm:$0xff]
        %v6570 = vld [vmem:[#allocation4 + $0x33] sm:$0xff]
        %v6571 = vld [vmem:[#allocation4 + $0x3b] sm:$0xff]
        %v6572 = vld [vmem:[#allocation4 + $0x43] sm:$0xff]
        %v6573 = vld [vmem:[#allocation4 + $0x4b] sm:$0xff]
        %v6574 = vld [vmem:[#allocation4 + $0x53] sm:$0xff]
        %v6575 = vld [vmem:[%s5 + $0x1c0] sm:$0xff]
        %v6576 = vld [vmem:[%s5 + $0x1c8] sm:$0xff]
        %v6577 = vld [vmem:[%s5 + $0x1d0] sm:$0xff]
        %v6578 = vld [vmem:[%s5 + $0x1d8] sm:$0xff]
        %v6579 = vld [vmem:[%s5 + $0x1e0] sm:$0xff]
        %v6580 = vld [vmem:[%s5 + $0x1e8] sm:$0xff]
        %v6581 = vld [vmem:[%s5 + $0x1f0] sm:$0xff]
        %v6582 = vld [vmem:[%s5 + $0x1f8] sm:$0xff]
        %v6584 = vsel %vm544, %v6566, 0
        %v6587 = vsel %vm544, %v6567, 0
        %v6590 = vsel %vm544, %v6568, 0
        %v6593 = vsel %vm544, %v6569, 0
        %v6596 = vsel %vm544, %v6570, 0
        %v6599 = vsel %vm544, %v6571, 0
        %v6602 = vsel %vm544, %v6572, 0
        %v6605 = vsel %vm544, %v6573, 0
        %v6608 = vsel %vm544, %v6574, 0
        %6610 = vmatpush.msra.mxu0 0.0
        %6611 = vmatpush.msra.mxu0 0.0
        %6612 = vmatpush.msra.mxu0 0.0
        %6613 = vmatpush.msra.mxu0 0.0
        %6614 = vmatpush.msra.mxu0 0.0
        %6615 = vmatpush.msra.mxu0 0.0
        %6616 = vmatpush.msra.mxu0 0.0
        %6617 = vmatpush.msra.mxu0 0.0
        %6618 = vmatpush.msra.mxu0 %v6582
        %6619 = vmatpush.msra.mxu0 %v6581
        %6620 = vmatpush.msra.mxu0 %v6580
        %6621 = vmatpush.msra.mxu0 %v6579
        %6622 = vmatpush.msra.mxu0 %v6578
        %6623 = vmatpush.msra.mxu0 %v6577
        %6624 = vmatpush.msra.mxu0 %v6576
        %6625 = vmatpush.msra.mxu0 %v6575
        %6626 = vmatmul.f32.gmra.mxu0 %v6584
        %v6627 = vpop.f32.mrf.mxu0
        %v6628 = vadd.f32 0.0, %v6627
        %6629 = vmatmul.f32.gmra.mxu0 %v6587
        %v6630 = vpop.f32.mrf.mxu0
        %v6631 = vadd.f32 0.0, %v6630
        %6632 = vmatmul.f32.gmra.mxu0 %v6590
        %v6633 = vpop.f32.mrf.mxu0
        %v6634 = vadd.f32 0.0, %v6633
        %6635 = vmatmul.f32.gmra.mxu0 %v6593
        %v6636 = vpop.f32.mrf.mxu0
        %v6637 = vadd.f32 0.0, %v6636
        %6638 = vmatmul.f32.gmra.mxu0 %v6596
        %v6639 = vpop.f32.mrf.mxu0
        %v6640 = vadd.f32 0.0, %v6639
        %6641 = vmatmul.f32.gmra.mxu0 %v6599
        %v6642 = vpop.f32.mrf.mxu0
        %v6643 = vadd.f32 0.0, %v6642
        %6644 = vmatmul.f32.gmra.mxu0 %v6602
        %v6645 = vpop.f32.mrf.mxu0
        %v6646 = vadd.f32 0.0, %v6645
        %6647 = vmatmul.f32.gmra.mxu0 %v6605
        %v6648 = vpop.f32.mrf.mxu0
        %v6649 = vadd.f32 0.0, %v6648
        %6650 = vmatmul.f32.gmra.mxu0 %v6608
        %v6651 = vpop.f32.mrf.mxu0
        %v6652 = vadd.f32 0.0, %v6651
        %6653 = vdwg.mxu0
        %v6654 = vadd.f32 %v6557, %v6628
        %v6655 = vadd.f32 %v6558, %v6631
        %v6656 = vadd.f32 %v6559, %v6634
        %v6657 = vadd.f32 %v6560, %v6637
        %v6658 = vadd.f32 %v6561, %v6640
        %v6659 = vadd.f32 %v6562, %v6643
        %v6660 = vadd.f32 %v6563, %v6646
        %v6661 = vadd.f32 %v6564, %v6649
        %v6662 = vadd.f32 %v6565, %v6652
        %v6663 = vld [vmem:[#allocation4 + $0x14] sm:$0xff]
        %v6664 = vld [vmem:[#allocation4 + $0x1c] sm:$0xff]
        %v6665 = vld [vmem:[#allocation4 + $0x24] sm:$0xff]
        %v6666 = vld [vmem:[#allocation4 + $0x2c] sm:$0xff]
        %v6667 = vld [vmem:[#allocation4 + $0x34] sm:$0xff]
        %v6668 = vld [vmem:[#allocation4 + $0x3c] sm:$0xff]
        %v6669 = vld [vmem:[#allocation4 + $0x44] sm:$0xff]
        %v6670 = vld [vmem:[#allocation4 + $0x4c] sm:$0xff]
        %v6671 = vld [vmem:[#allocation4 + $0x54] sm:$0xff]
        %v6672 = vld [vmem:[%s5 + $0x200] sm:$0xff]
        %v6673 = vld [vmem:[%s5 + $0x208] sm:$0xff]
        %v6674 = vld [vmem:[%s5 + $0x210] sm:$0xff]
        %v6675 = vld [vmem:[%s5 + $0x218] sm:$0xff]
        %v6676 = vld [vmem:[%s5 + $0x220] sm:$0xff]
        %v6677 = vld [vmem:[%s5 + $0x228] sm:$0xff]
        %v6678 = vld [vmem:[%s5 + $0x230] sm:$0xff]
        %v6679 = vld [vmem:[%s5 + $0x238] sm:$0xff]
        %v6681 = vsel %vm544, %v6663, 0
        %v6684 = vsel %vm544, %v6664, 0
        %v6687 = vsel %vm544, %v6665, 0
        %v6690 = vsel %vm544, %v6666, 0
        %v6693 = vsel %vm544, %v6667, 0
        %v6696 = vsel %vm544, %v6668, 0
        %v6699 = vsel %vm544, %v6669, 0
        %v6702 = vsel %vm544, %v6670, 0
        %v6705 = vsel %vm544, %v6671, 0
        %6707 = vmatpush.msra.mxu0 0.0
        %6708 = vmatpush.msra.mxu0 0.0
        %6709 = vmatpush.msra.mxu0 0.0
        %6710 = vmatpush.msra.mxu0 0.0
        %6711 = vmatpush.msra.mxu0 0.0
        %6712 = vmatpush.msra.mxu0 0.0
        %6713 = vmatpush.msra.mxu0 0.0
        %6714 = vmatpush.msra.mxu0 0.0
        %6715 = vmatpush.msra.mxu0 %v6679
        %6716 = vmatpush.msra.mxu0 %v6678
        %6717 = vmatpush.msra.mxu0 %v6677
        %6718 = vmatpush.msra.mxu0 %v6676
        %6719 = vmatpush.msra.mxu0 %v6675
        %6720 = vmatpush.msra.mxu0 %v6674
        %6721 = vmatpush.msra.mxu0 %v6673
        %6722 = vmatpush.msra.mxu0 %v6672
        %6723 = vmatmul.f32.gmra.mxu0 %v6681
        %v6724 = vpop.f32.mrf.mxu0
        %v6725 = vadd.f32 0.0, %v6724
        %6726 = vmatmul.f32.gmra.mxu0 %v6684
        %v6727 = vpop.f32.mrf.mxu0
        %v6728 = vadd.f32 0.0, %v6727
        %6729 = vmatmul.f32.gmra.mxu0 %v6687
        %v6730 = vpop.f32.mrf.mxu0
        %v6731 = vadd.f32 0.0, %v6730
        %6732 = vmatmul.f32.gmra.mxu0 %v6690
        %v6733 = vpop.f32.mrf.mxu0
        %v6734 = vadd.f32 0.0, %v6733
        %6735 = vmatmul.f32.gmra.mxu0 %v6693
        %v6736 = vpop.f32.mrf.mxu0
        %v6737 = vadd.f32 0.0, %v6736
        %6738 = vmatmul.f32.gmra.mxu0 %v6696
        %v6739 = vpop.f32.mrf.mxu0
        %v6740 = vadd.f32 0.0, %v6739
        %6741 = vmatmul.f32.gmra.mxu0 %v6699
        %v6742 = vpop.f32.mrf.mxu0
        %v6743 = vadd.f32 0.0, %v6742
        %6744 = vmatmul.f32.gmra.mxu0 %v6702
        %v6745 = vpop.f32.mrf.mxu0
        %v6746 = vadd.f32 0.0, %v6745
        %6747 = vmatmul.f32.gmra.mxu0 %v6705
        %v6748 = vpop.f32.mrf.mxu0
        %v6749 = vadd.f32 0.0, %v6748
        %6750 = vdwg.mxu0
        %v6751 = vadd.f32 %v6654, %v6725
        %v6752 = vadd.f32 %v6655, %v6728
        %v6753 = vadd.f32 %v6656, %v6731
        %v6754 = vadd.f32 %v6657, %v6734
        %v6755 = vadd.f32 %v6658, %v6737
        %v6756 = vadd.f32 %v6659, %v6740
        %v6757 = vadd.f32 %v6660, %v6743
        %v6758 = vadd.f32 %v6661, %v6746
        %v6759 = vadd.f32 %v6662, %v6749
        %v6760 = vld [vmem:[%s6] sm:$0x1]
        %v6762 = vperm.slane %v6760, 0
        %v6764 = vadd.f32 %v6751, %v6762
        %v6765 = vadd.f32 %v6752, %v6762
        %v6766 = vadd.f32 %v6753, %v6762
        %v6767 = vadd.f32 %v6754, %v6762
        %v6768 = vadd.f32 %v6755, %v6762
        %v6769 = vadd.f32 %v6756, %v6762
        %v6770 = vadd.f32 %v6757, %v6762
        %v6771 = vadd.f32 %v6758, %v6762
        %v6772 = vadd.f32 %v6759, %v6762
        %v6773 = vmax.f32 %v6764, 0.0
        %v6774 = vmax.f32 %v6765, 0.0
        %v6775 = vmax.f32 %v6766, 0.0
        %v6776 = vmax.f32 %v6767, 0.0
        %v6777 = vmax.f32 %v6768, 0.0
        %v6778 = vmax.f32 %v6769, 0.0
        %v6779 = vmax.f32 %v6770, 0.0
        %v6780 = vmax.f32 %v6771, 0.0
        %v6781 = vmax.f32 %v6772, 0.0
        %6791 = vrot.lane.b32.xlu0 %v6773, 96
        %v6792 = vpop.permute.xlu0 %6791
        %6793 = vrot.lane.b32.xlu0 %v6774, 96
        %v6794 = vpop.permute.xlu0 %6793
        %6795 = vrot.lane.b32.xlu0 %v6775, 96
        %v6796 = vpop.permute.xlu0 %6795
        %6797 = vrot.lane.b32.xlu0 %v6776, 96
        %v6798 = vpop.permute.xlu0 %6797
        %6799 = vrot.lane.b32.xlu0 %v6777, 96
        %v6800 = vpop.permute.xlu0 %6799
        %6801 = vrot.lane.b32.xlu0 %v6778, 96
        %v6802 = vpop.permute.xlu0 %6801
        %6803 = vrot.lane.b32.xlu0 %v6779, 96
        %v6804 = vpop.permute.xlu0 %6803
        %6805 = vrot.lane.b32.xlu0 %v6780, 96
        %v6806 = vpop.permute.xlu0 %6805
        %6807 = vrot.lane.b32.xlu0 %v6781, 96
        %v6808 = vpop.permute.xlu0 %6807
        %v6818 = vmax.f32 %v6773, %v6792
        %v6819 = vmax.f32 %v6774, %v6794
        %v6820 = vmax.f32 %v6775, %v6796
        %v6821 = vmax.f32 %v6776, %v6798
        %v6822 = vmax.f32 %v6777, %v6800
        %v6823 = vmax.f32 %v6778, %v6802
        %v6824 = vmax.f32 %v6779, %v6804
        %v6825 = vmax.f32 %v6780, %v6806
        %v6826 = vmax.f32 %v6781, %v6808
        %6836 = vrot.lane.b32.xlu0 %v6818, 64
        %v6837 = vpop.permute.xlu0 %6836
        %6838 = vrot.lane.b32.xlu0 %v6819, 64
        %v6839 = vpop.permute.xlu0 %6838
        %6840 = vrot.lane.b32.xlu0 %v6820, 64
        %v6841 = vpop.permute.xlu0 %6840
        %6842 = vrot.lane.b32.xlu0 %v6821, 64
        %v6843 = vpop.permute.xlu0 %6842
        %6844 = vrot.lane.b32.xlu0 %v6822, 64
        %v6845 = vpop.permute.xlu0 %6844
        %6846 = vrot.lane.b32.xlu0 %v6823, 64
        %v6847 = vpop.permute.xlu0 %6846
        %6848 = vrot.lane.b32.xlu0 %v6824, 64
        %v6849 = vpop.permute.xlu0 %6848
        %6850 = vrot.lane.b32.xlu0 %v6825, 64
        %v6851 = vpop.permute.xlu0 %6850
        %6852 = vrot.lane.b32.xlu0 %v6826, 64
        %v6853 = vpop.permute.xlu0 %6852
        %v6863 = vmax.f32 %v6818, %v6837
        %v6864 = vmax.f32 %v6819, %v6839
        %v6865 = vmax.f32 %v6820, %v6841
        %v6866 = vmax.f32 %v6821, %v6843
        %v6867 = vmax.f32 %v6822, %v6845
        %v6868 = vmax.f32 %v6823, %v6847
        %v6869 = vmax.f32 %v6824, %v6849
        %v6870 = vmax.f32 %v6825, %v6851
        %v6871 = vmax.f32 %v6826, %v6853
        %6872 = vst.msk [vmem:[#allocation5] sm:$0xff] %vm492, %v6863
        %6873 = vst.msk [vmem:[#allocation5 + $0x8] sm:$0xff] %vm492, %v6864
        %6874 = vst.msk [vmem:[#allocation5 + $0x10] sm:$0xff] %vm492, %v6865
        %6875 = vst.msk [vmem:[#allocation5 + $0x18] sm:$0xff] %vm492, %v6866
        %6876 = vst.msk [vmem:[#allocation5 + $0x20] sm:$0xff] %vm492, %v6867
        %6877 = vst.msk [vmem:[#allocation5 + $0x28] sm:$0xff] %vm492, %v6868
        %6878 = vst.msk [vmem:[#allocation5 + $0x30] sm:$0xff] %vm492, %v6869
        %6879 = vst.msk [vmem:[#allocation5 + $0x38] sm:$0xff] %vm492, %v6870
        %6880 = vst.msk [vmem:[#allocation5 + $0x40] sm:$0xff] %vm492, %v6871
        %v6881 = vld [vmem:[#allocation5] ss:$2 sm:$0xf]
        %vm6882 = vcmask 257024
        %6883 = vst.msk [vmem:[#allocation6] sm:$0xf] %vm6882, %v6881
        %s6884 = scalar_lea.vmem [#allocation5], 1
        %v6885 = vld [vmem:[%s6884] ss:$2 sm:$0xf]
        %6887 = vrot.lane.b32.xlu0 %v6885, 32
        %v6888 = vpop.permute.xlu0 %6887
        %vm6890 = vcmask 519424
        %6891 = vst.msk [vmem:[#allocation6] sm:$0xf] %vm6890, %v6888
        %s6892 = scalar_lea.vmem [#allocation5], 9
        %v6893 = vld [vmem:[%s6892] ss:$2 sm:$0xf]
        %6895 = vrot.lane.b32.xlu0 %v6893, 64
        %v6896 = vpop.permute.xlu0 %6895
        %vm6898 = vcmask 781824
        %6899 = vst.msk [vmem:[#allocation6] sm:$0xf] %vm6898, %v6896
        %s6900 = scalar_lea.vmem [#allocation5], 10
        %v6901 = vld [vmem:[%s6900] ss:$2 sm:$0xf]
        %6903 = vrot.lane.b32.xlu0 %v6901, 96
        %v6904 = vpop.permute.xlu0 %6903
        %vm6906 = vcmask 1044224
        %6907 = vst.msk [vmem:[#allocation6] sm:$0xf] %vm6906, %v6904
        %s6908 = scalar_lea.vmem [#allocation5], 18
        %v6909 = vld [vmem:[%s6908] ss:$2 sm:$0xf]
        %6910 = vst.msk [vmem:[#allocation6 + $0x4] sm:$0xf] %vm6882, %v6909
        %s6911 = scalar_lea.vmem [#allocation5], 19
        %v6912 = vld [vmem:[%s6911] ss:$2 sm:$0xf]
        %6914 = vrot.lane.b32.xlu0 %v6912, 32
        %v6915 = vpop.permute.xlu0 %6914
        %6917 = vst.msk [vmem:[#allocation6 + $0x4] sm:$0xf] %vm6890, %v6915
        %s6918 = scalar_lea.vmem [#allocation5], 27
        %v6919 = vld [vmem:[%s6918] ss:$2 sm:$0xf]
        %6921 = vrot.lane.b32.xlu0 %v6919, 64
        %v6922 = vpop.permute.xlu0 %6921
        %6924 = vst.msk [vmem:[#allocation6 + $0x4] sm:$0xf] %vm6898, %v6922
        %s6925 = scalar_lea.vmem [#allocation5], 28
        %v6926 = vld [vmem:[%s6925] ss:$2 sm:$0xf]
        %6928 = vrot.lane.b32.xlu0 %v6926, 96
        %v6929 = vpop.permute.xlu0 %6928
        %6931 = vst.msk [vmem:[#allocation6 + $0x4] sm:$0xf] %vm6906, %v6929
        %s6932 = scalar_lea.vmem [#allocation5], 36
        %v6933 = vld [vmem:[%s6932] ss:$2 sm:$0xf]
        %6934 = vst.msk [vmem:[#allocation6 + $0x8] sm:$0xf] %vm6882, %v6933
        %s6935 = scalar_lea.vmem [#allocation5], 37
        %v6936 = vld [vmem:[%s6935] ss:$2 sm:$0xf]
        %6938 = vrot.lane.b32.xlu0 %v6936, 32
        %v6939 = vpop.permute.xlu0 %6938
        %6941 = vst.msk [vmem:[#allocation6 + $0x8] sm:$0xf] %vm6890, %v6939
        %s6942 = scalar_lea.vmem [#allocation5], 45
        %v6943 = vld [vmem:[%s6942] ss:$2 sm:$0xf]
        %6945 = vrot.lane.b32.xlu0 %v6943, 64
        %v6946 = vpop.permute.xlu0 %6945
        %6948 = vst.msk [vmem:[#allocation6 + $0x8] sm:$0xf] %vm6898, %v6946
        %s6949 = scalar_lea.vmem [#allocation5], 46
        %v6950 = vld [vmem:[%s6949] ss:$2 sm:$0xf]
        %6952 = vrot.lane.b32.xlu0 %v6950, 96
        %v6953 = vpop.permute.xlu0 %6952
        %6955 = vst.msk [vmem:[#allocation6 + $0x8] sm:$0xf] %vm6906, %v6953
        %s6956 = scalar_lea.vmem [#allocation5], 54
        %v6957 = vld [vmem:[%s6956] ss:$2 sm:$0xf]
        %6958 = vst.msk [vmem:[#allocation6 + $0xc] sm:$0xf] %vm6882, %v6957
        %s6959 = scalar_lea.vmem [#allocation5], 55
        %v6960 = vld [vmem:[%s6959] ss:$2 sm:$0xf]
        %6962 = vrot.lane.b32.xlu0 %v6960, 32
        %v6963 = vpop.permute.xlu0 %6962
        %6965 = vst.msk [vmem:[#allocation6 + $0xc] sm:$0xf] %vm6890, %v6963
        %s6966 = scalar_lea.vmem [#allocation5], 63
        %v6967 = vld [vmem:[%s6966] ss:$2 sm:$0xf]
        %6969 = vrot.lane.b32.xlu0 %v6967, 64
        %v6970 = vpop.permute.xlu0 %6969
        %6972 = vst.msk [vmem:[#allocation6 + $0xc] sm:$0xf] %vm6898, %v6970
        %s6973 = scalar_lea.vmem [#allocation5], 64
        %v6974 = vld [vmem:[%s6973] ss:$2 sm:$0xf]
        %6976 = vrot.lane.b32.xlu0 %v6974, 96
        %v6977 = vpop.permute.xlu0 %6976
        %6979 = vst.msk [vmem:[#allocation6 + $0xc] sm:$0xf] %vm6906, %v6977
        %v6980 = vld [vmem:[#allocation6] sm:$0xf]
        %v6981 = vld [vmem:[%s7] sm:$0xff]
        %v6982 = vld [vmem:[%s7 + $0x8] sm:$0xff]
        %v6983 = vld [vmem:[%s7 + $0x10] sm:$0xff]
        %v6984 = vld [vmem:[%s7 + $0x18] sm:$0xff]
        %v6985 = vld [vmem:[%s7 + $0x20] sm:$0xff]
        %v6986 = vld [vmem:[%s7 + $0x28] sm:$0xff]
        %v6987 = vld [vmem:[%s7 + $0x30] sm:$0xff]
        %v6988 = vld [vmem:[%s7 + $0x38] sm:$0xff]
        %v6989 = vld [vmem:[%s7 + $0x40] sm:$0xff]
        %v6990 = vld [vmem:[%s7 + $0x48] sm:$0xff]
        %v6991 = vld [vmem:[%s7 + $0x50] sm:$0xff]
        %v6992 = vld [vmem:[%s7 + $0x58] sm:$0xff]
        %v6993 = vld [vmem:[%s7 + $0x60] sm:$0xff]
        %v6994 = vld [vmem:[%s7 + $0x68] sm:$0xff]
        %v6995 = vld [vmem:[%s7 + $0x70] sm:$0xff]
        %v6996 = vld [vmem:[%s7 + $0x78] sm:$0xff]
        %v6997 = vld [vmem:[%s7 + $0x80] sm:$0xff]
        %v6998 = vld [vmem:[%s7 + $0x88] sm:$0xff]
        %v6999 = vld [vmem:[%s7 + $0x90] sm:$0xff]
        %v7000 = vld [vmem:[%s7 + $0x98] sm:$0xff]
        %v7001 = vld [vmem:[%s7 + $0xa0] sm:$0xff]
        %v7002 = vld [vmem:[%s7 + $0xa8] sm:$0xff]
        %v7003 = vld [vmem:[%s7 + $0xb0] sm:$0xff]
        %v7004 = vld [vmem:[%s7 + $0xb8] sm:$0xff]
        %v7005 = vld [vmem:[%s7 + $0xc0] sm:$0xff]
        %v7006 = vld [vmem:[%s7 + $0xc8] sm:$0xff]
        %v7007 = vld [vmem:[%s7 + $0xd0] sm:$0xff]
        %v7008 = vld [vmem:[%s7 + $0xd8] sm:$0xff]
        %v7009 = vld [vmem:[%s7 + $0xe0] sm:$0xff]
        %v7010 = vld [vmem:[%s7 + $0xe8] sm:$0xff]
        %v7011 = vld [vmem:[%s7 + $0xf0] sm:$0xff]
        %v7012 = vld [vmem:[%s7 + $0xf8] sm:$0xff]
        %v7013 = vld [vmem:[#allocation6 + $0x1] sm:$0xf]
        %v7014 = vld [vmem:[%s7 + $0x100] sm:$0xff]
        %v7015 = vld [vmem:[%s7 + $0x108] sm:$0xff]
        %v7016 = vld [vmem:[%s7 + $0x110] sm:$0xff]
        %v7017 = vld [vmem:[%s7 + $0x118] sm:$0xff]
        %v7018 = vld [vmem:[%s7 + $0x120] sm:$0xff]
        %v7019 = vld [vmem:[%s7 + $0x128] sm:$0xff]
        %v7020 = vld [vmem:[%s7 + $0x130] sm:$0xff]
        %v7021 = vld [vmem:[%s7 + $0x138] sm:$0xff]
        %v7022 = vld [vmem:[%s7 + $0x140] sm:$0xff]
        %v7023 = vld [vmem:[%s7 + $0x148] sm:$0xff]
        %v7024 = vld [vmem:[%s7 + $0x150] sm:$0xff]
        %v7025 = vld [vmem:[%s7 + $0x158] sm:$0xff]
        %v7026 = vld [vmem:[%s7 + $0x160] sm:$0xff]
        %v7027 = vld [vmem:[%s7 + $0x168] sm:$0xff]
        %v7028 = vld [vmem:[%s7 + $0x170] sm:$0xff]
        %v7029 = vld [vmem:[%s7 + $0x178] sm:$0xff]
        %v7030 = vld [vmem:[%s7 + $0x180] sm:$0xff]
        %v7031 = vld [vmem:[%s7 + $0x188] sm:$0xff]
        %v7032 = vld [vmem:[%s7 + $0x190] sm:$0xff]
        %v7033 = vld [vmem:[%s7 + $0x198] sm:$0xff]
        %v7034 = vld [vmem:[%s7 + $0x1a0] sm:$0xff]
        %v7035 = vld [vmem:[%s7 + $0x1a8] sm:$0xff]
        %v7036 = vld [vmem:[%s7 + $0x1b0] sm:$0xff]
        %v7037 = vld [vmem:[%s7 + $0x1b8] sm:$0xff]
        %v7038 = vld [vmem:[%s7 + $0x1c0] sm:$0xff]
        %v7039 = vld [vmem:[%s7 + $0x1c8] sm:$0xff]
        %v7040 = vld [vmem:[%s7 + $0x1d0] sm:$0xff]
        %v7041 = vld [vmem:[%s7 + $0x1d8] sm:$0xff]
        %v7042 = vld [vmem:[%s7 + $0x1e0] sm:$0xff]
        %v7043 = vld [vmem:[%s7 + $0x1e8] sm:$0xff]
        %v7044 = vld [vmem:[%s7 + $0x1f0] sm:$0xff]
        %v7045 = vld [vmem:[%s7 + $0x1f8] sm:$0xff]
        %7046 = vmatpush.msra.mxu0 %v7044
        %7047 = vmatpush.msra.mxu0 %v7042
        %7048 = vmatpush.msra.mxu0 %v7040
        %7049 = vmatpush.msra.mxu0 %v7038
        %7050 = vmatpush.msra.mxu0 %v7036
        %7051 = vmatpush.msra.mxu0 %v7034
        %7052 = vmatpush.msra.mxu0 %v7032
        %7053 = vmatpush.msra.mxu0 %v7030
        %7054 = vmatpush.msra.mxu0 %v7028
        %7055 = vmatpush.msra.mxu0 %v7026
        %7056 = vmatpush.msra.mxu0 %v7024
        %7057 = vmatpush.msra.mxu0 %v7022
        %7058 = vmatpush.msra.mxu0 %v7020
        %7059 = vmatpush.msra.mxu0 %v7018
        %7060 = vmatpush.msra.mxu0 %v7016
        %7061 = vmatpush.msra.mxu0 %v7014
        %7062 = vmatmul.f32.gmra.mxu0 %v7013
        %v7063 = vpop.f32.mrf.mxu0
        %v7064 = vadd.f32 0.0, %v7063
        %7065 = vdwg.mxu0
        %7066 = vmatpush.msra.mxu0 %v7045
        %7067 = vmatpush.msra.mxu0 %v7043
        %7068 = vmatpush.msra.mxu0 %v7041
        %7069 = vmatpush.msra.mxu0 %v7039
        %7070 = vmatpush.msra.mxu0 %v7037
        %7071 = vmatpush.msra.mxu0 %v7035
        %7072 = vmatpush.msra.mxu0 %v7033
        %7073 = vmatpush.msra.mxu0 %v7031
        %7074 = vmatpush.msra.mxu0 %v7029
        %7075 = vmatpush.msra.mxu0 %v7027
        %7076 = vmatpush.msra.mxu0 %v7025
        %7077 = vmatpush.msra.mxu0 %v7023
        %7078 = vmatpush.msra.mxu0 %v7021
        %7079 = vmatpush.msra.mxu0 %v7019
        %7080 = vmatpush.msra.mxu0 %v7017
        %7081 = vmatpush.msra.mxu0 %v7015
        %7082 = vmatmul.f32.gmra.mxu0 %v7013
        %v7083 = vpop.f32.mrf.mxu0
        %v7084 = vadd.f32 0.0, %v7083
        %7085 = vdwg.mxu0
        %7086 = vmatpush.msra.mxu0 %v7011
        %7087 = vmatpush.msra.mxu0 %v7009
        %7088 = vmatpush.msra.mxu0 %v7007
        %7089 = vmatpush.msra.mxu0 %v7005
        %7090 = vmatpush.msra.mxu0 %v7003
        %7091 = vmatpush.msra.mxu0 %v7001
        %7092 = vmatpush.msra.mxu0 %v6999
        %7093 = vmatpush.msra.mxu0 %v6997
        %7094 = vmatpush.msra.mxu0 %v6995
        %7095 = vmatpush.msra.mxu0 %v6993
        %7096 = vmatpush.msra.mxu0 %v6991
        %7097 = vmatpush.msra.mxu0 %v6989
        %7098 = vmatpush.msra.mxu0 %v6987
        %7099 = vmatpush.msra.mxu0 %v6985
        %7100 = vmatpush.msra.mxu0 %v6983
        %7101 = vmatpush.msra.mxu0 %v6981
        %7102 = vmatmul.f32.gmra.mxu0 %v6980
        %v7103 = vpop.f32.mrf.mxu0
        %v7104 = vadd.f32 %v7064, %v7103
        %7105 = vdwg.mxu0
        %7106 = vmatpush.msra.mxu0 %v7012
        %7107 = vmatpush.msra.mxu0 %v7010
        %7108 = vmatpush.msra.mxu0 %v7008
        %7109 = vmatpush.msra.mxu0 %v7006
        %7110 = vmatpush.msra.mxu0 %v7004
        %7111 = vmatpush.msra.mxu0 %v7002
        %7112 = vmatpush.msra.mxu0 %v7000
        %7113 = vmatpush.msra.mxu0 %v6998
        %7114 = vmatpush.msra.mxu0 %v6996
        %7115 = vmatpush.msra.mxu0 %v6994
        %7116 = vmatpush.msra.mxu0 %v6992
        %7117 = vmatpush.msra.mxu0 %v6990
        %7118 = vmatpush.msra.mxu0 %v6988
        %7119 = vmatpush.msra.mxu0 %v6986
        %7120 = vmatpush.msra.mxu0 %v6984
        %7121 = vmatpush.msra.mxu0 %v6982
        %7122 = vmatmul.f32.gmra.mxu0 %v6980
        %v7123 = vpop.f32.mrf.mxu0
        %v7124 = vadd.f32 %v7084, %v7123
        %7125 = vdwg.mxu0
        %v7126 = vld [vmem:[#allocation6 + $0x2] sm:$0xf]
        %v7127 = vld [vmem:[%s7 + $0x200] sm:$0xff]
        %v7128 = vld [vmem:[%s7 + $0x208] sm:$0xff]
        %v7129 = vld [vmem:[%s7 + $0x210] sm:$0xff]
        %v7130 = vld [vmem:[%s7 + $0x218] sm:$0xff]
        %v7131 = vld [vmem:[%s7 + $0x220] sm:$0xff]
        %v7132 = vld [vmem:[%s7 + $0x228] sm:$0xff]
        %v7133 = vld [vmem:[%s7 + $0x230] sm:$0xff]
        %v7134 = vld [vmem:[%s7 + $0x238] sm:$0xff]
        %v7135 = vld [vmem:[%s7 + $0x240] sm:$0xff]
        %v7136 = vld [vmem:[%s7 + $0x248] sm:$0xff]
        %v7137 = vld [vmem:[%s7 + $0x250] sm:$0xff]
        %v7138 = vld [vmem:[%s7 + $0x258] sm:$0xff]
        %v7139 = vld [vmem:[%s7 + $0x260] sm:$0xff]
        %v7140 = vld [vmem:[%s7 + $0x268] sm:$0xff]
        %v7141 = vld [vmem:[%s7 + $0x270] sm:$0xff]
        %v7142 = vld [vmem:[%s7 + $0x278] sm:$0xff]
        %v7143 = vld [vmem:[%s7 + $0x280] sm:$0xff]
        %v7144 = vld [vmem:[%s7 + $0x288] sm:$0xff]
        %v7145 = vld [vmem:[%s7 + $0x290] sm:$0xff]
        %v7146 = vld [vmem:[%s7 + $0x298] sm:$0xff]
        %v7147 = vld [vmem:[%s7 + $0x2a0] sm:$0xff]
        %v7148 = vld [vmem:[%s7 + $0x2a8] sm:$0xff]
        %v7149 = vld [vmem:[%s7 + $0x2b0] sm:$0xff]
        %v7150 = vld [vmem:[%s7 + $0x2b8] sm:$0xff]
        %v7151 = vld [vmem:[%s7 + $0x2c0] sm:$0xff]
        %v7152 = vld [vmem:[%s7 + $0x2c8] sm:$0xff]
        %v7153 = vld [vmem:[%s7 + $0x2d0] sm:$0xff]
        %v7154 = vld [vmem:[%s7 + $0x2d8] sm:$0xff]
        %v7155 = vld [vmem:[%s7 + $0x2e0] sm:$0xff]
        %v7156 = vld [vmem:[%s7 + $0x2e8] sm:$0xff]
        %v7157 = vld [vmem:[%s7 + $0x2f0] sm:$0xff]
        %v7158 = vld [vmem:[%s7 + $0x2f8] sm:$0xff]
        %7159 = vmatpush.msra.mxu0 %v7157
        %7160 = vmatpush.msra.mxu0 %v7155
        %7161 = vmatpush.msra.mxu0 %v7153
        %7162 = vmatpush.msra.mxu0 %v7151
        %7163 = vmatpush.msra.mxu0 %v7149
        %7164 = vmatpush.msra.mxu0 %v7147
        %7165 = vmatpush.msra.mxu0 %v7145
        %7166 = vmatpush.msra.mxu0 %v7143
        %7167 = vmatpush.msra.mxu0 %v7141
        %7168 = vmatpush.msra.mxu0 %v7139
        %7169 = vmatpush.msra.mxu0 %v7137
        %7170 = vmatpush.msra.mxu0 %v7135
        %7171 = vmatpush.msra.mxu0 %v7133
        %7172 = vmatpush.msra.mxu0 %v7131
        %7173 = vmatpush.msra.mxu0 %v7129
        %7174 = vmatpush.msra.mxu0 %v7127
        %7175 = vmatmul.f32.gmra.mxu0 %v7126
        %v7176 = vpop.f32.mrf.mxu0
        %v7177 = vadd.f32 0.0, %v7176
        %7178 = vdwg.mxu0
        %7179 = vmatpush.msra.mxu0 %v7158
        %7180 = vmatpush.msra.mxu0 %v7156
        %7181 = vmatpush.msra.mxu0 %v7154
        %7182 = vmatpush.msra.mxu0 %v7152
        %7183 = vmatpush.msra.mxu0 %v7150
        %7184 = vmatpush.msra.mxu0 %v7148
        %7185 = vmatpush.msra.mxu0 %v7146
        %7186 = vmatpush.msra.mxu0 %v7144
        %7187 = vmatpush.msra.mxu0 %v7142
        %7188 = vmatpush.msra.mxu0 %v7140
        %7189 = vmatpush.msra.mxu0 %v7138
        %7190 = vmatpush.msra.mxu0 %v7136
        %7191 = vmatpush.msra.mxu0 %v7134
        %7192 = vmatpush.msra.mxu0 %v7132
        %7193 = vmatpush.msra.mxu0 %v7130
        %7194 = vmatpush.msra.mxu0 %v7128
        %7195 = vmatmul.f32.gmra.mxu0 %v7126
        %v7196 = vpop.f32.mrf.mxu0
        %v7197 = vadd.f32 0.0, %v7196
        %7198 = vdwg.mxu0
        %v7199 = vadd.f32 %v7104, %v7177
        %v7200 = vadd.f32 %v7124, %v7197
        %v7201 = vld [vmem:[#allocation6 + $0x4] sm:$0xf]
        %v7202 = vld [vmem:[%s7 + $0x300] sm:$0xff]
        %v7203 = vld [vmem:[%s7 + $0x308] sm:$0xff]
        %v7204 = vld [vmem:[%s7 + $0x310] sm:$0xff]
        %v7205 = vld [vmem:[%s7 + $0x318] sm:$0xff]
        %v7206 = vld [vmem:[%s7 + $0x320] sm:$0xff]
        %v7207 = vld [vmem:[%s7 + $0x328] sm:$0xff]
        %v7208 = vld [vmem:[%s7 + $0x330] sm:$0xff]
        %v7209 = vld [vmem:[%s7 + $0x338] sm:$0xff]
        %v7210 = vld [vmem:[%s7 + $0x340] sm:$0xff]
        %v7211 = vld [vmem:[%s7 + $0x348] sm:$0xff]
        %v7212 = vld [vmem:[%s7 + $0x350] sm:$0xff]
        %v7213 = vld [vmem:[%s7 + $0x358] sm:$0xff]
        %v7214 = vld [vmem:[%s7 + $0x360] sm:$0xff]
        %v7215 = vld [vmem:[%s7 + $0x368] sm:$0xff]
        %v7216 = vld [vmem:[%s7 + $0x370] sm:$0xff]
        %v7217 = vld [vmem:[%s7 + $0x378] sm:$0xff]
        %v7218 = vld [vmem:[%s7 + $0x380] sm:$0xff]
        %v7219 = vld [vmem:[%s7 + $0x388] sm:$0xff]
        %v7220 = vld [vmem:[%s7 + $0x390] sm:$0xff]
        %v7221 = vld [vmem:[%s7 + $0x398] sm:$0xff]
        %v7222 = vld [vmem:[%s7 + $0x3a0] sm:$0xff]
        %v7223 = vld [vmem:[%s7 + $0x3a8] sm:$0xff]
        %v7224 = vld [vmem:[%s7 + $0x3b0] sm:$0xff]
        %v7225 = vld [vmem:[%s7 + $0x3b8] sm:$0xff]
        %v7226 = vld [vmem:[%s7 + $0x3c0] sm:$0xff]
        %v7227 = vld [vmem:[%s7 + $0x3c8] sm:$0xff]
        %v7228 = vld [vmem:[%s7 + $0x3d0] sm:$0xff]
        %v7229 = vld [vmem:[%s7 + $0x3d8] sm:$0xff]
        %v7230 = vld [vmem:[%s7 + $0x3e0] sm:$0xff]
        %v7231 = vld [vmem:[%s7 + $0x3e8] sm:$0xff]
        %v7232 = vld [vmem:[%s7 + $0x3f0] sm:$0xff]
        %v7233 = vld [vmem:[%s7 + $0x3f8] sm:$0xff]
        %7234 = vmatpush.msra.mxu0 %v7232
        %7235 = vmatpush.msra.mxu0 %v7230
        %7236 = vmatpush.msra.mxu0 %v7228
        %7237 = vmatpush.msra.mxu0 %v7226
        %7238 = vmatpush.msra.mxu0 %v7224
        %7239 = vmatpush.msra.mxu0 %v7222
        %7240 = vmatpush.msra.mxu0 %v7220
        %7241 = vmatpush.msra.mxu0 %v7218
        %7242 = vmatpush.msra.mxu0 %v7216
        %7243 = vmatpush.msra.mxu0 %v7214
        %7244 = vmatpush.msra.mxu0 %v7212
        %7245 = vmatpush.msra.mxu0 %v7210
        %7246 = vmatpush.msra.mxu0 %v7208
        %7247 = vmatpush.msra.mxu0 %v7206
        %7248 = vmatpush.msra.mxu0 %v7204
        %7249 = vmatpush.msra.mxu0 %v7202
        %7250 = vmatmul.f32.gmra.mxu0 %v7201
        %v7251 = vpop.f32.mrf.mxu0
        %v7252 = vadd.f32 0.0, %v7251
        %7253 = vdwg.mxu0
        %7254 = vmatpush.msra.mxu0 %v7233
        %7255 = vmatpush.msra.mxu0 %v7231
        %7256 = vmatpush.msra.mxu0 %v7229
        %7257 = vmatpush.msra.mxu0 %v7227
        %7258 = vmatpush.msra.mxu0 %v7225
        %7259 = vmatpush.msra.mxu0 %v7223
        %7260 = vmatpush.msra.mxu0 %v7221
        %7261 = vmatpush.msra.mxu0 %v7219
        %7262 = vmatpush.msra.mxu0 %v7217
        %7263 = vmatpush.msra.mxu0 %v7215
        %7264 = vmatpush.msra.mxu0 %v7213
        %7265 = vmatpush.msra.mxu0 %v7211
        %7266 = vmatpush.msra.mxu0 %v7209
        %7267 = vmatpush.msra.mxu0 %v7207
        %7268 = vmatpush.msra.mxu0 %v7205
        %7269 = vmatpush.msra.mxu0 %v7203
        %7270 = vmatmul.f32.gmra.mxu0 %v7201
        %v7271 = vpop.f32.mrf.mxu0
        %v7272 = vadd.f32 0.0, %v7271
        %7273 = vdwg.mxu0
        %v7274 = vadd.f32 %v7199, %v7252
        %v7275 = vadd.f32 %v7200, %v7272
        %v7276 = vld [vmem:[#allocation6 + $0x5] sm:$0xf]
        %v7277 = vld [vmem:[%s7 + $0x400] sm:$0xff]
        %v7278 = vld [vmem:[%s7 + $0x408] sm:$0xff]
        %v7279 = vld [vmem:[%s7 + $0x410] sm:$0xff]
        %v7280 = vld [vmem:[%s7 + $0x418] sm:$0xff]
        %v7281 = vld [vmem:[%s7 + $0x420] sm:$0xff]
        %v7282 = vld [vmem:[%s7 + $0x428] sm:$0xff]
        %v7283 = vld [vmem:[%s7 + $0x430] sm:$0xff]
        %v7284 = vld [vmem:[%s7 + $0x438] sm:$0xff]
        %v7285 = vld [vmem:[%s7 + $0x440] sm:$0xff]
        %v7286 = vld [vmem:[%s7 + $0x448] sm:$0xff]
        %v7287 = vld [vmem:[%s7 + $0x450] sm:$0xff]
        %v7288 = vld [vmem:[%s7 + $0x458] sm:$0xff]
        %v7289 = vld [vmem:[%s7 + $0x460] sm:$0xff]
        %v7290 = vld [vmem:[%s7 + $0x468] sm:$0xff]
        %v7291 = vld [vmem:[%s7 + $0x470] sm:$0xff]
        %v7292 = vld [vmem:[%s7 + $0x478] sm:$0xff]
        %v7293 = vld [vmem:[%s7 + $0x480] sm:$0xff]
        %v7294 = vld [vmem:[%s7 + $0x488] sm:$0xff]
        %v7295 = vld [vmem:[%s7 + $0x490] sm:$0xff]
        %v7296 = vld [vmem:[%s7 + $0x498] sm:$0xff]
        %v7297 = vld [vmem:[%s7 + $0x4a0] sm:$0xff]
        %v7298 = vld [vmem:[%s7 + $0x4a8] sm:$0xff]
        %v7299 = vld [vmem:[%s7 + $0x4b0] sm:$0xff]
        %v7300 = vld [vmem:[%s7 + $0x4b8] sm:$0xff]
        %v7301 = vld [vmem:[%s7 + $0x4c0] sm:$0xff]
        %v7302 = vld [vmem:[%s7 + $0x4c8] sm:$0xff]
        %v7303 = vld [vmem:[%s7 + $0x4d0] sm:$0xff]
        %v7304 = vld [vmem:[%s7 + $0x4d8] sm:$0xff]
        %v7305 = vld [vmem:[%s7 + $0x4e0] sm:$0xff]
        %v7306 = vld [vmem:[%s7 + $0x4e8] sm:$0xff]
        %v7307 = vld [vmem:[%s7 + $0x4f0] sm:$0xff]
        %v7308 = vld [vmem:[%s7 + $0x4f8] sm:$0xff]
        %7309 = vmatpush.msra.mxu0 %v7307
        %7310 = vmatpush.msra.mxu0 %v7305
        %7311 = vmatpush.msra.mxu0 %v7303
        %7312 = vmatpush.msra.mxu0 %v7301
        %7313 = vmatpush.msra.mxu0 %v7299
        %7314 = vmatpush.msra.mxu0 %v7297
        %7315 = vmatpush.msra.mxu0 %v7295
        %7316 = vmatpush.msra.mxu0 %v7293
        %7317 = vmatpush.msra.mxu0 %v7291
        %7318 = vmatpush.msra.mxu0 %v7289
        %7319 = vmatpush.msra.mxu0 %v7287
        %7320 = vmatpush.msra.mxu0 %v7285
        %7321 = vmatpush.msra.mxu0 %v7283
        %7322 = vmatpush.msra.mxu0 %v7281
        %7323 = vmatpush.msra.mxu0 %v7279
        %7324 = vmatpush.msra.mxu0 %v7277
        %7325 = vmatmul.f32.gmra.mxu0 %v7276
        %v7326 = vpop.f32.mrf.mxu0
        %v7327 = vadd.f32 0.0, %v7326
        %7328 = vdwg.mxu0
        %7329 = vmatpush.msra.mxu0 %v7308
        %7330 = vmatpush.msra.mxu0 %v7306
        %7331 = vmatpush.msra.mxu0 %v7304
        %7332 = vmatpush.msra.mxu0 %v7302
        %7333 = vmatpush.msra.mxu0 %v7300
        %7334 = vmatpush.msra.mxu0 %v7298
        %7335 = vmatpush.msra.mxu0 %v7296
        %7336 = vmatpush.msra.mxu0 %v7294
        %7337 = vmatpush.msra.mxu0 %v7292
        %7338 = vmatpush.msra.mxu0 %v7290
        %7339 = vmatpush.msra.mxu0 %v7288
        %7340 = vmatpush.msra.mxu0 %v7286
        %7341 = vmatpush.msra.mxu0 %v7284
        %7342 = vmatpush.msra.mxu0 %v7282
        %7343 = vmatpush.msra.mxu0 %v7280
        %7344 = vmatpush.msra.mxu0 %v7278
        %7345 = vmatmul.f32.gmra.mxu0 %v7276
        %v7346 = vpop.f32.mrf.mxu0
        %v7347 = vadd.f32 0.0, %v7346
        %7348 = vdwg.mxu0
        %v7349 = vadd.f32 %v7274, %v7327
        %v7350 = vadd.f32 %v7275, %v7347
        %v7351 = vld [vmem:[#allocation6 + $0x6] sm:$0xf]
        %v7352 = vld [vmem:[%s7 + $0x500] sm:$0xff]
        %v7353 = vld [vmem:[%s7 + $0x508] sm:$0xff]
        %v7354 = vld [vmem:[%s7 + $0x510] sm:$0xff]
        %v7355 = vld [vmem:[%s7 + $0x518] sm:$0xff]
        %v7356 = vld [vmem:[%s7 + $0x520] sm:$0xff]
        %v7357 = vld [vmem:[%s7 + $0x528] sm:$0xff]
        %v7358 = vld [vmem:[%s7 + $0x530] sm:$0xff]
        %v7359 = vld [vmem:[%s7 + $0x538] sm:$0xff]
        %v7360 = vld [vmem:[%s7 + $0x540] sm:$0xff]
        %v7361 = vld [vmem:[%s7 + $0x548] sm:$0xff]
        %v7362 = vld [vmem:[%s7 + $0x550] sm:$0xff]
        %v7363 = vld [vmem:[%s7 + $0x558] sm:$0xff]
        %v7364 = vld [vmem:[%s7 + $0x560] sm:$0xff]
        %v7365 = vld [vmem:[%s7 + $0x568] sm:$0xff]
        %v7366 = vld [vmem:[%s7 + $0x570] sm:$0xff]
        %v7367 = vld [vmem:[%s7 + $0x578] sm:$0xff]
        %v7368 = vld [vmem:[%s7 + $0x580] sm:$0xff]
        %v7369 = vld [vmem:[%s7 + $0x588] sm:$0xff]
        %v7370 = vld [vmem:[%s7 + $0x590] sm:$0xff]
        %v7371 = vld [vmem:[%s7 + $0x598] sm:$0xff]
        %v7372 = vld [vmem:[%s7 + $0x5a0] sm:$0xff]
        %v7373 = vld [vmem:[%s7 + $0x5a8] sm:$0xff]
        %v7374 = vld [vmem:[%s7 + $0x5b0] sm:$0xff]
        %v7375 = vld [vmem:[%s7 + $0x5b8] sm:$0xff]
        %v7376 = vld [vmem:[%s7 + $0x5c0] sm:$0xff]
        %v7377 = vld [vmem:[%s7 + $0x5c8] sm:$0xff]
        %v7378 = vld [vmem:[%s7 + $0x5d0] sm:$0xff]
        %v7379 = vld [vmem:[%s7 + $0x5d8] sm:$0xff]
        %v7380 = vld [vmem:[%s7 + $0x5e0] sm:$0xff]
        %v7381 = vld [vmem:[%s7 + $0x5e8] sm:$0xff]
        %v7382 = vld [vmem:[%s7 + $0x5f0] sm:$0xff]
        %v7383 = vld [vmem:[%s7 + $0x5f8] sm:$0xff]
        %7384 = vmatpush.msra.mxu0 %v7382
        %7385 = vmatpush.msra.mxu0 %v7380
        %7386 = vmatpush.msra.mxu0 %v7378
        %7387 = vmatpush.msra.mxu0 %v7376
        %7388 = vmatpush.msra.mxu0 %v7374
        %7389 = vmatpush.msra.mxu0 %v7372
        %7390 = vmatpush.msra.mxu0 %v7370
        %7391 = vmatpush.msra.mxu0 %v7368
        %7392 = vmatpush.msra.mxu0 %v7366
        %7393 = vmatpush.msra.mxu0 %v7364
        %7394 = vmatpush.msra.mxu0 %v7362
        %7395 = vmatpush.msra.mxu0 %v7360
        %7396 = vmatpush.msra.mxu0 %v7358
        %7397 = vmatpush.msra.mxu0 %v7356
        %7398 = vmatpush.msra.mxu0 %v7354
        %7399 = vmatpush.msra.mxu0 %v7352
        %7400 = vmatmul.f32.gmra.mxu0 %v7351
        %v7401 = vpop.f32.mrf.mxu0
        %v7402 = vadd.f32 0.0, %v7401
        %7403 = vdwg.mxu0
        %7404 = vmatpush.msra.mxu0 %v7383
        %7405 = vmatpush.msra.mxu0 %v7381
        %7406 = vmatpush.msra.mxu0 %v7379
        %7407 = vmatpush.msra.mxu0 %v7377
        %7408 = vmatpush.msra.mxu0 %v7375
        %7409 = vmatpush.msra.mxu0 %v7373
        %7410 = vmatpush.msra.mxu0 %v7371
        %7411 = vmatpush.msra.mxu0 %v7369
        %7412 = vmatpush.msra.mxu0 %v7367
        %7413 = vmatpush.msra.mxu0 %v7365
        %7414 = vmatpush.msra.mxu0 %v7363
        %7415 = vmatpush.msra.mxu0 %v7361
        %7416 = vmatpush.msra.mxu0 %v7359
        %7417 = vmatpush.msra.mxu0 %v7357
        %7418 = vmatpush.msra.mxu0 %v7355
        %7419 = vmatpush.msra.mxu0 %v7353
        %7420 = vmatmul.f32.gmra.mxu0 %v7351
        %v7421 = vpop.f32.mrf.mxu0
        %v7422 = vadd.f32 0.0, %v7421
        %7423 = vdwg.mxu0
        %v7424 = vadd.f32 %v7349, %v7402
        %v7425 = vadd.f32 %v7350, %v7422
        %v7426 = vld [vmem:[#allocation6 + $0x8] sm:$0xf]
        %v7427 = vld [vmem:[%s7 + $0x600] sm:$0xff]
        %v7428 = vld [vmem:[%s7 + $0x608] sm:$0xff]
        %v7429 = vld [vmem:[%s7 + $0x610] sm:$0xff]
        %v7430 = vld [vmem:[%s7 + $0x618] sm:$0xff]
        %v7431 = vld [vmem:[%s7 + $0x620] sm:$0xff]
        %v7432 = vld [vmem:[%s7 + $0x628] sm:$0xff]
        %v7433 = vld [vmem:[%s7 + $0x630] sm:$0xff]
        %v7434 = vld [vmem:[%s7 + $0x638] sm:$0xff]
        %v7435 = vld [vmem:[%s7 + $0x640] sm:$0xff]
        %v7436 = vld [vmem:[%s7 + $0x648] sm:$0xff]
        %v7437 = vld [vmem:[%s7 + $0x650] sm:$0xff]
        %v7438 = vld [vmem:[%s7 + $0x658] sm:$0xff]
        %v7439 = vld [vmem:[%s7 + $0x660] sm:$0xff]
        %v7440 = vld [vmem:[%s7 + $0x668] sm:$0xff]
        %v7441 = vld [vmem:[%s7 + $0x670] sm:$0xff]
        %v7442 = vld [vmem:[%s7 + $0x678] sm:$0xff]
        %v7443 = vld [vmem:[%s7 + $0x680] sm:$0xff]
        %v7444 = vld [vmem:[%s7 + $0x688] sm:$0xff]
        %v7445 = vld [vmem:[%s7 + $0x690] sm:$0xff]
        %v7446 = vld [vmem:[%s7 + $0x698] sm:$0xff]
        %v7447 = vld [vmem:[%s7 + $0x6a0] sm:$0xff]
        %v7448 = vld [vmem:[%s7 + $0x6a8] sm:$0xff]
        %v7449 = vld [vmem:[%s7 + $0x6b0] sm:$0xff]
        %v7450 = vld [vmem:[%s7 + $0x6b8] sm:$0xff]
        %v7451 = vld [vmem:[%s7 + $0x6c0] sm:$0xff]
        %v7452 = vld [vmem:[%s7 + $0x6c8] sm:$0xff]
        %v7453 = vld [vmem:[%s7 + $0x6d0] sm:$0xff]
        %v7454 = vld [vmem:[%s7 + $0x6d8] sm:$0xff]
        %v7455 = vld [vmem:[%s7 + $0x6e0] sm:$0xff]
        %v7456 = vld [vmem:[%s7 + $0x6e8] sm:$0xff]
        %v7457 = vld [vmem:[%s7 + $0x6f0] sm:$0xff]
        %v7458 = vld [vmem:[%s7 + $0x6f8] sm:$0xff]
        %7459 = vmatpush.msra.mxu0 %v7457
        %7460 = vmatpush.msra.mxu0 %v7455
        %7461 = vmatpush.msra.mxu0 %v7453
        %7462 = vmatpush.msra.mxu0 %v7451
        %7463 = vmatpush.msra.mxu0 %v7449
        %7464 = vmatpush.msra.mxu0 %v7447
        %7465 = vmatpush.msra.mxu0 %v7445
        %7466 = vmatpush.msra.mxu0 %v7443
        %7467 = vmatpush.msra.mxu0 %v7441
        %7468 = vmatpush.msra.mxu0 %v7439
        %7469 = vmatpush.msra.mxu0 %v7437
        %7470 = vmatpush.msra.mxu0 %v7435
        %7471 = vmatpush.msra.mxu0 %v7433
        %7472 = vmatpush.msra.mxu0 %v7431
        %7473 = vmatpush.msra.mxu0 %v7429
        %7474 = vmatpush.msra.mxu0 %v7427
        %7475 = vmatmul.f32.gmra.mxu0 %v7426
        %v7476 = vpop.f32.mrf.mxu0
        %v7477 = vadd.f32 0.0, %v7476
        %7478 = vdwg.mxu0
        %7479 = vmatpush.msra.mxu0 %v7458
        %7480 = vmatpush.msra.mxu0 %v7456
        %7481 = vmatpush.msra.mxu0 %v7454
        %7482 = vmatpush.msra.mxu0 %v7452
        %7483 = vmatpush.msra.mxu0 %v7450
        %7484 = vmatpush.msra.mxu0 %v7448
        %7485 = vmatpush.msra.mxu0 %v7446
        %7486 = vmatpush.msra.mxu0 %v7444
        %7487 = vmatpush.msra.mxu0 %v7442
        %7488 = vmatpush.msra.mxu0 %v7440
        %7489 = vmatpush.msra.mxu0 %v7438
        %7490 = vmatpush.msra.mxu0 %v7436
        %7491 = vmatpush.msra.mxu0 %v7434
        %7492 = vmatpush.msra.mxu0 %v7432
        %7493 = vmatpush.msra.mxu0 %v7430
        %7494 = vmatpush.msra.mxu0 %v7428
        %7495 = vmatmul.f32.gmra.mxu0 %v7426
        %v7496 = vpop.f32.mrf.mxu0
        %v7497 = vadd.f32 0.0, %v7496
        %7498 = vdwg.mxu0
        %v7499 = vadd.f32 %v7424, %v7477
        %v7500 = vadd.f32 %v7425, %v7497
        %v7501 = vld [vmem:[#allocation6 + $0x9] sm:$0xf]
        %v7502 = vld [vmem:[%s7 + $0x700] sm:$0xff]
        %v7503 = vld [vmem:[%s7 + $0x708] sm:$0xff]
        %v7504 = vld [vmem:[%s7 + $0x710] sm:$0xff]
        %v7505 = vld [vmem:[%s7 + $0x718] sm:$0xff]
        %v7506 = vld [vmem:[%s7 + $0x720] sm:$0xff]
        %v7507 = vld [vmem:[%s7 + $0x728] sm:$0xff]
        %v7508 = vld [vmem:[%s7 + $0x730] sm:$0xff]
        %v7509 = vld [vmem:[%s7 + $0x738] sm:$0xff]
        %v7510 = vld [vmem:[%s7 + $0x740] sm:$0xff]
        %v7511 = vld [vmem:[%s7 + $0x748] sm:$0xff]
        %v7512 = vld [vmem:[%s7 + $0x750] sm:$0xff]
        %v7513 = vld [vmem:[%s7 + $0x758] sm:$0xff]
        %v7514 = vld [vmem:[%s7 + $0x760] sm:$0xff]
        %v7515 = vld [vmem:[%s7 + $0x768] sm:$0xff]
        %v7516 = vld [vmem:[%s7 + $0x770] sm:$0xff]
        %v7517 = vld [vmem:[%s7 + $0x778] sm:$0xff]
        %v7518 = vld [vmem:[%s7 + $0x780] sm:$0xff]
        %v7519 = vld [vmem:[%s7 + $0x788] sm:$0xff]
        %v7520 = vld [vmem:[%s7 + $0x790] sm:$0xff]
        %v7521 = vld [vmem:[%s7 + $0x798] sm:$0xff]
        %v7522 = vld [vmem:[%s7 + $0x7a0] sm:$0xff]
        %v7523 = vld [vmem:[%s7 + $0x7a8] sm:$0xff]
        %v7524 = vld [vmem:[%s7 + $0x7b0] sm:$0xff]
        %v7525 = vld [vmem:[%s7 + $0x7b8] sm:$0xff]
        %v7526 = vld [vmem:[%s7 + $0x7c0] sm:$0xff]
        %v7527 = vld [vmem:[%s7 + $0x7c8] sm:$0xff]
        %v7528 = vld [vmem:[%s7 + $0x7d0] sm:$0xff]
        %v7529 = vld [vmem:[%s7 + $0x7d8] sm:$0xff]
        %v7530 = vld [vmem:[%s7 + $0x7e0] sm:$0xff]
        %v7531 = vld [vmem:[%s7 + $0x7e8] sm:$0xff]
        %v7532 = vld [vmem:[%s7 + $0x7f0] sm:$0xff]
        %v7533 = vld [vmem:[%s7 + $0x7f8] sm:$0xff]
        %7534 = vmatpush.msra.mxu0 %v7532
        %7535 = vmatpush.msra.mxu0 %v7530
        %7536 = vmatpush.msra.mxu0 %v7528
        %7537 = vmatpush.msra.mxu0 %v7526
        %7538 = vmatpush.msra.mxu0 %v7524
        %7539 = vmatpush.msra.mxu0 %v7522
        %7540 = vmatpush.msra.mxu0 %v7520
        %7541 = vmatpush.msra.mxu0 %v7518
        %7542 = vmatpush.msra.mxu0 %v7516
        %7543 = vmatpush.msra.mxu0 %v7514
        %7544 = vmatpush.msra.mxu0 %v7512
        %7545 = vmatpush.msra.mxu0 %v7510
        %7546 = vmatpush.msra.mxu0 %v7508
        %7547 = vmatpush.msra.mxu0 %v7506
        %7548 = vmatpush.msra.mxu0 %v7504
        %7549 = vmatpush.msra.mxu0 %v7502
        %7550 = vmatmul.f32.gmra.mxu0 %v7501
        %v7551 = vpop.f32.mrf.mxu0
        %v7552 = vadd.f32 0.0, %v7551
        %7553 = vdwg.mxu0
        %7554 = vmatpush.msra.mxu0 %v7533
        %7555 = vmatpush.msra.mxu0 %v7531
        %7556 = vmatpush.msra.mxu0 %v7529
        %7557 = vmatpush.msra.mxu0 %v7527
        %7558 = vmatpush.msra.mxu0 %v7525
        %7559 = vmatpush.msra.mxu0 %v7523
        %7560 = vmatpush.msra.mxu0 %v7521
        %7561 = vmatpush.msra.mxu0 %v7519
        %7562 = vmatpush.msra.mxu0 %v7517
        %7563 = vmatpush.msra.mxu0 %v7515
        %7564 = vmatpush.msra.mxu0 %v7513
        %7565 = vmatpush.msra.mxu0 %v7511
        %7566 = vmatpush.msra.mxu0 %v7509
        %7567 = vmatpush.msra.mxu0 %v7507
        %7568 = vmatpush.msra.mxu0 %v7505
        %7569 = vmatpush.msra.mxu0 %v7503
        %7570 = vmatmul.f32.gmra.mxu0 %v7501
        %v7571 = vpop.f32.mrf.mxu0
        %v7572 = vadd.f32 0.0, %v7571
        %7573 = vdwg.mxu0
        %v7574 = vadd.f32 %v7499, %v7552
        %v7575 = vadd.f32 %v7500, %v7572
        %v7576 = vld [vmem:[#allocation6 + $0xa] sm:$0xf]
        %v7577 = vld [vmem:[%s7 + $0x800] sm:$0xff]
        %v7578 = vld [vmem:[%s7 + $0x808] sm:$0xff]
        %v7579 = vld [vmem:[%s7 + $0x810] sm:$0xff]
        %v7580 = vld [vmem:[%s7 + $0x818] sm:$0xff]
        %v7581 = vld [vmem:[%s7 + $0x820] sm:$0xff]
        %v7582 = vld [vmem:[%s7 + $0x828] sm:$0xff]
        %v7583 = vld [vmem:[%s7 + $0x830] sm:$0xff]
        %v7584 = vld [vmem:[%s7 + $0x838] sm:$0xff]
        %v7585 = vld [vmem:[%s7 + $0x840] sm:$0xff]
        %v7586 = vld [vmem:[%s7 + $0x848] sm:$0xff]
        %v7587 = vld [vmem:[%s7 + $0x850] sm:$0xff]
        %v7588 = vld [vmem:[%s7 + $0x858] sm:$0xff]
        %v7589 = vld [vmem:[%s7 + $0x860] sm:$0xff]
        %v7590 = vld [vmem:[%s7 + $0x868] sm:$0xff]
        %v7591 = vld [vmem:[%s7 + $0x870] sm:$0xff]
        %v7592 = vld [vmem:[%s7 + $0x878] sm:$0xff]
        %v7593 = vld [vmem:[%s7 + $0x880] sm:$0xff]
        %v7594 = vld [vmem:[%s7 + $0x888] sm:$0xff]
        %v7595 = vld [vmem:[%s7 + $0x890] sm:$0xff]
        %v7596 = vld [vmem:[%s7 + $0x898] sm:$0xff]
        %v7597 = vld [vmem:[%s7 + $0x8a0] sm:$0xff]
        %v7598 = vld [vmem:[%s7 + $0x8a8] sm:$0xff]
        %v7599 = vld [vmem:[%s7 + $0x8b0] sm:$0xff]
        %v7600 = vld [vmem:[%s7 + $0x8b8] sm:$0xff]
        %v7601 = vld [vmem:[%s7 + $0x8c0] sm:$0xff]
        %v7602 = vld [vmem:[%s7 + $0x8c8] sm:$0xff]
        %v7603 = vld [vmem:[%s7 + $0x8d0] sm:$0xff]
        %v7604 = vld [vmem:[%s7 + $0x8d8] sm:$0xff]
        %v7605 = vld [vmem:[%s7 + $0x8e0] sm:$0xff]
        %v7606 = vld [vmem:[%s7 + $0x8e8] sm:$0xff]
        %v7607 = vld [vmem:[%s7 + $0x8f0] sm:$0xff]
        %v7608 = vld [vmem:[%s7 + $0x8f8] sm:$0xff]
        %7609 = vmatpush.msra.mxu0 %v7607
        %7610 = vmatpush.msra.mxu0 %v7605
        %7611 = vmatpush.msra.mxu0 %v7603
        %7612 = vmatpush.msra.mxu0 %v7601
        %7613 = vmatpush.msra.mxu0 %v7599
        %7614 = vmatpush.msra.mxu0 %v7597
        %7615 = vmatpush.msra.mxu0 %v7595
        %7616 = vmatpush.msra.mxu0 %v7593
        %7617 = vmatpush.msra.mxu0 %v7591
        %7618 = vmatpush.msra.mxu0 %v7589
        %7619 = vmatpush.msra.mxu0 %v7587
        %7620 = vmatpush.msra.mxu0 %v7585
        %7621 = vmatpush.msra.mxu0 %v7583
        %7622 = vmatpush.msra.mxu0 %v7581
        %7623 = vmatpush.msra.mxu0 %v7579
        %7624 = vmatpush.msra.mxu0 %v7577
        %7625 = vmatmul.f32.gmra.mxu0 %v7576
        %v7626 = vpop.f32.mrf.mxu0
        %v7627 = vadd.f32 0.0, %v7626
        %7628 = vdwg.mxu0
        %7629 = vmatpush.msra.mxu0 %v7608
        %7630 = vmatpush.msra.mxu0 %v7606
        %7631 = vmatpush.msra.mxu0 %v7604
        %7632 = vmatpush.msra.mxu0 %v7602
        %7633 = vmatpush.msra.mxu0 %v7600
        %7634 = vmatpush.msra.mxu0 %v7598
        %7635 = vmatpush.msra.mxu0 %v7596
        %7636 = vmatpush.msra.mxu0 %v7594
        %7637 = vmatpush.msra.mxu0 %v7592
        %7638 = vmatpush.msra.mxu0 %v7590
        %7639 = vmatpush.msra.mxu0 %v7588
        %7640 = vmatpush.msra.mxu0 %v7586
        %7641 = vmatpush.msra.mxu0 %v7584
        %7642 = vmatpush.msra.mxu0 %v7582
        %7643 = vmatpush.msra.mxu0 %v7580
        %7644 = vmatpush.msra.mxu0 %v7578
        %7645 = vmatmul.f32.gmra.mxu0 %v7576
        %v7646 = vpop.f32.mrf.mxu0
        %v7647 = vadd.f32 0.0, %v7646
        %7648 = vdwg.mxu0
        %v7649 = vadd.f32 %v7574, %v7627
        %v7650 = vadd.f32 %v7575, %v7647
        %v7651 = vld [vmem:[%s8] sm:$0x3]
        %v7653 = vperm.slane %v7651, 0
        %v7654 = vperm.slane %v7651, 1
        %v7657 = vadd.f32 %v7649, %v7653
        %v7658 = vadd.f32 %v7650, %v7654
        %v7659 = vmax.f32 %v7657, 0.0
        %v7660 = vmax.f32 %v7658, 0.0
        %7662 = vrot.lane.b32.xlu0 %v7659, 64
        %v7663 = vpop.permute.xlu0 %7662
        %v7665 = vmax.f32 %v7659, %v7663
        %7667 = vrot.lane.b32.xlu0 %v7660, 64
        %v7668 = vpop.permute.xlu0 %7667
        %v7670 = vmax.f32 %v7660, %v7668
        %v7671 = vmax.f32 %v7665, %v7670
        %v7672 = vld [vmem:[%s9] sm:$0xff]
        %v7673 = vld [vmem:[%s9 + $0x8] sm:$0xff]
        %v7674 = vld [vmem:[%s9 + $0x10] sm:$0xff]
        %v7675 = vld [vmem:[%s9 + $0x18] sm:$0xff]
        %v7676 = vld [vmem:[%s9 + $0x20] sm:$0xff]
        %v7677 = vld [vmem:[%s9 + $0x28] sm:$0xff]
        %v7678 = vld [vmem:[%s9 + $0x30] sm:$0xff]
        %v7679 = vld [vmem:[%s9 + $0x38] sm:$0xff]
        %v7680 = vld [vmem:[%s9 + $0x40] sm:$0xff]
        %v7681 = vld [vmem:[%s9 + $0x48] sm:$0xff]
        %v7682 = vld [vmem:[%s9 + $0x50] sm:$0xff]
        %v7683 = vld [vmem:[%s9 + $0x58] sm:$0xff]
        %v7684 = vld [vmem:[%s9 + $0x60] sm:$0xff]
        %v7685 = vld [vmem:[%s9 + $0x68] sm:$0xff]
        %v7686 = vld [vmem:[%s9 + $0x70] sm:$0xff]
        %v7687 = vld [vmem:[%s9 + $0x78] sm:$0xff]
        %v7688 = vld [vmem:[%s10] sm:$0x3]
        %v7690 = vperm.slane %v7688, 0
        %v7691 = vperm.slane %v7688, 1
        %v7695 = vsel %vm544, %v7671, 0
        %7697 = vmatpush.msra.mxu0 0.0
        %7698 = vmatpush.msra.mxu0 0.0
        %7699 = vmatpush.msra.mxu0 0.0
        %7700 = vmatpush.msra.mxu0 0.0
        %7701 = vmatpush.msra.mxu0 0.0
        %7702 = vmatpush.msra.mxu0 0.0
        %7703 = vmatpush.msra.mxu0 0.0
        %7704 = vmatpush.msra.mxu0 0.0
        %7705 = vmatpush.msra.mxu0 %v7686
        %7706 = vmatpush.msra.mxu0 %v7684
        %7707 = vmatpush.msra.mxu0 %v7682
        %7708 = vmatpush.msra.mxu0 %v7680
        %7709 = vmatpush.msra.mxu0 %v7678
        %7710 = vmatpush.msra.mxu0 %v7676
        %7711 = vmatpush.msra.mxu0 %v7674
        %7712 = vmatpush.msra.mxu0 %v7672
        %7713 = vmatmul.f32.gmra.mxu0 %v7695
        %v7714 = vpop.f32.mrf.mxu0
        %v7715 = vadd.f32 %v7690, %v7714
        %7716 = vdwg.mxu0
        %7717 = vmatpush.msra.mxu0 0.0
        %7718 = vmatpush.msra.mxu0 0.0
        %7719 = vmatpush.msra.mxu0 0.0
        %7720 = vmatpush.msra.mxu0 0.0
        %7721 = vmatpush.msra.mxu0 0.0
        %7722 = vmatpush.msra.mxu0 0.0
        %7723 = vmatpush.msra.mxu0 0.0
        %7724 = vmatpush.msra.mxu0 0.0
        %7725 = vmatpush.msra.mxu0 %v7687
        %7726 = vmatpush.msra.mxu0 %v7685
        %7727 = vmatpush.msra.mxu0 %v7683
        %7728 = vmatpush.msra.mxu0 %v7681
        %7729 = vmatpush.msra.mxu0 %v7679
        %7730 = vmatpush.msra.mxu0 %v7677
        %7731 = vmatpush.msra.mxu0 %v7675
        %7732 = vmatpush.msra.mxu0 %v7673
        %7733 = vmatmul.f32.gmra.mxu0 %v7695
        %v7734 = vpop.f32.mrf.mxu0
        %v7735 = vadd.f32 %v7691, %v7734
        %7736 = vdwg.mxu0
        %v7737 = vmax.f32 %v7715, 0.0
        %v7738 = vmax.f32 %v7735, 0.0
        %v7739 = vld [vmem:[%s11] sm:$0xff]
        %v7740 = vld [vmem:[%s11 + $0x8] sm:$0xff]
        %v7741 = vld [vmem:[%s11 + $0x10] sm:$0xff]
        %v7742 = vld [vmem:[%s11 + $0x18] sm:$0xff]
        %v7743 = vld [vmem:[%s11 + $0x20] sm:$0xff]
        %v7744 = vld [vmem:[%s11 + $0x28] sm:$0xff]
        %v7745 = vld [vmem:[%s11 + $0x30] sm:$0xff]
        %v7746 = vld [vmem:[%s11 + $0x38] sm:$0xff]
        %v7747 = vld [vmem:[%s11 + $0x40] sm:$0xff]
        %v7748 = vld [vmem:[%s11 + $0x48] sm:$0xff]
        %v7749 = vld [vmem:[%s11 + $0x50] sm:$0xff]
        %v7750 = vld [vmem:[%s11 + $0x58] sm:$0xff]
        %v7751 = vld [vmem:[%s11 + $0x60] sm:$0xff]
        %v7752 = vld [vmem:[%s11 + $0x68] sm:$0xff]
        %v7753 = vld [vmem:[%s11 + $0x70] sm:$0xff]
        %v7754 = vld [vmem:[%s11 + $0x78] sm:$0xff]
        %v7755 = vld [vmem:[%s11 + $0x80] sm:$0xff]
        %v7756 = vld [vmem:[%s11 + $0x88] sm:$0xff]
        %v7757 = vld [vmem:[%s11 + $0x90] sm:$0xff]
        %v7758 = vld [vmem:[%s11 + $0x98] sm:$0xff]
        %v7759 = vld [vmem:[%s11 + $0xa0] sm:$0xff]
        %v7760 = vld [vmem:[%s11 + $0xa8] sm:$0xff]
        %v7761 = vld [vmem:[%s11 + $0xb0] sm:$0xff]
        %v7762 = vld [vmem:[%s11 + $0xb8] sm:$0xff]
        %v7763 = vld [vmem:[%s11 + $0xc0] sm:$0xff]
        %v7764 = vld [vmem:[%s11 + $0xc8] sm:$0xff]
        %v7765 = vld [vmem:[%s11 + $0xd0] sm:$0xff]
        %v7766 = vld [vmem:[%s11 + $0xd8] sm:$0xff]
        %v7767 = vld [vmem:[%s11 + $0xe0] sm:$0xff]
        %v7768 = vld [vmem:[%s11 + $0xe8] sm:$0xff]
        %v7769 = vld [vmem:[%s11 + $0xf0] sm:$0xff]
        %v7770 = vld [vmem:[%s11 + $0xf8] sm:$0xff]
        %v7771 = vld [vmem:[%s11 + $0x100] sm:$0xff]
        %v7772 = vld [vmem:[%s11 + $0x108] sm:$0xff]
        %v7773 = vld [vmem:[%s11 + $0x110] sm:$0xff]
        %v7774 = vld [vmem:[%s11 + $0x118] sm:$0xff]
        %v7775 = vld [vmem:[%s11 + $0x120] sm:$0xff]
        %v7776 = vld [vmem:[%s11 + $0x128] sm:$0xff]
        %v7777 = vld [vmem:[%s11 + $0x130] sm:$0xff]
        %v7778 = vld [vmem:[%s11 + $0x138] sm:$0xff]
        %v7779 = vld [vmem:[%s11 + $0x140] sm:$0xff]
        %v7780 = vld [vmem:[%s11 + $0x148] sm:$0xff]
        %v7781 = vld [vmem:[%s11 + $0x150] sm:$0xff]
        %v7782 = vld [vmem:[%s11 + $0x158] sm:$0xff]
        %v7783 = vld [vmem:[%s11 + $0x160] sm:$0xff]
        %v7784 = vld [vmem:[%s11 + $0x168] sm:$0xff]
        %v7785 = vld [vmem:[%s11 + $0x170] sm:$0xff]
        %v7786 = vld [vmem:[%s11 + $0x178] sm:$0xff]
        %v7787 = vld [vmem:[%s11 + $0x180] sm:$0xff]
        %v7788 = vld [vmem:[%s11 + $0x188] sm:$0xff]
        %v7789 = vld [vmem:[%s11 + $0x190] sm:$0xff]
        %v7790 = vld [vmem:[%s11 + $0x198] sm:$0xff]
        %v7791 = vld [vmem:[%s11 + $0x1a0] sm:$0xff]
        %v7792 = vld [vmem:[%s11 + $0x1a8] sm:$0xff]
        %v7793 = vld [vmem:[%s11 + $0x1b0] sm:$0xff]
        %v7794 = vld [vmem:[%s11 + $0x1b8] sm:$0xff]
        %v7795 = vld [vmem:[%s11 + $0x1c0] sm:$0xff]
        %v7796 = vld [vmem:[%s11 + $0x1c8] sm:$0xff]
        %v7797 = vld [vmem:[%s11 + $0x1d0] sm:$0xff]
        %v7798 = vld [vmem:[%s11 + $0x1d8] sm:$0xff]
        %v7799 = vld [vmem:[%s11 + $0x1e0] sm:$0xff]
        %v7800 = vld [vmem:[%s11 + $0x1e8] sm:$0xff]
        %v7801 = vld [vmem:[%s11 + $0x1f0] sm:$0xff]
        %v7802 = vld [vmem:[%s11 + $0x1f8] sm:$0xff]
        %v7803 = vld [vmem:[%s12] sm:$0x3]
        %v7805 = vperm.slane %v7803, 0
        %v7806 = vperm.slane %v7803, 1
        %7809 = vmatpush.msra.mxu0 %v7769
        %7810 = vmatpush.msra.mxu0 %v7767
        %7811 = vmatpush.msra.mxu0 %v7765
        %7812 = vmatpush.msra.mxu0 %v7763
        %7813 = vmatpush.msra.mxu0 %v7761
        %7814 = vmatpush.msra.mxu0 %v7759
        %7815 = vmatpush.msra.mxu0 %v7757
        %7816 = vmatpush.msra.mxu0 %v7755
        %7817 = vmatpush.msra.mxu0 %v7753
        %7818 = vmatpush.msra.mxu0 %v7751
        %7819 = vmatpush.msra.mxu0 %v7749
        %7820 = vmatpush.msra.mxu0 %v7747
        %7821 = vmatpush.msra.mxu0 %v7745
        %7822 = vmatpush.msra.mxu0 %v7743
        %7823 = vmatpush.msra.mxu0 %v7741
        %7824 = vmatpush.msra.mxu0 %v7739
        %7825 = vmatmul.f32.gmra.mxu0 %v7737
        %v7826 = vpop.f32.mrf.mxu0
        %v7827 = vadd.f32 %v7805, %v7826
        %7828 = vdwg.mxu0
        %7829 = vmatpush.msra.mxu0 %v7801
        %7830 = vmatpush.msra.mxu0 %v7799
        %7831 = vmatpush.msra.mxu0 %v7797
        %7832 = vmatpush.msra.mxu0 %v7795
        %7833 = vmatpush.msra.mxu0 %v7793
        %7834 = vmatpush.msra.mxu0 %v7791
        %7835 = vmatpush.msra.mxu0 %v7789
        %7836 = vmatpush.msra.mxu0 %v7787
        %7837 = vmatpush.msra.mxu0 %v7785
        %7838 = vmatpush.msra.mxu0 %v7783
        %7839 = vmatpush.msra.mxu0 %v7781
        %7840 = vmatpush.msra.mxu0 %v7779
        %7841 = vmatpush.msra.mxu0 %v7777
        %7842 = vmatpush.msra.mxu0 %v7775
        %7843 = vmatpush.msra.mxu0 %v7773
        %7844 = vmatpush.msra.mxu0 %v7771
        %7845 = vmatmul.f32.gmra.mxu0 %v7738
        %v7846 = vpop.f32.mrf.mxu0
        %v7847 = vadd.f32 %v7827, %v7846
        %7848 = vdwg.mxu0
        %7849 = vmatpush.msra.mxu0 %v7770
        %7850 = vmatpush.msra.mxu0 %v7768
        %7851 = vmatpush.msra.mxu0 %v7766
        %7852 = vmatpush.msra.mxu0 %v7764
        %7853 = vmatpush.msra.mxu0 %v7762
        %7854 = vmatpush.msra.mxu0 %v7760
        %7855 = vmatpush.msra.mxu0 %v7758
        %7856 = vmatpush.msra.mxu0 %v7756
        %7857 = vmatpush.msra.mxu0 %v7754
        %7858 = vmatpush.msra.mxu0 %v7752
        %7859 = vmatpush.msra.mxu0 %v7750
        %7860 = vmatpush.msra.mxu0 %v7748
        %7861 = vmatpush.msra.mxu0 %v7746
        %7862 = vmatpush.msra.mxu0 %v7744
        %7863 = vmatpush.msra.mxu0 %v7742
        %7864 = vmatpush.msra.mxu0 %v7740
        %7865 = vmatmul.f32.gmra.mxu0 %v7737
        %v7866 = vpop.f32.mrf.mxu0
        %v7867 = vadd.f32 %v7806, %v7866
        %7868 = vdwg.mxu0
        %7869 = vmatpush.msra.mxu0 %v7802
        %7870 = vmatpush.msra.mxu0 %v7800
        %7871 = vmatpush.msra.mxu0 %v7798
        %7872 = vmatpush.msra.mxu0 %v7796
        %7873 = vmatpush.msra.mxu0 %v7794
        %7874 = vmatpush.msra.mxu0 %v7792
        %7875 = vmatpush.msra.mxu0 %v7790
        %7876 = vmatpush.msra.mxu0 %v7788
        %7877 = vmatpush.msra.mxu0 %v7786
        %7878 = vmatpush.msra.mxu0 %v7784
        %7879 = vmatpush.msra.mxu0 %v7782
        %7880 = vmatpush.msra.mxu0 %v7780
        %7881 = vmatpush.msra.mxu0 %v7778
        %7882 = vmatpush.msra.mxu0 %v7776
        %7883 = vmatpush.msra.mxu0 %v7774
        %7884 = vmatpush.msra.mxu0 %v7772
        %7885 = vmatmul.f32.gmra.mxu0 %v7738
        %v7886 = vpop.f32.mrf.mxu0
        %v7887 = vadd.f32 %v7867, %v7886
        %7888 = vdwg.mxu0
        %v7889 = vmax.f32 %v7847, 0.0
        %v7890 = vmax.f32 %v7887, 0.0
        %v7891 = vld [vmem:[%s13] sm:$0xff]
        %v7892 = vld [vmem:[%s13 + $0x8] sm:$0xff]
        %v7893 = vld [vmem:[%s13 + $0x10] sm:$0xff]
        %v7894 = vld [vmem:[%s13 + $0x18] sm:$0xff]
        %v7895 = vld [vmem:[%s13 + $0x20] sm:$0xff]
        %v7896 = vld [vmem:[%s13 + $0x28] sm:$0xff]
        %v7897 = vld [vmem:[%s13 + $0x30] sm:$0xff]
        %v7898 = vld [vmem:[%s13 + $0x38] sm:$0xff]
        %v7899 = vld [vmem:[%s13 + $0x40] sm:$0xff]
        %v7900 = vld [vmem:[%s13 + $0x48] sm:$0xff]
        %v7901 = vld [vmem:[%s13 + $0x50] sm:$0xff]
        %v7902 = vld [vmem:[%s13 + $0x58] sm:$0xff]
        %v7903 = vld [vmem:[%s13 + $0x60] sm:$0xff]
        %v7904 = vld [vmem:[%s13 + $0x68] sm:$0xff]
        %v7905 = vld [vmem:[%s13 + $0x70] sm:$0xff]
        %v7906 = vld [vmem:[%s13 + $0x78] sm:$0xff]
        %v7907 = vld [vmem:[%s13 + $0x80] sm:$0xff]
        %v7908 = vld [vmem:[%s13 + $0x88] sm:$0xff]
        %v7909 = vld [vmem:[%s13 + $0x90] sm:$0xff]
        %v7910 = vld [vmem:[%s13 + $0x98] sm:$0xff]
        %v7911 = vld [vmem:[%s13 + $0xa0] sm:$0xff]
        %v7912 = vld [vmem:[%s13 + $0xa8] sm:$0xff]
        %v7913 = vld [vmem:[%s13 + $0xb0] sm:$0xff]
        %v7914 = vld [vmem:[%s13 + $0xb8] sm:$0xff]
        %v7915 = vld [vmem:[%s13 + $0xc0] sm:$0xff]
        %v7916 = vld [vmem:[%s13 + $0xc8] sm:$0xff]
        %v7917 = vld [vmem:[%s13 + $0xd0] sm:$0xff]
        %v7918 = vld [vmem:[%s13 + $0xd8] sm:$0xff]
        %v7919 = vld [vmem:[%s13 + $0xe0] sm:$0xff]
        %v7920 = vld [vmem:[%s13 + $0xe8] sm:$0xff]
        %v7921 = vld [vmem:[%s13 + $0xf0] sm:$0xff]
        %v7922 = vld [vmem:[%s13 + $0xf8] sm:$0xff]
        %v7923 = vld [vmem:[%s14] sm:$0x1]
        %7924 = vmatpush.msra.mxu0 %v7906
        %7925 = vmatpush.msra.mxu0 %v7905
        %7926 = vmatpush.msra.mxu0 %v7904
        %7927 = vmatpush.msra.mxu0 %v7903
        %7928 = vmatpush.msra.mxu0 %v7902
        %7929 = vmatpush.msra.mxu0 %v7901
        %7930 = vmatpush.msra.mxu0 %v7900
        %7931 = vmatpush.msra.mxu0 %v7899
        %7932 = vmatpush.msra.mxu0 %v7898
        %7933 = vmatpush.msra.mxu0 %v7897
        %7934 = vmatpush.msra.mxu0 %v7896
        %7935 = vmatpush.msra.mxu0 %v7895
        %7936 = vmatpush.msra.mxu0 %v7894
        %7937 = vmatpush.msra.mxu0 %v7893
        %7938 = vmatpush.msra.mxu0 %v7892
        %7939 = vmatpush.msra.mxu0 %v7891
        %7940 = vmatmul.f32.gmra.mxu0 %v7889
        %v7941 = vpop.f32.mrf.mxu0
        %v7942 = vadd.f32 %v7923, %v7941
        %7943 = vdwg.mxu0
        %7944 = vmatpush.msra.mxu0 %v7922
        %7945 = vmatpush.msra.mxu0 %v7921
        %7946 = vmatpush.msra.mxu0 %v7920
        %7947 = vmatpush.msra.mxu0 %v7919
        %7948 = vmatpush.msra.mxu0 %v7918
        %7949 = vmatpush.msra.mxu0 %v7917
        %7950 = vmatpush.msra.mxu0 %v7916
        %7951 = vmatpush.msra.mxu0 %v7915
        %7952 = vmatpush.msra.mxu0 %v7914
        %7953 = vmatpush.msra.mxu0 %v7913
        %7954 = vmatpush.msra.mxu0 %v7912
        %7955 = vmatpush.msra.mxu0 %v7911
        %7956 = vmatpush.msra.mxu0 %v7910
        %7957 = vmatpush.msra.mxu0 %v7909
        %7958 = vmatpush.msra.mxu0 %v7908
        %7959 = vmatpush.msra.mxu0 %v7907
        %7960 = vmatmul.f32.gmra.mxu0 %v7890
        %v7961 = vpop.f32.mrf.mxu0
        %v7962 = vadd.f32 %v7942, %v7961
        %7963 = vdwg.mxu0
        %7964 = vst [vmem:[%s486] sm:$0x1] %v7962
        %s7965 = sand.u32 %s357, 1
        %s7966 = scalar_lea.sflag [#allocation8], %s7965
        %s7967 = sand.u32 %s357, 1
        %s7968 = scalar_lea.vmem [#allocation7], %s7967
        // Predicated region
        $region81: #{depth_maps_classifier_forward.1} parent=79 // pred_check
          %p7969 = pneg %p367
        $region82: #{depth_maps_classifier_forward.1} parent=79 // pred_check_branch
          %7971 = sbr.rel (%p7969) target = $region84
        $region83: #{depth_maps_classifier_forward.1} parent=79 // pred_region
          %7973 = vsyncadd %s7966, 0
          %s7974 = scalar_lea.hbm %s15, %s29
          %s7976 = sshll.u32 %s7968, 4
          %s7977 = int_to_ptr.vmem [resolvable:$true] %s7976
          %s7978 = sshll.u32 %s7974, 4
          %s7979 = int_to_ptr.hbm [resolvable:$true] %s7978
          %7981 = dma.vmem_to_hbm [thread:$0]  %s7977, 16, %s7979, %s7966
        $region84: #{depth_maps_classifier_forward.1} parent=79 // pred_fallthru
          _
      $region80: #{depth_maps_classifier_forward.1} parent=5 // pred_fallthru
        _
      %p7982 = scmp.le.s32.totalorder 2, %s24
      // Predicated region
      $region85: #{depth_maps_classifier_forward.1} parent=5 // pred_check
        %p7983 = pneg %p7982
      $region86: #{depth_maps_classifier_forward.1} parent=5 // pred_check_branch
        %7985 = sbr.rel (%p7983) target = $region88
      $region87: #{depth_maps_classifier_forward.1} parent=5 // pred_region
        %s7986 = ssub.s32 %s24, 2
        // Predicated region
        $region89: #{depth_maps_classifier_forward.1} parent=87 // pred_check
          %p7987 = pneg %p373
        $region90: #{depth_maps_classifier_forward.1} parent=87 // pred_check_branch
          %7989 = sbr.rel (%p7987) target = $region92
        $region91: #{depth_maps_classifier_forward.1} parent=87 // pred_region
          %s7990 = sand.u32 %s358, 1
          %s7991 = scalar_lea.sflag [#allocation8], %s7990
          %s7992 = sand.u32 %s358, 1
          %s7993 = scalar_lea.vmem [#allocation7], %s7992
          %7995 = dma.done %s7991, 16
        $region92: #{depth_maps_classifier_forward.1} parent=87 // pred_fallthru
          _
      $region88: #{depth_maps_classifier_forward.1} parent=5 // pred_fallthru
        _
    $region6: #{depth_maps_classifier_forward.1} parent=1 // loop_footer
      %s28 = sadd.s32 1, %s24
    $region7: #{depth_maps_classifier_forward.1} parent=1 // loop_footer_branch
      %23 = sbr.rel target = $region3
    $region8: #{depth_maps_classifier_forward.1} parent=1 // loop_exit
      _
    %7996 = vsyncpa [#allocation8], 1
    %s7997 = scalar_lea.sflag [#allocation8], 1
    %7998 = vsyncpa %s7997, 1

</llo_original>
